<compile_context>
chip_gen: v6e
topology: v6e:2x2x1
jax: 0.10.0
libtpu: 0.0.40
codegen_flags: <defaults>
</compile_context>

<pallas_src>
import functools

import jax
import jax.numpy as jnp
from jax import lax
from jax.experimental import pallas as pl
from jax.experimental.pallas import tpu as pltpu

LANE = 128  # TPU lane-tile width (last-dim alignment)


def _round_up(n, m):
    return (n + m - 1) // m * m


def _layernorm(v, w, b, eps=1e-5):
    mu = jnp.mean(v, axis=-1, keepdims=True)
    var = jnp.mean((v - mu) ** 2, axis=-1, keepdims=True)
    return (v - mu) * lax.rsqrt(var + eps) * w + b


def transformer_block_kernel(x_ref, ln1w_ref, ln1b_ref, wqkv_ref,
                             ln2w_ref, ln2b_ref, w1_ref, b1_ref, w2_ref, b2_ref,
                             out_ref, *, num_heads, head_size, seq_len,
                             seqs_per_block, q_off, k_off, v_off):
    H, K, T, BT = num_heads, head_size, seq_len, seqs_per_block
    x = x_ref[...]                                   # (R, D) f32, R = BT*T folded rows
    R, D = x.shape
    scale = 1.0 / (float(K) ** 0.5)

    # ---- LayerNorm 1 (f32 stats) + ONE fused QKV projection over all R rows ----
    xn1 = _layernorm(x, ln1w_ref[0], ln1b_ref[0])
    qkv = jnp.dot(xn1.astype(jnp.bfloat16), wqkv_ref[...],
                  preferred_element_type=jnp.float32)          # (R, padded qkv cols)

    # Segment slices: every start offset is 128-lane aligned (wrapper zero-pads).
    q_all = qkv[:, q_off:q_off + H * K]                        # (R, H*K) f32
    k_all = qkv[:, k_off:k_off + H * K]                        # (R, H*K) f32
    v_all = qkv[:, v_off:v_off + H * D].astype(jnp.bfloat16)   # (R, H*D), cast once

    # Head-major 3-D stacks, hoisted out of the per-sequence loop (done once per step).
    # Scores stay f32 (tiny matmuls, better numerics, no extra bf16 packs on v5e's VPU).
    q3 = jnp.stack([q_all[:, h * K:(h + 1) * K] for h in range(H)], axis=0)  # (H, R, K)
    k3 = jnp.stack([k_all[:, h * K:(h + 1) * K] for h in range(H)], axis=0)  # (H, R, K)
    v3 = jnp.stack([v_all[:, h * D:(h + 1) * D] for h in range(H)], axis=0)  # (H, R, D) bf16

    # Causal mask: built once per grid step (2 iotas + compare), broadcast over heads.
    row = lax.broadcasted_iota(jnp.int32, (T, T), 0)
    col = lax.broadcasted_iota(jnp.int32, (T, T), 1)
    causal = (col <= row)[None]                                # (1, T, T)

    # Only the tiny causal-attention math loops per sequence; scores and prob@v are
    # each ONE head-batched matmul rather than 2*H tiny per-head MXU pushes.
    attn_rows = []
    for s in range(BT):                                        # static unroll, BT small
        rs, re = s * T, (s + 1) * T
        qs, ks, vs = q3[:, rs:re, :], k3[:, rs:re, :], v3[:, rs:re, :]
        sc = jnp.einsum('hqk,hsk->hqs', qs, ks,
                        preferred_element_type=jnp.float32)    # (H, T, T) f32
        # masked_fill(-inf) then /sqrt(K)  ==  scale-then-mask (since -inf/sqrt = -inf)
        sc = jnp.where(causal, sc * scale, -jnp.inf)
        m = jnp.max(sc, axis=-1, keepdims=True)
        p = jnp.exp(sc - m)
        p = p * pl.reciprocal(jnp.sum(p, axis=-1, keepdims=True), approx=True)
        o = jnp.einsum('hqs,hsd->hqd', p.astype(jnp.bfloat16), vs,
                       preferred_element_type=jnp.float32)     # (H, T, D)
        attn_rows.append(jnp.sum(o, axis=0))                   # head-sum: H-1 VPU adds
    attn = attn_rows[0] if BT == 1 else jnp.concatenate(attn_rows, axis=0)  # (R, D)

    x1 = x + attn

    # ---- LayerNorm 2 + feed-forward, again on the full folded (R, D) slab ----
    xn2 = _layernorm(x1, ln2w_ref[0], ln2b_ref[0])
    hdn = jnp.dot(xn2.astype(jnp.bfloat16), w1_ref[...],
                  preferred_element_type=jnp.float32) + b1_ref[0]
    hdn = jnp.maximum(hdn, 0.0)
    y = jnp.dot(hdn.astype(jnp.bfloat16), w2_ref[...],
                preferred_element_type=jnp.float32) + b2_ref[0]

    out_ref[...] = x1 + y


def _pick_seqs_per_block(batch, seq_len, target_rows):
    """Largest divisor of `batch` with bt*T <= target_rows, preferring >= 2 grid steps."""
    bt = 1
    for cand in range(1, batch + 1):
        if batch % cand == 0 and cand * seq_len <= target_rows:
            bt = cand
    if batch // bt < 2:              # keep both v7x TensorCores fed when possible
        for cand in range(bt, 0, -1):
            if batch % cand == 0 and batch // cand >= 2:
                bt = cand
                break
    return bt


def transformer_block(x, params, *, target_rows=128):
    # target_rows: row-tile target per grid step (128 suits v5e's MXU; use 256 on v6e/v7x).
    B, T, D = x.shape
    H, K, _ = params["wq"].shape
    D4 = params["w1"].shape[0]

    # ---- weight prep in plain JAX (free layout plumbing, no in-kernel transposes) ----
    # nn.Linear applies x @ W.T, so pre-transpose to input-major; q/k/v segments are
    # zero-padded to 128-lane boundaries so in-kernel segment slices are tile-aligned.
    seg_q = _round_up(H * K, LANE)
    seg_k = _round_up(H * K, LANE)
    seg_v = _round_up(H * D, LANE)
    wq_t = jnp.transpose(params["wq"], (2, 0, 1)).reshape(D, H * K)
    wk_t = jnp.transpose(params["wk"], (2, 0, 1)).reshape(D, H * K)
    wv_t = jnp.transpose(params["wv"], (2, 0, 1)).reshape(D, H * D)
    pad = lambda w, seg: jnp.pad(w, ((0, 0), (0, seg - w.shape[1])))
    wqkv = jnp.concatenate([pad(wq_t, seg_q), pad(wk_t, seg_k), pad(wv_t, seg_v)],
                           axis=1).astype(jnp.bfloat16)          # (D, seg_q+seg_k+seg_v)
    w1_t = params["w1"].T.astype(jnp.bfloat16)                   # (D, 4D)
    w2_t = params["w2"].T.astype(jnp.bfloat16)                   # (4D, D)
    qkv_cols = seg_q + seg_k + seg_v

    # ---- row-block tiling: fold (batch, seq) into the matmul M dimension ----
    BT = _pick_seqs_per_block(B, T, target_rows)
    R = BT * T
    num_blocks = B // BT
    if num_blocks > 1 and R % 8 != 0:         # satisfy the (8, 128) tiling rule
        BT, R, num_blocks = B, B * T, 1
    x2 = x.reshape(B * T, D)

    kernel = functools.partial(
        transformer_block_kernel, num_heads=H, head_size=K, seq_len=T,
        seqs_per_block=BT, q_off=0, k_off=seg_q, v_off=seg_q + seg_k)

    flops = 2 * B * T * (D * qkv_cols + 2 * D * D4) + 2 * B * H * T * T * (K + D)
    transcendentals = B * H * T * T
    bytes_accessed = (2 * B * T * D * 4
                      + (D * qkv_cols + D * D4 + D4 * D) * 2
                      + (4 * D + D4 + D) * 4)
    cost = pl.CostEstimate(flops=flops, transcendentals=transcendentals,
                           bytes_accessed=bytes_accessed)

    def run(weight_mode):
        def wspec(shape):
            # Grid-invariant weight block, resident for the whole grid.
            if weight_mode is None:
                return pl.BlockSpec(shape, lambda i: tuple(0 for _ in shape))
            return pl.BlockSpec(shape, lambda i: tuple(0 for _ in shape),
                                pipeline_mode=weight_mode)
        return pl.pallas_call(
            kernel,
            out_shape=jax.ShapeDtypeStruct((B * T, D), jnp.float32),
            grid=(num_blocks,),
            in_specs=[
                pl.BlockSpec((R, D), lambda i: (i, 0)),   # folded activation rows
                wspec((1, D)), wspec((1, D)),             # ln1 weight / bias
                wspec((D, qkv_cols)),                     # fused, 128-padded qkv (bf16)
                wspec((1, D)), wspec((1, D)),             # ln2 weight / bias
                wspec((D, D4)), wspec((1, D4)),           # ffn W1^T (bf16), b1
                wspec((D4, D)), wspec((1, D)),            # ffn W2^T (bf16), b2
            ],
            out_specs=pl.BlockSpec((R, D), lambda i: (i, 0)),
            compiler_params=pltpu.CompilerParams(dimension_semantics=("parallel",)),
            cost_estimate=cost,
        )(x2, params["ln1_w"], params["ln1_b"], wqkv,
          params["ln2_w"], params["ln2_b"], w1_t, params["b1"], w2_t, params["b2"])

    try:
        # Single-buffer the grid-invariant weights (halves their VMEM footprint —
        # matters on v7x's 64 MiB VMEM).  Fall back if this build rejects it.
        out2 = run(pl.Buffered(1))
    except Exception:  # pragma: no cover — depends on the Pallas build
        out2 = run(None)

    # TODO(synk): at real model dims (D ~ 4096) add an "arbitrary" reduction grid axis
    # that K-tiles the FFN (and QKV) weights with a VMEM f32 accumulator so the bf16
    # weights need not be fully resident (v7x 64 MiB VMEM); unnecessary at these shapes.
    return out2.reshape(B, T, D)


def reference_block(x, p):
    """Pure-JAX f32 reference mirroring the PyTorch module (for verification)."""
    B, T, D = x.shape
    H, K, _ = p["wq"].shape

    def ln(v, w, b):
        mu = jnp.mean(v, axis=-1, keepdims=True)
        var = jnp.mean((v - mu) ** 2, axis=-1, keepdims=True)
        return (v - mu) / jnp.sqrt(var + 1e-5) * w[0] + b[0]

    xn1 = ln(x, p["ln1_w"], p["ln1_b"])
    causal = jnp.tril(jnp.ones((T, T), bool))
    attn_sum = jnp.zeros_like(x)
    for h in range(H):
        q = xn1 @ p["wq"][h].T
        k = xn1 @ p["wk"][h].T
        v = xn1 @ p["wv"][h].T
        s = q @ jnp.swapaxes(k, -1, -2)
        s = jnp.where(causal[None], s, -jnp.inf) / (float(K) ** 0.5)
        s = jax.nn.softmax(s, axis=-1)
        attn_sum = attn_sum + s @ v
    x1 = x + attn_sum
    xn2 = ln(x1, p["ln2_w"], p["ln2_b"])
    hdn = jax.nn.relu(xn2 @ p["w1"].T + p["b1"][0])
    y = hdn @ p["w2"].T + p["b2"][0]
    return x1 + y


if __name__ == "__main__":
    # Small shapes implied by the forward: (B, T, D) with D divisible by num_heads.
    # B=8 so the row-folding (BT=4 sequences per grid step) and the 2-step parallel
    # grid axis (both v7x TensorCores) are both exercised.
    B, T, D, H = 8, 8, 32, 4
    K = D // H
    D4 = 4 * D

    keys = jax.random.split(jax.random.PRNGKey(0), 16)
    x = jax.random.normal(keys[0], (B, T, D), jnp.float32)

    params = {
        "ln1_w": (1.0 + 0.1 * jax.random.normal(keys[1], (1, D))).astype(jnp.float32),
        "ln1_b": (0.1 * jax.random.normal(keys[2], (1, D))).astype(jnp.float32),
        "ln2_w": (1.0 + 0.1 * jax.random.normal(keys[3], (1, D))).astype(jnp.float32),
        "ln2_b": (0.1 * jax.random.normal(keys[4], (1, D))).astype(jnp.float32),
        "wq": (jax.random.normal(keys[5], (H, K, D)) * (D ** -0.5)).astype(jnp.float32),
        "wk": (jax.random.normal(keys[6], (H, K, D)) * (D ** -0.5)).astype(jnp.float32),
        "wv": (jax.random.normal(keys[7], (H, D, D)) * (D ** -0.5)).astype(jnp.float32),
        "w1": (jax.random.normal(keys[8], (D4, D)) * (D ** -0.5)).astype(jnp.float32),
        "b1": (0.1 * jax.random.normal(keys[9], (1, D4))).astype(jnp.float32),
        "w2": (jax.random.normal(keys[10], (D, D4)) * (D4 ** -0.5)).astype(jnp.float32),
        "b2": (0.1 * jax.random.normal(keys[11], (1, D))).astype(jnp.float32),
    }

    out = transformer_block(x, params)
    jax.block_until_ready(out)

    ref = reference_block(x, params)
    assert out.shape == (B, T, D)
    # bf16 MXU inputs -> compare against the f32 reference with a relative-norm check.
    rel_err = jnp.linalg.norm(out - ref) / jnp.linalg.norm(ref)
    assert float(rel_err) < 5e-2, f"mismatch vs JAX reference: rel_err={float(rel_err)}"

    print("KERNEL_OK")
</pallas_src>

<mosaic_0001>
module attributes {stable_mosaic.version = 11 : i64} {
  func.func @transformer_block_kernel(%arg0: i32, %arg1: memref<32x32xf32, #tpu.memory_space<vmem>>, %arg2: memref<1x32xf32, #tpu.memory_space<vmem>>, %arg3: memref<1x32xf32, #tpu.memory_space<vmem>>, %arg4: memref<32x384xbf16, #tpu.memory_space<vmem>>, %arg5: memref<1x32xf32, #tpu.memory_space<vmem>>, %arg6: memref<1x32xf32, #tpu.memory_space<vmem>>, %arg7: memref<32x128xbf16, #tpu.memory_space<vmem>>, %arg8: memref<1x128xf32, #tpu.memory_space<vmem>>, %arg9: memref<128x32xbf16, #tpu.memory_space<vmem>>, %arg10: memref<1x32xf32, #tpu.memory_space<vmem>>, %arg11: memref<32x32xf32, #tpu.memory_space<vmem>>) attributes {dimension_semantics = [#tpu.dimension_semantics<parallel>], iteration_bounds = array<i64: 2>, scalar_prefetch = 0 : i64, scratch_operands = 0 : i64, tpu.core_type = #tpu.core_type<tc>, window_params = [{transform_indices = @transform_0, window_bounds = array<i64: 32, 32>}, {pipeline_mode = #tpu.pipeline_mode<synchronous>, transform_indices = @transform_1, window_bounds = array<i64: 1, 32>}, {pipeline_mode = #tpu.pipeline_mode<synchronous>, transform_indices = @transform_2, window_bounds = array<i64: 1, 32>}, {pipeline_mode = #tpu.pipeline_mode<synchronous>, transform_indices = @transform_3, window_bounds = array<i64: 32, 384>}, {pipeline_mode = #tpu.pipeline_mode<synchronous>, transform_indices = @transform_4, window_bounds = array<i64: 1, 32>}, {pipeline_mode = #tpu.pipeline_mode<synchronous>, transform_indices = @transform_5, window_bounds = array<i64: 1, 32>}, {pipeline_mode = #tpu.pipeline_mode<synchronous>, transform_indices = @transform_6, window_bounds = array<i64: 32, 128>}, {pipeline_mode = #tpu.pipeline_mode<synchronous>, transform_indices = @transform_7, window_bounds = array<i64: 1, 128>}, {pipeline_mode = #tpu.pipeline_mode<synchronous>, transform_indices = @transform_8, window_bounds = array<i64: 128, 32>}, {pipeline_mode = #tpu.pipeline_mode<synchronous>, transform_indices = @transform_9, window_bounds = array<i64: 1, 32>}, {transform_indices = @transform_10, window_bounds = array<i64: 32, 32>}]} {
    %c0 = arith.constant 0 : index
    %c0_0 = arith.constant 0 : index
    %0 = vector.load %arg1[%c0, %c0_0] : memref<32x32xf32, #tpu.memory_space<vmem>>, vector<32x32xf32>
    %c0_1 = arith.constant 0 : index
    %c0_2 = arith.constant 0 : index
    %1 = vector.load %arg2[%c0_1, %c0_2] : memref<1x32xf32, #tpu.memory_space<vmem>>, vector<1x32xf32>
    %2 = vector.shape_cast %1 : vector<1x32xf32> to vector<32xf32>
    %c0_3 = arith.constant 0 : index
    %c0_4 = arith.constant 0 : index
    %3 = vector.load %arg3[%c0_3, %c0_4] : memref<1x32xf32, #tpu.memory_space<vmem>>, vector<1x32xf32>
    %4 = vector.shape_cast %3 : vector<1x32xf32> to vector<32xf32>
    %cst = arith.constant dense<0.000000e+00> : vector<32xf32>
    %5 = vector.multi_reduction <add>, %0, %cst [1] : vector<32x32xf32> to vector<32xf32>
    %6 = vector.shape_cast %5 : vector<32xf32> to vector<32x1xf32>
    %cst_5 = arith.constant 3.200000e+01 : f32
    %7 = vector.broadcast %cst_5 : f32 to vector<32x1xf32>
    %8 = arith.divf %6, %7 : vector<32x1xf32>
    %9 = vector.broadcast %8 : vector<32x1xf32> to vector<32x32xf32>
    %10 = arith.subf %0, %9 : vector<32x32xf32>
    %11 = arith.mulf %10, %10 : vector<32x32xf32>
    %cst_6 = arith.constant dense<0.000000e+00> : vector<32xf32>
    %12 = vector.multi_reduction <add>, %11, %cst_6 [1] : vector<32x32xf32> to vector<32xf32>
    %13 = vector.shape_cast %12 : vector<32xf32> to vector<32x1xf32>
    %cst_7 = arith.constant 3.200000e+01 : f32
    %14 = vector.broadcast %cst_7 : f32 to vector<32x1xf32>
    %15 = arith.divf %13, %14 : vector<32x1xf32>
    %16 = vector.broadcast %8 : vector<32x1xf32> to vector<32x32xf32>
    %17 = arith.subf %0, %16 : vector<32x32xf32>
    %cst_8 = arith.constant 9.99999974E-6 : f32
    %18 = vector.broadcast %cst_8 : f32 to vector<32x1xf32>
    %19 = arith.addf %15, %18 : vector<32x1xf32>
    %20 = math.rsqrt %19 : vector<32x1xf32>
    %21 = vector.broadcast %20 : vector<32x1xf32> to vector<32x32xf32>
    %22 = arith.mulf %17, %21 : vector<32x32xf32>
    %23 = vector.shape_cast %2 : vector<32xf32> to vector<1x32xf32>
    %24 = vector.broadcast %23 : vector<1x32xf32> to vector<32x32xf32>
    %25 = arith.mulf %22, %24 : vector<32x32xf32>
    %26 = vector.shape_cast %4 : vector<32xf32> to vector<1x32xf32>
    %27 = vector.broadcast %26 : vector<1x32xf32> to vector<32x32xf32>
    %28 = arith.addf %25, %27 : vector<32x32xf32>
    %29 = arith.truncf %28 : vector<32x32xf32> to vector<32x32xbf16>
    %c0_9 = arith.constant 0 : index
    %c0_10 = arith.constant 0 : index
    %30 = vector.load %arg4[%c0_9, %c0_10] : memref<32x384xbf16, #tpu.memory_space<vmem>>, vector<32x384xbf16>
    %cst_11 = arith.constant dense<0.000000e+00> : vector<32x384xf32>
    %31 = tpu.matmul %29, %30, %cst_11 {dimension_numbers = #tpu.dot_dimension_numbers<[1], [0], [0], [1], [0, 0, 1, 1], [], []>} : vector<32x32xbf16>, vector<32x384xbf16>, vector<32x384xf32> -> vector<32x384xf32>
    %32 = vector.extract_strided_slice %31 {offsets = [0, 0], sizes = [32, 32], strides = [1, 1]} : vector<32x384xf32> to vector<32x32xf32>
    %33 = vector.extract_strided_slice %31 {offsets = [0, 128], sizes = [32, 32], strides = [1, 1]} : vector<32x384xf32> to vector<32x32xf32>
    %34 = vector.extract_strided_slice %31 {offsets = [0, 256], sizes = [32, 128], strides = [1, 1]} : vector<32x384xf32> to vector<32x128xf32>
    %35 = arith.truncf %34 : vector<32x128xf32> to vector<32x128xbf16>
    %36 = vector.extract_strided_slice %32 {offsets = [0, 0], sizes = [32, 8], strides = [1, 1]} : vector<32x32xf32> to vector<32x8xf32>
    %37 = vector.extract_strided_slice %32 {offsets = [0, 8], sizes = [32, 8], strides = [1, 1]} : vector<32x32xf32> to vector<32x8xf32>
    %38 = vector.extract_strided_slice %32 {offsets = [0, 16], sizes = [32, 8], strides = [1, 1]} : vector<32x32xf32> to vector<32x8xf32>
    %39 = vector.extract_strided_slice %32 {offsets = [0, 24], sizes = [32, 8], strides = [1, 1]} : vector<32x32xf32> to vector<32x8xf32>
    %40 = vector.shape_cast %36 : vector<32x8xf32> to vector<1x32x8xf32>
    %41 = vector.shape_cast %37 : vector<32x8xf32> to vector<1x32x8xf32>
    %42 = vector.shape_cast %38 : vector<32x8xf32> to vector<1x32x8xf32>
    %43 = vector.shape_cast %39 : vector<32x8xf32> to vector<1x32x8xf32>
    %44 = tpu.concatenate %40, %41, %42, %43 in 0 : vector<1x32x8xf32>, vector<1x32x8xf32>, vector<1x32x8xf32>, vector<1x32x8xf32> -> vector<4x32x8xf32>
    %45 = vector.extract_strided_slice %33 {offsets = [0, 0], sizes = [32, 8], strides = [1, 1]} : vector<32x32xf32> to vector<32x8xf32>
    %46 = vector.extract_strided_slice %33 {offsets = [0, 8], sizes = [32, 8], strides = [1, 1]} : vector<32x32xf32> to vector<32x8xf32>
    %47 = vector.extract_strided_slice %33 {offsets = [0, 16], sizes = [32, 8], strides = [1, 1]} : vector<32x32xf32> to vector<32x8xf32>
    %48 = vector.extract_strided_slice %33 {offsets = [0, 24], sizes = [32, 8], strides = [1, 1]} : vector<32x32xf32> to vector<32x8xf32>
    %49 = vector.shape_cast %45 : vector<32x8xf32> to vector<1x32x8xf32>
    %50 = vector.shape_cast %46 : vector<32x8xf32> to vector<1x32x8xf32>
    %51 = vector.shape_cast %47 : vector<32x8xf32> to vector<1x32x8xf32>
    %52 = vector.shape_cast %48 : vector<32x8xf32> to vector<1x32x8xf32>
    %53 = tpu.concatenate %49, %50, %51, %52 in 0 : vector<1x32x8xf32>, vector<1x32x8xf32>, vector<1x32x8xf32>, vector<1x32x8xf32> -> vector<4x32x8xf32>
    %54 = vector.extract_strided_slice %35 {offsets = [0, 0], sizes = [32, 32], strides = [1, 1]} : vector<32x128xbf16> to vector<32x32xbf16>
    %55 = vector.extract_strided_slice %35 {offsets = [0, 32], sizes = [32, 32], strides = [1, 1]} : vector<32x128xbf16> to vector<32x32xbf16>
    %56 = vector.extract_strided_slice %35 {offsets = [0, 64], sizes = [32, 32], strides = [1, 1]} : vector<32x128xbf16> to vector<32x32xbf16>
    %57 = vector.extract_strided_slice %35 {offsets = [0, 96], sizes = [32, 32], strides = [1, 1]} : vector<32x128xbf16> to vector<32x32xbf16>
    %58 = vector.shape_cast %54 : vector<32x32xbf16> to vector<1x32x32xbf16>
    %59 = vector.shape_cast %55 : vector<32x32xbf16> to vector<1x32x32xbf16>
    %60 = vector.shape_cast %56 : vector<32x32xbf16> to vector<1x32x32xbf16>
    %61 = vector.shape_cast %57 : vector<32x32xbf16> to vector<1x32x32xbf16>
    %62 = tpu.concatenate %58, %59, %60, %61 in 0 : vector<1x32x32xbf16>, vector<1x32x32xbf16>, vector<1x32x32xbf16>, vector<1x32x32xbf16> -> vector<4x32x32xbf16>
    %63 = tpu.iota {dimensions = array<i32: 0>} : vector<8x8xi32>
    %64 = tpu.iota {dimensions = array<i32: 1>} : vector<8x8xi32>
    %65 = arith.cmpi sle, %64, %63 : vector<8x8xi32>
    %66 = vector.shape_cast %65 : vector<8x8xi1> to vector<1x8x8xi1>
    %67 = vector.extract_strided_slice %44 {offsets = [0, 0, 0], sizes = [4, 8, 8], strides = [1, 1, 1]} : vector<4x32x8xf32> to vector<4x8x8xf32>
    %68 = vector.extract_strided_slice %53 {offsets = [0, 0, 0], sizes = [4, 8, 8], strides = [1, 1, 1]} : vector<4x32x8xf32> to vector<4x8x8xf32>
    %69 = vector.extract_strided_slice %62 {offsets = [0, 0, 0], sizes = [4, 8, 32], strides = [1, 1, 1]} : vector<4x32x32xbf16> to vector<4x8x32xbf16>
    "tpu.trace_start"() <{level = 10 : i32, message = "hqk,hsk->hqs"}> : () -> ()
    %cst_12 = arith.constant dense<0.000000e+00> : vector<4x8x8xf32>
    %70 = tpu.matmul %67, %68, %cst_12 {dimension_numbers = #tpu.dot_dimension_numbers<[2], [2], [1], [1], [0, 0, 0, 1, 1, 1], [0], [0]>} : vector<4x8x8xf32>, vector<4x8x8xf32>, vector<4x8x8xf32> -> vector<4x8x8xf32>
    "tpu.trace_stop"() : () -> ()
    %cst_13 = arith.constant 0.353553385 : f32
    %71 = vector.broadcast %cst_13 : f32 to vector<4x8x8xf32>
    %72 = arith.mulf %70, %71 : vector<4x8x8xf32>
    %cst_14 = arith.constant 0xFF800000 : f32
    %73 = vector.shape_cast %66 : vector<1x8x8xi1> to vector<1x8x8xi1>
    %74 = vector.broadcast %73 : vector<1x8x8xi1> to vector<4x8x8xi1>
    %75 = vector.broadcast %cst_14 : f32 to vector<4x8x8xf32>
    %76 = arith.select %74, %72, %75 : vector<4x8x8xi1>, vector<4x8x8xf32>
    %cst_15 = arith.constant dense<0xFF800000> : vector<4x8xf32>
    %77 = vector.multi_reduction <maximumf>, %76, %cst_15 [2] : vector<4x8x8xf32> to vector<4x8xf32>
    %78 = vector.shape_cast %77 : vector<4x8xf32> to vector<4x8x1xf32>
    %79 = vector.broadcast %78 : vector<4x8x1xf32> to vector<4x8x8xf32>
    %80 = arith.subf %76, %79 : vector<4x8x8xf32>
    %81 = math.exp %80 : vector<4x8x8xf32>
    %cst_16 = arith.constant dense<0.000000e+00> : vector<4x8xf32>
    %82 = vector.multi_reduction <add>, %81, %cst_16 [2] : vector<4x8x8xf32> to vector<4x8xf32>
    %83 = vector.shape_cast %82 : vector<4x8xf32> to vector<4x8x1xf32>
    %84 = tpu.reciprocal %83 {approx = true} : vector<4x8x1xf32> -> vector<4x8x1xf32>
    %85 = vector.broadcast %84 : vector<4x8x1xf32> to vector<4x8x8xf32>
    %86 = arith.mulf %81, %85 : vector<4x8x8xf32>
    %87 = arith.truncf %86 : vector<4x8x8xf32> to vector<4x8x8xbf16>
    "tpu.trace_start"() <{level = 10 : i32, message = "hqs,hsd->hqd"}> : () -> ()
    %cst_17 = arith.constant dense<0.000000e+00> : vector<4x8x32xf32>
    %88 = tpu.matmul %87, %69, %cst_17 {dimension_numbers = #tpu.dot_dimension_numbers<[2], [1], [1], [2], [0, 0, 0, 1, 1, 2], [0], [0]>} : vector<4x8x8xbf16>, vector<4x8x32xbf16>, vector<4x8x32xf32> -> vector<4x8x32xf32>
    "tpu.trace_stop"() : () -> ()
    %cst_18 = arith.constant dense<0.000000e+00> : vector<8x32xf32>
    %89 = vector.multi_reduction <add>, %88, %cst_18 [0] : vector<4x8x32xf32> to vector<8x32xf32>
    %90 = vector.extract_strided_slice %44 {offsets = [0, 8, 0], sizes = [4, 8, 8], strides = [1, 1, 1]} : vector<4x32x8xf32> to vector<4x8x8xf32>
    %91 = vector.extract_strided_slice %53 {offsets = [0, 8, 0], sizes = [4, 8, 8], strides = [1, 1, 1]} : vector<4x32x8xf32> to vector<4x8x8xf32>
    %92 = vector.extract_strided_slice %62 {offsets = [0, 8, 0], sizes = [4, 8, 32], strides = [1, 1, 1]} : vector<4x32x32xbf16> to vector<4x8x32xbf16>
    "tpu.trace_start"() <{level = 10 : i32, message = "hqk,hsk->hqs"}> : () -> ()
    %cst_19 = arith.constant dense<0.000000e+00> : vector<4x8x8xf32>
    %93 = tpu.matmul %90, %91, %cst_19 {dimension_numbers = #tpu.dot_dimension_numbers<[2], [2], [1], [1], [0, 0, 0, 1, 1, 1], [0], [0]>} : vector<4x8x8xf32>, vector<4x8x8xf32>, vector<4x8x8xf32> -> vector<4x8x8xf32>
    "tpu.trace_stop"() : () -> ()
    %cst_20 = arith.constant 0.353553385 : f32
    %94 = vector.broadcast %cst_20 : f32 to vector<4x8x8xf32>
    %95 = arith.mulf %93, %94 : vector<4x8x8xf32>
    %cst_21 = arith.constant 0xFF800000 : f32
    %96 = vector.shape_cast %66 : vector<1x8x8xi1> to vector<1x8x8xi1>
    %97 = vector.broadcast %96 : vector<1x8x8xi1> to vector<4x8x8xi1>
    %98 = vector.broadcast %cst_21 : f32 to vector<4x8x8xf32>
    %99 = arith.select %97, %95, %98 : vector<4x8x8xi1>, vector<4x8x8xf32>
    %cst_22 = arith.constant dense<0xFF800000> : vector<4x8xf32>
    %100 = vector.multi_reduction <maximumf>, %99, %cst_22 [2] : vector<4x8x8xf32> to vector<4x8xf32>
    %101 = vector.shape_cast %100 : vector<4x8xf32> to vector<4x8x1xf32>
    %102 = vector.broadcast %101 : vector<4x8x1xf32> to vector<4x8x8xf32>
    %103 = arith.subf %99, %102 : vector<4x8x8xf32>
    %104 = math.exp %103 : vector<4x8x8xf32>
    %cst_23 = arith.constant dense<0.000000e+00> : vector<4x8xf32>
    %105 = vector.multi_reduction <add>, %104, %cst_23 [2] : vector<4x8x8xf32> to vector<4x8xf32>
    %106 = vector.shape_cast %105 : vector<4x8xf32> to vector<4x8x1xf32>
    %107 = tpu.reciprocal %106 {approx = true} : vector<4x8x1xf32> -> vector<4x8x1xf32>
    %108 = vector.broadcast %107 : vector<4x8x1xf32> to vector<4x8x8xf32>
    %109 = arith.mulf %104, %108 : vector<4x8x8xf32>
    %110 = arith.truncf %109 : vector<4x8x8xf32> to vector<4x8x8xbf16>
    "tpu.trace_start"() <{level = 10 : i32, message = "hqs,hsd->hqd"}> : () -> ()
    %cst_24 = arith.constant dense<0.000000e+00> : vector<4x8x32xf32>
    %111 = tpu.matmul %110, %92, %cst_24 {dimension_numbers = #tpu.dot_dimension_numbers<[2], [1], [1], [2], [0, 0, 0, 1, 1, 2], [0], [0]>} : vector<4x8x8xbf16>, vector<4x8x32xbf16>, vector<4x8x32xf32> -> vector<4x8x32xf32>
    "tpu.trace_stop"() : () -> ()
    %cst_25 = arith.constant dense<0.000000e+00> : vector<8x32xf32>
    %112 = vector.multi_reduction <add>, %111, %cst_25 [0] : vector<4x8x32xf32> to vector<8x32xf32>
    %113 = vector.extract_strided_slice %44 {offsets = [0, 16, 0], sizes = [4, 8, 8], strides = [1, 1, 1]} : vector<4x32x8xf32> to vector<4x8x8xf32>
    %114 = vector.extract_strided_slice %53 {offsets = [0, 16, 0], sizes = [4, 8, 8], strides = [1, 1, 1]} : vector<4x32x8xf32> to vector<4x8x8xf32>
    %115 = vector.extract_strided_slice %62 {offsets = [0, 16, 0], sizes = [4, 8, 32], strides = [1, 1, 1]} : vector<4x32x32xbf16> to vector<4x8x32xbf16>
    "tpu.trace_start"() <{level = 10 : i32, message = "hqk,hsk->hqs"}> : () -> ()
    %cst_26 = arith.constant dense<0.000000e+00> : vector<4x8x8xf32>
    %116 = tpu.matmul %113, %114, %cst_26 {dimension_numbers = #tpu.dot_dimension_numbers<[2], [2], [1], [1], [0, 0, 0, 1, 1, 1], [0], [0]>} : vector<4x8x8xf32>, vector<4x8x8xf32>, vector<4x8x8xf32> -> vector<4x8x8xf32>
    "tpu.trace_stop"() : () -> ()
    %cst_27 = arith.constant 0.353553385 : f32
    %117 = vector.broadcast %cst_27 : f32 to vector<4x8x8xf32>
    %118 = arith.mulf %116, %117 : vector<4x8x8xf32>
    %cst_28 = arith.constant 0xFF800000 : f32
    %119 = vector.shape_cast %66 : vector<1x8x8xi1> to vector<1x8x8xi1>
    %120 = vector.broadcast %119 : vector<1x8x8xi1> to vector<4x8x8xi1>
    %121 = vector.broadcast %cst_28 : f32 to vector<4x8x8xf32>
    %122 = arith.select %120, %118, %121 : vector<4x8x8xi1>, vector<4x8x8xf32>
    %cst_29 = arith.constant dense<0xFF800000> : vector<4x8xf32>
    %123 = vector.multi_reduction <maximumf>, %122, %cst_29 [2] : vector<4x8x8xf32> to vector<4x8xf32>
    %124 = vector.shape_cast %123 : vector<4x8xf32> to vector<4x8x1xf32>
    %125 = vector.broadcast %124 : vector<4x8x1xf32> to vector<4x8x8xf32>
    %126 = arith.subf %122, %125 : vector<4x8x8xf32>
    %127 = math.exp %126 : vector<4x8x8xf32>
    %cst_30 = arith.constant dense<0.000000e+00> : vector<4x8xf32>
    %128 = vector.multi_reduction <add>, %127, %cst_30 [2] : vector<4x8x8xf32> to vector<4x8xf32>
    %129 = vector.shape_cast %128 : vector<4x8xf32> to vector<4x8x1xf32>
    %130 = tpu.reciprocal %129 {approx = true} : vector<4x8x1xf32> -> vector<4x8x1xf32>
    %131 = vector.broadcast %130 : vector<4x8x1xf32> to vector<4x8x8xf32>
    %132 = arith.mulf %127, %131 : vector<4x8x8xf32>
    %133 = arith.truncf %132 : vector<4x8x8xf32> to vector<4x8x8xbf16>
    "tpu.trace_start"() <{level = 10 : i32, message = "hqs,hsd->hqd"}> : () -> ()
    %cst_31 = arith.constant dense<0.000000e+00> : vector<4x8x32xf32>
    %134 = tpu.matmul %133, %115, %cst_31 {dimension_numbers = #tpu.dot_dimension_numbers<[2], [1], [1], [2], [0, 0, 0, 1, 1, 2], [0], [0]>} : vector<4x8x8xbf16>, vector<4x8x32xbf16>, vector<4x8x32xf32> -> vector<4x8x32xf32>
    "tpu.trace_stop"() : () -> ()
    %cst_32 = arith.constant dense<0.000000e+00> : vector<8x32xf32>
    %135 = vector.multi_reduction <add>, %134, %cst_32 [0] : vector<4x8x32xf32> to vector<8x32xf32>
    %136 = vector.extract_strided_slice %44 {offsets = [0, 24, 0], sizes = [4, 8, 8], strides = [1, 1, 1]} : vector<4x32x8xf32> to vector<4x8x8xf32>
    %137 = vector.extract_strided_slice %53 {offsets = [0, 24, 0], sizes = [4, 8, 8], strides = [1, 1, 1]} : vector<4x32x8xf32> to vector<4x8x8xf32>
    %138 = vector.extract_strided_slice %62 {offsets = [0, 24, 0], sizes = [4, 8, 32], strides = [1, 1, 1]} : vector<4x32x32xbf16> to vector<4x8x32xbf16>
    "tpu.trace_start"() <{level = 10 : i32, message = "hqk,hsk->hqs"}> : () -> ()
    %cst_33 = arith.constant dense<0.000000e+00> : vector<4x8x8xf32>
    %139 = tpu.matmul %136, %137, %cst_33 {dimension_numbers = #tpu.dot_dimension_numbers<[2], [2], [1], [1], [0, 0, 0, 1, 1, 1], [0], [0]>} : vector<4x8x8xf32>, vector<4x8x8xf32>, vector<4x8x8xf32> -> vector<4x8x8xf32>
    "tpu.trace_stop"() : () -> ()
    %cst_34 = arith.constant 0.353553385 : f32
    %140 = vector.broadcast %cst_34 : f32 to vector<4x8x8xf32>
    %141 = arith.mulf %139, %140 : vector<4x8x8xf32>
    %cst_35 = arith.constant 0xFF800000 : f32
    %142 = vector.shape_cast %66 : vector<1x8x8xi1> to vector<1x8x8xi1>
    %143 = vector.broadcast %142 : vector<1x8x8xi1> to vector<4x8x8xi1>
    %144 = vector.broadcast %cst_35 : f32 to vector<4x8x8xf32>
    %145 = arith.select %143, %141, %144 : vector<4x8x8xi1>, vector<4x8x8xf32>
    %cst_36 = arith.constant dense<0xFF800000> : vector<4x8xf32>
    %146 = vector.multi_reduction <maximumf>, %145, %cst_36 [2] : vector<4x8x8xf32> to vector<4x8xf32>
    %147 = vector.shape_cast %146 : vector<4x8xf32> to vector<4x8x1xf32>
    %148 = vector.broadcast %147 : vector<4x8x1xf32> to vector<4x8x8xf32>
    %149 = arith.subf %145, %148 : vector<4x8x8xf32>
    %150 = math.exp %149 : vector<4x8x8xf32>
    %cst_37 = arith.constant dense<0.000000e+00> : vector<4x8xf32>
    %151 = vector.multi_reduction <add>, %150, %cst_37 [2] : vector<4x8x8xf32> to vector<4x8xf32>
    %152 = vector.shape_cast %151 : vector<4x8xf32> to vector<4x8x1xf32>
    %153 = tpu.reciprocal %152 {approx = true} : vector<4x8x1xf32> -> vector<4x8x1xf32>
    %154 = vector.broadcast %153 : vector<4x8x1xf32> to vector<4x8x8xf32>
    %155 = arith.mulf %150, %154 : vector<4x8x8xf32>
    %156 = arith.truncf %155 : vector<4x8x8xf32> to vector<4x8x8xbf16>
    "tpu.trace_start"() <{level = 10 : i32, message = "hqs,hsd->hqd"}> : () -> ()
    %cst_38 = arith.constant dense<0.000000e+00> : vector<4x8x32xf32>
    %157 = tpu.matmul %156, %138, %cst_38 {dimension_numbers = #tpu.dot_dimension_numbers<[2], [1], [1], [2], [0, 0, 0, 1, 1, 2], [0], [0]>} : vector<4x8x8xbf16>, vector<4x8x32xbf16>, vector<4x8x32xf32> -> vector<4x8x32xf32>
    "tpu.trace_stop"() : () -> ()
    %cst_39 = arith.constant dense<0.000000e+00> : vector<8x32xf32>
    %158 = vector.multi_reduction <add>, %157, %cst_39 [0] : vector<4x8x32xf32> to vector<8x32xf32>
    %159 = tpu.concatenate %89, %112, %135, %158 in 0 : vector<8x32xf32>, vector<8x32xf32>, vector<8x32xf32>, vector<8x32xf32> -> vector<32x32xf32>
    %160 = arith.addf %0, %159 : vector<32x32xf32>
    %c0_40 = arith.constant 0 : index
    %c0_41 = arith.constant 0 : index
    %161 = vector.load %arg5[%c0_40, %c0_41] : memref<1x32xf32, #tpu.memory_space<vmem>>, vector<1x32xf32>
    %162 = vector.shape_cast %161 : vector<1x32xf32> to vector<32xf32>
    %c0_42 = arith.constant 0 : index
    %c0_43 = arith.constant 0 : index
    %163 = vector.load %arg6[%c0_42, %c0_43] : memref<1x32xf32, #tpu.memory_space<vmem>>, vector<1x32xf32>
    %164 = vector.shape_cast %163 : vector<1x32xf32> to vector<32xf32>
    %cst_44 = arith.constant dense<0.000000e+00> : vector<32xf32>
    %165 = vector.multi_reduction <add>, %160, %cst_44 [1] : vector<32x32xf32> to vector<32xf32>
    %166 = vector.shape_cast %165 : vector<32xf32> to vector<32x1xf32>
    %cst_45 = arith.constant 3.200000e+01 : f32
    %167 = vector.broadcast %cst_45 : f32 to vector<32x1xf32>
    %168 = arith.divf %166, %167 : vector<32x1xf32>
    %169 = vector.broadcast %168 : vector<32x1xf32> to vector<32x32xf32>
    %170 = arith.subf %160, %169 : vector<32x32xf32>
    %171 = arith.mulf %170, %170 : vector<32x32xf32>
    %cst_46 = arith.constant dense<0.000000e+00> : vector<32xf32>
    %172 = vector.multi_reduction <add>, %171, %cst_46 [1] : vector<32x32xf32> to vector<32xf32>
    %173 = vector.shape_cast %172 : vector<32xf32> to vector<32x1xf32>
    %cst_47 = arith.constant 3.200000e+01 : f32
    %174 = vector.broadcast %cst_47 : f32 to vector<32x1xf32>
    %175 = arith.divf %173, %174 : vector<32x1xf32>
    %176 = vector.broadcast %168 : vector<32x1xf32> to vector<32x32xf32>
    %177 = arith.subf %160, %176 : vector<32x32xf32>
    %cst_48 = arith.constant 9.99999974E-6 : f32
    %178 = vector.broadcast %cst_48 : f32 to vector<32x1xf32>
    %179 = arith.addf %175, %178 : vector<32x1xf32>
    %180 = math.rsqrt %179 : vector<32x1xf32>
    %181 = vector.broadcast %180 : vector<32x1xf32> to vector<32x32xf32>
    %182 = arith.mulf %177, %181 : vector<32x32xf32>
    %183 = vector.shape_cast %162 : vector<32xf32> to vector<1x32xf32>
    %184 = vector.broadcast %183 : vector<1x32xf32> to vector<32x32xf32>
    %185 = arith.mulf %182, %184 : vector<32x32xf32>
    %186 = vector.shape_cast %164 : vector<32xf32> to vector<1x32xf32>
    %187 = vector.broadcast %186 : vector<1x32xf32> to vector<32x32xf32>
    %188 = arith.addf %185, %187 : vector<32x32xf32>
    %189 = arith.truncf %188 : vector<32x32xf32> to vector<32x32xbf16>
    %c0_49 = arith.constant 0 : index
    %c0_50 = arith.constant 0 : index
    %190 = vector.load %arg7[%c0_49, %c0_50] : memref<32x128xbf16, #tpu.memory_space<vmem>>, vector<32x128xbf16>
    %cst_51 = arith.constant dense<0.000000e+00> : vector<32x128xf32>
    %191 = tpu.matmul %189, %190, %cst_51 {dimension_numbers = #tpu.dot_dimension_numbers<[1], [0], [0], [1], [0, 0, 1, 1], [], []>} : vector<32x32xbf16>, vector<32x128xbf16>, vector<32x128xf32> -> vector<32x128xf32>
    %c0_52 = arith.constant 0 : index
    %c0_53 = arith.constant 0 : index
    %192 = vector.load %arg8[%c0_52, %c0_53] : memref<1x128xf32, #tpu.memory_space<vmem>>, vector<1x128xf32>
    %193 = vector.shape_cast %192 : vector<1x128xf32> to vector<128xf32>
    %194 = vector.shape_cast %193 : vector<128xf32> to vector<1x128xf32>
    %195 = vector.broadcast %194 : vector<1x128xf32> to vector<32x128xf32>
    %196 = arith.addf %191, %195 : vector<32x128xf32>
    %cst_54 = arith.constant 0.000000e+00 : f32
    %197 = vector.broadcast %cst_54 : f32 to vector<32x128xf32>
    %198 = arith.maximumf %196, %197 : vector<32x128xf32>
    %199 = arith.truncf %198 : vector<32x128xf32> to vector<32x128xbf16>
    %c0_55 = arith.constant 0 : index
    %c0_56 = arith.constant 0 : index
    %200 = vector.load %arg9[%c0_55, %c0_56] : memref<128x32xbf16, #tpu.memory_space<vmem>>, vector<128x32xbf16>
    %cst_57 = arith.constant dense<0.000000e+00> : vector<32x32xf32>
    %201 = tpu.matmul %199, %200, %cst_57 {dimension_numbers = #tpu.dot_dimension_numbers<[1], [0], [0], [1], [0, 0, 1, 1], [], []>} : vector<32x128xbf16>, vector<128x32xbf16>, vector<32x32xf32> -> vector<32x32xf32>
    %c0_58 = arith.constant 0 : index
    %c0_59 = arith.constant 0 : index
    %202 = vector.load %arg10[%c0_58, %c0_59] : memref<1x32xf32, #tpu.memory_space<vmem>>, vector<1x32xf32>
    %203 = vector.shape_cast %202 : vector<1x32xf32> to vector<32xf32>
    %204 = vector.shape_cast %203 : vector<32xf32> to vector<1x32xf32>
    %205 = vector.broadcast %204 : vector<1x32xf32> to vector<32x32xf32>
    %206 = arith.addf %201, %205 : vector<32x32xf32>
    %207 = arith.addf %160, %206 : vector<32x32xf32>
    %c0_60 = arith.constant 0 : index
    %c0_61 = arith.constant 0 : index
    %208 = vector.load %arg11[%c0_60, %c0_61] : memref<32x32xf32, #tpu.memory_space<vmem>>, vector<32x32xf32>
    tpu.vector_store %arg11[%c0_60, %c0_61], %207 {strides = array<i32>} : memref<32x32xf32, #tpu.memory_space<vmem>>, vector<32x32xf32>,
    return
  }
  func.func @transform_0(%arg0: i32) -> (i32, i32) {
    %c0_i32 = arith.constant 0 : i32
    %c0_i32_0 = arith.constant 0 : i32
    return %arg0, %c0_i32 : i32, i32
  }
  func.func @transform_1(%arg0: i32) -> (i32, i32) {
    %c0_i32 = arith.constant 0 : i32
    %c0_i32_0 = arith.constant 0 : i32
    %c0_i32_1 = arith.constant 0 : i32
    return %c0_i32, %c0_i32_0 : i32, i32
  }
  func.func @transform_2(%arg0: i32) -> (i32, i32) {
    %c0_i32 = arith.constant 0 : i32
    %c0_i32_0 = arith.constant 0 : i32
    %c0_i32_1 = arith.constant 0 : i32
    return %c0_i32, %c0_i32_0 : i32, i32
  }
  func.func @transform_3(%arg0: i32) -> (i32, i32) {
    %c0_i32 = arith.constant 0 : i32
    %c0_i32_0 = arith.constant 0 : i32
    %c0_i32_1 = arith.constant 0 : i32
    return %c0_i32, %c0_i32_0 : i32, i32
  }
  func.func @transform_4(%arg0: i32) -> (i32, i32) {
    %c0_i32 = arith.constant 0 : i32
    %c0_i32_0 = arith.constant 0 : i32
    %c0_i32_1 = arith.constant 0 : i32
    return %c0_i32, %c0_i32_0 : i32, i32
  }
  func.func @transform_5(%arg0: i32) -> (i32, i32) {
    %c0_i32 = arith.constant 0 : i32
    %c0_i32_0 = arith.constant 0 : i32
    %c0_i32_1 = arith.constant 0 : i32
    return %c0_i32, %c0_i32_0 : i32, i32
  }
  func.func @transform_6(%arg0: i32) -> (i32, i32) {
    %c0_i32 = arith.constant 0 : i32
    %c0_i32_0 = arith.constant 0 : i32
    %c0_i32_1 = arith.constant 0 : i32
    return %c0_i32, %c0_i32_0 : i32, i32
  }
  func.func @transform_7(%arg0: i32) -> (i32, i32) {
    %c0_i32 = arith.constant 0 : i32
    %c0_i32_0 = arith.constant 0 : i32
    %c0_i32_1 = arith.constant 0 : i32
    return %c0_i32, %c0_i32_0 : i32, i32
  }
  func.func @transform_8(%arg0: i32) -> (i32, i32) {
    %c0_i32 = arith.constant 0 : i32
    %c0_i32_0 = arith.constant 0 : i32
    %c0_i32_1 = arith.constant 0 : i32
    return %c0_i32, %c0_i32_0 : i32, i32
  }
  func.func @transform_9(%arg0: i32) -> (i32, i32) {
    %c0_i32 = arith.constant 0 : i32
    %c0_i32_0 = arith.constant 0 : i32
    %c0_i32_1 = arith.constant 0 : i32
    return %c0_i32, %c0_i32_0 : i32, i32
  }
  func.func @transform_10(%arg0: i32) -> (i32, i32) {
    %c0_i32 = arith.constant 0 : i32
    %c0_i32_0 = arith.constant 0 : i32
    return %arg0, %c0_i32 : i32, i32
  }
}

module attributes {stable_mosaic.version = 11 : i64} {
  func.func @transformer_block_kernel(%arg0: i32, %arg1: memref<32x32xf32, #tpu.memory_space<vmem>>, %arg2: memref<1x32xf32, #tpu.memory_space<vmem>>, %arg3: memref<1x32xf32, #tpu.memory_space<vmem>>, %arg4: memref<32x384xbf16, #tpu.memory_space<vmem>>, %arg5: memref<1x32xf32, #tpu.memory_space<vmem>>, %arg6: memref<1x32xf32, #tpu.memory_space<vmem>>, %arg7: memref<32x128xbf16, #tpu.memory_space<vmem>>, %arg8: memref<1x128xf32, #tpu.memory_space<vmem>>, %arg9: memref<128x32xbf16, #tpu.memory_space<vmem>>, %arg10: memref<1x32xf32, #tpu.memory_space<vmem>>, %arg11: memref<32x32xf32, #tpu.memory_space<vmem>>) attributes {dimension_semantics = [#tpu.dimension_semantics<parallel>], iteration_bounds = array<i64: 2>, scalar_prefetch = 0 : i64, scratch_operands = 0 : i64, tpu.core_type = #tpu.core_type<tc>, window_params = [{transform_indices = @transform_0, window_bounds = array<i64: 32, 32>}, {pipeline_mode = #tpu.pipeline_mode<synchronous>, transform_indices = @transform_1, window_bounds = array<i64: 1, 32>}, {pipeline_mode = #tpu.pipeline_mode<synchronous>, transform_indices = @transform_2, window_bounds = array<i64: 1, 32>}, {pipeline_mode = #tpu.pipeline_mode<synchronous>, transform_indices = @transform_3, window_bounds = array<i64: 32, 384>}, {pipeline_mode = #tpu.pipeline_mode<synchronous>, transform_indices = @transform_4, window_bounds = array<i64: 1, 32>}, {pipeline_mode = #tpu.pipeline_mode<synchronous>, transform_indices = @transform_5, window_bounds = array<i64: 1, 32>}, {pipeline_mode = #tpu.pipeline_mode<synchronous>, transform_indices = @transform_6, window_bounds = array<i64: 32, 128>}, {pipeline_mode = #tpu.pipeline_mode<synchronous>, transform_indices = @transform_7, window_bounds = array<i64: 1, 128>}, {pipeline_mode = #tpu.pipeline_mode<synchronous>, transform_indices = @transform_8, window_bounds = array<i64: 128, 32>}, {pipeline_mode = #tpu.pipeline_mode<synchronous>, transform_indices = @transform_9, window_bounds = array<i64: 1, 32>}, {transform_indices = @transform_10, window_bounds = array<i64: 32, 32>}]} {
    %c0 = arith.constant 0 : index
    %c0_0 = arith.constant 0 : index
    %0 = vector.load %arg1[%c0, %c0_0] : memref<32x32xf32, #tpu.memory_space<vmem>>, vector<32x32xf32>
    %c0_1 = arith.constant 0 : index
    %c0_2 = arith.constant 0 : index
    %1 = vector.load %arg2[%c0_1, %c0_2] : memref<1x32xf32, #tpu.memory_space<vmem>>, vector<1x32xf32>
    %2 = vector.shape_cast %1 : vector<1x32xf32> to vector<32xf32>
    %c0_3 = arith.constant 0 : index
    %c0_4 = arith.constant 0 : index
    %3 = vector.load %arg3[%c0_3, %c0_4] : memref<1x32xf32, #tpu.memory_space<vmem>>, vector<1x32xf32>
    %4 = vector.shape_cast %3 : vector<1x32xf32> to vector<32xf32>
    %cst = arith.constant dense<0.000000e+00> : vector<32xf32>
    %5 = vector.multi_reduction <add>, %0, %cst [1] : vector<32x32xf32> to vector<32xf32>
    %6 = vector.shape_cast %5 : vector<32xf32> to vector<32x1xf32>
    %cst_5 = arith.constant 3.200000e+01 : f32
    %7 = vector.broadcast %cst_5 : f32 to vector<32x1xf32>
    %8 = arith.divf %6, %7 : vector<32x1xf32>
    %9 = vector.broadcast %8 : vector<32x1xf32> to vector<32x32xf32>
    %10 = arith.subf %0, %9 : vector<32x32xf32>
    %11 = arith.mulf %10, %10 : vector<32x32xf32>
    %cst_6 = arith.constant dense<0.000000e+00> : vector<32xf32>
    %12 = vector.multi_reduction <add>, %11, %cst_6 [1] : vector<32x32xf32> to vector<32xf32>
    %13 = vector.shape_cast %12 : vector<32xf32> to vector<32x1xf32>
    %cst_7 = arith.constant 3.200000e+01 : f32
    %14 = vector.broadcast %cst_7 : f32 to vector<32x1xf32>
    %15 = arith.divf %13, %14 : vector<32x1xf32>
    %16 = vector.broadcast %8 : vector<32x1xf32> to vector<32x32xf32>
    %17 = arith.subf %0, %16 : vector<32x32xf32>
    %cst_8 = arith.constant 9.99999974E-6 : f32
    %18 = vector.broadcast %cst_8 : f32 to vector<32x1xf32>
    %19 = arith.addf %15, %18 : vector<32x1xf32>
    %20 = math.rsqrt %19 : vector<32x1xf32>
    %21 = vector.broadcast %20 : vector<32x1xf32> to vector<32x32xf32>
    %22 = arith.mulf %17, %21 : vector<32x32xf32>
    %23 = vector.shape_cast %2 : vector<32xf32> to vector<1x32xf32>
    %24 = vector.broadcast %23 : vector<1x32xf32> to vector<32x32xf32>
    %25 = arith.mulf %22, %24 : vector<32x32xf32>
    %26 = vector.shape_cast %4 : vector<32xf32> to vector<1x32xf32>
    %27 = vector.broadcast %26 : vector<1x32xf32> to vector<32x32xf32>
    %28 = arith.addf %25, %27 : vector<32x32xf32>
    %29 = arith.truncf %28 : vector<32x32xf32> to vector<32x32xbf16>
    %c0_9 = arith.constant 0 : index
    %c0_10 = arith.constant 0 : index
    %30 = vector.load %arg4[%c0_9, %c0_10] : memref<32x384xbf16, #tpu.memory_space<vmem>>, vector<32x384xbf16>
    %cst_11 = arith.constant dense<0.000000e+00> : vector<32x384xf32>
    %31 = tpu.matmul %29, %30, %cst_11 {dimension_numbers = #tpu.dot_dimension_numbers<[1], [0], [0], [1], [0, 0, 1, 1], [], []>} : vector<32x32xbf16>, vector<32x384xbf16>, vector<32x384xf32> -> vector<32x384xf32>
    %32 = vector.extract_strided_slice %31 {offsets = [0, 0], sizes = [32, 32], strides = [1, 1]} : vector<32x384xf32> to vector<32x32xf32>
    %33 = vector.extract_strided_slice %31 {offsets = [0, 128], sizes = [32, 32], strides = [1, 1]} : vector<32x384xf32> to vector<32x32xf32>
    %34 = vector.extract_strided_slice %31 {offsets = [0, 256], sizes = [32, 128], strides = [1, 1]} : vector<32x384xf32> to vector<32x128xf32>
    %35 = arith.truncf %34 : vector<32x128xf32> to vector<32x128xbf16>
    %36 = vector.extract_strided_slice %32 {offsets = [0, 0], sizes = [32, 8], strides = [1, 1]} : vector<32x32xf32> to vector<32x8xf32>
    %37 = vector.extract_strided_slice %32 {offsets = [0, 8], sizes = [32, 8], strides = [1, 1]} : vector<32x32xf32> to vector<32x8xf32>
    %38 = vector.extract_strided_slice %32 {offsets = [0, 16], sizes = [32, 8], strides = [1, 1]} : vector<32x32xf32> to vector<32x8xf32>
    %39 = vector.extract_strided_slice %32 {offsets = [0, 24], sizes = [32, 8], strides = [1, 1]} : vector<32x32xf32> to vector<32x8xf32>
    %40 = vector.shape_cast %36 : vector<32x8xf32> to vector<1x32x8xf32>
    %41 = vector.shape_cast %37 : vector<32x8xf32> to vector<1x32x8xf32>
    %42 = vector.shape_cast %38 : vector<32x8xf32> to vector<1x32x8xf32>
    %43 = vector.shape_cast %39 : vector<32x8xf32> to vector<1x32x8xf32>
    %44 = tpu.concatenate %40, %41, %42, %43 in 0 : vector<1x32x8xf32>, vector<1x32x8xf32>, vector<1x32x8xf32>, vector<1x32x8xf32> -> vector<4x32x8xf32>
    %45 = vector.extract_strided_slice %33 {offsets = [0, 0], sizes = [32, 8], strides = [1, 1]} : vector<32x32xf32> to vector<32x8xf32>
    %46 = vector.extract_strided_slice %33 {offsets = [0, 8], sizes = [32, 8], strides = [1, 1]} : vector<32x32xf32> to vector<32x8xf32>
    %47 = vector.extract_strided_slice %33 {offsets = [0, 16], sizes = [32, 8], strides = [1, 1]} : vector<32x32xf32> to vector<32x8xf32>
    %48 = vector.extract_strided_slice %33 {offsets = [0, 24], sizes = [32, 8], strides = [1, 1]} : vector<32x32xf32> to vector<32x8xf32>
    %49 = vector.shape_cast %45 : vector<32x8xf32> to vector<1x32x8xf32>
    %50 = vector.shape_cast %46 : vector<32x8xf32> to vector<1x32x8xf32>
    %51 = vector.shape_cast %47 : vector<32x8xf32> to vector<1x32x8xf32>
    %52 = vector.shape_cast %48 : vector<32x8xf32> to vector<1x32x8xf32>
    %53 = tpu.concatenate %49, %50, %51, %52 in 0 : vector<1x32x8xf32>, vector<1x32x8xf32>, vector<1x32x8xf32>, vector<1x32x8xf32> -> vector<4x32x8xf32>
    %54 = vector.extract_strided_slice %35 {offsets = [0, 0], sizes = [32, 32], strides = [1, 1]} : vector<32x128xbf16> to vector<32x32xbf16>
    %55 = vector.extract_strided_slice %35 {offsets = [0, 32], sizes = [32, 32], strides = [1, 1]} : vector<32x128xbf16> to vector<32x32xbf16>
    %56 = vector.extract_strided_slice %35 {offsets = [0, 64], sizes = [32, 32], strides = [1, 1]} : vector<32x128xbf16> to vector<32x32xbf16>
    %57 = vector.extract_strided_slice %35 {offsets = [0, 96], sizes = [32, 32], strides = [1, 1]} : vector<32x128xbf16> to vector<32x32xbf16>
    %58 = vector.shape_cast %54 : vector<32x32xbf16> to vector<1x32x32xbf16>
    %59 = vector.shape_cast %55 : vector<32x32xbf16> to vector<1x32x32xbf16>
    %60 = vector.shape_cast %56 : vector<32x32xbf16> to vector<1x32x32xbf16>
    %61 = vector.shape_cast %57 : vector<32x32xbf16> to vector<1x32x32xbf16>
    %62 = tpu.concatenate %58, %59, %60, %61 in 0 : vector<1x32x32xbf16>, vector<1x32x32xbf16>, vector<1x32x32xbf16>, vector<1x32x32xbf16> -> vector<4x32x32xbf16>
    %63 = tpu.iota {dimensions = array<i32: 0>} : vector<8x8xi32>
    %64 = tpu.iota {dimensions = array<i32: 1>} : vector<8x8xi32>
    %65 = arith.cmpi sle, %64, %63 : vector<8x8xi32>
    %66 = vector.shape_cast %65 : vector<8x8xi1> to vector<1x8x8xi1>
    %67 = vector.extract_strided_slice %44 {offsets = [0, 0, 0], sizes = [4, 8, 8], strides = [1, 1, 1]} : vector<4x32x8xf32> to vector<4x8x8xf32>
    %68 = vector.extract_strided_slice %53 {offsets = [0, 0, 0], sizes = [4, 8, 8], strides = [1, 1, 1]} : vector<4x32x8xf32> to vector<4x8x8xf32>
    %69 = vector.extract_strided_slice %62 {offsets = [0, 0, 0], sizes = [4, 8, 32], strides = [1, 1, 1]} : vector<4x32x32xbf16> to vector<4x8x32xbf16>
    "tpu.trace_start"() <{level = 10 : i32, message = "hqk,hsk->hqs"}> : () -> ()
    %cst_12 = arith.constant dense<0.000000e+00> : vector<4x8x8xf32>
    %70 = tpu.matmul %67, %68, %cst_12 {dimension_numbers = #tpu.dot_dimension_numbers<[2], [2], [1], [1], [0, 0, 0, 1, 1, 1], [0], [0]>} : vector<4x8x8xf32>, vector<4x8x8xf32>, vector<4x8x8xf32> -> vector<4x8x8xf32>
    "tpu.trace_stop"() : () -> ()
    %cst_13 = arith.constant 0.353553385 : f32
    %71 = vector.broadcast %cst_13 : f32 to vector<4x8x8xf32>
    %72 = arith.mulf %70, %71 : vector<4x8x8xf32>
    %cst_14 = arith.constant 0xFF800000 : f32
    %73 = vector.shape_cast %66 : vector<1x8x8xi1> to vector<1x8x8xi1>
    %74 = vector.broadcast %73 : vector<1x8x8xi1> to vector<4x8x8xi1>
    %75 = vector.broadcast %cst_14 : f32 to vector<4x8x8xf32>
    %76 = arith.select %74, %72, %75 : vector<4x8x8xi1>, vector<4x8x8xf32>
    %cst_15 = arith.constant dense<0xFF800000> : vector<4x8xf32>
    %77 = vector.multi_reduction <maximumf>, %76, %cst_15 [2] : vector<4x8x8xf32> to vector<4x8xf32>
    %78 = vector.shape_cast %77 : vector<4x8xf32> to vector<4x8x1xf32>
    %79 = vector.broadcast %78 : vector<4x8x1xf32> to vector<4x8x8xf32>
    %80 = arith.subf %76, %79 : vector<4x8x8xf32>
    %81 = math.exp %80 : vector<4x8x8xf32>
    %cst_16 = arith.constant dense<0.000000e+00> : vector<4x8xf32>
    %82 = vector.multi_reduction <add>, %81, %cst_16 [2] : vector<4x8x8xf32> to vector<4x8xf32>
    %83 = vector.shape_cast %82 : vector<4x8xf32> to vector<4x8x1xf32>
    %84 = tpu.reciprocal %83 {approx = true} : vector<4x8x1xf32> -> vector<4x8x1xf32>
    %85 = vector.broadcast %84 : vector<4x8x1xf32> to vector<4x8x8xf32>
    %86 = arith.mulf %81, %85 : vector<4x8x8xf32>
    %87 = arith.truncf %86 : vector<4x8x8xf32> to vector<4x8x8xbf16>
    "tpu.trace_start"() <{level = 10 : i32, message = "hqs,hsd->hqd"}> : () -> ()
    %cst_17 = arith.constant dense<0.000000e+00> : vector<4x8x32xf32>
    %88 = tpu.matmul %87, %69, %cst_17 {dimension_numbers = #tpu.dot_dimension_numbers<[2], [1], [1], [2], [0, 0, 0, 1, 1, 2], [0], [0]>} : vector<4x8x8xbf16>, vector<4x8x32xbf16>, vector<4x8x32xf32> -> vector<4x8x32xf32>
    "tpu.trace_stop"() : () -> ()
    %cst_18 = arith.constant dense<0.000000e+00> : vector<8x32xf32>
    %89 = vector.multi_reduction <add>, %88, %cst_18 [0] : vector<4x8x32xf32> to vector<8x32xf32>
    %90 = vector.extract_strided_slice %44 {offsets = [0, 8, 0], sizes = [4, 8, 8], strides = [1, 1, 1]} : vector<4x32x8xf32> to vector<4x8x8xf32>
    %91 = vector.extract_strided_slice %53 {offsets = [0, 8, 0], sizes = [4, 8, 8], strides = [1, 1, 1]} : vector<4x32x8xf32> to vector<4x8x8xf32>
    %92 = vector.extract_strided_slice %62 {offsets = [0, 8, 0], sizes = [4, 8, 32], strides = [1, 1, 1]} : vector<4x32x32xbf16> to vector<4x8x32xbf16>
    "tpu.trace_start"() <{level = 10 : i32, message = "hqk,hsk->hqs"}> : () -> ()
    %cst_19 = arith.constant dense<0.000000e+00> : vector<4x8x8xf32>
    %93 = tpu.matmul %90, %91, %cst_19 {dimension_numbers = #tpu.dot_dimension_numbers<[2], [2], [1], [1], [0, 0, 0, 1, 1, 1], [0], [0]>} : vector<4x8x8xf32>, vector<4x8x8xf32>, vector<4x8x8xf32> -> vector<4x8x8xf32>
    "tpu.trace_stop"() : () -> ()
    %cst_20 = arith.constant 0.353553385 : f32
    %94 = vector.broadcast %cst_20 : f32 to vector<4x8x8xf32>
    %95 = arith.mulf %93, %94 : vector<4x8x8xf32>
    %cst_21 = arith.constant 0xFF800000 : f32
    %96 = vector.shape_cast %66 : vector<1x8x8xi1> to vector<1x8x8xi1>
    %97 = vector.broadcast %96 : vector<1x8x8xi1> to vector<4x8x8xi1>
    %98 = vector.broadcast %cst_21 : f32 to vector<4x8x8xf32>
    %99 = arith.select %97, %95, %98 : vector<4x8x8xi1>, vector<4x8x8xf32>
    %cst_22 = arith.constant dense<0xFF800000> : vector<4x8xf32>
    %100 = vector.multi_reduction <maximumf>, %99, %cst_22 [2] : vector<4x8x8xf32> to vector<4x8xf32>
    %101 = vector.shape_cast %100 : vector<4x8xf32> to vector<4x8x1xf32>
    %102 = vector.broadcast %101 : vector<4x8x1xf32> to vector<4x8x8xf32>
    %103 = arith.subf %99, %102 : vector<4x8x8xf32>
    %104 = math.exp %103 : vector<4x8x8xf32>
    %cst_23 = arith.constant dense<0.000000e+00> : vector<4x8xf32>
    %105 = vector.multi_reduction <add>, %104, %cst_23 [2] : vector<4x8x8xf32> to vector<4x8xf32>
    %106 = vector.shape_cast %105 : vector<4x8xf32> to vector<4x8x1xf32>
    %107 = tpu.reciprocal %106 {approx = true} : vector<4x8x1xf32> -> vector<4x8x1xf32>
    %108 = vector.broadcast %107 : vector<4x8x1xf32> to vector<4x8x8xf32>
    %109 = arith.mulf %104, %108 : vector<4x8x8xf32>
    %110 = arith.truncf %109 : vector<4x8x8xf32> to vector<4x8x8xbf16>
    "tpu.trace_start"() <{level = 10 : i32, message = "hqs,hsd->hqd"}> : () -> ()
    %cst_24 = arith.constant dense<0.000000e+00> : vector<4x8x32xf32>
    %111 = tpu.matmul %110, %92, %cst_24 {dimension_numbers = #tpu.dot_dimension_numbers<[2], [1], [1], [2], [0, 0, 0, 1, 1, 2], [0], [0]>} : vector<4x8x8xbf16>, vector<4x8x32xbf16>, vector<4x8x32xf32> -> vector<4x8x32xf32>
    "tpu.trace_stop"() : () -> ()
    %cst_25 = arith.constant dense<0.000000e+00> : vector<8x32xf32>
    %112 = vector.multi_reduction <add>, %111, %cst_25 [0] : vector<4x8x32xf32> to vector<8x32xf32>
    %113 = vector.extract_strided_slice %44 {offsets = [0, 16, 0], sizes = [4, 8, 8], strides = [1, 1, 1]} : vector<4x32x8xf32> to vector<4x8x8xf32>
    %114 = vector.extract_strided_slice %53 {offsets = [0, 16, 0], sizes = [4, 8, 8], strides = [1, 1, 1]} : vector<4x32x8xf32> to vector<4x8x8xf32>
    %115 = vector.extract_strided_slice %62 {offsets = [0, 16, 0], sizes = [4, 8, 32], strides = [1, 1, 1]} : vector<4x32x32xbf16> to vector<4x8x32xbf16>
    "tpu.trace_start"() <{level = 10 : i32, message = "hqk,hsk->hqs"}> : () -> ()
    %cst_26 = arith.constant dense<0.000000e+00> : vector<4x8x8xf32>
    %116 = tpu.matmul %113, %114, %cst_26 {dimension_numbers = #tpu.dot_dimension_numbers<[2], [2], [1], [1], [0, 0, 0, 1, 1, 1], [0], [0]>} : vector<4x8x8xf32>, vector<4x8x8xf32>, vector<4x8x8xf32> -> vector<4x8x8xf32>
    "tpu.trace_stop"() : () -> ()
    %cst_27 = arith.constant 0.353553385 : f32
    %117 = vector.broadcast %cst_27 : f32 to vector<4x8x8xf32>
    %118 = arith.mulf %116, %117 : vector<4x8x8xf32>
    %cst_28 = arith.constant 0xFF800000 : f32
    %119 = vector.shape_cast %66 : vector<1x8x8xi1> to vector<1x8x8xi1>
    %120 = vector.broadcast %119 : vector<1x8x8xi1> to vector<4x8x8xi1>
    %121 = vector.broadcast %cst_28 : f32 to vector<4x8x8xf32>
    %122 = arith.select %120, %118, %121 : vector<4x8x8xi1>, vector<4x8x8xf32>
    %cst_29 = arith.constant dense<0xFF800000> : vector<4x8xf32>
    %123 = vector.multi_reduction <maximumf>, %122, %cst_29 [2] : vector<4x8x8xf32> to vector<4x8xf32>
    %124 = vector.shape_cast %123 : vector<4x8xf32> to vector<4x8x1xf32>
    %125 = vector.broadcast %124 : vector<4x8x1xf32> to vector<4x8x8xf32>
    %126 = arith.subf %122, %125 : vector<4x8x8xf32>
    %127 = math.exp %126 : vector<4x8x8xf32>
    %cst_30 = arith.constant dense<0.000000e+00> : vector<4x8xf32>
    %128 = vector.multi_reduction <add>, %127, %cst_30 [2] : vector<4x8x8xf32> to vector<4x8xf32>
    %129 = vector.shape_cast %128 : vector<4x8xf32> to vector<4x8x1xf32>
    %130 = tpu.reciprocal %129 {approx = true} : vector<4x8x1xf32> -> vector<4x8x1xf32>
    %131 = vector.broadcast %130 : vector<4x8x1xf32> to vector<4x8x8xf32>
    %132 = arith.mulf %127, %131 : vector<4x8x8xf32>
    %133 = arith.truncf %132 : vector<4x8x8xf32> to vector<4x8x8xbf16>
    "tpu.trace_start"() <{level = 10 : i32, message = "hqs,hsd->hqd"}> : () -> ()
    %cst_31 = arith.constant dense<0.000000e+00> : vector<4x8x32xf32>
    %134 = tpu.matmul %133, %115, %cst_31 {dimension_numbers = #tpu.dot_dimension_numbers<[2], [1], [1], [2], [0, 0, 0, 1, 1, 2], [0], [0]>} : vector<4x8x8xbf16>, vector<4x8x32xbf16>, vector<4x8x32xf32> -> vector<4x8x32xf32>
    "tpu.trace_stop"() : () -> ()
    %cst_32 = arith.constant dense<0.000000e+00> : vector<8x32xf32>
    %135 = vector.multi_reduction <add>, %134, %cst_32 [0] : vector<4x8x32xf32> to vector<8x32xf32>
    %136 = vector.extract_strided_slice %44 {offsets = [0, 24, 0], sizes = [4, 8, 8], strides = [1, 1, 1]} : vector<4x32x8xf32> to vector<4x8x8xf32>
    %137 = vector.extract_strided_slice %53 {offsets = [0, 24, 0], sizes = [4, 8, 8], strides = [1, 1, 1]} : vector<4x32x8xf32> to vector<4x8x8xf32>
    %138 = vector.extract_strided_slice %62 {offsets = [0, 24, 0], sizes = [4, 8, 32], strides = [1, 1, 1]} : vector<4x32x32xbf16> to vector<4x8x32xbf16>
    "tpu.trace_start"() <{level = 10 : i32, message = "hqk,hsk->hqs"}> : () -> ()
    %cst_33 = arith.constant dense<0.000000e+00> : vector<4x8x8xf32>
    %139 = tpu.matmul %136, %137, %cst_33 {dimension_numbers = #tpu.dot_dimension_numbers<[2], [2], [1], [1], [0, 0, 0, 1, 1, 1], [0], [0]>} : vector<4x8x8xf32>, vector<4x8x8xf32>, vector<4x8x8xf32> -> vector<4x8x8xf32>
    "tpu.trace_stop"() : () -> ()
    %cst_34 = arith.constant 0.353553385 : f32
    %140 = vector.broadcast %cst_34 : f32 to vector<4x8x8xf32>
    %141 = arith.mulf %139, %140 : vector<4x8x8xf32>
    %cst_35 = arith.constant 0xFF800000 : f32
    %142 = vector.shape_cast %66 : vector<1x8x8xi1> to vector<1x8x8xi1>
    %143 = vector.broadcast %142 : vector<1x8x8xi1> to vector<4x8x8xi1>
    %144 = vector.broadcast %cst_35 : f32 to vector<4x8x8xf32>
    %145 = arith.select %143, %141, %144 : vector<4x8x8xi1>, vector<4x8x8xf32>
    %cst_36 = arith.constant dense<0xFF800000> : vector<4x8xf32>
    %146 = vector.multi_reduction <maximumf>, %145, %cst_36 [2] : vector<4x8x8xf32> to vector<4x8xf32>
    %147 = vector.shape_cast %146 : vector<4x8xf32> to vector<4x8x1xf32>
    %148 = vector.broadcast %147 : vector<4x8x1xf32> to vector<4x8x8xf32>
    %149 = arith.subf %145, %148 : vector<4x8x8xf32>
    %150 = math.exp %149 : vector<4x8x8xf32>
    %cst_37 = arith.constant dense<0.000000e+00> : vector<4x8xf32>
    %151 = vector.multi_reduction <add>, %150, %cst_37 [2] : vector<4x8x8xf32> to vector<4x8xf32>
    %152 = vector.shape_cast %151 : vector<4x8xf32> to vector<4x8x1xf32>
    %153 = tpu.reciprocal %152 {approx = true} : vector<4x8x1xf32> -> vector<4x8x1xf32>
    %154 = vector.broadcast %153 : vector<4x8x1xf32> to vector<4x8x8xf32>
    %155 = arith.mulf %150, %154 : vector<4x8x8xf32>
    %156 = arith.truncf %155 : vector<4x8x8xf32> to vector<4x8x8xbf16>
    "tpu.trace_start"() <{level = 10 : i32, message = "hqs,hsd->hqd"}> : () -> ()
    %cst_38 = arith.constant dense<0.000000e+00> : vector<4x8x32xf32>
    %157 = tpu.matmul %156, %138, %cst_38 {dimension_numbers = #tpu.dot_dimension_numbers<[2], [1], [1], [2], [0, 0, 0, 1, 1, 2], [0], [0]>} : vector<4x8x8xbf16>, vector<4x8x32xbf16>, vector<4x8x32xf32> -> vector<4x8x32xf32>
    "tpu.trace_stop"() : () -> ()
    %cst_39 = arith.constant dense<0.000000e+00> : vector<8x32xf32>
    %158 = vector.multi_reduction <add>, %157, %cst_39 [0] : vector<4x8x32xf32> to vector<8x32xf32>
    %159 = tpu.concatenate %89, %112, %135, %158 in 0 : vector<8x32xf32>, vector<8x32xf32>, vector<8x32xf32>, vector<8x32xf32> -> vector<32x32xf32>
    %160 = arith.addf %0, %159 : vector<32x32xf32>
    %c0_40 = arith.constant 0 : index
    %c0_41 = arith.constant 0 : index
    %161 = vector.load %arg5[%c0_40, %c0_41] : memref<1x32xf32, #tpu.memory_space<vmem>>, vector<1x32xf32>
    %162 = vector.shape_cast %161 : vector<1x32xf32> to vector<32xf32>
    %c0_42 = arith.constant 0 : index
    %c0_43 = arith.constant 0 : index
    %163 = vector.load %arg6[%c0_42, %c0_43] : memref<1x32xf32, #tpu.memory_space<vmem>>, vector<1x32xf32>
    %164 = vector.shape_cast %163 : vector<1x32xf32> to vector<32xf32>
    %cst_44 = arith.constant dense<0.000000e+00> : vector<32xf32>
    %165 = vector.multi_reduction <add>, %160, %cst_44 [1] : vector<32x32xf32> to vector<32xf32>
    %166 = vector.shape_cast %165 : vector<32xf32> to vector<32x1xf32>
    %cst_45 = arith.constant 3.200000e+01 : f32
    %167 = vector.broadcast %cst_45 : f32 to vector<32x1xf32>
    %168 = arith.divf %166, %167 : vector<32x1xf32>
    %169 = vector.broadcast %168 : vector<32x1xf32> to vector<32x32xf32>
    %170 = arith.subf %160, %169 : vector<32x32xf32>
    %171 = arith.mulf %170, %170 : vector<32x32xf32>
    %cst_46 = arith.constant dense<0.000000e+00> : vector<32xf32>
    %172 = vector.multi_reduction <add>, %171, %cst_46 [1] : vector<32x32xf32> to vector<32xf32>
    %173 = vector.shape_cast %172 : vector<32xf32> to vector<32x1xf32>
    %cst_47 = arith.constant 3.200000e+01 : f32
    %174 = vector.broadcast %cst_47 : f32 to vector<32x1xf32>
    %175 = arith.divf %173, %174 : vector<32x1xf32>
    %176 = vector.broadcast %168 : vector<32x1xf32> to vector<32x32xf32>
    %177 = arith.subf %160, %176 : vector<32x32xf32>
    %cst_48 = arith.constant 9.99999974E-6 : f32
    %178 = vector.broadcast %cst_48 : f32 to vector<32x1xf32>
    %179 = arith.addf %175, %178 : vector<32x1xf32>
    %180 = math.rsqrt %179 : vector<32x1xf32>
    %181 = vector.broadcast %180 : vector<32x1xf32> to vector<32x32xf32>
    %182 = arith.mulf %177, %181 : vector<32x32xf32>
    %183 = vector.shape_cast %162 : vector<32xf32> to vector<1x32xf32>
    %184 = vector.broadcast %183 : vector<1x32xf32> to vector<32x32xf32>
    %185 = arith.mulf %182, %184 : vector<32x32xf32>
    %186 = vector.shape_cast %164 : vector<32xf32> to vector<1x32xf32>
    %187 = vector.broadcast %186 : vector<1x32xf32> to vector<32x32xf32>
    %188 = arith.addf %185, %187 : vector<32x32xf32>
    %189 = arith.truncf %188 : vector<32x32xf32> to vector<32x32xbf16>
    %c0_49 = arith.constant 0 : index
    %c0_50 = arith.constant 0 : index
    %190 = vector.load %arg7[%c0_49, %c0_50] : memref<32x128xbf16, #tpu.memory_space<vmem>>, vector<32x128xbf16>
    %cst_51 = arith.constant dense<0.000000e+00> : vector<32x128xf32>
    %191 = tpu.matmul %189, %190, %cst_51 {dimension_numbers = #tpu.dot_dimension_numbers<[1], [0], [0], [1], [0, 0, 1, 1], [], []>} : vector<32x32xbf16>, vector<32x128xbf16>, vector<32x128xf32> -> vector<32x128xf32>
    %c0_52 = arith.constant 0 : index
    %c0_53 = arith.constant 0 : index
    %192 = vector.load %arg8[%c0_52, %c0_53] : memref<1x128xf32, #tpu.memory_space<vmem>>, vector<1x128xf32>
    %193 = vector.shape_cast %192 : vector<1x128xf32> to vector<128xf32>
    %194 = vector.shape_cast %193 : vector<128xf32> to vector<1x128xf32>
    %195 = vector.broadcast %194 : vector<1x128xf32> to vector<32x128xf32>
    %196 = arith.addf %191, %195 : vector<32x128xf32>
    %cst_54 = arith.constant 0.000000e+00 : f32
    %197 = vector.broadcast %cst_54 : f32 to vector<32x128xf32>
    %198 = arith.maximumf %196, %197 : vector<32x128xf32>
    %199 = arith.truncf %198 : vector<32x128xf32> to vector<32x128xbf16>
    %c0_55 = arith.constant 0 : index
    %c0_56 = arith.constant 0 : index
    %200 = vector.load %arg9[%c0_55, %c0_56] : memref<128x32xbf16, #tpu.memory_space<vmem>>, vector<128x32xbf16>
    %cst_57 = arith.constant dense<0.000000e+00> : vector<32x32xf32>
    %201 = tpu.matmul %199, %200, %cst_57 {dimension_numbers = #tpu.dot_dimension_numbers<[1], [0], [0], [1], [0, 0, 1, 1], [], []>} : vector<32x128xbf16>, vector<128x32xbf16>, vector<32x32xf32> -> vector<32x32xf32>
    %c0_58 = arith.constant 0 : index
    %c0_59 = arith.constant 0 : index
    %202 = vector.load %arg10[%c0_58, %c0_59] : memref<1x32xf32, #tpu.memory_space<vmem>>, vector<1x32xf32>
    %203 = vector.shape_cast %202 : vector<1x32xf32> to vector<32xf32>
    %204 = vector.shape_cast %203 : vector<32xf32> to vector<1x32xf32>
    %205 = vector.broadcast %204 : vector<1x32xf32> to vector<32x32xf32>
    %206 = arith.addf %201, %205 : vector<32x32xf32>
    %207 = arith.addf %160, %206 : vector<32x32xf32>
    %c0_60 = arith.constant 0 : index
    %c0_61 = arith.constant 0 : index
    %208 = vector.load %arg11[%c0_60, %c0_61] : memref<32x32xf32, #tpu.memory_space<vmem>>, vector<32x32xf32>
    tpu.vector_store %arg11[%c0_60, %c0_61], %207 {strides = array<i32>} : memref<32x32xf32, #tpu.memory_space<vmem>>, vector<32x32xf32>,
    return
  }
  func.func @transform_0(%arg0: i32) -> (i32, i32) {
    %c0_i32 = arith.constant 0 : i32
    %c0_i32_0 = arith.constant 0 : i32
    return %arg0, %c0_i32 : i32, i32
  }
  func.func @transform_1(%arg0: i32) -> (i32, i32) {
    %c0_i32 = arith.constant 0 : i32
    %c0_i32_0 = arith.constant 0 : i32
    %c0_i32_1 = arith.constant 0 : i32
    return %c0_i32, %c0_i32_0 : i32, i32
  }
  func.func @transform_2(%arg0: i32) -> (i32, i32) {
    %c0_i32 = arith.constant 0 : i32
    %c0_i32_0 = arith.constant 0 : i32
    %c0_i32_1 = arith.constant 0 : i32
    return %c0_i32, %c0_i32_0 : i32, i32
  }
  func.func @transform_3(%arg0: i32) -> (i32, i32) {
    %c0_i32 = arith.constant 0 : i32
    %c0_i32_0 = arith.constant 0 : i32
    %c0_i32_1 = arith.constant 0 : i32
    return %c0_i32, %c0_i32_0 : i32, i32
  }
  func.func @transform_4(%arg0: i32) -> (i32, i32) {
    %c0_i32 = arith.constant 0 : i32
    %c0_i32_0 = arith.constant 0 : i32
    %c0_i32_1 = arith.constant 0 : i32
    return %c0_i32, %c0_i32_0 : i32, i32
  }
  func.func @transform_5(%arg0: i32) -> (i32, i32) {
    %c0_i32 = arith.constant 0 : i32
    %c0_i32_0 = arith.constant 0 : i32
    %c0_i32_1 = arith.constant 0 : i32
    return %c0_i32, %c0_i32_0 : i32, i32
  }
  func.func @transform_6(%arg0: i32) -> (i32, i32) {
    %c0_i32 = arith.constant 0 : i32
    %c0_i32_0 = arith.constant 0 : i32
    %c0_i32_1 = arith.constant 0 : i32
    return %c0_i32, %c0_i32_0 : i32, i32
  }
  func.func @transform_7(%arg0: i32) -> (i32, i32) {
    %c0_i32 = arith.constant 0 : i32
    %c0_i32_0 = arith.constant 0 : i32
    %c0_i32_1 = arith.constant 0 : i32
    return %c0_i32, %c0_i32_0 : i32, i32
  }
  func.func @transform_8(%arg0: i32) -> (i32, i32) {
    %c0_i32 = arith.constant 0 : i32
    %c0_i32_0 = arith.constant 0 : i32
    %c0_i32_1 = arith.constant 0 : i32
    return %c0_i32, %c0_i32_0 : i32, i32
  }
  func.func @transform_9(%arg0: i32) -> (i32, i32) {
    %c0_i32 = arith.constant 0 : i32
    %c0_i32_0 = arith.constant 0 : i32
    %c0_i32_1 = arith.constant 0 : i32
    return %c0_i32, %c0_i32_0 : i32, i32
  }
  func.func @transform_10(%arg0: i32) -> (i32, i32) {
    %c0_i32 = arith.constant 0 : i32
    %c0_i32_0 = arith.constant 0 : i32
    return %arg0, %c0_i32 : i32, i32
  }
}

</mosaic_0001>

<llo_original>
// kernel: tpu_custom_call.1
$region0: #{tpu_custom_call.1}
  #allocation0 [shape = 'u32[]', space=smem, size = 0x4, offset = 0x4, fixed_abs, tag = 'smem constant byte address 0x4 - core index']
  #allocation1 [shape = 'u32[144,128]{1,0:T(1,128)}', space=vmem, size = 0x12000, scoped, tag = 'internal scratch']
  %s0 = inlined_call_operand.vmem [shape: f32[64,32], index: 0, kind: input, shape index: {}]
  %s1 = inlined_call_operand.vmem [shape: f32[1,32], index: 1, kind: input, shape index: {}]
  %s2 = inlined_call_operand.vmem [shape: f32[1,32], index: 2, kind: input, shape index: {}]
  %s3 = inlined_call_operand.vmem [shape: bf16[32,384], index: 3, kind: input, shape index: {}]
  %s4 = inlined_call_operand.vmem [shape: f32[1,32], index: 4, kind: input, shape index: {}]
  %s5 = inlined_call_operand.vmem [shape: f32[1,32], index: 5, kind: input, shape index: {}]
  %s6 = inlined_call_operand.vmem [shape: bf16[32,128], index: 6, kind: input, shape index: {}]
  %s7 = inlined_call_operand.vmem [shape: f32[1,128], index: 7, kind: input, shape index: {}]
  %s8 = inlined_call_operand.vmem [shape: bf16[128,32], index: 8, kind: input, shape index: {}]
  %s9 = inlined_call_operand.vmem [shape: f32[1,32], index: 9, kind: input, shape index: {}]
  %s10 = inlined_call_operand.vmem [shape: f32[64,32], index: 10, kind: output, shape index: {}]
  %s11 = sld [smem:[#allocation0]]
  $region73: #{tpu_custom_call.1} parent=0
    _
  %s13 = ssub.s32 1, %s11
  %s14 = scalar_select 0, %s13, %s11
  loop: start=0, step=1, limit=4
  $region2: #{tpu_custom_call.1} parent=0 // loop_pre_header
    _
  $region3: #{tpu_custom_call.1} parent=0 // loop_header
    %s16 = sphi 0, %s20
    %p17 = scmp.ge.s32.totalorder %s16, 4
    %s26 = sphi 0, %s28
    %s29 = sphi 0, %s26
    %s30 = sphi 0, %s29
    %s46 = sphi 0, %s30
    %s50 = sphi 0, %s50
    %s52 = sphi 0, %s50
    %s53 = sphi 0, %s52
    %s67 = sphi 0, %s53
    %s71 = sphi 0, %s71
    %s73 = sphi 0, %s71
    %s74 = sphi 0, %s73
    %s88 = sphi 0, %s74
    %s92 = sphi 0, %s92
    %s94 = sphi 0, %s92
    %s95 = sphi 0, %s94
    %s109 = sphi 0, %s95
    %s113 = sphi 0, %s113
    %s115 = sphi 0, %s113
    %s116 = sphi 0, %s115
    %s130 = sphi 0, %s116
    %s134 = sphi 0, %s134
    %s136 = sphi 0, %s134
    %s137 = sphi 0, %s136
    %s151 = sphi 0, %s137
    %s155 = sphi 0, %s155
    %s157 = sphi 0, %s155
    %s158 = sphi 0, %s157
    %s172 = sphi 0, %s158
    %s176 = sphi 0, %s176
    %s178 = sphi 0, %s176
    %s179 = sphi 0, %s178
    %s193 = sphi 0, %s179
    %s197 = sphi 0, %s197
    %s199 = sphi 0, %s197
    %s200 = sphi 0, %s199
    %s214 = sphi 0, %s200
    %s218 = sphi 0, %s218
    %s220 = sphi 0, %s218
    %s221 = sphi 0, %s220
    %s235 = sphi 0, %s221
    %s241 = sphi 0, %s243
    %s244 = sphi 0, %s241
    %s245 = sphi 0, %s244
    %s261 = sphi 0, %s245
  $region4: #{tpu_custom_call.1} parent=0 // loop_header_branch
    %19 = sbr.rel (%p17) target = $region8
  $region5: #{tpu_custom_call.1} parent=0 // loop_body
    %s21 = ssub.s32 %s16, 1
    %s22 = ssub.s32 %s16, 2
    %s23 = sadd.s32 %s16, 1
    %s24 = ssub.s32 %s16, %s23
    %p25 = scmp.eq.s32.totalorder %s24, 0
    %s27 = sadd.s32 %s26, 1
    %s28 = scalar_select %p25, %s26, %s27
    %p31 = pneg %p25
    %p32 = scmp.eq.s32.totalorder %s16, 1
    %p33 = por %p31, %p32
    %p34 = scmp.ne.s32.totalorder %s26, %s29
    %p35 = scmp.eq.s32.totalorder %s16, 0
    %p36 = por %p34, %p35
    %p37 = scmp.ne.s32.totalorder %s26, %s29
    %p38 = scmp.eq.s32.totalorder %s21, 1
    %p39 = por %p37, %p38
    %p40 = scmp.ne.s32.totalorder %s29, %s30
    %p41 = scmp.eq.s32.totalorder %s21, 0
    %p42 = por %p40, %p41
    %p43 = scmp.ne.s32.totalorder %s29, %s30
    %p44 = scmp.eq.s32.totalorder %s22, 1
    %p45 = por %p43, %p44
    %p47 = scmp.ne.s32.totalorder %s30, %s46
    %p48 = scmp.eq.s32.totalorder %s22, 0
    %p49 = por %p47, %p48
    %s51 = sadd.s32 %s50, 1
    %p54 = scmp.eq.s32.totalorder %s16, 1
    %p55 = scmp.ne.s32.totalorder %s50, %s52
    %p56 = scmp.eq.s32.totalorder %s16, 0
    %p57 = por %p55, %p56
    %p58 = scmp.ne.s32.totalorder %s50, %s52
    %p59 = scmp.eq.s32.totalorder %s21, 1
    %p60 = por %p58, %p59
    %p61 = scmp.ne.s32.totalorder %s52, %s53
    %p62 = scmp.eq.s32.totalorder %s21, 0
    %p63 = por %p61, %p62
    %p64 = scmp.ne.s32.totalorder %s52, %s53
    %p65 = scmp.eq.s32.totalorder %s22, 1
    %p66 = por %p64, %p65
    %p68 = scmp.ne.s32.totalorder %s53, %s67
    %p69 = scmp.eq.s32.totalorder %s22, 0
    %p70 = por %p68, %p69
    %s72 = sadd.s32 %s71, 1
    %p75 = scmp.eq.s32.totalorder %s16, 1
    %p76 = scmp.ne.s32.totalorder %s71, %s73
    %p77 = scmp.eq.s32.totalorder %s16, 0
    %p78 = por %p76, %p77
    %p79 = scmp.ne.s32.totalorder %s71, %s73
    %p80 = scmp.eq.s32.totalorder %s21, 1
    %p81 = por %p79, %p80
    %p82 = scmp.ne.s32.totalorder %s73, %s74
    %p83 = scmp.eq.s32.totalorder %s21, 0
    %p84 = por %p82, %p83
    %p85 = scmp.ne.s32.totalorder %s73, %s74
    %p86 = scmp.eq.s32.totalorder %s22, 1
    %p87 = por %p85, %p86
    %p89 = scmp.ne.s32.totalorder %s74, %s88
    %p90 = scmp.eq.s32.totalorder %s22, 0
    %p91 = por %p89, %p90
    %s93 = sadd.s32 %s92, 1
    %p96 = scmp.eq.s32.totalorder %s16, 1
    %p97 = scmp.ne.s32.totalorder %s92, %s94
    %p98 = scmp.eq.s32.totalorder %s16, 0
    %p99 = por %p97, %p98
    %p100 = scmp.ne.s32.totalorder %s92, %s94
    %p101 = scmp.eq.s32.totalorder %s21, 1
    %p102 = por %p100, %p101
    %p103 = scmp.ne.s32.totalorder %s94, %s95
    %p104 = scmp.eq.s32.totalorder %s21, 0
    %p105 = por %p103, %p104
    %p106 = scmp.ne.s32.totalorder %s94, %s95
    %p107 = scmp.eq.s32.totalorder %s22, 1
    %p108 = por %p106, %p107
    %p110 = scmp.ne.s32.totalorder %s95, %s109
    %p111 = scmp.eq.s32.totalorder %s22, 0
    %p112 = por %p110, %p111
    %s114 = sadd.s32 %s113, 1
    %p117 = scmp.eq.s32.totalorder %s16, 1
    %p118 = scmp.ne.s32.totalorder %s113, %s115
    %p119 = scmp.eq.s32.totalorder %s16, 0
    %p120 = por %p118, %p119
    %p121 = scmp.ne.s32.totalorder %s113, %s115
    %p122 = scmp.eq.s32.totalorder %s21, 1
    %p123 = por %p121, %p122
    %p124 = scmp.ne.s32.totalorder %s115, %s116
    %p125 = scmp.eq.s32.totalorder %s21, 0
    %p126 = por %p124, %p125
    %p127 = scmp.ne.s32.totalorder %s115, %s116
    %p128 = scmp.eq.s32.totalorder %s22, 1
    %p129 = por %p127, %p128
    %p131 = scmp.ne.s32.totalorder %s116, %s130
    %p132 = scmp.eq.s32.totalorder %s22, 0
    %p133 = por %p131, %p132
    %s135 = sadd.s32 %s134, 1
    %p138 = scmp.eq.s32.totalorder %s16, 1
    %p139 = scmp.ne.s32.totalorder %s134, %s136
    %p140 = scmp.eq.s32.totalorder %s16, 0
    %p141 = por %p139, %p140
    %p142 = scmp.ne.s32.totalorder %s134, %s136
    %p143 = scmp.eq.s32.totalorder %s21, 1
    %p144 = por %p142, %p143
    %p145 = scmp.ne.s32.totalorder %s136, %s137
    %p146 = scmp.eq.s32.totalorder %s21, 0
    %p147 = por %p145, %p146
    %p148 = scmp.ne.s32.totalorder %s136, %s137
    %p149 = scmp.eq.s32.totalorder %s22, 1
    %p150 = por %p148, %p149
    %p152 = scmp.ne.s32.totalorder %s137, %s151
    %p153 = scmp.eq.s32.totalorder %s22, 0
    %p154 = por %p152, %p153
    %s156 = sadd.s32 %s155, 1
    %p159 = scmp.eq.s32.totalorder %s16, 1
    %p160 = scmp.ne.s32.totalorder %s155, %s157
    %p161 = scmp.eq.s32.totalorder %s16, 0
    %p162 = por %p160, %p161
    %p163 = scmp.ne.s32.totalorder %s155, %s157
    %p164 = scmp.eq.s32.totalorder %s21, 1
    %p165 = por %p163, %p164
    %p166 = scmp.ne.s32.totalorder %s157, %s158
    %p167 = scmp.eq.s32.totalorder %s21, 0
    %p168 = por %p166, %p167
    %p169 = scmp.ne.s32.totalorder %s157, %s158
    %p170 = scmp.eq.s32.totalorder %s22, 1
    %p171 = por %p169, %p170
    %p173 = scmp.ne.s32.totalorder %s158, %s172
    %p174 = scmp.eq.s32.totalorder %s22, 0
    %p175 = por %p173, %p174
    %s177 = sadd.s32 %s176, 1
    %p180 = scmp.eq.s32.totalorder %s16, 1
    %p181 = scmp.ne.s32.totalorder %s176, %s178
    %p182 = scmp.eq.s32.totalorder %s16, 0
    %p183 = por %p181, %p182
    %p184 = scmp.ne.s32.totalorder %s176, %s178
    %p185 = scmp.eq.s32.totalorder %s21, 1
    %p186 = por %p184, %p185
    %p187 = scmp.ne.s32.totalorder %s178, %s179
    %p188 = scmp.eq.s32.totalorder %s21, 0
    %p189 = por %p187, %p188
    %p190 = scmp.ne.s32.totalorder %s178, %s179
    %p191 = scmp.eq.s32.totalorder %s22, 1
    %p192 = por %p190, %p191
    %p194 = scmp.ne.s32.totalorder %s179, %s193
    %p195 = scmp.eq.s32.totalorder %s22, 0
    %p196 = por %p194, %p195
    %s198 = sadd.s32 %s197, 1
    %p201 = scmp.eq.s32.totalorder %s16, 1
    %p202 = scmp.ne.s32.totalorder %s197, %s199
    %p203 = scmp.eq.s32.totalorder %s16, 0
    %p204 = por %p202, %p203
    %p205 = scmp.ne.s32.totalorder %s197, %s199
    %p206 = scmp.eq.s32.totalorder %s21, 1
    %p207 = por %p205, %p206
    %p208 = scmp.ne.s32.totalorder %s199, %s200
    %p209 = scmp.eq.s32.totalorder %s21, 0
    %p210 = por %p208, %p209
    %p211 = scmp.ne.s32.totalorder %s199, %s200
    %p212 = scmp.eq.s32.totalorder %s22, 1
    %p213 = por %p211, %p212
    %p215 = scmp.ne.s32.totalorder %s200, %s214
    %p216 = scmp.eq.s32.totalorder %s22, 0
    %p217 = por %p215, %p216
    %s219 = sadd.s32 %s218, 1
    %p222 = scmp.eq.s32.totalorder %s16, 1
    %p223 = scmp.ne.s32.totalorder %s218, %s220
    %p224 = scmp.eq.s32.totalorder %s16, 0
    %p225 = por %p223, %p224
    %p226 = scmp.ne.s32.totalorder %s218, %s220
    %p227 = scmp.eq.s32.totalorder %s21, 1
    %p228 = por %p226, %p227
    %p229 = scmp.ne.s32.totalorder %s220, %s221
    %p230 = scmp.eq.s32.totalorder %s21, 0
    %p231 = por %p229, %p230
    %p232 = scmp.ne.s32.totalorder %s220, %s221
    %p233 = scmp.eq.s32.totalorder %s22, 1
    %p234 = por %p232, %p233
    %p236 = scmp.ne.s32.totalorder %s221, %s235
    %p237 = scmp.eq.s32.totalorder %s22, 0
    %p238 = por %p236, %p237
    %s239 = ssub.s32 %s16, %s23
    %p240 = scmp.eq.s32.totalorder %s239, 0
    %s242 = sadd.s32 %s241, 1
    %s243 = scalar_select %p240, %s241, %s242
    %p246 = pneg %p240
    %p247 = scmp.eq.s32.totalorder %s16, 1
    %p248 = por %p246, %p247
    %p249 = scmp.ne.s32.totalorder %s241, %s244
    %p250 = scmp.eq.s32.totalorder %s16, 0
    %p251 = por %p249, %p250
    %p252 = scmp.ne.s32.totalorder %s241, %s244
    %p253 = scmp.eq.s32.totalorder %s21, 1
    %p254 = por %p252, %p253
    %p255 = scmp.ne.s32.totalorder %s244, %s245
    %p256 = scmp.eq.s32.totalorder %s21, 0
    %p257 = por %p255, %p256
    %p258 = scmp.ne.s32.totalorder %s244, %s245
    %p259 = scmp.eq.s32.totalorder %s22, 1
    %p260 = por %p258, %p259
    %p262 = scmp.ne.s32.totalorder %s245, %s261
    %p263 = scmp.eq.s32.totalorder %s22, 0
    %p264 = por %p262, %p263
    %p265 = scmp.le.s32.totalorder 1, %s16
    %p266 = scmp.lt.s32.totalorder %s16, 3
    %p267 = pnand %p265, %p266
    %p268 = pneg %p267
    // Predicated region
    $region9: #{tpu_custom_call.1} parent=5 // pred_check
      _
    $region10: #{tpu_custom_call.1} parent=5 // pred_check_branch
      %270 = sbr.rel (%p267) target = $region12
    $region11: #{tpu_custom_call.1} parent=5 // pred_region
      %s271 = ssub.s32 %s16, 1
      // Predicated region
      $region13: #{tpu_custom_call.1} parent=11 // pred_check
        %p272 = pneg %p63
      $region14: #{tpu_custom_call.1} parent=11 // pred_check_branch
        %274 = sbr.rel (%p272) target = $region16
      $region15: #{tpu_custom_call.1} parent=11 // pred_region
        _
      $region16: #{tpu_custom_call.1} parent=11 // pred_fallthru
        _
      // Predicated region
      $region17: #{tpu_custom_call.1} parent=11 // pred_check
        %p275 = pneg %p84
      $region18: #{tpu_custom_call.1} parent=11 // pred_check_branch
        %277 = sbr.rel (%p275) target = $region20
      $region19: #{tpu_custom_call.1} parent=11 // pred_region
        _
      $region20: #{tpu_custom_call.1} parent=11 // pred_fallthru
        _
      // Predicated region
      $region21: #{tpu_custom_call.1} parent=11 // pred_check
        %p278 = pneg %p105
      $region22: #{tpu_custom_call.1} parent=11 // pred_check_branch
        %280 = sbr.rel (%p278) target = $region24
      $region23: #{tpu_custom_call.1} parent=11 // pred_region
        _
      $region24: #{tpu_custom_call.1} parent=11 // pred_fallthru
        _
      // Predicated region
      $region25: #{tpu_custom_call.1} parent=11 // pred_check
        %p281 = pneg %p126
      $region26: #{tpu_custom_call.1} parent=11 // pred_check_branch
        %283 = sbr.rel (%p281) target = $region28
      $region27: #{tpu_custom_call.1} parent=11 // pred_region
        _
      $region28: #{tpu_custom_call.1} parent=11 // pred_fallthru
        _
      // Predicated region
      $region29: #{tpu_custom_call.1} parent=11 // pred_check
        %p284 = pneg %p147
      $region30: #{tpu_custom_call.1} parent=11 // pred_check_branch
        %286 = sbr.rel (%p284) target = $region32
      $region31: #{tpu_custom_call.1} parent=11 // pred_region
        _
      $region32: #{tpu_custom_call.1} parent=11 // pred_fallthru
        _
      // Predicated region
      $region33: #{tpu_custom_call.1} parent=11 // pred_check
        %p287 = pneg %p168
      $region34: #{tpu_custom_call.1} parent=11 // pred_check_branch
        %289 = sbr.rel (%p287) target = $region36
      $region35: #{tpu_custom_call.1} parent=11 // pred_region
        _
      $region36: #{tpu_custom_call.1} parent=11 // pred_fallthru
        _
      // Predicated region
      $region37: #{tpu_custom_call.1} parent=11 // pred_check
        %p290 = pneg %p189
      $region38: #{tpu_custom_call.1} parent=11 // pred_check_branch
        %292 = sbr.rel (%p290) target = $region40
      $region39: #{tpu_custom_call.1} parent=11 // pred_region
        _
      $region40: #{tpu_custom_call.1} parent=11 // pred_fallthru
        _
      // Predicated region
      $region41: #{tpu_custom_call.1} parent=11 // pred_check
        %p293 = pneg %p210
      $region42: #{tpu_custom_call.1} parent=11 // pred_check_branch
        %295 = sbr.rel (%p293) target = $region44
      $region43: #{tpu_custom_call.1} parent=11 // pred_region
        _
      $region44: #{tpu_custom_call.1} parent=11 // pred_fallthru
        _
      // Predicated region
      $region45: #{tpu_custom_call.1} parent=11 // pred_check
        %p296 = pneg %p231
      $region46: #{tpu_custom_call.1} parent=11 // pred_check_branch
        %298 = sbr.rel (%p296) target = $region48
      $region47: #{tpu_custom_call.1} parent=11 // pred_region
        _
      $region48: #{tpu_custom_call.1} parent=11 // pred_fallthru
        _
    $region12: #{tpu_custom_call.1} parent=5 // pred_fallthru
      _
    %p299 = scmp.lt.s32.totalorder %s16, 2
    // Predicated region
    $region49: #{tpu_custom_call.1} parent=5 // pred_check
      %p300 = pneg %p299
    $region50: #{tpu_custom_call.1} parent=5 // pred_check_branch
      %302 = sbr.rel (%p300) target = $region52
    $region51: #{tpu_custom_call.1} parent=5 // pred_region
      // Predicated region
      $region53: #{tpu_custom_call.1} parent=51 // pred_check
        %p303 = pneg %p36
      $region54: #{tpu_custom_call.1} parent=51 // pred_check_branch
        %305 = sbr.rel (%p303) target = $region56
      $region55: #{tpu_custom_call.1} parent=51 // pred_region
        %s306 = smul.u32 4, %s16
        %p307 = scmp.lt.s32.totalorder %s306, 7
        %s308 = scalar_select %p307, %s306, 7
        %s309 = smul.addr %s308, 8
        %s310 = scalar_lea.vmem %s0, %s309
        %s311 = smul.u32 4, %s16
      $region56: #{tpu_custom_call.1} parent=51 // pred_fallthru
        _
    $region52: #{tpu_custom_call.1} parent=5 // pred_fallthru
      _
    %p312 = scmp.le.s32.totalorder 1, %s16
    %p313 = scmp.lt.s32.totalorder %s16, 3
    %p314 = pnand %p312, %p313
    %p315 = pneg %p314
    // Predicated region
    $region57: #{tpu_custom_call.1} parent=5 // pred_check
      _
    $region58: #{tpu_custom_call.1} parent=5 // pred_check_branch
      %317 = sbr.rel (%p314) target = $region60
    $region59: #{tpu_custom_call.1} parent=5 // pred_region
      %s318 = ssub.s32 %s16, 1
      %s319 = smul.u32 4, %s21
      %p320 = scmp.lt.s32.totalorder %s319, 7
      %s321 = scalar_select %p320, %s319, 7
      %s322 = smul.addr %s321, 8
      %s323 = scalar_lea.vmem %s0, %s322
      %p324 = pneg %p42
      %p325 = pneg %p39
      %p326 = pneg %p63
      %p327 = pneg %p60
      %p328 = pneg %p84
      %p329 = pneg %p81
      %p330 = pneg %p105
      %p331 = pneg %p102
      %p332 = pneg %p126
      %p333 = pneg %p123
      %p334 = pneg %p147
      %p335 = pneg %p144
      %p336 = pneg %p168
      %p337 = pneg %p165
      %p338 = pneg %p189
      %p339 = pneg %p186
      %p340 = pneg %p210
      %p341 = pneg %p207
      %p342 = pneg %p231
      %p343 = pneg %p228
      %p344 = pneg %p257
      %p345 = pneg %p254
      %s346 = smul.u32 4, %s21
      %p347 = scmp.lt.s32.totalorder %s346, 7
      %s348 = scalar_select %p347, %s346, 7
      %s349 = smul.addr %s348, 8
      %s350 = scalar_lea.vmem %s10, %s349
      %s351 = smul.u32 4, %s21
      %p352 = scmp.lt.s32.totalorder %s351, 7
      %s353 = scalar_select %p352, %s351, 7
      %s354 = smul.addr %s353, 8
      %s355 = scalar_lea.vmem %s0, %s354
      %s356 = smul.u32 4, %s21
      %s357 = smul.u32 4, %s21
      %p358 = scmp.lt.s32.totalorder %s357, 7
      %s359 = scalar_select %p358, %s357, 7
      %s360 = smul.addr %s359, 8
      %s361 = scalar_lea.vmem %s10, %s360
      %s362 = smul.u32 4, %s21
      %v364 = vld [vmem:[%s355] sm:$0xff]
      %v365 = vld [vmem:[%s355 + $0x8] sm:$0xff]
      %v366 = vld [vmem:[%s355 + $0x10] sm:$0xff]
      %v367 = vld [vmem:[%s355 + $0x18] sm:$0xff]
      %v368 = vld [vmem:[%s1] sm:$0x1]
      %v369 = vld [vmem:[%s2] sm:$0x1]
      %vm370 = vcmask 261120
      %v371 = vsel %vm370, %v364, 0.0
      %372 = vadd.xlane.f32.xlu0 %v371
      %v373 = vpop.xlane.xlu0 %372
      %v374 = vsel %vm370, %v365, 0.0
      %375 = vadd.xlane.f32.xlu0 %v374
      %v376 = vpop.xlane.xlu0 %375
      %v377 = vsel %vm370, %v366, 0.0
      %378 = vadd.xlane.f32.xlu0 %v377
      %v379 = vpop.xlane.xlu0 %378
      %v380 = vsel %vm370, %v367, 0.0
      %381 = vadd.xlane.f32.xlu0 %v380
      %v382 = vpop.xlane.xlu0 %381
      %v383 = vrcp.pop 32.0
      %v384 = vmul.f32 %v373, %v383
      %v385 = vmul.f32 %v376, %v383
      %v386 = vmul.f32 %v379, %v383
      %v387 = vmul.f32 %v382, %v383
      %v388 = vsub.f32 %v364, %v384
      %v389 = vsub.f32 %v365, %v385
      %v390 = vsub.f32 %v366, %v386
      %v391 = vsub.f32 %v367, %v387
      %v392 = vmul.f32 %v388, %v388
      %v393 = vmul.f32 %v389, %v389
      %v394 = vmul.f32 %v390, %v390
      %v395 = vmul.f32 %v391, %v391
      %v396 = vsel %vm370, %v392, 0.0
      %397 = vadd.xlane.f32.xlu0 %v396
      %v398 = vpop.xlane.xlu0 %397
      %v399 = vsel %vm370, %v393, 0.0
      %400 = vadd.xlane.f32.xlu0 %v399
      %v401 = vpop.xlane.xlu0 %400
      %v402 = vsel %vm370, %v394, 0.0
      %403 = vadd.xlane.f32.xlu0 %v402
      %v404 = vpop.xlane.xlu0 %403
      %v405 = vsel %vm370, %v395, 0.0
      %406 = vadd.xlane.f32.xlu0 %v405
      %v407 = vpop.xlane.xlu0 %406
      %v408 = vmul.f32 %v398, %v383
      %v409 = vmul.f32 %v401, %v383
      %v410 = vmul.f32 %v404, %v383
      %v411 = vmul.f32 %v407, %v383
      %v412 = vadd.f32 %v408, 1e-05
      %v413 = vadd.f32 %v409, 1e-05
      %v414 = vadd.f32 %v410, 1e-05
      %v415 = vadd.f32 %v411, 1e-05
      %v416 = vrsqrt.pop %v412
      %v417 = vrsqrt.pop %v413
      %v418 = vrsqrt.pop %v414
      %v419 = vrsqrt.pop %v415
      %v420 = vmul.f32 %v388, %v416
      %v421 = vmul.f32 %v389, %v417
      %v422 = vmul.f32 %v390, %v418
      %v423 = vmul.f32 %v391, %v419
      %v425 = vlaneseq
      %v426 = vshrl.u32 %v425, 7
      %v427 = vsub.s32 0, %v426
      %v428 = vrot.slane %v368, %v427
      %v430 = vmul.f32 %v420, %v428
      %v431 = vmul.f32 %v421, %v428
      %v432 = vmul.f32 %v422, %v428
      %v433 = vmul.f32 %v423, %v428
      %v435 = vlaneseq
      %v436 = vshrl.u32 %v435, 7
      %v437 = vsub.s32 0, %v436
      %v438 = vrot.slane %v369, %v437
      %v440 = vadd.f32 %v430, %v438
      %v441 = vadd.f32 %v431, %v438
      %v442 = vadd.f32 %v432, %v438
      %v443 = vadd.f32 %v433, %v438
      %v444 = vpack.c.bf16 %v441, %v440
      %v445 = vpack.c.bf16 %v443, %v442
      %v446 = vld [vmem:[%s3] sm:$0xff]
      %v447 = vld [vmem:[%s3 + $0x8] sm:$0xf]
      %v448 = vld [vmem:[%s3 + $0xc] sm:$0xff]
      %v449 = vld [vmem:[%s3 + $0x14] sm:$0xf]
      %v450 = vld [vmem:[%s3 + $0x18] sm:$0xff]
      %v451 = vld [vmem:[%s3 + $0x20] sm:$0xf]
      %v452 = vld [vmem:[%s3 + $0x24] sm:$0xff]
      %v453 = vld [vmem:[%s3 + $0x2c] sm:$0xf]
      %v462 = vunpack.c.l.b16 %v446
      %v463 = vunpack.c.h.b16 %v446
      %v464 = vunpack.c.l.b16 %v447
      %v465 = vunpack.c.l.b16 %v448
      %v466 = vunpack.c.h.b16 %v448
      %v467 = vunpack.c.l.b16 %v449
      %v468 = vunpack.c.l.b16 %v450
      %v469 = vunpack.c.h.b16 %v450
      %v470 = vunpack.c.l.b16 %v451
      %v471 = vunpack.c.l.b16 %v452
      %v472 = vunpack.c.h.b16 %v452
      %v473 = vunpack.c.l.b16 %v453
      %v474 = vpack.c.b16 %v465, %v462
      %v475 = vpack.c.b16 %v466, %v463
      %v476 = vpack.c.b16 %v467, %v464
      %v477 = vpack.c.b16 %v471, %v468
      %v478 = vpack.c.b16 %v472, %v469
      %v479 = vpack.c.b16 %v473, %v470
      %v487 = vsel %vm370, %v444, 0
      %v490 = vsel %vm370, %v445, 0
      %492 = vmatprep.subr.bf16.mxu0 0
      %493 = vmatpush1.bf16.msra.mxu0 0
      %494 = vmatprep.subr.bf16.mxu0 0
      %495 = vmatpush1.bf16.msra.mxu0 0
      %496 = vmatprep.subr.bf16.mxu0 0
      %497 = vmatpush1.bf16.msra.mxu0 0
      %498 = vmatprep.subr.bf16.mxu0 0
      %499 = vmatpush1.bf16.msra.mxu0 0
      %500 = vmatprep.subr.bf16.mxu0 0
      %501 = vmatpush1.bf16.msra.mxu0 0
      %502 = vmatprep.subr.bf16.mxu0 0
      %503 = vmatpush1.bf16.msra.mxu0 0
      %504 = vmatprep.subr.bf16.mxu0 %v478
      %505 = vmatpush1.bf16.msra.mxu0 %v477
      %506 = vmatprep.subr.bf16.mxu0 %v475
      %507 = vmatpush1.bf16.msra.mxu0 %v474
      %508 = vmatprep.subr.bf16.mxu0 0
      %509 = vmatpush2.bf16.msra.mxu0 0
      %510 = vmatprep.subr.bf16.mxu0 0
      %511 = vmatpush2.bf16.msra.mxu0 0
      %512 = vmatprep.subr.bf16.mxu0 0
      %513 = vmatpush2.bf16.msra.mxu0 0
      %514 = vmatprep.subr.bf16.mxu0 0
      %515 = vmatpush2.bf16.msra.mxu0 0
      %516 = vmatprep.subr.bf16.mxu0 0
      %517 = vmatpush2.bf16.msra.mxu0 0
      %518 = vmatprep.subr.bf16.mxu0 0
      %519 = vmatpush2.bf16.msra.mxu0 0
      %520 = vmatprep.subr.bf16.mxu0 0
      %521 = vmatpush2.bf16.msra.mxu0 0
      %522 = vmatprep.subr.bf16.mxu0 0
      %523 = vmatpush2.bf16.msra.mxu0 0
      %524 = vmatprep.mubr.bf16.mxu0 0
      %525 = vmatmul.mubr.bf16.gmra.mxu0 %v487
      %v526 = vpop.f32.mrf.mxu0
      %v527 = vadd.f32 0.0, %v526
      %v528 = vpop.f32.mrf.mxu0
      %v529 = vadd.f32 0.0, %v528
      %v530 = vpop.f32.mrf.mxu0
      %v531 = vadd.f32 0.0, %v530
      %v532 = vpop.f32.mrf.mxu0
      %v533 = vadd.f32 0.0, %v532
      %534 = vmatprep.mubr.bf16.mxu0 0
      %535 = vmatmul.mubr.bf16.gmra.mxu0 %v490
      %v536 = vpop.f32.mrf.mxu0
      %v537 = vadd.f32 0.0, %v536
      %v538 = vpop.f32.mrf.mxu0
      %v539 = vadd.f32 0.0, %v538
      %v540 = vpop.f32.mrf.mxu0
      %v541 = vadd.f32 0.0, %v540
      %v542 = vpop.f32.mrf.mxu0
      %v543 = vadd.f32 0.0, %v542
      %544 = vdwg.mxu0
      %545 = vmatprep.subr.bf16.mxu0 0
      %546 = vmatpush1.bf16.msra.mxu0 0
      %547 = vmatprep.subr.bf16.mxu0 0
      %548 = vmatpush1.bf16.msra.mxu0 0
      %549 = vmatprep.subr.bf16.mxu0 0
      %550 = vmatpush1.bf16.msra.mxu0 0
      %551 = vmatprep.subr.bf16.mxu0 0
      %552 = vmatpush1.bf16.msra.mxu0 0
      %553 = vmatprep.subr.bf16.mxu0 0
      %554 = vmatpush1.bf16.msra.mxu0 0
      %555 = vmatprep.subr.bf16.mxu0 0
      %556 = vmatpush1.bf16.msra.mxu0 0
      %557 = vmatprep.subr.bf16.mxu0 0
      %558 = vmatpush1.bf16.msra.mxu0 %v479
      %559 = vmatprep.subr.bf16.mxu0 0
      %560 = vmatpush1.bf16.msra.mxu0 %v476
      %561 = vmatprep.subr.bf16.mxu0 0
      %562 = vmatpush2.bf16.msra.mxu0 0
      %563 = vmatprep.subr.bf16.mxu0 0
      %564 = vmatpush2.bf16.msra.mxu0 0
      %565 = vmatprep.subr.bf16.mxu0 0
      %566 = vmatpush2.bf16.msra.mxu0 0
      %567 = vmatprep.subr.bf16.mxu0 0
      %568 = vmatpush2.bf16.msra.mxu0 0
      %569 = vmatprep.subr.bf16.mxu0 0
      %570 = vmatpush2.bf16.msra.mxu0 0
      %571 = vmatprep.subr.bf16.mxu0 0
      %572 = vmatpush2.bf16.msra.mxu0 0
      %573 = vmatprep.subr.bf16.mxu0 0
      %574 = vmatpush2.bf16.msra.mxu0 0
      %575 = vmatprep.subr.bf16.mxu0 0
      %576 = vmatpush2.bf16.msra.mxu0 0
      %577 = vmatprep.mubr.bf16.mxu0 0
      %578 = vmatmul.mubr.bf16.gmra.mxu0 %v487
      %v579 = vpop.f32.mrf.mxu0
      %v580 = vadd.f32 0.0, %v579
      %v581 = vpop.f32.mrf.mxu0
      %v582 = vpop.f32.mrf.mxu0
      %v583 = vadd.f32 0.0, %v582
      %v584 = vpop.f32.mrf.mxu0
      %585 = vmatprep.mubr.bf16.mxu0 0
      %586 = vmatmul.mubr.bf16.gmra.mxu0 %v490
      %v587 = vpop.f32.mrf.mxu0
      %v588 = vadd.f32 0.0, %v587
      %v589 = vpop.f32.mrf.mxu0
      %v590 = vpop.f32.mrf.mxu0
      %v591 = vadd.f32 0.0, %v590
      %v592 = vpop.f32.mrf.mxu0
      %593 = vdwg.mxu0
      %v594 = vpack.c.bf16 %v583, %v580
      %v595 = vpack.c.bf16 %v591, %v588
      %600 = vrot.lane.b32.xlu0 %v527, 120
      %v601 = vpop.permute.xlu0 %600
      %602 = vrot.lane.b32.xlu0 %v531, 120
      %v603 = vpop.permute.xlu0 %602
      %604 = vrot.lane.b32.xlu0 %v537, 120
      %v605 = vpop.permute.xlu0 %604
      %606 = vrot.lane.b32.xlu0 %v541, 120
      %v607 = vpop.permute.xlu0 %606
      %608 = vrot.lane.b32.xlu0 %v527, 112
      %v609 = vpop.permute.xlu0 %608
      %610 = vrot.lane.b32.xlu0 %v531, 112
      %v611 = vpop.permute.xlu0 %610
      %612 = vrot.lane.b32.xlu0 %v537, 112
      %v613 = vpop.permute.xlu0 %612
      %614 = vrot.lane.b32.xlu0 %v541, 112
      %v615 = vpop.permute.xlu0 %614
      %616 = vrot.lane.b32.xlu0 %v527, 104
      %v617 = vpop.permute.xlu0 %616
      %618 = vrot.lane.b32.xlu0 %v531, 104
      %v619 = vpop.permute.xlu0 %618
      %620 = vrot.lane.b32.xlu0 %v537, 104
      %v621 = vpop.permute.xlu0 %620
      %622 = vrot.lane.b32.xlu0 %v541, 104
      %v623 = vpop.permute.xlu0 %622
      %628 = vrot.lane.b32.xlu0 %v529, 120
      %v629 = vpop.permute.xlu0 %628
      %630 = vrot.lane.b32.xlu0 %v533, 120
      %v631 = vpop.permute.xlu0 %630
      %632 = vrot.lane.b32.xlu0 %v539, 120
      %v633 = vpop.permute.xlu0 %632
      %634 = vrot.lane.b32.xlu0 %v543, 120
      %v635 = vpop.permute.xlu0 %634
      %636 = vrot.lane.b32.xlu0 %v529, 112
      %v637 = vpop.permute.xlu0 %636
      %638 = vrot.lane.b32.xlu0 %v533, 112
      %v639 = vpop.permute.xlu0 %638
      %640 = vrot.lane.b32.xlu0 %v539, 112
      %v641 = vpop.permute.xlu0 %640
      %642 = vrot.lane.b32.xlu0 %v543, 112
      %v643 = vpop.permute.xlu0 %642
      %644 = vrot.lane.b32.xlu0 %v529, 104
      %v645 = vpop.permute.xlu0 %644
      %646 = vrot.lane.b32.xlu0 %v533, 104
      %v647 = vpop.permute.xlu0 %646
      %648 = vrot.lane.b32.xlu0 %v539, 104
      %v649 = vpop.permute.xlu0 %648
      %650 = vrot.lane.b32.xlu0 %v543, 104
      %v651 = vpop.permute.xlu0 %650
      %654 = vrot.lane.b32.xlu0 %v594, 96
      %v655 = vpop.permute.xlu0 %654
      %656 = vrot.lane.b32.xlu0 %v595, 96
      %v657 = vpop.permute.xlu0 %656
      %658 = vrot.lane.b32.xlu0 %v594, 64
      %v659 = vpop.permute.xlu0 %658
      %660 = vrot.lane.b32.xlu0 %v595, 64
      %v661 = vpop.permute.xlu0 %660
      %662 = vrot.lane.b32.xlu0 %v594, 32
      %v663 = vpop.permute.xlu0 %662
      %664 = vrot.lane.b32.xlu0 %v595, 32
      %v665 = vpop.permute.xlu0 %664
      %v666 = vlaneseq
      %v667 = vshrl.u32 %v666, 7
      %v668 = vlaneseq
      %v669 = vand.u32 %v668, 127
      %vm670 = vcmp.le.s32.totalorder %v669, %v667
      %vm671 = vcmask 64512
      %v672 = vsel %vm671, %v527, 0
      %v674 = vsel %vm671, %v529, 0
      %676 = vmatprep.subr.mxu0 0.0
      %677 = vmatpush1.xpose.msra.mxu0 0.0
      %678 = vmatprep.subr.mxu0 0.0
      %679 = vmatpush1.xpose.msra.mxu0 0.0
      %680 = vmatprep.subr.mxu0 0.0
      %681 = vmatpush1.xpose.msra.mxu0 0.0
      %682 = vmatprep.subr.mxu0 0.0
      %683 = vmatpush1.xpose.msra.mxu0 0.0
      %684 = vmatprep.subr.mxu0 0.0
      %685 = vmatpush1.xpose.msra.mxu0 0.0
      %686 = vmatprep.subr.mxu0 0.0
      %687 = vmatpush1.xpose.msra.mxu0 0.0
      %688 = vmatprep.subr.mxu0 0.0
      %689 = vmatpush1.xpose.msra.mxu0 0.0
      %690 = vmatprep.subr.mxu0 0.0
      %691 = vmatpush1.xpose.msra.mxu0 0.0
      %692 = vmatprep.subr.mxu0 0.0
      %693 = vmatpush1.xpose.msra.mxu0 0.0
      %694 = vmatprep.subr.mxu0 0.0
      %695 = vmatpush1.xpose.msra.mxu0 0.0
      %696 = vmatprep.subr.mxu0 0.0
      %697 = vmatpush1.xpose.msra.mxu0 0.0
      %698 = vmatprep.subr.mxu0 0.0
      %699 = vmatpush1.xpose.msra.mxu0 0.0
      %700 = vmatprep.subr.mxu0 0.0
      %701 = vmatpush1.xpose.msra.mxu0 0.0
      %702 = vmatprep.subr.mxu0 0.0
      %703 = vmatpush1.xpose.msra.mxu0 0.0
      %704 = vmatprep.subr.mxu0 0.0
      %705 = vmatpush1.xpose.msra.mxu0 0.0
      %706 = vmatprep.subr.mxu0 0.0
      %707 = vmatpush1.xpose.msra.mxu0 %v674
      %708 = vmatprep.subr.mxu0 0.0
      %709 = vmatpush2.xpose.msra.mxu0 0.0
      %710 = vmatprep.subr.mxu0 0.0
      %711 = vmatpush2.xpose.msra.mxu0 0.0
      %712 = vmatprep.subr.mxu0 0.0
      %713 = vmatpush2.xpose.msra.mxu0 0.0
      %714 = vmatprep.subr.mxu0 0.0
      %715 = vmatpush2.xpose.msra.mxu0 0.0
      %716 = vmatprep.subr.mxu0 0.0
      %717 = vmatpush2.xpose.msra.mxu0 0.0
      %718 = vmatprep.subr.mxu0 0.0
      %719 = vmatpush2.xpose.msra.mxu0 0.0
      %720 = vmatprep.subr.mxu0 0.0
      %721 = vmatpush2.xpose.msra.mxu0 0.0
      %722 = vmatprep.subr.mxu0 0.0
      %723 = vmatpush2.xpose.msra.mxu0 0.0
      %724 = vmatprep.subr.mxu0 0.0
      %725 = vmatpush2.xpose.msra.mxu0 0.0
      %726 = vmatprep.subr.mxu0 0.0
      %727 = vmatpush2.xpose.msra.mxu0 0.0
      %728 = vmatprep.subr.mxu0 0.0
      %729 = vmatpush2.xpose.msra.mxu0 0.0
      %730 = vmatprep.subr.mxu0 0.0
      %731 = vmatpush2.xpose.msra.mxu0 0.0
      %732 = vmatprep.subr.mxu0 0.0
      %733 = vmatpush2.xpose.msra.mxu0 0.0
      %734 = vmatprep.subr.mxu0 0.0
      %735 = vmatpush2.xpose.msra.mxu0 0.0
      %736 = vmatprep.subr.mxu0 0.0
      %737 = vmatpush2.xpose.msra.mxu0 0.0
      %738 = vmatprep.subr.mxu0 0.0
      %739 = vmatpush2.xpose.msra.mxu0 0.0
      %740 = vmatprep.mubr.f32.mxu0 0.0
      %741 = vmatmul.mubr.f32.gmra.mxu0 %v672
      %v742 = vpop.f32.mrf.mxu0
      %v743 = vadd.f32 0.0, %v742
      %v744 = vpop.f32.mrf.mxu0
      %745 = vdwg.mxu0
      %v746 = vsel %vm671, %v601, 0
      %v748 = vsel %vm671, %v629, 0
      %750 = vmatprep.subr.mxu0 0.0
      %751 = vmatpush1.xpose.msra.mxu0 0.0
      %752 = vmatprep.subr.mxu0 0.0
      %753 = vmatpush1.xpose.msra.mxu0 0.0
      %754 = vmatprep.subr.mxu0 0.0
      %755 = vmatpush1.xpose.msra.mxu0 0.0
      %756 = vmatprep.subr.mxu0 0.0
      %757 = vmatpush1.xpose.msra.mxu0 0.0
      %758 = vmatprep.subr.mxu0 0.0
      %759 = vmatpush1.xpose.msra.mxu0 0.0
      %760 = vmatprep.subr.mxu0 0.0
      %761 = vmatpush1.xpose.msra.mxu0 0.0
      %762 = vmatprep.subr.mxu0 0.0
      %763 = vmatpush1.xpose.msra.mxu0 0.0
      %764 = vmatprep.subr.mxu0 0.0
      %765 = vmatpush1.xpose.msra.mxu0 0.0
      %766 = vmatprep.subr.mxu0 0.0
      %767 = vmatpush1.xpose.msra.mxu0 0.0
      %768 = vmatprep.subr.mxu0 0.0
      %769 = vmatpush1.xpose.msra.mxu0 0.0
      %770 = vmatprep.subr.mxu0 0.0
      %771 = vmatpush1.xpose.msra.mxu0 0.0
      %772 = vmatprep.subr.mxu0 0.0
      %773 = vmatpush1.xpose.msra.mxu0 0.0
      %774 = vmatprep.subr.mxu0 0.0
      %775 = vmatpush1.xpose.msra.mxu0 0.0
      %776 = vmatprep.subr.mxu0 0.0
      %777 = vmatpush1.xpose.msra.mxu0 0.0
      %778 = vmatprep.subr.mxu0 0.0
      %779 = vmatpush1.xpose.msra.mxu0 0.0
      %780 = vmatprep.subr.mxu0 0.0
      %781 = vmatpush1.xpose.msra.mxu0 %v748
      %782 = vmatprep.subr.mxu0 0.0
      %783 = vmatpush2.xpose.msra.mxu0 0.0
      %784 = vmatprep.subr.mxu0 0.0
      %785 = vmatpush2.xpose.msra.mxu0 0.0
      %786 = vmatprep.subr.mxu0 0.0
      %787 = vmatpush2.xpose.msra.mxu0 0.0
      %788 = vmatprep.subr.mxu0 0.0
      %789 = vmatpush2.xpose.msra.mxu0 0.0
      %790 = vmatprep.subr.mxu0 0.0
      %791 = vmatpush2.xpose.msra.mxu0 0.0
      %792 = vmatprep.subr.mxu0 0.0
      %793 = vmatpush2.xpose.msra.mxu0 0.0
      %794 = vmatprep.subr.mxu0 0.0
      %795 = vmatpush2.xpose.msra.mxu0 0.0
      %796 = vmatprep.subr.mxu0 0.0
      %797 = vmatpush2.xpose.msra.mxu0 0.0
      %798 = vmatprep.subr.mxu0 0.0
      %799 = vmatpush2.xpose.msra.mxu0 0.0
      %800 = vmatprep.subr.mxu0 0.0
      %801 = vmatpush2.xpose.msra.mxu0 0.0
      %802 = vmatprep.subr.mxu0 0.0
      %803 = vmatpush2.xpose.msra.mxu0 0.0
      %804 = vmatprep.subr.mxu0 0.0
      %805 = vmatpush2.xpose.msra.mxu0 0.0
      %806 = vmatprep.subr.mxu0 0.0
      %807 = vmatpush2.xpose.msra.mxu0 0.0
      %808 = vmatprep.subr.mxu0 0.0
      %809 = vmatpush2.xpose.msra.mxu0 0.0
      %810 = vmatprep.subr.mxu0 0.0
      %811 = vmatpush2.xpose.msra.mxu0 0.0
      %812 = vmatprep.subr.mxu0 0.0
      %813 = vmatpush2.xpose.msra.mxu0 0.0
      %814 = vmatprep.mubr.f32.mxu0 0.0
      %815 = vmatmul.mubr.f32.gmra.mxu0 %v746
      %v816 = vpop.f32.mrf.mxu0
      %v817 = vadd.f32 0.0, %v816
      %v818 = vpop.f32.mrf.mxu0
      %819 = vdwg.mxu0
      %v820 = vsel %vm671, %v609, 0
      %v822 = vsel %vm671, %v637, 0
      %824 = vmatprep.subr.mxu0 0.0
      %825 = vmatpush1.xpose.msra.mxu0 0.0
      %826 = vmatprep.subr.mxu0 0.0
      %827 = vmatpush1.xpose.msra.mxu0 0.0
      %828 = vmatprep.subr.mxu0 0.0
      %829 = vmatpush1.xpose.msra.mxu0 0.0
      %830 = vmatprep.subr.mxu0 0.0
      %831 = vmatpush1.xpose.msra.mxu0 0.0
      %832 = vmatprep.subr.mxu0 0.0
      %833 = vmatpush1.xpose.msra.mxu0 0.0
      %834 = vmatprep.subr.mxu0 0.0
      %835 = vmatpush1.xpose.msra.mxu0 0.0
      %836 = vmatprep.subr.mxu0 0.0
      %837 = vmatpush1.xpose.msra.mxu0 0.0
      %838 = vmatprep.subr.mxu0 0.0
      %839 = vmatpush1.xpose.msra.mxu0 0.0
      %840 = vmatprep.subr.mxu0 0.0
      %841 = vmatpush1.xpose.msra.mxu0 0.0
      %842 = vmatprep.subr.mxu0 0.0
      %843 = vmatpush1.xpose.msra.mxu0 0.0
      %844 = vmatprep.subr.mxu0 0.0
      %845 = vmatpush1.xpose.msra.mxu0 0.0
      %846 = vmatprep.subr.mxu0 0.0
      %847 = vmatpush1.xpose.msra.mxu0 0.0
      %848 = vmatprep.subr.mxu0 0.0
      %849 = vmatpush1.xpose.msra.mxu0 0.0
      %850 = vmatprep.subr.mxu0 0.0
      %851 = vmatpush1.xpose.msra.mxu0 0.0
      %852 = vmatprep.subr.mxu0 0.0
      %853 = vmatpush1.xpose.msra.mxu0 0.0
      %854 = vmatprep.subr.mxu0 0.0
      %855 = vmatpush1.xpose.msra.mxu0 %v822
      %856 = vmatprep.subr.mxu0 0.0
      %857 = vmatpush2.xpose.msra.mxu0 0.0
      %858 = vmatprep.subr.mxu0 0.0
      %859 = vmatpush2.xpose.msra.mxu0 0.0
      %860 = vmatprep.subr.mxu0 0.0
      %861 = vmatpush2.xpose.msra.mxu0 0.0
      %862 = vmatprep.subr.mxu0 0.0
      %863 = vmatpush2.xpose.msra.mxu0 0.0
      %864 = vmatprep.subr.mxu0 0.0
      %865 = vmatpush2.xpose.msra.mxu0 0.0
      %866 = vmatprep.subr.mxu0 0.0
      %867 = vmatpush2.xpose.msra.mxu0 0.0
      %868 = vmatprep.subr.mxu0 0.0
      %869 = vmatpush2.xpose.msra.mxu0 0.0
      %870 = vmatprep.subr.mxu0 0.0
      %871 = vmatpush2.xpose.msra.mxu0 0.0
      %872 = vmatprep.subr.mxu0 0.0
      %873 = vmatpush2.xpose.msra.mxu0 0.0
      %874 = vmatprep.subr.mxu0 0.0
      %875 = vmatpush2.xpose.msra.mxu0 0.0
      %876 = vmatprep.subr.mxu0 0.0
      %877 = vmatpush2.xpose.msra.mxu0 0.0
      %878 = vmatprep.subr.mxu0 0.0
      %879 = vmatpush2.xpose.msra.mxu0 0.0
      %880 = vmatprep.subr.mxu0 0.0
      %881 = vmatpush2.xpose.msra.mxu0 0.0
      %882 = vmatprep.subr.mxu0 0.0
      %883 = vmatpush2.xpose.msra.mxu0 0.0
      %884 = vmatprep.subr.mxu0 0.0
      %885 = vmatpush2.xpose.msra.mxu0 0.0
      %886 = vmatprep.subr.mxu0 0.0
      %887 = vmatpush2.xpose.msra.mxu0 0.0
      %888 = vmatprep.mubr.f32.mxu0 0.0
      %889 = vmatmul.mubr.f32.gmra.mxu0 %v820
      %v890 = vpop.f32.mrf.mxu0
      %v891 = vadd.f32 0.0, %v890
      %v892 = vpop.f32.mrf.mxu0
      %893 = vdwg.mxu0
      %v894 = vsel %vm671, %v617, 0
      %v896 = vsel %vm671, %v645, 0
      %898 = vmatprep.subr.mxu0 0.0
      %899 = vmatpush1.xpose.msra.mxu0 0.0
      %900 = vmatprep.subr.mxu0 0.0
      %901 = vmatpush1.xpose.msra.mxu0 0.0
      %902 = vmatprep.subr.mxu0 0.0
      %903 = vmatpush1.xpose.msra.mxu0 0.0
      %904 = vmatprep.subr.mxu0 0.0
      %905 = vmatpush1.xpose.msra.mxu0 0.0
      %906 = vmatprep.subr.mxu0 0.0
      %907 = vmatpush1.xpose.msra.mxu0 0.0
      %908 = vmatprep.subr.mxu0 0.0
      %909 = vmatpush1.xpose.msra.mxu0 0.0
      %910 = vmatprep.subr.mxu0 0.0
      %911 = vmatpush1.xpose.msra.mxu0 0.0
      %912 = vmatprep.subr.mxu0 0.0
      %913 = vmatpush1.xpose.msra.mxu0 0.0
      %914 = vmatprep.subr.mxu0 0.0
      %915 = vmatpush1.xpose.msra.mxu0 0.0
      %916 = vmatprep.subr.mxu0 0.0
      %917 = vmatpush1.xpose.msra.mxu0 0.0
      %918 = vmatprep.subr.mxu0 0.0
      %919 = vmatpush1.xpose.msra.mxu0 0.0
      %920 = vmatprep.subr.mxu0 0.0
      %921 = vmatpush1.xpose.msra.mxu0 0.0
      %922 = vmatprep.subr.mxu0 0.0
      %923 = vmatpush1.xpose.msra.mxu0 0.0
      %924 = vmatprep.subr.mxu0 0.0
      %925 = vmatpush1.xpose.msra.mxu0 0.0
      %926 = vmatprep.subr.mxu0 0.0
      %927 = vmatpush1.xpose.msra.mxu0 0.0
      %928 = vmatprep.subr.mxu0 0.0
      %929 = vmatpush1.xpose.msra.mxu0 %v896
      %930 = vmatprep.subr.mxu0 0.0
      %931 = vmatpush2.xpose.msra.mxu0 0.0
      %932 = vmatprep.subr.mxu0 0.0
      %933 = vmatpush2.xpose.msra.mxu0 0.0
      %934 = vmatprep.subr.mxu0 0.0
      %935 = vmatpush2.xpose.msra.mxu0 0.0
      %936 = vmatprep.subr.mxu0 0.0
      %937 = vmatpush2.xpose.msra.mxu0 0.0
      %938 = vmatprep.subr.mxu0 0.0
      %939 = vmatpush2.xpose.msra.mxu0 0.0
      %940 = vmatprep.subr.mxu0 0.0
      %941 = vmatpush2.xpose.msra.mxu0 0.0
      %942 = vmatprep.subr.mxu0 0.0
      %943 = vmatpush2.xpose.msra.mxu0 0.0
      %944 = vmatprep.subr.mxu0 0.0
      %945 = vmatpush2.xpose.msra.mxu0 0.0
      %946 = vmatprep.subr.mxu0 0.0
      %947 = vmatpush2.xpose.msra.mxu0 0.0
      %948 = vmatprep.subr.mxu0 0.0
      %949 = vmatpush2.xpose.msra.mxu0 0.0
      %950 = vmatprep.subr.mxu0 0.0
      %951 = vmatpush2.xpose.msra.mxu0 0.0
      %952 = vmatprep.subr.mxu0 0.0
      %953 = vmatpush2.xpose.msra.mxu0 0.0
      %954 = vmatprep.subr.mxu0 0.0
      %955 = vmatpush2.xpose.msra.mxu0 0.0
      %956 = vmatprep.subr.mxu0 0.0
      %957 = vmatpush2.xpose.msra.mxu0 0.0
      %958 = vmatprep.subr.mxu0 0.0
      %959 = vmatpush2.xpose.msra.mxu0 0.0
      %960 = vmatprep.subr.mxu0 0.0
      %961 = vmatpush2.xpose.msra.mxu0 0.0
      %962 = vmatprep.mubr.f32.mxu0 0.0
      %963 = vmatmul.mubr.f32.gmra.mxu0 %v894
      %v964 = vpop.f32.mrf.mxu0
      %v965 = vadd.f32 0.0, %v964
      %v966 = vpop.f32.mrf.mxu0
      %967 = vdwg.mxu0
      %v968 = vmul.f32 %v743, 0.35355338
      %v969 = vmul.f32 %v817, 0.35355338
      %v970 = vmul.f32 %v891, 0.35355338
      %v971 = vmul.f32 %v965, 0.35355338
      %v972 = vsel %vm670, 1, 0
      %vm973 = vcmp.eq.s32.totalorder %v972, 1
      %v974 = vsel %vm973, %v968, -inf
      %v975 = vsel %vm973, %v969, -inf
      %v976 = vsel %vm973, %v970, -inf
      %v977 = vsel %vm973, %v971, -inf
      %v978 = vsel %vm671, %v974, -inf
      %979 = vmax.xlane.f32.xlu0 %v978
      %v980 = vpop.xlane.xlu0 %979
      %v981 = vsel %vm671, %v975, -inf
      %982 = vmax.xlane.f32.xlu0 %v981
      %v983 = vpop.xlane.xlu0 %982
      %v984 = vsel %vm671, %v976, -inf
      %985 = vmax.xlane.f32.xlu0 %v984
      %v986 = vpop.xlane.xlu0 %985
      %v987 = vsel %vm671, %v977, -inf
      %988 = vmax.xlane.f32.xlu0 %v987
      %v989 = vpop.xlane.xlu0 %988
      %v990 = vsub.f32 %v974, %v980
      %v991 = vsub.f32 %v975, %v983
      %v992 = vsub.f32 %v976, %v986
      %v993 = vsub.f32 %v977, %v989
      %v994 = vmul.f32 %v990, 1.442695
      %v995 = vpow.pop %v994
      %v996 = vmul.f32 %v991, 1.442695
      %v997 = vpow.pop %v996
      %v998 = vmul.f32 %v992, 1.442695
      %v999 = vpow.pop %v998
      %v1000 = vmul.f32 %v993, 1.442695
      %v1001 = vpow.pop %v1000
      %v1002 = vsel %vm671, %v995, 0.0
      %1003 = vadd.xlane.f32.xlu0 %v1002
      %v1004 = vpop.xlane.xlu0 %1003
      %v1005 = vsel %vm671, %v997, 0.0
      %1006 = vadd.xlane.f32.xlu0 %v1005
      %v1007 = vpop.xlane.xlu0 %1006
      %v1008 = vsel %vm671, %v999, 0.0
      %1009 = vadd.xlane.f32.xlu0 %v1008
      %v1010 = vpop.xlane.xlu0 %1009
      %v1011 = vsel %vm671, %v1001, 0.0
      %1012 = vadd.xlane.f32.xlu0 %v1011
      %v1013 = vpop.xlane.xlu0 %1012
      %v1014 = vrcp.pop %v1004
      %v1015 = vrcp.pop %v1007
      %v1016 = vrcp.pop %v1010
      %v1017 = vrcp.pop %v1013
      %v1018 = vmul.f32 %v995, %v1014
      %v1019 = vmul.f32 %v997, %v1015
      %v1020 = vmul.f32 %v999, %v1016
      %v1021 = vmul.f32 %v1001, %v1017
      %v1022 = vpack.c.bf16 %v1018, %v1018
      %v1023 = vpack.c.bf16 %v1019, %v1019
      %v1024 = vpack.c.bf16 %v1020, %v1020
      %v1025 = vpack.c.bf16 %v1021, %v1021
      %v1027 = vsel %vm671, %v1022, 0
      %vm1029 = vcmask 1043456
      %v1031 = vsel %vm1029, %v594, 0
      %1033 = vmatprep.subr.bf16.mxu0 0
      %1034 = vmatpush1.bf16.msra.mxu0 0
      %1035 = vmatprep.subr.bf16.mxu0 0
      %1036 = vmatpush1.bf16.msra.mxu0 0
      %1037 = vmatprep.subr.bf16.mxu0 0
      %1038 = vmatpush1.bf16.msra.mxu0 0
      %1039 = vmatprep.subr.bf16.mxu0 0
      %1040 = vmatpush1.bf16.msra.mxu0 0
      %1041 = vmatprep.subr.bf16.mxu0 0
      %1042 = vmatpush1.bf16.msra.mxu0 0
      %1043 = vmatprep.subr.bf16.mxu0 0
      %1044 = vmatpush1.bf16.msra.mxu0 0
      %1045 = vmatprep.subr.bf16.mxu0 0
      %1046 = vmatpush1.bf16.msra.mxu0 0
      %1047 = vmatprep.subr.bf16.mxu0 0
      %1048 = vmatpush1.bf16.msra.mxu0 %v1031
      %1049 = vmatprep.subr.bf16.mxu0 0
      %1050 = vmatpush2.bf16.msra.mxu0 0
      %1051 = vmatprep.subr.bf16.mxu0 0
      %1052 = vmatpush2.bf16.msra.mxu0 0
      %1053 = vmatprep.subr.bf16.mxu0 0
      %1054 = vmatpush2.bf16.msra.mxu0 0
      %1055 = vmatprep.subr.bf16.mxu0 0
      %1056 = vmatpush2.bf16.msra.mxu0 0
      %1057 = vmatprep.subr.bf16.mxu0 0
      %1058 = vmatpush2.bf16.msra.mxu0 0
      %1059 = vmatprep.subr.bf16.mxu0 0
      %1060 = vmatpush2.bf16.msra.mxu0 0
      %1061 = vmatprep.subr.bf16.mxu0 0
      %1062 = vmatpush2.bf16.msra.mxu0 0
      %1063 = vmatprep.subr.bf16.mxu0 0
      %1064 = vmatpush2.bf16.msra.mxu0 0
      %1065 = vmatprep.mubr.bf16.mxu0 0
      %1066 = vmatmul.mubr.bf16.gmra.mxu0 %v1027
      %v1067 = vpop.f32.mrf.mxu0
      %v1068 = vadd.f32 0.0, %v1067
      %v1069 = vpop.f32.mrf.mxu0
      %v1070 = vpop.f32.mrf.mxu0
      %v1071 = vpop.f32.mrf.mxu0
      %1072 = vdwg.mxu0
      %v1074 = vsel %vm671, %v1023, 0
      %v1077 = vsel %vm1029, %v655, 0
      %1079 = vmatprep.subr.bf16.mxu0 0
      %1080 = vmatpush1.bf16.msra.mxu0 0
      %1081 = vmatprep.subr.bf16.mxu0 0
      %1082 = vmatpush1.bf16.msra.mxu0 0
      %1083 = vmatprep.subr.bf16.mxu0 0
      %1084 = vmatpush1.bf16.msra.mxu0 0
      %1085 = vmatprep.subr.bf16.mxu0 0
      %1086 = vmatpush1.bf16.msra.mxu0 0
      %1087 = vmatprep.subr.bf16.mxu0 0
      %1088 = vmatpush1.bf16.msra.mxu0 0
      %1089 = vmatprep.subr.bf16.mxu0 0
      %1090 = vmatpush1.bf16.msra.mxu0 0
      %1091 = vmatprep.subr.bf16.mxu0 0
      %1092 = vmatpush1.bf16.msra.mxu0 0
      %1093 = vmatprep.subr.bf16.mxu0 0
      %1094 = vmatpush1.bf16.msra.mxu0 %v1077
      %1095 = vmatprep.subr.bf16.mxu0 0
      %1096 = vmatpush2.bf16.msra.mxu0 0
      %1097 = vmatprep.subr.bf16.mxu0 0
      %1098 = vmatpush2.bf16.msra.mxu0 0
      %1099 = vmatprep.subr.bf16.mxu0 0
      %1100 = vmatpush2.bf16.msra.mxu0 0
      %1101 = vmatprep.subr.bf16.mxu0 0
      %1102 = vmatpush2.bf16.msra.mxu0 0
      %1103 = vmatprep.subr.bf16.mxu0 0
      %1104 = vmatpush2.bf16.msra.mxu0 0
      %1105 = vmatprep.subr.bf16.mxu0 0
      %1106 = vmatpush2.bf16.msra.mxu0 0
      %1107 = vmatprep.subr.bf16.mxu0 0
      %1108 = vmatpush2.bf16.msra.mxu0 0
      %1109 = vmatprep.subr.bf16.mxu0 0
      %1110 = vmatpush2.bf16.msra.mxu0 0
      %1111 = vmatprep.mubr.bf16.mxu0 0
      %1112 = vmatmul.mubr.bf16.gmra.mxu0 %v1074
      %v1113 = vpop.f32.mrf.mxu0
      %v1114 = vadd.f32 0.0, %v1113
      %v1115 = vpop.f32.mrf.mxu0
      %v1116 = vpop.f32.mrf.mxu0
      %v1117 = vpop.f32.mrf.mxu0
      %1118 = vdwg.mxu0
      %v1120 = vsel %vm671, %v1024, 0
      %v1123 = vsel %vm1029, %v659, 0
      %1125 = vmatprep.subr.bf16.mxu0 0
      %1126 = vmatpush1.bf16.msra.mxu0 0
      %1127 = vmatprep.subr.bf16.mxu0 0
      %1128 = vmatpush1.bf16.msra.mxu0 0
      %1129 = vmatprep.subr.bf16.mxu0 0
      %1130 = vmatpush1.bf16.msra.mxu0 0
      %1131 = vmatprep.subr.bf16.mxu0 0
      %1132 = vmatpush1.bf16.msra.mxu0 0
      %1133 = vmatprep.subr.bf16.mxu0 0
      %1134 = vmatpush1.bf16.msra.mxu0 0
      %1135 = vmatprep.subr.bf16.mxu0 0
      %1136 = vmatpush1.bf16.msra.mxu0 0
      %1137 = vmatprep.subr.bf16.mxu0 0
      %1138 = vmatpush1.bf16.msra.mxu0 0
      %1139 = vmatprep.subr.bf16.mxu0 0
      %1140 = vmatpush1.bf16.msra.mxu0 %v1123
      %1141 = vmatprep.subr.bf16.mxu0 0
      %1142 = vmatpush2.bf16.msra.mxu0 0
      %1143 = vmatprep.subr.bf16.mxu0 0
      %1144 = vmatpush2.bf16.msra.mxu0 0
      %1145 = vmatprep.subr.bf16.mxu0 0
      %1146 = vmatpush2.bf16.msra.mxu0 0
      %1147 = vmatprep.subr.bf16.mxu0 0
      %1148 = vmatpush2.bf16.msra.mxu0 0
      %1149 = vmatprep.subr.bf16.mxu0 0
      %1150 = vmatpush2.bf16.msra.mxu0 0
      %1151 = vmatprep.subr.bf16.mxu0 0
      %1152 = vmatpush2.bf16.msra.mxu0 0
      %1153 = vmatprep.subr.bf16.mxu0 0
      %1154 = vmatpush2.bf16.msra.mxu0 0
      %1155 = vmatprep.subr.bf16.mxu0 0
      %1156 = vmatpush2.bf16.msra.mxu0 0
      %1157 = vmatprep.mubr.bf16.mxu0 0
      %1158 = vmatmul.mubr.bf16.gmra.mxu0 %v1120
      %v1159 = vpop.f32.mrf.mxu0
      %v1160 = vadd.f32 0.0, %v1159
      %v1161 = vpop.f32.mrf.mxu0
      %v1162 = vpop.f32.mrf.mxu0
      %v1163 = vpop.f32.mrf.mxu0
      %1164 = vdwg.mxu0
      %v1166 = vsel %vm671, %v1025, 0
      %v1169 = vsel %vm1029, %v663, 0
      %1171 = vmatprep.subr.bf16.mxu0 0
      %1172 = vmatpush1.bf16.msra.mxu0 0
      %1173 = vmatprep.subr.bf16.mxu0 0
      %1174 = vmatpush1.bf16.msra.mxu0 0
      %1175 = vmatprep.subr.bf16.mxu0 0
      %1176 = vmatpush1.bf16.msra.mxu0 0
      %1177 = vmatprep.subr.bf16.mxu0 0
      %1178 = vmatpush1.bf16.msra.mxu0 0
      %1179 = vmatprep.subr.bf16.mxu0 0
      %1180 = vmatpush1.bf16.msra.mxu0 0
      %1181 = vmatprep.subr.bf16.mxu0 0
      %1182 = vmatpush1.bf16.msra.mxu0 0
      %1183 = vmatprep.subr.bf16.mxu0 0
      %1184 = vmatpush1.bf16.msra.mxu0 0
      %1185 = vmatprep.subr.bf16.mxu0 0
      %1186 = vmatpush1.bf16.msra.mxu0 %v1169
      %1187 = vmatprep.subr.bf16.mxu0 0
      %1188 = vmatpush2.bf16.msra.mxu0 0
      %1189 = vmatprep.subr.bf16.mxu0 0
      %1190 = vmatpush2.bf16.msra.mxu0 0
      %1191 = vmatprep.subr.bf16.mxu0 0
      %1192 = vmatpush2.bf16.msra.mxu0 0
      %1193 = vmatprep.subr.bf16.mxu0 0
      %1194 = vmatpush2.bf16.msra.mxu0 0
      %1195 = vmatprep.subr.bf16.mxu0 0
      %1196 = vmatpush2.bf16.msra.mxu0 0
      %1197 = vmatprep.subr.bf16.mxu0 0
      %1198 = vmatpush2.bf16.msra.mxu0 0
      %1199 = vmatprep.subr.bf16.mxu0 0
      %1200 = vmatpush2.bf16.msra.mxu0 0
      %1201 = vmatprep.subr.bf16.mxu0 0
      %1202 = vmatpush2.bf16.msra.mxu0 0
      %1203 = vmatprep.mubr.bf16.mxu0 0
      %1204 = vmatmul.mubr.bf16.gmra.mxu0 %v1166
      %v1205 = vpop.f32.mrf.mxu0
      %v1206 = vadd.f32 0.0, %v1205
      %v1207 = vpop.f32.mrf.mxu0
      %v1208 = vpop.f32.mrf.mxu0
      %v1209 = vpop.f32.mrf.mxu0
      %1210 = vdwg.mxu0
      %v1211 = vsel %vm370, %v1068, 0.0
      %v1212 = vsel %vm370, %v1114, 0.0
      %v1213 = vadd.f32 %v1211, %v1212
      %v1214 = vsel %vm370, %v1160, 0.0
      %v1215 = vadd.f32 %v1213, %v1214
      %v1216 = vsel %vm370, %v1206, 0.0
      %v1217 = vadd.f32 %v1215, %v1216
      %v1218 = vsel %vm671, %v531, 0
      %v1220 = vsel %vm671, %v533, 0
      %1222 = vmatprep.subr.mxu0 0.0
      %1223 = vmatpush1.xpose.msra.mxu0 0.0
      %1224 = vmatprep.subr.mxu0 0.0
      %1225 = vmatpush1.xpose.msra.mxu0 0.0
      %1226 = vmatprep.subr.mxu0 0.0
      %1227 = vmatpush1.xpose.msra.mxu0 0.0
      %1228 = vmatprep.subr.mxu0 0.0
      %1229 = vmatpush1.xpose.msra.mxu0 0.0
      %1230 = vmatprep.subr.mxu0 0.0
      %1231 = vmatpush1.xpose.msra.mxu0 0.0
      %1232 = vmatprep.subr.mxu0 0.0
      %1233 = vmatpush1.xpose.msra.mxu0 0.0
      %1234 = vmatprep.subr.mxu0 0.0
      %1235 = vmatpush1.xpose.msra.mxu0 0.0
      %1236 = vmatprep.subr.mxu0 0.0
      %1237 = vmatpush1.xpose.msra.mxu0 0.0
      %1238 = vmatprep.subr.mxu0 0.0
      %1239 = vmatpush1.xpose.msra.mxu0 0.0
      %1240 = vmatprep.subr.mxu0 0.0
      %1241 = vmatpush1.xpose.msra.mxu0 0.0
      %1242 = vmatprep.subr.mxu0 0.0
      %1243 = vmatpush1.xpose.msra.mxu0 0.0
      %1244 = vmatprep.subr.mxu0 0.0
      %1245 = vmatpush1.xpose.msra.mxu0 0.0
      %1246 = vmatprep.subr.mxu0 0.0
      %1247 = vmatpush1.xpose.msra.mxu0 0.0
      %1248 = vmatprep.subr.mxu0 0.0
      %1249 = vmatpush1.xpose.msra.mxu0 0.0
      %1250 = vmatprep.subr.mxu0 0.0
      %1251 = vmatpush1.xpose.msra.mxu0 0.0
      %1252 = vmatprep.subr.mxu0 0.0
      %1253 = vmatpush1.xpose.msra.mxu0 %v1220
      %1254 = vmatprep.subr.mxu0 0.0
      %1255 = vmatpush2.xpose.msra.mxu0 0.0
      %1256 = vmatprep.subr.mxu0 0.0
      %1257 = vmatpush2.xpose.msra.mxu0 0.0
      %1258 = vmatprep.subr.mxu0 0.0
      %1259 = vmatpush2.xpose.msra.mxu0 0.0
      %1260 = vmatprep.subr.mxu0 0.0
      %1261 = vmatpush2.xpose.msra.mxu0 0.0
      %1262 = vmatprep.subr.mxu0 0.0
      %1263 = vmatpush2.xpose.msra.mxu0 0.0
      %1264 = vmatprep.subr.mxu0 0.0
      %1265 = vmatpush2.xpose.msra.mxu0 0.0
      %1266 = vmatprep.subr.mxu0 0.0
      %1267 = vmatpush2.xpose.msra.mxu0 0.0
      %1268 = vmatprep.subr.mxu0 0.0
      %1269 = vmatpush2.xpose.msra.mxu0 0.0
      %1270 = vmatprep.subr.mxu0 0.0
      %1271 = vmatpush2.xpose.msra.mxu0 0.0
      %1272 = vmatprep.subr.mxu0 0.0
      %1273 = vmatpush2.xpose.msra.mxu0 0.0
      %1274 = vmatprep.subr.mxu0 0.0
      %1275 = vmatpush2.xpose.msra.mxu0 0.0
      %1276 = vmatprep.subr.mxu0 0.0
      %1277 = vmatpush2.xpose.msra.mxu0 0.0
      %1278 = vmatprep.subr.mxu0 0.0
      %1279 = vmatpush2.xpose.msra.mxu0 0.0
      %1280 = vmatprep.subr.mxu0 0.0
      %1281 = vmatpush2.xpose.msra.mxu0 0.0
      %1282 = vmatprep.subr.mxu0 0.0
      %1283 = vmatpush2.xpose.msra.mxu0 0.0
      %1284 = vmatprep.subr.mxu0 0.0
      %1285 = vmatpush2.xpose.msra.mxu0 0.0
      %1286 = vmatprep.mubr.f32.mxu0 0.0
      %1287 = vmatmul.mubr.f32.gmra.mxu0 %v1218
      %v1288 = vpop.f32.mrf.mxu0
      %v1289 = vadd.f32 0.0, %v1288
      %v1290 = vpop.f32.mrf.mxu0
      %1291 = vdwg.mxu0
      %v1292 = vsel %vm671, %v603, 0
      %v1294 = vsel %vm671, %v631, 0
      %1296 = vmatprep.subr.mxu0 0.0
      %1297 = vmatpush1.xpose.msra.mxu0 0.0
      %1298 = vmatprep.subr.mxu0 0.0
      %1299 = vmatpush1.xpose.msra.mxu0 0.0
      %1300 = vmatprep.subr.mxu0 0.0
      %1301 = vmatpush1.xpose.msra.mxu0 0.0
      %1302 = vmatprep.subr.mxu0 0.0
      %1303 = vmatpush1.xpose.msra.mxu0 0.0
      %1304 = vmatprep.subr.mxu0 0.0
      %1305 = vmatpush1.xpose.msra.mxu0 0.0
      %1306 = vmatprep.subr.mxu0 0.0
      %1307 = vmatpush1.xpose.msra.mxu0 0.0
      %1308 = vmatprep.subr.mxu0 0.0
      %1309 = vmatpush1.xpose.msra.mxu0 0.0
      %1310 = vmatprep.subr.mxu0 0.0
      %1311 = vmatpush1.xpose.msra.mxu0 0.0
      %1312 = vmatprep.subr.mxu0 0.0
      %1313 = vmatpush1.xpose.msra.mxu0 0.0
      %1314 = vmatprep.subr.mxu0 0.0
      %1315 = vmatpush1.xpose.msra.mxu0 0.0
      %1316 = vmatprep.subr.mxu0 0.0
      %1317 = vmatpush1.xpose.msra.mxu0 0.0
      %1318 = vmatprep.subr.mxu0 0.0
      %1319 = vmatpush1.xpose.msra.mxu0 0.0
      %1320 = vmatprep.subr.mxu0 0.0
      %1321 = vmatpush1.xpose.msra.mxu0 0.0
      %1322 = vmatprep.subr.mxu0 0.0
      %1323 = vmatpush1.xpose.msra.mxu0 0.0
      %1324 = vmatprep.subr.mxu0 0.0
      %1325 = vmatpush1.xpose.msra.mxu0 0.0
      %1326 = vmatprep.subr.mxu0 0.0
      %1327 = vmatpush1.xpose.msra.mxu0 %v1294
      %1328 = vmatprep.subr.mxu0 0.0
      %1329 = vmatpush2.xpose.msra.mxu0 0.0
      %1330 = vmatprep.subr.mxu0 0.0
      %1331 = vmatpush2.xpose.msra.mxu0 0.0
      %1332 = vmatprep.subr.mxu0 0.0
      %1333 = vmatpush2.xpose.msra.mxu0 0.0
      %1334 = vmatprep.subr.mxu0 0.0
      %1335 = vmatpush2.xpose.msra.mxu0 0.0
      %1336 = vmatprep.subr.mxu0 0.0
      %1337 = vmatpush2.xpose.msra.mxu0 0.0
      %1338 = vmatprep.subr.mxu0 0.0
      %1339 = vmatpush2.xpose.msra.mxu0 0.0
      %1340 = vmatprep.subr.mxu0 0.0
      %1341 = vmatpush2.xpose.msra.mxu0 0.0
      %1342 = vmatprep.subr.mxu0 0.0
      %1343 = vmatpush2.xpose.msra.mxu0 0.0
      %1344 = vmatprep.subr.mxu0 0.0
      %1345 = vmatpush2.xpose.msra.mxu0 0.0
      %1346 = vmatprep.subr.mxu0 0.0
      %1347 = vmatpush2.xpose.msra.mxu0 0.0
      %1348 = vmatprep.subr.mxu0 0.0
      %1349 = vmatpush2.xpose.msra.mxu0 0.0
      %1350 = vmatprep.subr.mxu0 0.0
      %1351 = vmatpush2.xpose.msra.mxu0 0.0
      %1352 = vmatprep.subr.mxu0 0.0
      %1353 = vmatpush2.xpose.msra.mxu0 0.0
      %1354 = vmatprep.subr.mxu0 0.0
      %1355 = vmatpush2.xpose.msra.mxu0 0.0
      %1356 = vmatprep.subr.mxu0 0.0
      %1357 = vmatpush2.xpose.msra.mxu0 0.0
      %1358 = vmatprep.subr.mxu0 0.0
      %1359 = vmatpush2.xpose.msra.mxu0 0.0
      %1360 = vmatprep.mubr.f32.mxu0 0.0
      %1361 = vmatmul.mubr.f32.gmra.mxu0 %v1292
      %v1362 = vpop.f32.mrf.mxu0
      %v1363 = vadd.f32 0.0, %v1362
      %v1364 = vpop.f32.mrf.mxu0
      %1365 = vdwg.mxu0
      %v1366 = vsel %vm671, %v611, 0
      %v1368 = vsel %vm671, %v639, 0
      %1370 = vmatprep.subr.mxu0 0.0
      %1371 = vmatpush1.xpose.msra.mxu0 0.0
      %1372 = vmatprep.subr.mxu0 0.0
      %1373 = vmatpush1.xpose.msra.mxu0 0.0
      %1374 = vmatprep.subr.mxu0 0.0
      %1375 = vmatpush1.xpose.msra.mxu0 0.0
      %1376 = vmatprep.subr.mxu0 0.0
      %1377 = vmatpush1.xpose.msra.mxu0 0.0
      %1378 = vmatprep.subr.mxu0 0.0
      %1379 = vmatpush1.xpose.msra.mxu0 0.0
      %1380 = vmatprep.subr.mxu0 0.0
      %1381 = vmatpush1.xpose.msra.mxu0 0.0
      %1382 = vmatprep.subr.mxu0 0.0
      %1383 = vmatpush1.xpose.msra.mxu0 0.0
      %1384 = vmatprep.subr.mxu0 0.0
      %1385 = vmatpush1.xpose.msra.mxu0 0.0
      %1386 = vmatprep.subr.mxu0 0.0
      %1387 = vmatpush1.xpose.msra.mxu0 0.0
      %1388 = vmatprep.subr.mxu0 0.0
      %1389 = vmatpush1.xpose.msra.mxu0 0.0
      %1390 = vmatprep.subr.mxu0 0.0
      %1391 = vmatpush1.xpose.msra.mxu0 0.0
      %1392 = vmatprep.subr.mxu0 0.0
      %1393 = vmatpush1.xpose.msra.mxu0 0.0
      %1394 = vmatprep.subr.mxu0 0.0
      %1395 = vmatpush1.xpose.msra.mxu0 0.0
      %1396 = vmatprep.subr.mxu0 0.0
      %1397 = vmatpush1.xpose.msra.mxu0 0.0
      %1398 = vmatprep.subr.mxu0 0.0
      %1399 = vmatpush1.xpose.msra.mxu0 0.0
      %1400 = vmatprep.subr.mxu0 0.0
      %1401 = vmatpush1.xpose.msra.mxu0 %v1368
      %1402 = vmatprep.subr.mxu0 0.0
      %1403 = vmatpush2.xpose.msra.mxu0 0.0
      %1404 = vmatprep.subr.mxu0 0.0
      %1405 = vmatpush2.xpose.msra.mxu0 0.0
      %1406 = vmatprep.subr.mxu0 0.0
      %1407 = vmatpush2.xpose.msra.mxu0 0.0
      %1408 = vmatprep.subr.mxu0 0.0
      %1409 = vmatpush2.xpose.msra.mxu0 0.0
      %1410 = vmatprep.subr.mxu0 0.0
      %1411 = vmatpush2.xpose.msra.mxu0 0.0
      %1412 = vmatprep.subr.mxu0 0.0
      %1413 = vmatpush2.xpose.msra.mxu0 0.0
      %1414 = vmatprep.subr.mxu0 0.0
      %1415 = vmatpush2.xpose.msra.mxu0 0.0
      %1416 = vmatprep.subr.mxu0 0.0
      %1417 = vmatpush2.xpose.msra.mxu0 0.0
      %1418 = vmatprep.subr.mxu0 0.0
      %1419 = vmatpush2.xpose.msra.mxu0 0.0
      %1420 = vmatprep.subr.mxu0 0.0
      %1421 = vmatpush2.xpose.msra.mxu0 0.0
      %1422 = vmatprep.subr.mxu0 0.0
      %1423 = vmatpush2.xpose.msra.mxu0 0.0
      %1424 = vmatprep.subr.mxu0 0.0
      %1425 = vmatpush2.xpose.msra.mxu0 0.0
      %1426 = vmatprep.subr.mxu0 0.0
      %1427 = vmatpush2.xpose.msra.mxu0 0.0
      %1428 = vmatprep.subr.mxu0 0.0
      %1429 = vmatpush2.xpose.msra.mxu0 0.0
      %1430 = vmatprep.subr.mxu0 0.0
      %1431 = vmatpush2.xpose.msra.mxu0 0.0
      %1432 = vmatprep.subr.mxu0 0.0
      %1433 = vmatpush2.xpose.msra.mxu0 0.0
      %1434 = vmatprep.mubr.f32.mxu0 0.0
      %1435 = vmatmul.mubr.f32.gmra.mxu0 %v1366
      %v1436 = vpop.f32.mrf.mxu0
      %v1437 = vadd.f32 0.0, %v1436
      %v1438 = vpop.f32.mrf.mxu0
      %1439 = vdwg.mxu0
      %v1440 = vsel %vm671, %v619, 0
      %v1442 = vsel %vm671, %v647, 0
      %1444 = vmatprep.subr.mxu0 0.0
      %1445 = vmatpush1.xpose.msra.mxu0 0.0
      %1446 = vmatprep.subr.mxu0 0.0
      %1447 = vmatpush1.xpose.msra.mxu0 0.0
      %1448 = vmatprep.subr.mxu0 0.0
      %1449 = vmatpush1.xpose.msra.mxu0 0.0
      %1450 = vmatprep.subr.mxu0 0.0
      %1451 = vmatpush1.xpose.msra.mxu0 0.0
      %1452 = vmatprep.subr.mxu0 0.0
      %1453 = vmatpush1.xpose.msra.mxu0 0.0
      %1454 = vmatprep.subr.mxu0 0.0
      %1455 = vmatpush1.xpose.msra.mxu0 0.0
      %1456 = vmatprep.subr.mxu0 0.0
      %1457 = vmatpush1.xpose.msra.mxu0 0.0
      %1458 = vmatprep.subr.mxu0 0.0
      %1459 = vmatpush1.xpose.msra.mxu0 0.0
      %1460 = vmatprep.subr.mxu0 0.0
      %1461 = vmatpush1.xpose.msra.mxu0 0.0
      %1462 = vmatprep.subr.mxu0 0.0
      %1463 = vmatpush1.xpose.msra.mxu0 0.0
      %1464 = vmatprep.subr.mxu0 0.0
      %1465 = vmatpush1.xpose.msra.mxu0 0.0
      %1466 = vmatprep.subr.mxu0 0.0
      %1467 = vmatpush1.xpose.msra.mxu0 0.0
      %1468 = vmatprep.subr.mxu0 0.0
      %1469 = vmatpush1.xpose.msra.mxu0 0.0
      %1470 = vmatprep.subr.mxu0 0.0
      %1471 = vmatpush1.xpose.msra.mxu0 0.0
      %1472 = vmatprep.subr.mxu0 0.0
      %1473 = vmatpush1.xpose.msra.mxu0 0.0
      %1474 = vmatprep.subr.mxu0 0.0
      %1475 = vmatpush1.xpose.msra.mxu0 %v1442
      %1476 = vmatprep.subr.mxu0 0.0
      %1477 = vmatpush2.xpose.msra.mxu0 0.0
      %1478 = vmatprep.subr.mxu0 0.0
      %1479 = vmatpush2.xpose.msra.mxu0 0.0
      %1480 = vmatprep.subr.mxu0 0.0
      %1481 = vmatpush2.xpose.msra.mxu0 0.0
      %1482 = vmatprep.subr.mxu0 0.0
      %1483 = vmatpush2.xpose.msra.mxu0 0.0
      %1484 = vmatprep.subr.mxu0 0.0
      %1485 = vmatpush2.xpose.msra.mxu0 0.0
      %1486 = vmatprep.subr.mxu0 0.0
      %1487 = vmatpush2.xpose.msra.mxu0 0.0
      %1488 = vmatprep.subr.mxu0 0.0
      %1489 = vmatpush2.xpose.msra.mxu0 0.0
      %1490 = vmatprep.subr.mxu0 0.0
      %1491 = vmatpush2.xpose.msra.mxu0 0.0
      %1492 = vmatprep.subr.mxu0 0.0
      %1493 = vmatpush2.xpose.msra.mxu0 0.0
      %1494 = vmatprep.subr.mxu0 0.0
      %1495 = vmatpush2.xpose.msra.mxu0 0.0
      %1496 = vmatprep.subr.mxu0 0.0
      %1497 = vmatpush2.xpose.msra.mxu0 0.0
      %1498 = vmatprep.subr.mxu0 0.0
      %1499 = vmatpush2.xpose.msra.mxu0 0.0
      %1500 = vmatprep.subr.mxu0 0.0
      %1501 = vmatpush2.xpose.msra.mxu0 0.0
      %1502 = vmatprep.subr.mxu0 0.0
      %1503 = vmatpush2.xpose.msra.mxu0 0.0
      %1504 = vmatprep.subr.mxu0 0.0
      %1505 = vmatpush2.xpose.msra.mxu0 0.0
      %1506 = vmatprep.subr.mxu0 0.0
      %1507 = vmatpush2.xpose.msra.mxu0 0.0
      %1508 = vmatprep.mubr.f32.mxu0 0.0
      %1509 = vmatmul.mubr.f32.gmra.mxu0 %v1440
      %v1510 = vpop.f32.mrf.mxu0
      %v1511 = vadd.f32 0.0, %v1510
      %v1512 = vpop.f32.mrf.mxu0
      %1513 = vdwg.mxu0
      %v1514 = vmul.f32 %v1289, 0.35355338
      %v1515 = vmul.f32 %v1363, 0.35355338
      %v1516 = vmul.f32 %v1437, 0.35355338
      %v1517 = vmul.f32 %v1511, 0.35355338
      %v1518 = vsel %vm973, %v1514, -inf
      %v1519 = vsel %vm973, %v1515, -inf
      %v1520 = vsel %vm973, %v1516, -inf
      %v1521 = vsel %vm973, %v1517, -inf
      %v1522 = vsel %vm671, %v1518, -inf
      %1523 = vmax.xlane.f32.xlu0 %v1522
      %v1524 = vpop.xlane.xlu0 %1523
      %v1525 = vsel %vm671, %v1519, -inf
      %1526 = vmax.xlane.f32.xlu0 %v1525
      %v1527 = vpop.xlane.xlu0 %1526
      %v1528 = vsel %vm671, %v1520, -inf
      %1529 = vmax.xlane.f32.xlu0 %v1528
      %v1530 = vpop.xlane.xlu0 %1529
      %v1531 = vsel %vm671, %v1521, -inf
      %1532 = vmax.xlane.f32.xlu0 %v1531
      %v1533 = vpop.xlane.xlu0 %1532
      %v1534 = vsub.f32 %v1518, %v1524
      %v1535 = vsub.f32 %v1519, %v1527
      %v1536 = vsub.f32 %v1520, %v1530
      %v1537 = vsub.f32 %v1521, %v1533
      %v1538 = vmul.f32 %v1534, 1.442695
      %v1539 = vpow.pop %v1538
      %v1540 = vmul.f32 %v1535, 1.442695
      %v1541 = vpow.pop %v1540
      %v1542 = vmul.f32 %v1536, 1.442695
      %v1543 = vpow.pop %v1542
      %v1544 = vmul.f32 %v1537, 1.442695
      %v1545 = vpow.pop %v1544
      %v1546 = vsel %vm671, %v1539, 0.0
      %1547 = vadd.xlane.f32.xlu0 %v1546
      %v1548 = vpop.xlane.xlu0 %1547
      %v1549 = vsel %vm671, %v1541, 0.0
      %1550 = vadd.xlane.f32.xlu0 %v1549
      %v1551 = vpop.xlane.xlu0 %1550
      %v1552 = vsel %vm671, %v1543, 0.0
      %1553 = vadd.xlane.f32.xlu0 %v1552
      %v1554 = vpop.xlane.xlu0 %1553
      %v1555 = vsel %vm671, %v1545, 0.0
      %1556 = vadd.xlane.f32.xlu0 %v1555
      %v1557 = vpop.xlane.xlu0 %1556
      %v1558 = vrcp.pop %v1548
      %v1559 = vrcp.pop %v1551
      %v1560 = vrcp.pop %v1554
      %v1561 = vrcp.pop %v1557
      %v1562 = vmul.f32 %v1539, %v1558
      %v1563 = vmul.f32 %v1541, %v1559
      %v1564 = vmul.f32 %v1543, %v1560
      %v1565 = vmul.f32 %v1545, %v1561
      %v1566 = vpack.c.bf16 %v1562, %v1562
      %v1567 = vpack.c.bf16 %v1563, %v1563
      %v1568 = vpack.c.bf16 %v1564, %v1564
      %v1569 = vpack.c.bf16 %v1565, %v1565
      %v1570 = vrot.slane %v594, 4
      %v1572 = vsel %vm671, %v1566, 0
      %v1575 = vsel %vm1029, %v1570, 0
      %1577 = vmatprep.subr.bf16.mxu0 0
      %1578 = vmatpush1.bf16.msra.mxu0 0
      %1579 = vmatprep.subr.bf16.mxu0 0
      %1580 = vmatpush1.bf16.msra.mxu0 0
      %1581 = vmatprep.subr.bf16.mxu0 0
      %1582 = vmatpush1.bf16.msra.mxu0 0
      %1583 = vmatprep.subr.bf16.mxu0 0
      %1584 = vmatpush1.bf16.msra.mxu0 0
      %1585 = vmatprep.subr.bf16.mxu0 0
      %1586 = vmatpush1.bf16.msra.mxu0 0
      %1587 = vmatprep.subr.bf16.mxu0 0
      %1588 = vmatpush1.bf16.msra.mxu0 0
      %1589 = vmatprep.subr.bf16.mxu0 0
      %1590 = vmatpush1.bf16.msra.mxu0 0
      %1591 = vmatprep.subr.bf16.mxu0 0
      %1592 = vmatpush1.bf16.msra.mxu0 %v1575
      %1593 = vmatprep.subr.bf16.mxu0 0
      %1594 = vmatpush2.bf16.msra.mxu0 0
      %1595 = vmatprep.subr.bf16.mxu0 0
      %1596 = vmatpush2.bf16.msra.mxu0 0
      %1597 = vmatprep.subr.bf16.mxu0 0
      %1598 = vmatpush2.bf16.msra.mxu0 0
      %1599 = vmatprep.subr.bf16.mxu0 0
      %1600 = vmatpush2.bf16.msra.mxu0 0
      %1601 = vmatprep.subr.bf16.mxu0 0
      %1602 = vmatpush2.bf16.msra.mxu0 0
      %1603 = vmatprep.subr.bf16.mxu0 0
      %1604 = vmatpush2.bf16.msra.mxu0 0
      %1605 = vmatprep.subr.bf16.mxu0 0
      %1606 = vmatpush2.bf16.msra.mxu0 0
      %1607 = vmatprep.subr.bf16.mxu0 0
      %1608 = vmatpush2.bf16.msra.mxu0 0
      %1609 = vmatprep.mubr.bf16.mxu0 0
      %1610 = vmatmul.mubr.bf16.gmra.mxu0 %v1572
      %v1611 = vpop.f32.mrf.mxu0
      %v1612 = vadd.f32 0.0, %v1611
      %v1613 = vpop.f32.mrf.mxu0
      %v1614 = vpop.f32.mrf.mxu0
      %v1615 = vpop.f32.mrf.mxu0
      %1616 = vdwg.mxu0
      %v1617 = vrot.slane %v655, 4
      %v1619 = vsel %vm671, %v1567, 0
      %v1622 = vsel %vm1029, %v1617, 0
      %1624 = vmatprep.subr.bf16.mxu0 0
      %1625 = vmatpush1.bf16.msra.mxu0 0
      %1626 = vmatprep.subr.bf16.mxu0 0
      %1627 = vmatpush1.bf16.msra.mxu0 0
      %1628 = vmatprep.subr.bf16.mxu0 0
      %1629 = vmatpush1.bf16.msra.mxu0 0
      %1630 = vmatprep.subr.bf16.mxu0 0
      %1631 = vmatpush1.bf16.msra.mxu0 0
      %1632 = vmatprep.subr.bf16.mxu0 0
      %1633 = vmatpush1.bf16.msra.mxu0 0
      %1634 = vmatprep.subr.bf16.mxu0 0
      %1635 = vmatpush1.bf16.msra.mxu0 0
      %1636 = vmatprep.subr.bf16.mxu0 0
      %1637 = vmatpush1.bf16.msra.mxu0 0
      %1638 = vmatprep.subr.bf16.mxu0 0
      %1639 = vmatpush1.bf16.msra.mxu0 %v1622
      %1640 = vmatprep.subr.bf16.mxu0 0
      %1641 = vmatpush2.bf16.msra.mxu0 0
      %1642 = vmatprep.subr.bf16.mxu0 0
      %1643 = vmatpush2.bf16.msra.mxu0 0
      %1644 = vmatprep.subr.bf16.mxu0 0
      %1645 = vmatpush2.bf16.msra.mxu0 0
      %1646 = vmatprep.subr.bf16.mxu0 0
      %1647 = vmatpush2.bf16.msra.mxu0 0
      %1648 = vmatprep.subr.bf16.mxu0 0
      %1649 = vmatpush2.bf16.msra.mxu0 0
      %1650 = vmatprep.subr.bf16.mxu0 0
      %1651 = vmatpush2.bf16.msra.mxu0 0
      %1652 = vmatprep.subr.bf16.mxu0 0
      %1653 = vmatpush2.bf16.msra.mxu0 0
      %1654 = vmatprep.subr.bf16.mxu0 0
      %1655 = vmatpush2.bf16.msra.mxu0 0
      %1656 = vmatprep.mubr.bf16.mxu0 0
      %1657 = vmatmul.mubr.bf16.gmra.mxu0 %v1619
      %v1658 = vpop.f32.mrf.mxu0
      %v1659 = vadd.f32 0.0, %v1658
      %v1660 = vpop.f32.mrf.mxu0
      %v1661 = vpop.f32.mrf.mxu0
      %v1662 = vpop.f32.mrf.mxu0
      %1663 = vdwg.mxu0
      %v1664 = vrot.slane %v659, 4
      %v1666 = vsel %vm671, %v1568, 0
      %v1669 = vsel %vm1029, %v1664, 0
      %1671 = vmatprep.subr.bf16.mxu0 0
      %1672 = vmatpush1.bf16.msra.mxu0 0
      %1673 = vmatprep.subr.bf16.mxu0 0
      %1674 = vmatpush1.bf16.msra.mxu0 0
      %1675 = vmatprep.subr.bf16.mxu0 0
      %1676 = vmatpush1.bf16.msra.mxu0 0
      %1677 = vmatprep.subr.bf16.mxu0 0
      %1678 = vmatpush1.bf16.msra.mxu0 0
      %1679 = vmatprep.subr.bf16.mxu0 0
      %1680 = vmatpush1.bf16.msra.mxu0 0
      %1681 = vmatprep.subr.bf16.mxu0 0
      %1682 = vmatpush1.bf16.msra.mxu0 0
      %1683 = vmatprep.subr.bf16.mxu0 0
      %1684 = vmatpush1.bf16.msra.mxu0 0
      %1685 = vmatprep.subr.bf16.mxu0 0
      %1686 = vmatpush1.bf16.msra.mxu0 %v1669
      %1687 = vmatprep.subr.bf16.mxu0 0
      %1688 = vmatpush2.bf16.msra.mxu0 0
      %1689 = vmatprep.subr.bf16.mxu0 0
      %1690 = vmatpush2.bf16.msra.mxu0 0
      %1691 = vmatprep.subr.bf16.mxu0 0
      %1692 = vmatpush2.bf16.msra.mxu0 0
      %1693 = vmatprep.subr.bf16.mxu0 0
      %1694 = vmatpush2.bf16.msra.mxu0 0
      %1695 = vmatprep.subr.bf16.mxu0 0
      %1696 = vmatpush2.bf16.msra.mxu0 0
      %1697 = vmatprep.subr.bf16.mxu0 0
      %1698 = vmatpush2.bf16.msra.mxu0 0
      %1699 = vmatprep.subr.bf16.mxu0 0
      %1700 = vmatpush2.bf16.msra.mxu0 0
      %1701 = vmatprep.subr.bf16.mxu0 0
      %1702 = vmatpush2.bf16.msra.mxu0 0
      %1703 = vmatprep.mubr.bf16.mxu0 0
      %1704 = vmatmul.mubr.bf16.gmra.mxu0 %v1666
      %v1705 = vpop.f32.mrf.mxu0
      %v1706 = vadd.f32 0.0, %v1705
      %v1707 = vpop.f32.mrf.mxu0
      %v1708 = vpop.f32.mrf.mxu0
      %v1709 = vpop.f32.mrf.mxu0
      %1710 = vdwg.mxu0
      %v1711 = vrot.slane %v663, 4
      %v1713 = vsel %vm671, %v1569, 0
      %v1716 = vsel %vm1029, %v1711, 0
      %1718 = vmatprep.subr.bf16.mxu0 0
      %1719 = vmatpush1.bf16.msra.mxu0 0
      %1720 = vmatprep.subr.bf16.mxu0 0
      %1721 = vmatpush1.bf16.msra.mxu0 0
      %1722 = vmatprep.subr.bf16.mxu0 0
      %1723 = vmatpush1.bf16.msra.mxu0 0
      %1724 = vmatprep.subr.bf16.mxu0 0
      %1725 = vmatpush1.bf16.msra.mxu0 0
      %1726 = vmatprep.subr.bf16.mxu0 0
      %1727 = vmatpush1.bf16.msra.mxu0 0
      %1728 = vmatprep.subr.bf16.mxu0 0
      %1729 = vmatpush1.bf16.msra.mxu0 0
      %1730 = vmatprep.subr.bf16.mxu0 0
      %1731 = vmatpush1.bf16.msra.mxu0 0
      %1732 = vmatprep.subr.bf16.mxu0 0
      %1733 = vmatpush1.bf16.msra.mxu0 %v1716
      %1734 = vmatprep.subr.bf16.mxu0 0
      %1735 = vmatpush2.bf16.msra.mxu0 0
      %1736 = vmatprep.subr.bf16.mxu0 0
      %1737 = vmatpush2.bf16.msra.mxu0 0
      %1738 = vmatprep.subr.bf16.mxu0 0
      %1739 = vmatpush2.bf16.msra.mxu0 0
      %1740 = vmatprep.subr.bf16.mxu0 0
      %1741 = vmatpush2.bf16.msra.mxu0 0
      %1742 = vmatprep.subr.bf16.mxu0 0
      %1743 = vmatpush2.bf16.msra.mxu0 0
      %1744 = vmatprep.subr.bf16.mxu0 0
      %1745 = vmatpush2.bf16.msra.mxu0 0
      %1746 = vmatprep.subr.bf16.mxu0 0
      %1747 = vmatpush2.bf16.msra.mxu0 0
      %1748 = vmatprep.subr.bf16.mxu0 0
      %1749 = vmatpush2.bf16.msra.mxu0 0
      %1750 = vmatprep.mubr.bf16.mxu0 0
      %1751 = vmatmul.mubr.bf16.gmra.mxu0 %v1713
      %v1752 = vpop.f32.mrf.mxu0
      %v1753 = vadd.f32 0.0, %v1752
      %v1754 = vpop.f32.mrf.mxu0
      %v1755 = vpop.f32.mrf.mxu0
      %v1756 = vpop.f32.mrf.mxu0
      %1757 = vdwg.mxu0
      %v1758 = vsel %vm370, %v1612, 0.0
      %v1759 = vsel %vm370, %v1659, 0.0
      %v1760 = vadd.f32 %v1758, %v1759
      %v1761 = vsel %vm370, %v1706, 0.0
      %v1762 = vadd.f32 %v1760, %v1761
      %v1763 = vsel %vm370, %v1753, 0.0
      %v1764 = vadd.f32 %v1762, %v1763
      %v1765 = vsel %vm671, %v537, 0
      %v1767 = vsel %vm671, %v539, 0
      %1769 = vmatprep.subr.mxu0 0.0
      %1770 = vmatpush1.xpose.msra.mxu0 0.0
      %1771 = vmatprep.subr.mxu0 0.0
      %1772 = vmatpush1.xpose.msra.mxu0 0.0
      %1773 = vmatprep.subr.mxu0 0.0
      %1774 = vmatpush1.xpose.msra.mxu0 0.0
      %1775 = vmatprep.subr.mxu0 0.0
      %1776 = vmatpush1.xpose.msra.mxu0 0.0
      %1777 = vmatprep.subr.mxu0 0.0
      %1778 = vmatpush1.xpose.msra.mxu0 0.0
      %1779 = vmatprep.subr.mxu0 0.0
      %1780 = vmatpush1.xpose.msra.mxu0 0.0
      %1781 = vmatprep.subr.mxu0 0.0
      %1782 = vmatpush1.xpose.msra.mxu0 0.0
      %1783 = vmatprep.subr.mxu0 0.0
      %1784 = vmatpush1.xpose.msra.mxu0 0.0
      %1785 = vmatprep.subr.mxu0 0.0
      %1786 = vmatpush1.xpose.msra.mxu0 0.0
      %1787 = vmatprep.subr.mxu0 0.0
      %1788 = vmatpush1.xpose.msra.mxu0 0.0
      %1789 = vmatprep.subr.mxu0 0.0
      %1790 = vmatpush1.xpose.msra.mxu0 0.0
      %1791 = vmatprep.subr.mxu0 0.0
      %1792 = vmatpush1.xpose.msra.mxu0 0.0
      %1793 = vmatprep.subr.mxu0 0.0
      %1794 = vmatpush1.xpose.msra.mxu0 0.0
      %1795 = vmatprep.subr.mxu0 0.0
      %1796 = vmatpush1.xpose.msra.mxu0 0.0
      %1797 = vmatprep.subr.mxu0 0.0
      %1798 = vmatpush1.xpose.msra.mxu0 0.0
      %1799 = vmatprep.subr.mxu0 0.0
      %1800 = vmatpush1.xpose.msra.mxu0 %v1767
      %1801 = vmatprep.subr.mxu0 0.0
      %1802 = vmatpush2.xpose.msra.mxu0 0.0
      %1803 = vmatprep.subr.mxu0 0.0
      %1804 = vmatpush2.xpose.msra.mxu0 0.0
      %1805 = vmatprep.subr.mxu0 0.0
      %1806 = vmatpush2.xpose.msra.mxu0 0.0
      %1807 = vmatprep.subr.mxu0 0.0
      %1808 = vmatpush2.xpose.msra.mxu0 0.0
      %1809 = vmatprep.subr.mxu0 0.0
      %1810 = vmatpush2.xpose.msra.mxu0 0.0
      %1811 = vmatprep.subr.mxu0 0.0
      %1812 = vmatpush2.xpose.msra.mxu0 0.0
      %1813 = vmatprep.subr.mxu0 0.0
      %1814 = vmatpush2.xpose.msra.mxu0 0.0
      %1815 = vmatprep.subr.mxu0 0.0
      %1816 = vmatpush2.xpose.msra.mxu0 0.0
      %1817 = vmatprep.subr.mxu0 0.0
      %1818 = vmatpush2.xpose.msra.mxu0 0.0
      %1819 = vmatprep.subr.mxu0 0.0
      %1820 = vmatpush2.xpose.msra.mxu0 0.0
      %1821 = vmatprep.subr.mxu0 0.0
      %1822 = vmatpush2.xpose.msra.mxu0 0.0
      %1823 = vmatprep.subr.mxu0 0.0
      %1824 = vmatpush2.xpose.msra.mxu0 0.0
      %1825 = vmatprep.subr.mxu0 0.0
      %1826 = vmatpush2.xpose.msra.mxu0 0.0
      %1827 = vmatprep.subr.mxu0 0.0
      %1828 = vmatpush2.xpose.msra.mxu0 0.0
      %1829 = vmatprep.subr.mxu0 0.0
      %1830 = vmatpush2.xpose.msra.mxu0 0.0
      %1831 = vmatprep.subr.mxu0 0.0
      %1832 = vmatpush2.xpose.msra.mxu0 0.0
      %1833 = vmatprep.mubr.f32.mxu0 0.0
      %1834 = vmatmul.mubr.f32.gmra.mxu0 %v1765
      %v1835 = vpop.f32.mrf.mxu0
      %v1836 = vadd.f32 0.0, %v1835
      %v1837 = vpop.f32.mrf.mxu0
      %1838 = vdwg.mxu0
      %v1839 = vsel %vm671, %v605, 0
      %v1841 = vsel %vm671, %v633, 0
      %1843 = vmatprep.subr.mxu0 0.0
      %1844 = vmatpush1.xpose.msra.mxu0 0.0
      %1845 = vmatprep.subr.mxu0 0.0
      %1846 = vmatpush1.xpose.msra.mxu0 0.0
      %1847 = vmatprep.subr.mxu0 0.0
      %1848 = vmatpush1.xpose.msra.mxu0 0.0
      %1849 = vmatprep.subr.mxu0 0.0
      %1850 = vmatpush1.xpose.msra.mxu0 0.0
      %1851 = vmatprep.subr.mxu0 0.0
      %1852 = vmatpush1.xpose.msra.mxu0 0.0
      %1853 = vmatprep.subr.mxu0 0.0
      %1854 = vmatpush1.xpose.msra.mxu0 0.0
      %1855 = vmatprep.subr.mxu0 0.0
      %1856 = vmatpush1.xpose.msra.mxu0 0.0
      %1857 = vmatprep.subr.mxu0 0.0
      %1858 = vmatpush1.xpose.msra.mxu0 0.0
      %1859 = vmatprep.subr.mxu0 0.0
      %1860 = vmatpush1.xpose.msra.mxu0 0.0
      %1861 = vmatprep.subr.mxu0 0.0
      %1862 = vmatpush1.xpose.msra.mxu0 0.0
      %1863 = vmatprep.subr.mxu0 0.0
      %1864 = vmatpush1.xpose.msra.mxu0 0.0
      %1865 = vmatprep.subr.mxu0 0.0
      %1866 = vmatpush1.xpose.msra.mxu0 0.0
      %1867 = vmatprep.subr.mxu0 0.0
      %1868 = vmatpush1.xpose.msra.mxu0 0.0
      %1869 = vmatprep.subr.mxu0 0.0
      %1870 = vmatpush1.xpose.msra.mxu0 0.0
      %1871 = vmatprep.subr.mxu0 0.0
      %1872 = vmatpush1.xpose.msra.mxu0 0.0
      %1873 = vmatprep.subr.mxu0 0.0
      %1874 = vmatpush1.xpose.msra.mxu0 %v1841
      %1875 = vmatprep.subr.mxu0 0.0
      %1876 = vmatpush2.xpose.msra.mxu0 0.0
      %1877 = vmatprep.subr.mxu0 0.0
      %1878 = vmatpush2.xpose.msra.mxu0 0.0
      %1879 = vmatprep.subr.mxu0 0.0
      %1880 = vmatpush2.xpose.msra.mxu0 0.0
      %1881 = vmatprep.subr.mxu0 0.0
      %1882 = vmatpush2.xpose.msra.mxu0 0.0
      %1883 = vmatprep.subr.mxu0 0.0
      %1884 = vmatpush2.xpose.msra.mxu0 0.0
      %1885 = vmatprep.subr.mxu0 0.0
      %1886 = vmatpush2.xpose.msra.mxu0 0.0
      %1887 = vmatprep.subr.mxu0 0.0
      %1888 = vmatpush2.xpose.msra.mxu0 0.0
      %1889 = vmatprep.subr.mxu0 0.0
      %1890 = vmatpush2.xpose.msra.mxu0 0.0
      %1891 = vmatprep.subr.mxu0 0.0
      %1892 = vmatpush2.xpose.msra.mxu0 0.0
      %1893 = vmatprep.subr.mxu0 0.0
      %1894 = vmatpush2.xpose.msra.mxu0 0.0
      %1895 = vmatprep.subr.mxu0 0.0
      %1896 = vmatpush2.xpose.msra.mxu0 0.0
      %1897 = vmatprep.subr.mxu0 0.0
      %1898 = vmatpush2.xpose.msra.mxu0 0.0
      %1899 = vmatprep.subr.mxu0 0.0
      %1900 = vmatpush2.xpose.msra.mxu0 0.0
      %1901 = vmatprep.subr.mxu0 0.0
      %1902 = vmatpush2.xpose.msra.mxu0 0.0
      %1903 = vmatprep.subr.mxu0 0.0
      %1904 = vmatpush2.xpose.msra.mxu0 0.0
      %1905 = vmatprep.subr.mxu0 0.0
      %1906 = vmatpush2.xpose.msra.mxu0 0.0
      %1907 = vmatprep.mubr.f32.mxu0 0.0
      %1908 = vmatmul.mubr.f32.gmra.mxu0 %v1839
      %v1909 = vpop.f32.mrf.mxu0
      %v1910 = vadd.f32 0.0, %v1909
      %v1911 = vpop.f32.mrf.mxu0
      %1912 = vdwg.mxu0
      %v1913 = vsel %vm671, %v613, 0
      %v1915 = vsel %vm671, %v641, 0
      %1917 = vmatprep.subr.mxu0 0.0
      %1918 = vmatpush1.xpose.msra.mxu0 0.0
      %1919 = vmatprep.subr.mxu0 0.0
      %1920 = vmatpush1.xpose.msra.mxu0 0.0
      %1921 = vmatprep.subr.mxu0 0.0
      %1922 = vmatpush1.xpose.msra.mxu0 0.0
      %1923 = vmatprep.subr.mxu0 0.0
      %1924 = vmatpush1.xpose.msra.mxu0 0.0
      %1925 = vmatprep.subr.mxu0 0.0
      %1926 = vmatpush1.xpose.msra.mxu0 0.0
      %1927 = vmatprep.subr.mxu0 0.0
      %1928 = vmatpush1.xpose.msra.mxu0 0.0
      %1929 = vmatprep.subr.mxu0 0.0
      %1930 = vmatpush1.xpose.msra.mxu0 0.0
      %1931 = vmatprep.subr.mxu0 0.0
      %1932 = vmatpush1.xpose.msra.mxu0 0.0
      %1933 = vmatprep.subr.mxu0 0.0
      %1934 = vmatpush1.xpose.msra.mxu0 0.0
      %1935 = vmatprep.subr.mxu0 0.0
      %1936 = vmatpush1.xpose.msra.mxu0 0.0
      %1937 = vmatprep.subr.mxu0 0.0
      %1938 = vmatpush1.xpose.msra.mxu0 0.0
      %1939 = vmatprep.subr.mxu0 0.0
      %1940 = vmatpush1.xpose.msra.mxu0 0.0
      %1941 = vmatprep.subr.mxu0 0.0
      %1942 = vmatpush1.xpose.msra.mxu0 0.0
      %1943 = vmatprep.subr.mxu0 0.0
      %1944 = vmatpush1.xpose.msra.mxu0 0.0
      %1945 = vmatprep.subr.mxu0 0.0
      %1946 = vmatpush1.xpose.msra.mxu0 0.0
      %1947 = vmatprep.subr.mxu0 0.0
      %1948 = vmatpush1.xpose.msra.mxu0 %v1915
      %1949 = vmatprep.subr.mxu0 0.0
      %1950 = vmatpush2.xpose.msra.mxu0 0.0
      %1951 = vmatprep.subr.mxu0 0.0
      %1952 = vmatpush2.xpose.msra.mxu0 0.0
      %1953 = vmatprep.subr.mxu0 0.0
      %1954 = vmatpush2.xpose.msra.mxu0 0.0
      %1955 = vmatprep.subr.mxu0 0.0
      %1956 = vmatpush2.xpose.msra.mxu0 0.0
      %1957 = vmatprep.subr.mxu0 0.0
      %1958 = vmatpush2.xpose.msra.mxu0 0.0
      %1959 = vmatprep.subr.mxu0 0.0
      %1960 = vmatpush2.xpose.msra.mxu0 0.0
      %1961 = vmatprep.subr.mxu0 0.0
      %1962 = vmatpush2.xpose.msra.mxu0 0.0
      %1963 = vmatprep.subr.mxu0 0.0
      %1964 = vmatpush2.xpose.msra.mxu0 0.0
      %1965 = vmatprep.subr.mxu0 0.0
      %1966 = vmatpush2.xpose.msra.mxu0 0.0
      %1967 = vmatprep.subr.mxu0 0.0
      %1968 = vmatpush2.xpose.msra.mxu0 0.0
      %1969 = vmatprep.subr.mxu0 0.0
      %1970 = vmatpush2.xpose.msra.mxu0 0.0
      %1971 = vmatprep.subr.mxu0 0.0
      %1972 = vmatpush2.xpose.msra.mxu0 0.0
      %1973 = vmatprep.subr.mxu0 0.0
      %1974 = vmatpush2.xpose.msra.mxu0 0.0
      %1975 = vmatprep.subr.mxu0 0.0
      %1976 = vmatpush2.xpose.msra.mxu0 0.0
      %1977 = vmatprep.subr.mxu0 0.0
      %1978 = vmatpush2.xpose.msra.mxu0 0.0
      %1979 = vmatprep.subr.mxu0 0.0
      %1980 = vmatpush2.xpose.msra.mxu0 0.0
      %1981 = vmatprep.mubr.f32.mxu0 0.0
      %1982 = vmatmul.mubr.f32.gmra.mxu0 %v1913
      %v1983 = vpop.f32.mrf.mxu0
      %v1984 = vadd.f32 0.0, %v1983
      %v1985 = vpop.f32.mrf.mxu0
      %1986 = vdwg.mxu0
      %v1987 = vsel %vm671, %v621, 0
      %v1989 = vsel %vm671, %v649, 0
      %1991 = vmatprep.subr.mxu0 0.0
      %1992 = vmatpush1.xpose.msra.mxu0 0.0
      %1993 = vmatprep.subr.mxu0 0.0
      %1994 = vmatpush1.xpose.msra.mxu0 0.0
      %1995 = vmatprep.subr.mxu0 0.0
      %1996 = vmatpush1.xpose.msra.mxu0 0.0
      %1997 = vmatprep.subr.mxu0 0.0
      %1998 = vmatpush1.xpose.msra.mxu0 0.0
      %1999 = vmatprep.subr.mxu0 0.0
      %2000 = vmatpush1.xpose.msra.mxu0 0.0
      %2001 = vmatprep.subr.mxu0 0.0
      %2002 = vmatpush1.xpose.msra.mxu0 0.0
      %2003 = vmatprep.subr.mxu0 0.0
      %2004 = vmatpush1.xpose.msra.mxu0 0.0
      %2005 = vmatprep.subr.mxu0 0.0
      %2006 = vmatpush1.xpose.msra.mxu0 0.0
      %2007 = vmatprep.subr.mxu0 0.0
      %2008 = vmatpush1.xpose.msra.mxu0 0.0
      %2009 = vmatprep.subr.mxu0 0.0
      %2010 = vmatpush1.xpose.msra.mxu0 0.0
      %2011 = vmatprep.subr.mxu0 0.0
      %2012 = vmatpush1.xpose.msra.mxu0 0.0
      %2013 = vmatprep.subr.mxu0 0.0
      %2014 = vmatpush1.xpose.msra.mxu0 0.0
      %2015 = vmatprep.subr.mxu0 0.0
      %2016 = vmatpush1.xpose.msra.mxu0 0.0
      %2017 = vmatprep.subr.mxu0 0.0
      %2018 = vmatpush1.xpose.msra.mxu0 0.0
      %2019 = vmatprep.subr.mxu0 0.0
      %2020 = vmatpush1.xpose.msra.mxu0 0.0
      %2021 = vmatprep.subr.mxu0 0.0
      %2022 = vmatpush1.xpose.msra.mxu0 %v1989
      %2023 = vmatprep.subr.mxu0 0.0
      %2024 = vmatpush2.xpose.msra.mxu0 0.0
      %2025 = vmatprep.subr.mxu0 0.0
      %2026 = vmatpush2.xpose.msra.mxu0 0.0
      %2027 = vmatprep.subr.mxu0 0.0
      %2028 = vmatpush2.xpose.msra.mxu0 0.0
      %2029 = vmatprep.subr.mxu0 0.0
      %2030 = vmatpush2.xpose.msra.mxu0 0.0
      %2031 = vmatprep.subr.mxu0 0.0
      %2032 = vmatpush2.xpose.msra.mxu0 0.0
      %2033 = vmatprep.subr.mxu0 0.0
      %2034 = vmatpush2.xpose.msra.mxu0 0.0
      %2035 = vmatprep.subr.mxu0 0.0
      %2036 = vmatpush2.xpose.msra.mxu0 0.0
      %2037 = vmatprep.subr.mxu0 0.0
      %2038 = vmatpush2.xpose.msra.mxu0 0.0
      %2039 = vmatprep.subr.mxu0 0.0
      %2040 = vmatpush2.xpose.msra.mxu0 0.0
      %2041 = vmatprep.subr.mxu0 0.0
      %2042 = vmatpush2.xpose.msra.mxu0 0.0
      %2043 = vmatprep.subr.mxu0 0.0
      %2044 = vmatpush2.xpose.msra.mxu0 0.0
      %2045 = vmatprep.subr.mxu0 0.0
      %2046 = vmatpush2.xpose.msra.mxu0 0.0
      %2047 = vmatprep.subr.mxu0 0.0
      %2048 = vmatpush2.xpose.msra.mxu0 0.0
      %2049 = vmatprep.subr.mxu0 0.0
      %2050 = vmatpush2.xpose.msra.mxu0 0.0
      %2051 = vmatprep.subr.mxu0 0.0
      %2052 = vmatpush2.xpose.msra.mxu0 0.0
      %2053 = vmatprep.subr.mxu0 0.0
      %2054 = vmatpush2.xpose.msra.mxu0 0.0
      %2055 = vmatprep.mubr.f32.mxu0 0.0
      %2056 = vmatmul.mubr.f32.gmra.mxu0 %v1987
      %v2057 = vpop.f32.mrf.mxu0
      %v2058 = vadd.f32 0.0, %v2057
      %v2059 = vpop.f32.mrf.mxu0
      %2060 = vdwg.mxu0
      %v2061 = vmul.f32 %v1836, 0.35355338
      %v2062 = vmul.f32 %v1910, 0.35355338
      %v2063 = vmul.f32 %v1984, 0.35355338
      %v2064 = vmul.f32 %v2058, 0.35355338
      %v2065 = vsel %vm973, %v2061, -inf
      %v2066 = vsel %vm973, %v2062, -inf
      %v2067 = vsel %vm973, %v2063, -inf
      %v2068 = vsel %vm973, %v2064, -inf
      %v2069 = vsel %vm671, %v2065, -inf
      %2070 = vmax.xlane.f32.xlu0 %v2069
      %v2071 = vpop.xlane.xlu0 %2070
      %v2072 = vsel %vm671, %v2066, -inf
      %2073 = vmax.xlane.f32.xlu0 %v2072
      %v2074 = vpop.xlane.xlu0 %2073
      %v2075 = vsel %vm671, %v2067, -inf
      %2076 = vmax.xlane.f32.xlu0 %v2075
      %v2077 = vpop.xlane.xlu0 %2076
      %v2078 = vsel %vm671, %v2068, -inf
      %2079 = vmax.xlane.f32.xlu0 %v2078
      %v2080 = vpop.xlane.xlu0 %2079
      %v2081 = vsub.f32 %v2065, %v2071
      %v2082 = vsub.f32 %v2066, %v2074
      %v2083 = vsub.f32 %v2067, %v2077
      %v2084 = vsub.f32 %v2068, %v2080
      %v2085 = vmul.f32 %v2081, 1.442695
      %v2086 = vpow.pop %v2085
      %v2087 = vmul.f32 %v2082, 1.442695
      %v2088 = vpow.pop %v2087
      %v2089 = vmul.f32 %v2083, 1.442695
      %v2090 = vpow.pop %v2089
      %v2091 = vmul.f32 %v2084, 1.442695
      %v2092 = vpow.pop %v2091
      %v2093 = vsel %vm671, %v2086, 0.0
      %2094 = vadd.xlane.f32.xlu0 %v2093
      %v2095 = vpop.xlane.xlu0 %2094
      %v2096 = vsel %vm671, %v2088, 0.0
      %2097 = vadd.xlane.f32.xlu0 %v2096
      %v2098 = vpop.xlane.xlu0 %2097
      %v2099 = vsel %vm671, %v2090, 0.0
      %2100 = vadd.xlane.f32.xlu0 %v2099
      %v2101 = vpop.xlane.xlu0 %2100
      %v2102 = vsel %vm671, %v2092, 0.0
      %2103 = vadd.xlane.f32.xlu0 %v2102
      %v2104 = vpop.xlane.xlu0 %2103
      %v2105 = vrcp.pop %v2095
      %v2106 = vrcp.pop %v2098
      %v2107 = vrcp.pop %v2101
      %v2108 = vrcp.pop %v2104
      %v2109 = vmul.f32 %v2086, %v2105
      %v2110 = vmul.f32 %v2088, %v2106
      %v2111 = vmul.f32 %v2090, %v2107
      %v2112 = vmul.f32 %v2092, %v2108
      %v2113 = vpack.c.bf16 %v2109, %v2109
      %v2114 = vpack.c.bf16 %v2110, %v2110
      %v2115 = vpack.c.bf16 %v2111, %v2111
      %v2116 = vpack.c.bf16 %v2112, %v2112
      %v2118 = vsel %vm671, %v2113, 0
      %v2121 = vsel %vm1029, %v595, 0
      %2123 = vmatprep.subr.bf16.mxu0 0
      %2124 = vmatpush1.bf16.msra.mxu0 0
      %2125 = vmatprep.subr.bf16.mxu0 0
      %2126 = vmatpush1.bf16.msra.mxu0 0
      %2127 = vmatprep.subr.bf16.mxu0 0
      %2128 = vmatpush1.bf16.msra.mxu0 0
      %2129 = vmatprep.subr.bf16.mxu0 0
      %2130 = vmatpush1.bf16.msra.mxu0 0
      %2131 = vmatprep.subr.bf16.mxu0 0
      %2132 = vmatpush1.bf16.msra.mxu0 0
      %2133 = vmatprep.subr.bf16.mxu0 0
      %2134 = vmatpush1.bf16.msra.mxu0 0
      %2135 = vmatprep.subr.bf16.mxu0 0
      %2136 = vmatpush1.bf16.msra.mxu0 0
      %2137 = vmatprep.subr.bf16.mxu0 0
      %2138 = vmatpush1.bf16.msra.mxu0 %v2121
      %2139 = vmatprep.subr.bf16.mxu0 0
      %2140 = vmatpush2.bf16.msra.mxu0 0
      %2141 = vmatprep.subr.bf16.mxu0 0
      %2142 = vmatpush2.bf16.msra.mxu0 0
      %2143 = vmatprep.subr.bf16.mxu0 0
      %2144 = vmatpush2.bf16.msra.mxu0 0
      %2145 = vmatprep.subr.bf16.mxu0 0
      %2146 = vmatpush2.bf16.msra.mxu0 0
      %2147 = vmatprep.subr.bf16.mxu0 0
      %2148 = vmatpush2.bf16.msra.mxu0 0
      %2149 = vmatprep.subr.bf16.mxu0 0
      %2150 = vmatpush2.bf16.msra.mxu0 0
      %2151 = vmatprep.subr.bf16.mxu0 0
      %2152 = vmatpush2.bf16.msra.mxu0 0
      %2153 = vmatprep.subr.bf16.mxu0 0
      %2154 = vmatpush2.bf16.msra.mxu0 0
      %2155 = vmatprep.mubr.bf16.mxu0 0
      %2156 = vmatmul.mubr.bf16.gmra.mxu0 %v2118
      %v2157 = vpop.f32.mrf.mxu0
      %v2158 = vadd.f32 0.0, %v2157
      %v2159 = vpop.f32.mrf.mxu0
      %v2160 = vpop.f32.mrf.mxu0
      %v2161 = vpop.f32.mrf.mxu0
      %2162 = vdwg.mxu0
      %v2164 = vsel %vm671, %v2114, 0
      %v2167 = vsel %vm1029, %v657, 0
      %2169 = vmatprep.subr.bf16.mxu0 0
      %2170 = vmatpush1.bf16.msra.mxu0 0
      %2171 = vmatprep.subr.bf16.mxu0 0
      %2172 = vmatpush1.bf16.msra.mxu0 0
      %2173 = vmatprep.subr.bf16.mxu0 0
      %2174 = vmatpush1.bf16.msra.mxu0 0
      %2175 = vmatprep.subr.bf16.mxu0 0
      %2176 = vmatpush1.bf16.msra.mxu0 0
      %2177 = vmatprep.subr.bf16.mxu0 0
      %2178 = vmatpush1.bf16.msra.mxu0 0
      %2179 = vmatprep.subr.bf16.mxu0 0
      %2180 = vmatpush1.bf16.msra.mxu0 0
      %2181 = vmatprep.subr.bf16.mxu0 0
      %2182 = vmatpush1.bf16.msra.mxu0 0
      %2183 = vmatprep.subr.bf16.mxu0 0
      %2184 = vmatpush1.bf16.msra.mxu0 %v2167
      %2185 = vmatprep.subr.bf16.mxu0 0
      %2186 = vmatpush2.bf16.msra.mxu0 0
      %2187 = vmatprep.subr.bf16.mxu0 0
      %2188 = vmatpush2.bf16.msra.mxu0 0
      %2189 = vmatprep.subr.bf16.mxu0 0
      %2190 = vmatpush2.bf16.msra.mxu0 0
      %2191 = vmatprep.subr.bf16.mxu0 0
      %2192 = vmatpush2.bf16.msra.mxu0 0
      %2193 = vmatprep.subr.bf16.mxu0 0
      %2194 = vmatpush2.bf16.msra.mxu0 0
      %2195 = vmatprep.subr.bf16.mxu0 0
      %2196 = vmatpush2.bf16.msra.mxu0 0
      %2197 = vmatprep.subr.bf16.mxu0 0
      %2198 = vmatpush2.bf16.msra.mxu0 0
      %2199 = vmatprep.subr.bf16.mxu0 0
      %2200 = vmatpush2.bf16.msra.mxu0 0
      %2201 = vmatprep.mubr.bf16.mxu0 0
      %2202 = vmatmul.mubr.bf16.gmra.mxu0 %v2164
      %v2203 = vpop.f32.mrf.mxu0
      %v2204 = vadd.f32 0.0, %v2203
      %v2205 = vpop.f32.mrf.mxu0
      %v2206 = vpop.f32.mrf.mxu0
      %v2207 = vpop.f32.mrf.mxu0
      %2208 = vdwg.mxu0
      %v2210 = vsel %vm671, %v2115, 0
      %v2213 = vsel %vm1029, %v661, 0
      %2215 = vmatprep.subr.bf16.mxu0 0
      %2216 = vmatpush1.bf16.msra.mxu0 0
      %2217 = vmatprep.subr.bf16.mxu0 0
      %2218 = vmatpush1.bf16.msra.mxu0 0
      %2219 = vmatprep.subr.bf16.mxu0 0
      %2220 = vmatpush1.bf16.msra.mxu0 0
      %2221 = vmatprep.subr.bf16.mxu0 0
      %2222 = vmatpush1.bf16.msra.mxu0 0
      %2223 = vmatprep.subr.bf16.mxu0 0
      %2224 = vmatpush1.bf16.msra.mxu0 0
      %2225 = vmatprep.subr.bf16.mxu0 0
      %2226 = vmatpush1.bf16.msra.mxu0 0
      %2227 = vmatprep.subr.bf16.mxu0 0
      %2228 = vmatpush1.bf16.msra.mxu0 0
      %2229 = vmatprep.subr.bf16.mxu0 0
      %2230 = vmatpush1.bf16.msra.mxu0 %v2213
      %2231 = vmatprep.subr.bf16.mxu0 0
      %2232 = vmatpush2.bf16.msra.mxu0 0
      %2233 = vmatprep.subr.bf16.mxu0 0
      %2234 = vmatpush2.bf16.msra.mxu0 0
      %2235 = vmatprep.subr.bf16.mxu0 0
      %2236 = vmatpush2.bf16.msra.mxu0 0
      %2237 = vmatprep.subr.bf16.mxu0 0
      %2238 = vmatpush2.bf16.msra.mxu0 0
      %2239 = vmatprep.subr.bf16.mxu0 0
      %2240 = vmatpush2.bf16.msra.mxu0 0
      %2241 = vmatprep.subr.bf16.mxu0 0
      %2242 = vmatpush2.bf16.msra.mxu0 0
      %2243 = vmatprep.subr.bf16.mxu0 0
      %2244 = vmatpush2.bf16.msra.mxu0 0
      %2245 = vmatprep.subr.bf16.mxu0 0
      %2246 = vmatpush2.bf16.msra.mxu0 0
      %2247 = vmatprep.mubr.bf16.mxu0 0
      %2248 = vmatmul.mubr.bf16.gmra.mxu0 %v2210
      %v2249 = vpop.f32.mrf.mxu0
      %v2250 = vadd.f32 0.0, %v2249
      %v2251 = vpop.f32.mrf.mxu0
      %v2252 = vpop.f32.mrf.mxu0
      %v2253 = vpop.f32.mrf.mxu0
      %2254 = vdwg.mxu0
      %v2256 = vsel %vm671, %v2116, 0
      %v2259 = vsel %vm1029, %v665, 0
      %2261 = vmatprep.subr.bf16.mxu0 0
      %2262 = vmatpush1.bf16.msra.mxu0 0
      %2263 = vmatprep.subr.bf16.mxu0 0
      %2264 = vmatpush1.bf16.msra.mxu0 0
      %2265 = vmatprep.subr.bf16.mxu0 0
      %2266 = vmatpush1.bf16.msra.mxu0 0
      %2267 = vmatprep.subr.bf16.mxu0 0
      %2268 = vmatpush1.bf16.msra.mxu0 0
      %2269 = vmatprep.subr.bf16.mxu0 0
      %2270 = vmatpush1.bf16.msra.mxu0 0
      %2271 = vmatprep.subr.bf16.mxu0 0
      %2272 = vmatpush1.bf16.msra.mxu0 0
      %2273 = vmatprep.subr.bf16.mxu0 0
      %2274 = vmatpush1.bf16.msra.mxu0 0
      %2275 = vmatprep.subr.bf16.mxu0 0
      %2276 = vmatpush1.bf16.msra.mxu0 %v2259
      %2277 = vmatprep.subr.bf16.mxu0 0
      %2278 = vmatpush2.bf16.msra.mxu0 0
      %2279 = vmatprep.subr.bf16.mxu0 0
      %2280 = vmatpush2.bf16.msra.mxu0 0
      %2281 = vmatprep.subr.bf16.mxu0 0
      %2282 = vmatpush2.bf16.msra.mxu0 0
      %2283 = vmatprep.subr.bf16.mxu0 0
      %2284 = vmatpush2.bf16.msra.mxu0 0
      %2285 = vmatprep.subr.bf16.mxu0 0
      %2286 = vmatpush2.bf16.msra.mxu0 0
      %2287 = vmatprep.subr.bf16.mxu0 0
      %2288 = vmatpush2.bf16.msra.mxu0 0
      %2289 = vmatprep.subr.bf16.mxu0 0
      %2290 = vmatpush2.bf16.msra.mxu0 0
      %2291 = vmatprep.subr.bf16.mxu0 0
      %2292 = vmatpush2.bf16.msra.mxu0 0
      %2293 = vmatprep.mubr.bf16.mxu0 0
      %2294 = vmatmul.mubr.bf16.gmra.mxu0 %v2256
      %v2295 = vpop.f32.mrf.mxu0
      %v2296 = vadd.f32 0.0, %v2295
      %v2297 = vpop.f32.mrf.mxu0
      %v2298 = vpop.f32.mrf.mxu0
      %v2299 = vpop.f32.mrf.mxu0
      %2300 = vdwg.mxu0
      %v2301 = vsel %vm370, %v2158, 0.0
      %v2302 = vsel %vm370, %v2204, 0.0
      %v2303 = vadd.f32 %v2301, %v2302
      %v2304 = vsel %vm370, %v2250, 0.0
      %v2305 = vadd.f32 %v2303, %v2304
      %v2306 = vsel %vm370, %v2296, 0.0
      %v2307 = vadd.f32 %v2305, %v2306
      %v2308 = vsel %vm671, %v541, 0
      %v2310 = vsel %vm671, %v543, 0
      %2312 = vmatprep.subr.mxu0 0.0
      %2313 = vmatpush1.xpose.msra.mxu0 0.0
      %2314 = vmatprep.subr.mxu0 0.0
      %2315 = vmatpush1.xpose.msra.mxu0 0.0
      %2316 = vmatprep.subr.mxu0 0.0
      %2317 = vmatpush1.xpose.msra.mxu0 0.0
      %2318 = vmatprep.subr.mxu0 0.0
      %2319 = vmatpush1.xpose.msra.mxu0 0.0
      %2320 = vmatprep.subr.mxu0 0.0
      %2321 = vmatpush1.xpose.msra.mxu0 0.0
      %2322 = vmatprep.subr.mxu0 0.0
      %2323 = vmatpush1.xpose.msra.mxu0 0.0
      %2324 = vmatprep.subr.mxu0 0.0
      %2325 = vmatpush1.xpose.msra.mxu0 0.0
      %2326 = vmatprep.subr.mxu0 0.0
      %2327 = vmatpush1.xpose.msra.mxu0 0.0
      %2328 = vmatprep.subr.mxu0 0.0
      %2329 = vmatpush1.xpose.msra.mxu0 0.0
      %2330 = vmatprep.subr.mxu0 0.0
      %2331 = vmatpush1.xpose.msra.mxu0 0.0
      %2332 = vmatprep.subr.mxu0 0.0
      %2333 = vmatpush1.xpose.msra.mxu0 0.0
      %2334 = vmatprep.subr.mxu0 0.0
      %2335 = vmatpush1.xpose.msra.mxu0 0.0
      %2336 = vmatprep.subr.mxu0 0.0
      %2337 = vmatpush1.xpose.msra.mxu0 0.0
      %2338 = vmatprep.subr.mxu0 0.0
      %2339 = vmatpush1.xpose.msra.mxu0 0.0
      %2340 = vmatprep.subr.mxu0 0.0
      %2341 = vmatpush1.xpose.msra.mxu0 0.0
      %2342 = vmatprep.subr.mxu0 0.0
      %2343 = vmatpush1.xpose.msra.mxu0 %v2310
      %2344 = vmatprep.subr.mxu0 0.0
      %2345 = vmatpush2.xpose.msra.mxu0 0.0
      %2346 = vmatprep.subr.mxu0 0.0
      %2347 = vmatpush2.xpose.msra.mxu0 0.0
      %2348 = vmatprep.subr.mxu0 0.0
      %2349 = vmatpush2.xpose.msra.mxu0 0.0
      %2350 = vmatprep.subr.mxu0 0.0
      %2351 = vmatpush2.xpose.msra.mxu0 0.0
      %2352 = vmatprep.subr.mxu0 0.0
      %2353 = vmatpush2.xpose.msra.mxu0 0.0
      %2354 = vmatprep.subr.mxu0 0.0
      %2355 = vmatpush2.xpose.msra.mxu0 0.0
      %2356 = vmatprep.subr.mxu0 0.0
      %2357 = vmatpush2.xpose.msra.mxu0 0.0
      %2358 = vmatprep.subr.mxu0 0.0
      %2359 = vmatpush2.xpose.msra.mxu0 0.0
      %2360 = vmatprep.subr.mxu0 0.0
      %2361 = vmatpush2.xpose.msra.mxu0 0.0
      %2362 = vmatprep.subr.mxu0 0.0
      %2363 = vmatpush2.xpose.msra.mxu0 0.0
      %2364 = vmatprep.subr.mxu0 0.0
      %2365 = vmatpush2.xpose.msra.mxu0 0.0
      %2366 = vmatprep.subr.mxu0 0.0
      %2367 = vmatpush2.xpose.msra.mxu0 0.0
      %2368 = vmatprep.subr.mxu0 0.0
      %2369 = vmatpush2.xpose.msra.mxu0 0.0
      %2370 = vmatprep.subr.mxu0 0.0
      %2371 = vmatpush2.xpose.msra.mxu0 0.0
      %2372 = vmatprep.subr.mxu0 0.0
      %2373 = vmatpush2.xpose.msra.mxu0 0.0
      %2374 = vmatprep.subr.mxu0 0.0
      %2375 = vmatpush2.xpose.msra.mxu0 0.0
      %2376 = vmatprep.mubr.f32.mxu0 0.0
      %2377 = vmatmul.mubr.f32.gmra.mxu0 %v2308
      %v2378 = vpop.f32.mrf.mxu0
      %v2379 = vadd.f32 0.0, %v2378
      %v2380 = vpop.f32.mrf.mxu0
      %2381 = vdwg.mxu0
      %v2382 = vsel %vm671, %v607, 0
      %v2384 = vsel %vm671, %v635, 0
      %2386 = vmatprep.subr.mxu0 0.0
      %2387 = vmatpush1.xpose.msra.mxu0 0.0
      %2388 = vmatprep.subr.mxu0 0.0
      %2389 = vmatpush1.xpose.msra.mxu0 0.0
      %2390 = vmatprep.subr.mxu0 0.0
      %2391 = vmatpush1.xpose.msra.mxu0 0.0
      %2392 = vmatprep.subr.mxu0 0.0
      %2393 = vmatpush1.xpose.msra.mxu0 0.0
      %2394 = vmatprep.subr.mxu0 0.0
      %2395 = vmatpush1.xpose.msra.mxu0 0.0
      %2396 = vmatprep.subr.mxu0 0.0
      %2397 = vmatpush1.xpose.msra.mxu0 0.0
      %2398 = vmatprep.subr.mxu0 0.0
      %2399 = vmatpush1.xpose.msra.mxu0 0.0
      %2400 = vmatprep.subr.mxu0 0.0
      %2401 = vmatpush1.xpose.msra.mxu0 0.0
      %2402 = vmatprep.subr.mxu0 0.0
      %2403 = vmatpush1.xpose.msra.mxu0 0.0
      %2404 = vmatprep.subr.mxu0 0.0
      %2405 = vmatpush1.xpose.msra.mxu0 0.0
      %2406 = vmatprep.subr.mxu0 0.0
      %2407 = vmatpush1.xpose.msra.mxu0 0.0
      %2408 = vmatprep.subr.mxu0 0.0
      %2409 = vmatpush1.xpose.msra.mxu0 0.0
      %2410 = vmatprep.subr.mxu0 0.0
      %2411 = vmatpush1.xpose.msra.mxu0 0.0
      %2412 = vmatprep.subr.mxu0 0.0
      %2413 = vmatpush1.xpose.msra.mxu0 0.0
      %2414 = vmatprep.subr.mxu0 0.0
      %2415 = vmatpush1.xpose.msra.mxu0 0.0
      %2416 = vmatprep.subr.mxu0 0.0
      %2417 = vmatpush1.xpose.msra.mxu0 %v2384
      %2418 = vmatprep.subr.mxu0 0.0
      %2419 = vmatpush2.xpose.msra.mxu0 0.0
      %2420 = vmatprep.subr.mxu0 0.0
      %2421 = vmatpush2.xpose.msra.mxu0 0.0
      %2422 = vmatprep.subr.mxu0 0.0
      %2423 = vmatpush2.xpose.msra.mxu0 0.0
      %2424 = vmatprep.subr.mxu0 0.0
      %2425 = vmatpush2.xpose.msra.mxu0 0.0
      %2426 = vmatprep.subr.mxu0 0.0
      %2427 = vmatpush2.xpose.msra.mxu0 0.0
      %2428 = vmatprep.subr.mxu0 0.0
      %2429 = vmatpush2.xpose.msra.mxu0 0.0
      %2430 = vmatprep.subr.mxu0 0.0
      %2431 = vmatpush2.xpose.msra.mxu0 0.0
      %2432 = vmatprep.subr.mxu0 0.0
      %2433 = vmatpush2.xpose.msra.mxu0 0.0
      %2434 = vmatprep.subr.mxu0 0.0
      %2435 = vmatpush2.xpose.msra.mxu0 0.0
      %2436 = vmatprep.subr.mxu0 0.0
      %2437 = vmatpush2.xpose.msra.mxu0 0.0
      %2438 = vmatprep.subr.mxu0 0.0
      %2439 = vmatpush2.xpose.msra.mxu0 0.0
      %2440 = vmatprep.subr.mxu0 0.0
      %2441 = vmatpush2.xpose.msra.mxu0 0.0
      %2442 = vmatprep.subr.mxu0 0.0
      %2443 = vmatpush2.xpose.msra.mxu0 0.0
      %2444 = vmatprep.subr.mxu0 0.0
      %2445 = vmatpush2.xpose.msra.mxu0 0.0
      %2446 = vmatprep.subr.mxu0 0.0
      %2447 = vmatpush2.xpose.msra.mxu0 0.0
      %2448 = vmatprep.subr.mxu0 0.0
      %2449 = vmatpush2.xpose.msra.mxu0 0.0
      %2450 = vmatprep.mubr.f32.mxu0 0.0
      %2451 = vmatmul.mubr.f32.gmra.mxu0 %v2382
      %v2452 = vpop.f32.mrf.mxu0
      %v2453 = vadd.f32 0.0, %v2452
      %v2454 = vpop.f32.mrf.mxu0
      %2455 = vdwg.mxu0
      %v2456 = vsel %vm671, %v615, 0
      %v2458 = vsel %vm671, %v643, 0
      %2460 = vmatprep.subr.mxu0 0.0
      %2461 = vmatpush1.xpose.msra.mxu0 0.0
      %2462 = vmatprep.subr.mxu0 0.0
      %2463 = vmatpush1.xpose.msra.mxu0 0.0
      %2464 = vmatprep.subr.mxu0 0.0
      %2465 = vmatpush1.xpose.msra.mxu0 0.0
      %2466 = vmatprep.subr.mxu0 0.0
      %2467 = vmatpush1.xpose.msra.mxu0 0.0
      %2468 = vmatprep.subr.mxu0 0.0
      %2469 = vmatpush1.xpose.msra.mxu0 0.0
      %2470 = vmatprep.subr.mxu0 0.0
      %2471 = vmatpush1.xpose.msra.mxu0 0.0
      %2472 = vmatprep.subr.mxu0 0.0
      %2473 = vmatpush1.xpose.msra.mxu0 0.0
      %2474 = vmatprep.subr.mxu0 0.0
      %2475 = vmatpush1.xpose.msra.mxu0 0.0
      %2476 = vmatprep.subr.mxu0 0.0
      %2477 = vmatpush1.xpose.msra.mxu0 0.0
      %2478 = vmatprep.subr.mxu0 0.0
      %2479 = vmatpush1.xpose.msra.mxu0 0.0
      %2480 = vmatprep.subr.mxu0 0.0
      %2481 = vmatpush1.xpose.msra.mxu0 0.0
      %2482 = vmatprep.subr.mxu0 0.0
      %2483 = vmatpush1.xpose.msra.mxu0 0.0
      %2484 = vmatprep.subr.mxu0 0.0
      %2485 = vmatpush1.xpose.msra.mxu0 0.0
      %2486 = vmatprep.subr.mxu0 0.0
      %2487 = vmatpush1.xpose.msra.mxu0 0.0
      %2488 = vmatprep.subr.mxu0 0.0
      %2489 = vmatpush1.xpose.msra.mxu0 0.0
      %2490 = vmatprep.subr.mxu0 0.0
      %2491 = vmatpush1.xpose.msra.mxu0 %v2458
      %2492 = vmatprep.subr.mxu0 0.0
      %2493 = vmatpush2.xpose.msra.mxu0 0.0
      %2494 = vmatprep.subr.mxu0 0.0
      %2495 = vmatpush2.xpose.msra.mxu0 0.0
      %2496 = vmatprep.subr.mxu0 0.0
      %2497 = vmatpush2.xpose.msra.mxu0 0.0
      %2498 = vmatprep.subr.mxu0 0.0
      %2499 = vmatpush2.xpose.msra.mxu0 0.0
      %2500 = vmatprep.subr.mxu0 0.0
      %2501 = vmatpush2.xpose.msra.mxu0 0.0
      %2502 = vmatprep.subr.mxu0 0.0
      %2503 = vmatpush2.xpose.msra.mxu0 0.0
      %2504 = vmatprep.subr.mxu0 0.0
      %2505 = vmatpush2.xpose.msra.mxu0 0.0
      %2506 = vmatprep.subr.mxu0 0.0
      %2507 = vmatpush2.xpose.msra.mxu0 0.0
      %2508 = vmatprep.subr.mxu0 0.0
      %2509 = vmatpush2.xpose.msra.mxu0 0.0
      %2510 = vmatprep.subr.mxu0 0.0
      %2511 = vmatpush2.xpose.msra.mxu0 0.0
      %2512 = vmatprep.subr.mxu0 0.0
      %2513 = vmatpush2.xpose.msra.mxu0 0.0
      %2514 = vmatprep.subr.mxu0 0.0
      %2515 = vmatpush2.xpose.msra.mxu0 0.0
      %2516 = vmatprep.subr.mxu0 0.0
      %2517 = vmatpush2.xpose.msra.mxu0 0.0
      %2518 = vmatprep.subr.mxu0 0.0
      %2519 = vmatpush2.xpose.msra.mxu0 0.0
      %2520 = vmatprep.subr.mxu0 0.0
      %2521 = vmatpush2.xpose.msra.mxu0 0.0
      %2522 = vmatprep.subr.mxu0 0.0
      %2523 = vmatpush2.xpose.msra.mxu0 0.0
      %2524 = vmatprep.mubr.f32.mxu0 0.0
      %2525 = vmatmul.mubr.f32.gmra.mxu0 %v2456
      %v2526 = vpop.f32.mrf.mxu0
      %v2527 = vadd.f32 0.0, %v2526
      %v2528 = vpop.f32.mrf.mxu0
      %2529 = vdwg.mxu0
      %v2530 = vsel %vm671, %v623, 0
      %v2532 = vsel %vm671, %v651, 0
      %2534 = vmatprep.subr.mxu0 0.0
      %2535 = vmatpush1.xpose.msra.mxu0 0.0
      %2536 = vmatprep.subr.mxu0 0.0
      %2537 = vmatpush1.xpose.msra.mxu0 0.0
      %2538 = vmatprep.subr.mxu0 0.0
      %2539 = vmatpush1.xpose.msra.mxu0 0.0
      %2540 = vmatprep.subr.mxu0 0.0
      %2541 = vmatpush1.xpose.msra.mxu0 0.0
      %2542 = vmatprep.subr.mxu0 0.0
      %2543 = vmatpush1.xpose.msra.mxu0 0.0
      %2544 = vmatprep.subr.mxu0 0.0
      %2545 = vmatpush1.xpose.msra.mxu0 0.0
      %2546 = vmatprep.subr.mxu0 0.0
      %2547 = vmatpush1.xpose.msra.mxu0 0.0
      %2548 = vmatprep.subr.mxu0 0.0
      %2549 = vmatpush1.xpose.msra.mxu0 0.0
      %2550 = vmatprep.subr.mxu0 0.0
      %2551 = vmatpush1.xpose.msra.mxu0 0.0
      %2552 = vmatprep.subr.mxu0 0.0
      %2553 = vmatpush1.xpose.msra.mxu0 0.0
      %2554 = vmatprep.subr.mxu0 0.0
      %2555 = vmatpush1.xpose.msra.mxu0 0.0
      %2556 = vmatprep.subr.mxu0 0.0
      %2557 = vmatpush1.xpose.msra.mxu0 0.0
      %2558 = vmatprep.subr.mxu0 0.0
      %2559 = vmatpush1.xpose.msra.mxu0 0.0
      %2560 = vmatprep.subr.mxu0 0.0
      %2561 = vmatpush1.xpose.msra.mxu0 0.0
      %2562 = vmatprep.subr.mxu0 0.0
      %2563 = vmatpush1.xpose.msra.mxu0 0.0
      %2564 = vmatprep.subr.mxu0 0.0
      %2565 = vmatpush1.xpose.msra.mxu0 %v2532
      %2566 = vmatprep.subr.mxu0 0.0
      %2567 = vmatpush2.xpose.msra.mxu0 0.0
      %2568 = vmatprep.subr.mxu0 0.0
      %2569 = vmatpush2.xpose.msra.mxu0 0.0
      %2570 = vmatprep.subr.mxu0 0.0
      %2571 = vmatpush2.xpose.msra.mxu0 0.0
      %2572 = vmatprep.subr.mxu0 0.0
      %2573 = vmatpush2.xpose.msra.mxu0 0.0
      %2574 = vmatprep.subr.mxu0 0.0
      %2575 = vmatpush2.xpose.msra.mxu0 0.0
      %2576 = vmatprep.subr.mxu0 0.0
      %2577 = vmatpush2.xpose.msra.mxu0 0.0
      %2578 = vmatprep.subr.mxu0 0.0
      %2579 = vmatpush2.xpose.msra.mxu0 0.0
      %2580 = vmatprep.subr.mxu0 0.0
      %2581 = vmatpush2.xpose.msra.mxu0 0.0
      %2582 = vmatprep.subr.mxu0 0.0
      %2583 = vmatpush2.xpose.msra.mxu0 0.0
      %2584 = vmatprep.subr.mxu0 0.0
      %2585 = vmatpush2.xpose.msra.mxu0 0.0
      %2586 = vmatprep.subr.mxu0 0.0
      %2587 = vmatpush2.xpose.msra.mxu0 0.0
      %2588 = vmatprep.subr.mxu0 0.0
      %2589 = vmatpush2.xpose.msra.mxu0 0.0
      %2590 = vmatprep.subr.mxu0 0.0
      %2591 = vmatpush2.xpose.msra.mxu0 0.0
      %2592 = vmatprep.subr.mxu0 0.0
      %2593 = vmatpush2.xpose.msra.mxu0 0.0
      %2594 = vmatprep.subr.mxu0 0.0
      %2595 = vmatpush2.xpose.msra.mxu0 0.0
      %2596 = vmatprep.subr.mxu0 0.0
      %2597 = vmatpush2.xpose.msra.mxu0 0.0
      %2598 = vmatprep.mubr.f32.mxu0 0.0
      %2599 = vmatmul.mubr.f32.gmra.mxu0 %v2530
      %v2600 = vpop.f32.mrf.mxu0
      %v2601 = vadd.f32 0.0, %v2600
      %v2602 = vpop.f32.mrf.mxu0
      %2603 = vdwg.mxu0
      %v2604 = vmul.f32 %v2379, 0.35355338
      %v2605 = vmul.f32 %v2453, 0.35355338
      %v2606 = vmul.f32 %v2527, 0.35355338
      %v2607 = vmul.f32 %v2601, 0.35355338
      %v2608 = vsel %vm973, %v2604, -inf
      %v2609 = vsel %vm973, %v2605, -inf
      %v2610 = vsel %vm973, %v2606, -inf
      %v2611 = vsel %vm973, %v2607, -inf
      %v2612 = vsel %vm671, %v2608, -inf
      %2613 = vmax.xlane.f32.xlu0 %v2612
      %v2614 = vpop.xlane.xlu0 %2613
      %v2615 = vsel %vm671, %v2609, -inf
      %2616 = vmax.xlane.f32.xlu0 %v2615
      %v2617 = vpop.xlane.xlu0 %2616
      %v2618 = vsel %vm671, %v2610, -inf
      %2619 = vmax.xlane.f32.xlu0 %v2618
      %v2620 = vpop.xlane.xlu0 %2619
      %v2621 = vsel %vm671, %v2611, -inf
      %2622 = vmax.xlane.f32.xlu0 %v2621
      %v2623 = vpop.xlane.xlu0 %2622
      %v2624 = vsub.f32 %v2608, %v2614
      %v2625 = vsub.f32 %v2609, %v2617
      %v2626 = vsub.f32 %v2610, %v2620
      %v2627 = vsub.f32 %v2611, %v2623
      %v2628 = vmul.f32 %v2624, 1.442695
      %v2629 = vpow.pop %v2628
      %v2630 = vmul.f32 %v2625, 1.442695
      %v2631 = vpow.pop %v2630
      %v2632 = vmul.f32 %v2626, 1.442695
      %v2633 = vpow.pop %v2632
      %v2634 = vmul.f32 %v2627, 1.442695
      %v2635 = vpow.pop %v2634
      %v2636 = vsel %vm671, %v2629, 0.0
      %2637 = vadd.xlane.f32.xlu0 %v2636
      %v2638 = vpop.xlane.xlu0 %2637
      %v2639 = vsel %vm671, %v2631, 0.0
      %2640 = vadd.xlane.f32.xlu0 %v2639
      %v2641 = vpop.xlane.xlu0 %2640
      %v2642 = vsel %vm671, %v2633, 0.0
      %2643 = vadd.xlane.f32.xlu0 %v2642
      %v2644 = vpop.xlane.xlu0 %2643
      %v2645 = vsel %vm671, %v2635, 0.0
      %2646 = vadd.xlane.f32.xlu0 %v2645
      %v2647 = vpop.xlane.xlu0 %2646
      %v2648 = vrcp.pop %v2638
      %v2649 = vrcp.pop %v2641
      %v2650 = vrcp.pop %v2644
      %v2651 = vrcp.pop %v2647
      %v2652 = vmul.f32 %v2629, %v2648
      %v2653 = vmul.f32 %v2631, %v2649
      %v2654 = vmul.f32 %v2633, %v2650
      %v2655 = vmul.f32 %v2635, %v2651
      %v2656 = vpack.c.bf16 %v2652, %v2652
      %v2657 = vpack.c.bf16 %v2653, %v2653
      %v2658 = vpack.c.bf16 %v2654, %v2654
      %v2659 = vpack.c.bf16 %v2655, %v2655
      %v2660 = vrot.slane %v595, 4
      %v2662 = vsel %vm671, %v2656, 0
      %v2665 = vsel %vm1029, %v2660, 0
      %2667 = vmatprep.subr.bf16.mxu0 0
      %2668 = vmatpush1.bf16.msra.mxu0 0
      %2669 = vmatprep.subr.bf16.mxu0 0
      %2670 = vmatpush1.bf16.msra.mxu0 0
      %2671 = vmatprep.subr.bf16.mxu0 0
      %2672 = vmatpush1.bf16.msra.mxu0 0
      %2673 = vmatprep.subr.bf16.mxu0 0
      %2674 = vmatpush1.bf16.msra.mxu0 0
      %2675 = vmatprep.subr.bf16.mxu0 0
      %2676 = vmatpush1.bf16.msra.mxu0 0
      %2677 = vmatprep.subr.bf16.mxu0 0
      %2678 = vmatpush1.bf16.msra.mxu0 0
      %2679 = vmatprep.subr.bf16.mxu0 0
      %2680 = vmatpush1.bf16.msra.mxu0 0
      %2681 = vmatprep.subr.bf16.mxu0 0
      %2682 = vmatpush1.bf16.msra.mxu0 %v2665
      %2683 = vmatprep.subr.bf16.mxu0 0
      %2684 = vmatpush2.bf16.msra.mxu0 0
      %2685 = vmatprep.subr.bf16.mxu0 0
      %2686 = vmatpush2.bf16.msra.mxu0 0
      %2687 = vmatprep.subr.bf16.mxu0 0
      %2688 = vmatpush2.bf16.msra.mxu0 0
      %2689 = vmatprep.subr.bf16.mxu0 0
      %2690 = vmatpush2.bf16.msra.mxu0 0
      %2691 = vmatprep.subr.bf16.mxu0 0
      %2692 = vmatpush2.bf16.msra.mxu0 0
      %2693 = vmatprep.subr.bf16.mxu0 0
      %2694 = vmatpush2.bf16.msra.mxu0 0
      %2695 = vmatprep.subr.bf16.mxu0 0
      %2696 = vmatpush2.bf16.msra.mxu0 0
      %2697 = vmatprep.subr.bf16.mxu0 0
      %2698 = vmatpush2.bf16.msra.mxu0 0
      %2699 = vmatprep.mubr.bf16.mxu0 0
      %2700 = vmatmul.mubr.bf16.gmra.mxu0 %v2662
      %v2701 = vpop.f32.mrf.mxu0
      %v2702 = vadd.f32 0.0, %v2701
      %v2703 = vpop.f32.mrf.mxu0
      %v2704 = vpop.f32.mrf.mxu0
      %v2705 = vpop.f32.mrf.mxu0
      %2706 = vdwg.mxu0
      %v2707 = vrot.slane %v657, 4
      %v2709 = vsel %vm671, %v2657, 0
      %v2712 = vsel %vm1029, %v2707, 0
      %2714 = vmatprep.subr.bf16.mxu0 0
      %2715 = vmatpush1.bf16.msra.mxu0 0
      %2716 = vmatprep.subr.bf16.mxu0 0
      %2717 = vmatpush1.bf16.msra.mxu0 0
      %2718 = vmatprep.subr.bf16.mxu0 0
      %2719 = vmatpush1.bf16.msra.mxu0 0
      %2720 = vmatprep.subr.bf16.mxu0 0
      %2721 = vmatpush1.bf16.msra.mxu0 0
      %2722 = vmatprep.subr.bf16.mxu0 0
      %2723 = vmatpush1.bf16.msra.mxu0 0
      %2724 = vmatprep.subr.bf16.mxu0 0
      %2725 = vmatpush1.bf16.msra.mxu0 0
      %2726 = vmatprep.subr.bf16.mxu0 0
      %2727 = vmatpush1.bf16.msra.mxu0 0
      %2728 = vmatprep.subr.bf16.mxu0 0
      %2729 = vmatpush1.bf16.msra.mxu0 %v2712
      %2730 = vmatprep.subr.bf16.mxu0 0
      %2731 = vmatpush2.bf16.msra.mxu0 0
      %2732 = vmatprep.subr.bf16.mxu0 0
      %2733 = vmatpush2.bf16.msra.mxu0 0
      %2734 = vmatprep.subr.bf16.mxu0 0
      %2735 = vmatpush2.bf16.msra.mxu0 0
      %2736 = vmatprep.subr.bf16.mxu0 0
      %2737 = vmatpush2.bf16.msra.mxu0 0
      %2738 = vmatprep.subr.bf16.mxu0 0
      %2739 = vmatpush2.bf16.msra.mxu0 0
      %2740 = vmatprep.subr.bf16.mxu0 0
      %2741 = vmatpush2.bf16.msra.mxu0 0
      %2742 = vmatprep.subr.bf16.mxu0 0
      %2743 = vmatpush2.bf16.msra.mxu0 0
      %2744 = vmatprep.subr.bf16.mxu0 0
      %2745 = vmatpush2.bf16.msra.mxu0 0
      %2746 = vmatprep.mubr.bf16.mxu0 0
      %2747 = vmatmul.mubr.bf16.gmra.mxu0 %v2709
      %v2748 = vpop.f32.mrf.mxu0
      %v2749 = vadd.f32 0.0, %v2748
      %v2750 = vpop.f32.mrf.mxu0
      %v2751 = vpop.f32.mrf.mxu0
      %v2752 = vpop.f32.mrf.mxu0
      %2753 = vdwg.mxu0
      %v2754 = vrot.slane %v661, 4
      %v2756 = vsel %vm671, %v2658, 0
      %v2759 = vsel %vm1029, %v2754, 0
      %2761 = vmatprep.subr.bf16.mxu0 0
      %2762 = vmatpush1.bf16.msra.mxu0 0
      %2763 = vmatprep.subr.bf16.mxu0 0
      %2764 = vmatpush1.bf16.msra.mxu0 0
      %2765 = vmatprep.subr.bf16.mxu0 0
      %2766 = vmatpush1.bf16.msra.mxu0 0
      %2767 = vmatprep.subr.bf16.mxu0 0
      %2768 = vmatpush1.bf16.msra.mxu0 0
      %2769 = vmatprep.subr.bf16.mxu0 0
      %2770 = vmatpush1.bf16.msra.mxu0 0
      %2771 = vmatprep.subr.bf16.mxu0 0
      %2772 = vmatpush1.bf16.msra.mxu0 0
      %2773 = vmatprep.subr.bf16.mxu0 0
      %2774 = vmatpush1.bf16.msra.mxu0 0
      %2775 = vmatprep.subr.bf16.mxu0 0
      %2776 = vmatpush1.bf16.msra.mxu0 %v2759
      %2777 = vmatprep.subr.bf16.mxu0 0
      %2778 = vmatpush2.bf16.msra.mxu0 0
      %2779 = vmatprep.subr.bf16.mxu0 0
      %2780 = vmatpush2.bf16.msra.mxu0 0
      %2781 = vmatprep.subr.bf16.mxu0 0
      %2782 = vmatpush2.bf16.msra.mxu0 0
      %2783 = vmatprep.subr.bf16.mxu0 0
      %2784 = vmatpush2.bf16.msra.mxu0 0
      %2785 = vmatprep.subr.bf16.mxu0 0
      %2786 = vmatpush2.bf16.msra.mxu0 0
      %2787 = vmatprep.subr.bf16.mxu0 0
      %2788 = vmatpush2.bf16.msra.mxu0 0
      %2789 = vmatprep.subr.bf16.mxu0 0
      %2790 = vmatpush2.bf16.msra.mxu0 0
      %2791 = vmatprep.subr.bf16.mxu0 0
      %2792 = vmatpush2.bf16.msra.mxu0 0
      %2793 = vmatprep.mubr.bf16.mxu0 0
      %2794 = vmatmul.mubr.bf16.gmra.mxu0 %v2756
      %v2795 = vpop.f32.mrf.mxu0
      %v2796 = vadd.f32 0.0, %v2795
      %v2797 = vpop.f32.mrf.mxu0
      %v2798 = vpop.f32.mrf.mxu0
      %v2799 = vpop.f32.mrf.mxu0
      %2800 = vdwg.mxu0
      %v2801 = vrot.slane %v665, 4
      %v2803 = vsel %vm671, %v2659, 0
      %v2806 = vsel %vm1029, %v2801, 0
      %2808 = vmatprep.subr.bf16.mxu0 0
      %2809 = vmatpush1.bf16.msra.mxu0 0
      %2810 = vmatprep.subr.bf16.mxu0 0
      %2811 = vmatpush1.bf16.msra.mxu0 0
      %2812 = vmatprep.subr.bf16.mxu0 0
      %2813 = vmatpush1.bf16.msra.mxu0 0
      %2814 = vmatprep.subr.bf16.mxu0 0
      %2815 = vmatpush1.bf16.msra.mxu0 0
      %2816 = vmatprep.subr.bf16.mxu0 0
      %2817 = vmatpush1.bf16.msra.mxu0 0
      %2818 = vmatprep.subr.bf16.mxu0 0
      %2819 = vmatpush1.bf16.msra.mxu0 0
      %2820 = vmatprep.subr.bf16.mxu0 0
      %2821 = vmatpush1.bf16.msra.mxu0 0
      %2822 = vmatprep.subr.bf16.mxu0 0
      %2823 = vmatpush1.bf16.msra.mxu0 %v2806
      %2824 = vmatprep.subr.bf16.mxu0 0
      %2825 = vmatpush2.bf16.msra.mxu0 0
      %2826 = vmatprep.subr.bf16.mxu0 0
      %2827 = vmatpush2.bf16.msra.mxu0 0
      %2828 = vmatprep.subr.bf16.mxu0 0
      %2829 = vmatpush2.bf16.msra.mxu0 0
      %2830 = vmatprep.subr.bf16.mxu0 0
      %2831 = vmatpush2.bf16.msra.mxu0 0
      %2832 = vmatprep.subr.bf16.mxu0 0
      %2833 = vmatpush2.bf16.msra.mxu0 0
      %2834 = vmatprep.subr.bf16.mxu0 0
      %2835 = vmatpush2.bf16.msra.mxu0 0
      %2836 = vmatprep.subr.bf16.mxu0 0
      %2837 = vmatpush2.bf16.msra.mxu0 0
      %2838 = vmatprep.subr.bf16.mxu0 0
      %2839 = vmatpush2.bf16.msra.mxu0 0
      %2840 = vmatprep.mubr.bf16.mxu0 0
      %2841 = vmatmul.mubr.bf16.gmra.mxu0 %v2803
      %v2842 = vpop.f32.mrf.mxu0
      %v2843 = vadd.f32 0.0, %v2842
      %v2844 = vpop.f32.mrf.mxu0
      %v2845 = vpop.f32.mrf.mxu0
      %v2846 = vpop.f32.mrf.mxu0
      %2847 = vdwg.mxu0
      %v2848 = vsel %vm370, %v2702, 0.0
      %v2849 = vsel %vm370, %v2749, 0.0
      %v2850 = vadd.f32 %v2848, %v2849
      %v2851 = vsel %vm370, %v2796, 0.0
      %v2852 = vadd.f32 %v2850, %v2851
      %v2853 = vsel %vm370, %v2843, 0.0
      %v2854 = vadd.f32 %v2852, %v2853
      %v2855 = vadd.f32 %v364, %v1217
      %v2856 = vadd.f32 %v365, %v1764
      %v2857 = vadd.f32 %v366, %v2307
      %v2858 = vadd.f32 %v367, %v2854
      %v2859 = vld [vmem:[%s4] sm:$0x1]
      %v2860 = vld [vmem:[%s5] sm:$0x1]
      %v2861 = vsel %vm370, %v2855, 0.0
      %2862 = vadd.xlane.f32.xlu0 %v2861
      %v2863 = vpop.xlane.xlu0 %2862
      %v2864 = vsel %vm370, %v2856, 0.0
      %2865 = vadd.xlane.f32.xlu0 %v2864
      %v2866 = vpop.xlane.xlu0 %2865
      %v2867 = vsel %vm370, %v2857, 0.0
      %2868 = vadd.xlane.f32.xlu0 %v2867
      %v2869 = vpop.xlane.xlu0 %2868
      %v2870 = vsel %vm370, %v2858, 0.0
      %2871 = vadd.xlane.f32.xlu0 %v2870
      %v2872 = vpop.xlane.xlu0 %2871
      %v2873 = vmul.f32 %v2863, %v383
      %v2874 = vmul.f32 %v2866, %v383
      %v2875 = vmul.f32 %v2869, %v383
      %v2876 = vmul.f32 %v2872, %v383
      %v2877 = vsub.f32 %v2855, %v2873
      %v2878 = vsub.f32 %v2856, %v2874
      %v2879 = vsub.f32 %v2857, %v2875
      %v2880 = vsub.f32 %v2858, %v2876
      %v2881 = vmul.f32 %v2877, %v2877
      %v2882 = vmul.f32 %v2878, %v2878
      %v2883 = vmul.f32 %v2879, %v2879
      %v2884 = vmul.f32 %v2880, %v2880
      %v2885 = vsel %vm370, %v2881, 0.0
      %2886 = vadd.xlane.f32.xlu0 %v2885
      %v2887 = vpop.xlane.xlu0 %2886
      %v2888 = vsel %vm370, %v2882, 0.0
      %2889 = vadd.xlane.f32.xlu0 %v2888
      %v2890 = vpop.xlane.xlu0 %2889
      %v2891 = vsel %vm370, %v2883, 0.0
      %2892 = vadd.xlane.f32.xlu0 %v2891
      %v2893 = vpop.xlane.xlu0 %2892
      %v2894 = vsel %vm370, %v2884, 0.0
      %2895 = vadd.xlane.f32.xlu0 %v2894
      %v2896 = vpop.xlane.xlu0 %2895
      %v2897 = vmul.f32 %v2887, %v383
      %v2898 = vmul.f32 %v2890, %v383
      %v2899 = vmul.f32 %v2893, %v383
      %v2900 = vmul.f32 %v2896, %v383
      %v2901 = vadd.f32 %v2897, 1e-05
      %v2902 = vadd.f32 %v2898, 1e-05
      %v2903 = vadd.f32 %v2899, 1e-05
      %v2904 = vadd.f32 %v2900, 1e-05
      %v2905 = vrsqrt.pop %v2901
      %v2906 = vrsqrt.pop %v2902
      %v2907 = vrsqrt.pop %v2903
      %v2908 = vrsqrt.pop %v2904
      %v2909 = vmul.f32 %v2877, %v2905
      %v2910 = vmul.f32 %v2878, %v2906
      %v2911 = vmul.f32 %v2879, %v2907
      %v2912 = vmul.f32 %v2880, %v2908
      %v2914 = vlaneseq
      %v2915 = vshrl.u32 %v2914, 7
      %v2916 = vsub.s32 0, %v2915
      %v2917 = vrot.slane %v2859, %v2916
      %v2919 = vmul.f32 %v2909, %v2917
      %v2920 = vmul.f32 %v2910, %v2917
      %v2921 = vmul.f32 %v2911, %v2917
      %v2922 = vmul.f32 %v2912, %v2917
      %v2924 = vlaneseq
      %v2925 = vshrl.u32 %v2924, 7
      %v2926 = vsub.s32 0, %v2925
      %v2927 = vrot.slane %v2860, %v2926
      %v2929 = vadd.f32 %v2919, %v2927
      %v2930 = vadd.f32 %v2920, %v2927
      %v2931 = vadd.f32 %v2921, %v2927
      %v2932 = vadd.f32 %v2922, %v2927
      %v2933 = vpack.c.bf16 %v2930, %v2929
      %v2934 = vpack.c.bf16 %v2932, %v2931
      %v2935 = vld [vmem:[%s6] sm:$0xf]
      %v2936 = vld [vmem:[%s6 + $0x4] sm:$0xf]
      %v2937 = vld [vmem:[%s6 + $0x8] sm:$0xf]
      %v2938 = vld [vmem:[%s6 + $0xc] sm:$0xf]
      %v2939 = vld [vmem:[%s7] sm:$0x1]
      %v2941 = vlaneseq
      %v2942 = vshrl.u32 %v2941, 7
      %v2943 = vsub.s32 0, %v2942
      %v2944 = vrot.slane %v2939, %v2943
      %v2950 = vunpack.c.l.b16 %v2935
      %v2951 = vunpack.c.l.b16 %v2936
      %v2952 = vunpack.c.l.b16 %v2937
      %v2953 = vunpack.c.l.b16 %v2938
      %v2954 = vpack.c.b16 %v2951, %v2950
      %v2955 = vpack.c.b16 %v2953, %v2952
      %v2959 = vsel %vm370, %v2933, 0
      %v2962 = vsel %vm370, %v2934, 0
      %2964 = vmatprep.subr.bf16.mxu0 0
      %2965 = vmatpush1.bf16.msra.mxu0 0
      %2966 = vmatprep.subr.bf16.mxu0 0
      %2967 = vmatpush1.bf16.msra.mxu0 0
      %2968 = vmatprep.subr.bf16.mxu0 0
      %2969 = vmatpush1.bf16.msra.mxu0 0
      %2970 = vmatprep.subr.bf16.mxu0 0
      %2971 = vmatpush1.bf16.msra.mxu0 0
      %2972 = vmatprep.subr.bf16.mxu0 0
      %2973 = vmatpush1.bf16.msra.mxu0 0
      %2974 = vmatprep.subr.bf16.mxu0 0
      %2975 = vmatpush1.bf16.msra.mxu0 0
      %2976 = vmatprep.subr.bf16.mxu0 0
      %2977 = vmatpush1.bf16.msra.mxu0 %v2955
      %2978 = vmatprep.subr.bf16.mxu0 0
      %2979 = vmatpush1.bf16.msra.mxu0 %v2954
      %2980 = vmatprep.subr.bf16.mxu0 0
      %2981 = vmatpush2.bf16.msra.mxu0 0
      %2982 = vmatprep.subr.bf16.mxu0 0
      %2983 = vmatpush2.bf16.msra.mxu0 0
      %2984 = vmatprep.subr.bf16.mxu0 0
      %2985 = vmatpush2.bf16.msra.mxu0 0
      %2986 = vmatprep.subr.bf16.mxu0 0
      %2987 = vmatpush2.bf16.msra.mxu0 0
      %2988 = vmatprep.subr.bf16.mxu0 0
      %2989 = vmatpush2.bf16.msra.mxu0 0
      %2990 = vmatprep.subr.bf16.mxu0 0
      %2991 = vmatpush2.bf16.msra.mxu0 0
      %2992 = vmatprep.subr.bf16.mxu0 0
      %2993 = vmatpush2.bf16.msra.mxu0 0
      %2994 = vmatprep.subr.bf16.mxu0 0
      %2995 = vmatpush2.bf16.msra.mxu0 0
      %2996 = vmatprep.mubr.bf16.mxu0 0
      %2997 = vmatmul.mubr.bf16.gmra.mxu0 %v2959
      %v2998 = vpop.f32.mrf.mxu0
      %v2999 = vadd.f32 %v2944, %v2998
      %v3000 = vpop.f32.mrf.mxu0
      %v3001 = vpop.f32.mrf.mxu0
      %v3002 = vadd.f32 %v2944, %v3001
      %v3003 = vpop.f32.mrf.mxu0
      %3004 = vmatprep.mubr.bf16.mxu0 0
      %3005 = vmatmul.mubr.bf16.gmra.mxu0 %v2962
      %v3006 = vpop.f32.mrf.mxu0
      %v3007 = vadd.f32 %v2944, %v3006
      %v3008 = vpop.f32.mrf.mxu0
      %v3009 = vpop.f32.mrf.mxu0
      %v3010 = vadd.f32 %v2944, %v3009
      %v3011 = vpop.f32.mrf.mxu0
      %3012 = vdwg.mxu0
      %v3013 = vmax.f32 %v2999, 0.0
      %v3014 = vmax.f32 %v3002, 0.0
      %v3015 = vmax.f32 %v3007, 0.0
      %v3016 = vmax.f32 %v3010, 0.0
      %v3017 = vpack.c.bf16 %v3014, %v3013
      %v3018 = vpack.c.bf16 %v3016, %v3015
      %v3019 = vld [vmem:[%s8] sm:$0xf]
      %v3020 = vld [vmem:[%s8 + $0x4] sm:$0xf]
      %v3021 = vld [vmem:[%s8 + $0x8] sm:$0xf]
      %v3022 = vld [vmem:[%s8 + $0xc] sm:$0xf]
      %v3023 = vld [vmem:[%s8 + $0x10] sm:$0xf]
      %v3024 = vld [vmem:[%s8 + $0x14] sm:$0xf]
      %v3025 = vld [vmem:[%s8 + $0x18] sm:$0xf]
      %v3026 = vld [vmem:[%s8 + $0x1c] sm:$0xf]
      %v3027 = vld [vmem:[%s8 + $0x20] sm:$0xf]
      %v3028 = vld [vmem:[%s8 + $0x24] sm:$0xf]
      %v3029 = vld [vmem:[%s8 + $0x28] sm:$0xf]
      %v3030 = vld [vmem:[%s8 + $0x2c] sm:$0xf]
      %v3031 = vld [vmem:[%s8 + $0x30] sm:$0xf]
      %v3032 = vld [vmem:[%s8 + $0x34] sm:$0xf]
      %v3033 = vld [vmem:[%s8 + $0x38] sm:$0xf]
      %v3034 = vld [vmem:[%s8 + $0x3c] sm:$0xf]
      %v3035 = vld [vmem:[%s9] sm:$0x1]
      %v3037 = vlaneseq
      %v3038 = vshrl.u32 %v3037, 7
      %v3039 = vsub.s32 0, %v3038
      %v3040 = vrot.slane %v3035, %v3039
      %v3058 = vunpack.c.l.b16 %v3019
      %v3059 = vunpack.c.l.b16 %v3020
      %v3060 = vunpack.c.l.b16 %v3021
      %v3061 = vunpack.c.l.b16 %v3022
      %v3062 = vunpack.c.l.b16 %v3023
      %v3063 = vunpack.c.l.b16 %v3024
      %v3064 = vunpack.c.l.b16 %v3025
      %v3065 = vunpack.c.l.b16 %v3026
      %v3066 = vunpack.c.l.b16 %v3027
      %v3067 = vunpack.c.l.b16 %v3028
      %v3068 = vunpack.c.l.b16 %v3029
      %v3069 = vunpack.c.l.b16 %v3030
      %v3070 = vunpack.c.l.b16 %v3031
      %v3071 = vunpack.c.l.b16 %v3032
      %v3072 = vunpack.c.l.b16 %v3033
      %v3073 = vunpack.c.l.b16 %v3034
      %v3074 = vpack.c.b16 %v3059, %v3058
      %v3075 = vpack.c.b16 %v3061, %v3060
      %v3076 = vpack.c.b16 %v3063, %v3062
      %v3077 = vpack.c.b16 %v3065, %v3064
      %v3078 = vpack.c.b16 %v3067, %v3066
      %v3079 = vpack.c.b16 %v3069, %v3068
      %v3080 = vpack.c.b16 %v3071, %v3070
      %v3081 = vpack.c.b16 %v3073, %v3072
      %3090 = vmatprep.subr.bf16.mxu0 0
      %3091 = vmatpush1.bf16.msra.mxu0 %v3081
      %3092 = vmatprep.subr.bf16.mxu0 0
      %3093 = vmatpush1.bf16.msra.mxu0 %v3080
      %3094 = vmatprep.subr.bf16.mxu0 0
      %3095 = vmatpush1.bf16.msra.mxu0 %v3079
      %3096 = vmatprep.subr.bf16.mxu0 0
      %3097 = vmatpush1.bf16.msra.mxu0 %v3078
      %3098 = vmatprep.subr.bf16.mxu0 0
      %3099 = vmatpush1.bf16.msra.mxu0 %v3077
      %3100 = vmatprep.subr.bf16.mxu0 0
      %3101 = vmatpush1.bf16.msra.mxu0 %v3076
      %3102 = vmatprep.subr.bf16.mxu0 0
      %3103 = vmatpush1.bf16.msra.mxu0 %v3075
      %3104 = vmatprep.subr.bf16.mxu0 0
      %3105 = vmatpush1.bf16.msra.mxu0 %v3074
      %3106 = vmatprep.subr.bf16.mxu0 0
      %3107 = vmatpush2.bf16.msra.mxu0 0
      %3108 = vmatprep.subr.bf16.mxu0 0
      %3109 = vmatpush2.bf16.msra.mxu0 0
      %3110 = vmatprep.subr.bf16.mxu0 0
      %3111 = vmatpush2.bf16.msra.mxu0 0
      %3112 = vmatprep.subr.bf16.mxu0 0
      %3113 = vmatpush2.bf16.msra.mxu0 0
      %3114 = vmatprep.subr.bf16.mxu0 0
      %3115 = vmatpush2.bf16.msra.mxu0 0
      %3116 = vmatprep.subr.bf16.mxu0 0
      %3117 = vmatpush2.bf16.msra.mxu0 0
      %3118 = vmatprep.subr.bf16.mxu0 0
      %3119 = vmatpush2.bf16.msra.mxu0 0
      %3120 = vmatprep.subr.bf16.mxu0 0
      %3121 = vmatpush2.bf16.msra.mxu0 0
      %3122 = vmatprep.mubr.bf16.mxu0 0
      %3123 = vmatmul.mubr.bf16.gmra.mxu0 %v3017
      %v3124 = vpop.f32.mrf.mxu0
      %v3125 = vadd.f32 %v3040, %v3124
      %v3126 = vpop.f32.mrf.mxu0
      %v3127 = vpop.f32.mrf.mxu0
      %v3128 = vadd.f32 %v3040, %v3127
      %v3129 = vpop.f32.mrf.mxu0
      %3130 = vmatprep.mubr.bf16.mxu0 0
      %3131 = vmatmul.mubr.bf16.gmra.mxu0 %v3018
      %v3132 = vpop.f32.mrf.mxu0
      %v3133 = vadd.f32 %v3040, %v3132
      %v3134 = vpop.f32.mrf.mxu0
      %v3135 = vpop.f32.mrf.mxu0
      %v3136 = vadd.f32 %v3040, %v3135
      %v3137 = vpop.f32.mrf.mxu0
      %3138 = vdwg.mxu0
      %v3139 = vadd.f32 %v2855, %v3125
      %v3140 = vadd.f32 %v2856, %v3128
      %v3141 = vadd.f32 %v2857, %v3133
      %v3142 = vadd.f32 %v2858, %v3136
      %3143 = vst.msk [vmem:[%s361] sm:$0xff] %vm370, %v3139
      %3144 = vst.msk [vmem:[%s361 + $0x8] sm:$0xff] %vm370, %v3140
      %3145 = vst.msk [vmem:[%s361 + $0x10] sm:$0xff] %vm370, %v3141
      %3146 = vst.msk [vmem:[%s361 + $0x18] sm:$0xff] %vm370, %v3142
      %s3147 = smul.u32 4, %s21
      %p3148 = scmp.lt.s32.totalorder %s3147, 7
      %s3149 = scalar_select %p3148, %s3147, 7
      %s3150 = smul.addr %s3149, 8
      %s3151 = scalar_lea.vmem %s10, %s3150
      // Predicated region
      $region61: #{tpu_custom_call.1} parent=59 // pred_check
        %p3152 = pneg %p254
      $region62: #{tpu_custom_call.1} parent=59 // pred_check_branch
        %3154 = sbr.rel (%p3152) target = $region64
      $region63: #{tpu_custom_call.1} parent=59 // pred_region
        %s3155 = smul.u32 4, %s21
      $region64: #{tpu_custom_call.1} parent=59 // pred_fallthru
        _
    $region60: #{tpu_custom_call.1} parent=5 // pred_fallthru
      _
    %p3156 = scmp.le.s32.totalorder 2, %s16
    // Predicated region
    $region65: #{tpu_custom_call.1} parent=5 // pred_check
      %p3157 = pneg %p3156
    $region66: #{tpu_custom_call.1} parent=5 // pred_check_branch
      %3159 = sbr.rel (%p3157) target = $region68
    $region67: #{tpu_custom_call.1} parent=5 // pred_region
      %s3160 = ssub.s32 %s16, 2
      // Predicated region
      $region69: #{tpu_custom_call.1} parent=67 // pred_check
        %p3161 = pneg %p260
      $region70: #{tpu_custom_call.1} parent=67 // pred_check_branch
        %3163 = sbr.rel (%p3161) target = $region72
      $region71: #{tpu_custom_call.1} parent=67 // pred_region
        %s3164 = smul.u32 4, %s22
        %p3165 = scmp.lt.s32.totalorder %s3164, 7
        %s3166 = scalar_select %p3165, %s3164, 7
        %s3167 = smul.addr %s3166, 8
        %s3168 = scalar_lea.vmem %s10, %s3167
      $region72: #{tpu_custom_call.1} parent=67 // pred_fallthru
        _
    $region68: #{tpu_custom_call.1} parent=5 // pred_fallthru
      _
  $region6: #{tpu_custom_call.1} parent=0 // loop_footer
    %s20 = sadd.s32 1, %s16
  $region7: #{tpu_custom_call.1} parent=0 // loop_footer_branch
    %15 = sbr.rel target = $region3
  $region8: #{tpu_custom_call.1} parent=0 // loop_exit
    _

// kernel: tpu_custom_call.1
$region0: #{tpu_custom_call.1}
  #allocation0 [shape = 'u32[]', space=smem, size = 0x4, offset = 0x4, fixed_abs, tag = 'smem constant byte address 0x4 - core index']
  #allocation1 [shape = 'u32[144,128]{1,0:T(1,128)}', space=vmem, size = 0x12000, scoped, tag = 'internal scratch']
  %s0 = inlined_call_operand.vmem [shape: f32[64,32], index: 0, kind: input, shape index: {}]
  %s1 = inlined_call_operand.vmem [shape: f32[1,32], index: 1, kind: input, shape index: {}]
  %s2 = inlined_call_operand.vmem [shape: f32[1,32], index: 2, kind: input, shape index: {}]
  %s3 = inlined_call_operand.vmem [shape: bf16[32,384], index: 3, kind: input, shape index: {}]
  %s4 = inlined_call_operand.vmem [shape: f32[1,32], index: 4, kind: input, shape index: {}]
  %s5 = inlined_call_operand.vmem [shape: f32[1,32], index: 5, kind: input, shape index: {}]
  %s6 = inlined_call_operand.vmem [shape: bf16[32,128], index: 6, kind: input, shape index: {}]
  %s7 = inlined_call_operand.vmem [shape: f32[1,128], index: 7, kind: input, shape index: {}]
  %s8 = inlined_call_operand.vmem [shape: bf16[128,32], index: 8, kind: input, shape index: {}]
  %s9 = inlined_call_operand.vmem [shape: f32[1,32], index: 9, kind: input, shape index: {}]
  %s10 = inlined_call_operand.vmem [shape: f32[64,32], index: 10, kind: output, shape index: {}]
  %s11 = sld [smem:[#allocation0]]
  $region73: #{tpu_custom_call.1} parent=0
    _
  %s13 = ssub.s32 1, %s11
  %s14 = scalar_select 0, %s13, %s11
  loop: start=0, step=1, limit=4
  $region2: #{tpu_custom_call.1} parent=0 // loop_pre_header
    _
  $region3: #{tpu_custom_call.1} parent=0 // loop_header
    %s16 = sphi 0, %s20
    %p17 = scmp.ge.s32.totalorder %s16, 4
    %s26 = sphi 0, %s28
    %s29 = sphi 0, %s26
    %s30 = sphi 0, %s29
    %s46 = sphi 0, %s30
    %s50 = sphi 0, %s50
    %s52 = sphi 0, %s50
    %s53 = sphi 0, %s52
    %s67 = sphi 0, %s53
    %s71 = sphi 0, %s71
    %s73 = sphi 0, %s71
    %s74 = sphi 0, %s73
    %s88 = sphi 0, %s74
    %s92 = sphi 0, %s92
    %s94 = sphi 0, %s92
    %s95 = sphi 0, %s94
    %s109 = sphi 0, %s95
    %s113 = sphi 0, %s113
    %s115 = sphi 0, %s113
    %s116 = sphi 0, %s115
    %s130 = sphi 0, %s116
    %s134 = sphi 0, %s134
    %s136 = sphi 0, %s134
    %s137 = sphi 0, %s136
    %s151 = sphi 0, %s137
    %s155 = sphi 0, %s155
    %s157 = sphi 0, %s155
    %s158 = sphi 0, %s157
    %s172 = sphi 0, %s158
    %s176 = sphi 0, %s176
    %s178 = sphi 0, %s176
    %s179 = sphi 0, %s178
    %s193 = sphi 0, %s179
    %s197 = sphi 0, %s197
    %s199 = sphi 0, %s197
    %s200 = sphi 0, %s199
    %s214 = sphi 0, %s200
    %s218 = sphi 0, %s218
    %s220 = sphi 0, %s218
    %s221 = sphi 0, %s220
    %s235 = sphi 0, %s221
    %s241 = sphi 0, %s243
    %s244 = sphi 0, %s241
    %s245 = sphi 0, %s244
    %s261 = sphi 0, %s245
  $region4: #{tpu_custom_call.1} parent=0 // loop_header_branch
    %19 = sbr.rel (%p17) target = $region8
  $region5: #{tpu_custom_call.1} parent=0 // loop_body
    %s21 = ssub.s32 %s16, 1
    %s22 = ssub.s32 %s16, 2
    %s23 = sadd.s32 %s16, 1
    %s24 = ssub.s32 %s16, %s23
    %p25 = scmp.eq.s32.totalorder %s24, 0
    %s27 = sadd.s32 %s26, 1
    %s28 = scalar_select %p25, %s26, %s27
    %p31 = pneg %p25
    %p32 = scmp.eq.s32.totalorder %s16, 1
    %p33 = por %p31, %p32
    %p34 = scmp.ne.s32.totalorder %s26, %s29
    %p35 = scmp.eq.s32.totalorder %s16, 0
    %p36 = por %p34, %p35
    %p37 = scmp.ne.s32.totalorder %s26, %s29
    %p38 = scmp.eq.s32.totalorder %s21, 1
    %p39 = por %p37, %p38
    %p40 = scmp.ne.s32.totalorder %s29, %s30
    %p41 = scmp.eq.s32.totalorder %s21, 0
    %p42 = por %p40, %p41
    %p43 = scmp.ne.s32.totalorder %s29, %s30
    %p44 = scmp.eq.s32.totalorder %s22, 1
    %p45 = por %p43, %p44
    %p47 = scmp.ne.s32.totalorder %s30, %s46
    %p48 = scmp.eq.s32.totalorder %s22, 0
    %p49 = por %p47, %p48
    %s51 = sadd.s32 %s50, 1
    %p54 = scmp.eq.s32.totalorder %s16, 1
    %p55 = scmp.ne.s32.totalorder %s50, %s52
    %p56 = scmp.eq.s32.totalorder %s16, 0
    %p57 = por %p55, %p56
    %p58 = scmp.ne.s32.totalorder %s50, %s52
    %p59 = scmp.eq.s32.totalorder %s21, 1
    %p60 = por %p58, %p59
    %p61 = scmp.ne.s32.totalorder %s52, %s53
    %p62 = scmp.eq.s32.totalorder %s21, 0
    %p63 = por %p61, %p62
    %p64 = scmp.ne.s32.totalorder %s52, %s53
    %p65 = scmp.eq.s32.totalorder %s22, 1
    %p66 = por %p64, %p65
    %p68 = scmp.ne.s32.totalorder %s53, %s67
    %p69 = scmp.eq.s32.totalorder %s22, 0
    %p70 = por %p68, %p69
    %s72 = sadd.s32 %s71, 1
    %p75 = scmp.eq.s32.totalorder %s16, 1
    %p76 = scmp.ne.s32.totalorder %s71, %s73
    %p77 = scmp.eq.s32.totalorder %s16, 0
    %p78 = por %p76, %p77
    %p79 = scmp.ne.s32.totalorder %s71, %s73
    %p80 = scmp.eq.s32.totalorder %s21, 1
    %p81 = por %p79, %p80
    %p82 = scmp.ne.s32.totalorder %s73, %s74
    %p83 = scmp.eq.s32.totalorder %s21, 0
    %p84 = por %p82, %p83
    %p85 = scmp.ne.s32.totalorder %s73, %s74
    %p86 = scmp.eq.s32.totalorder %s22, 1
    %p87 = por %p85, %p86
    %p89 = scmp.ne.s32.totalorder %s74, %s88
    %p90 = scmp.eq.s32.totalorder %s22, 0
    %p91 = por %p89, %p90
    %s93 = sadd.s32 %s92, 1
    %p96 = scmp.eq.s32.totalorder %s16, 1
    %p97 = scmp.ne.s32.totalorder %s92, %s94
    %p98 = scmp.eq.s32.totalorder %s16, 0
    %p99 = por %p97, %p98
    %p100 = scmp.ne.s32.totalorder %s92, %s94
    %p101 = scmp.eq.s32.totalorder %s21, 1
    %p102 = por %p100, %p101
    %p103 = scmp.ne.s32.totalorder %s94, %s95
    %p104 = scmp.eq.s32.totalorder %s21, 0
    %p105 = por %p103, %p104
    %p106 = scmp.ne.s32.totalorder %s94, %s95
    %p107 = scmp.eq.s32.totalorder %s22, 1
    %p108 = por %p106, %p107
    %p110 = scmp.ne.s32.totalorder %s95, %s109
    %p111 = scmp.eq.s32.totalorder %s22, 0
    %p112 = por %p110, %p111
    %s114 = sadd.s32 %s113, 1
    %p117 = scmp.eq.s32.totalorder %s16, 1
    %p118 = scmp.ne.s32.totalorder %s113, %s115
    %p119 = scmp.eq.s32.totalorder %s16, 0
    %p120 = por %p118, %p119
    %p121 = scmp.ne.s32.totalorder %s113, %s115
    %p122 = scmp.eq.s32.totalorder %s21, 1
    %p123 = por %p121, %p122
    %p124 = scmp.ne.s32.totalorder %s115, %s116
    %p125 = scmp.eq.s32.totalorder %s21, 0
    %p126 = por %p124, %p125
    %p127 = scmp.ne.s32.totalorder %s115, %s116
    %p128 = scmp.eq.s32.totalorder %s22, 1
    %p129 = por %p127, %p128
    %p131 = scmp.ne.s32.totalorder %s116, %s130
    %p132 = scmp.eq.s32.totalorder %s22, 0
    %p133 = por %p131, %p132
    %s135 = sadd.s32 %s134, 1
    %p138 = scmp.eq.s32.totalorder %s16, 1
    %p139 = scmp.ne.s32.totalorder %s134, %s136
    %p140 = scmp.eq.s32.totalorder %s16, 0
    %p141 = por %p139, %p140
    %p142 = scmp.ne.s32.totalorder %s134, %s136
    %p143 = scmp.eq.s32.totalorder %s21, 1
    %p144 = por %p142, %p143
    %p145 = scmp.ne.s32.totalorder %s136, %s137
    %p146 = scmp.eq.s32.totalorder %s21, 0
    %p147 = por %p145, %p146
    %p148 = scmp.ne.s32.totalorder %s136, %s137
    %p149 = scmp.eq.s32.totalorder %s22, 1
    %p150 = por %p148, %p149
    %p152 = scmp.ne.s32.totalorder %s137, %s151
    %p153 = scmp.eq.s32.totalorder %s22, 0
    %p154 = por %p152, %p153
    %s156 = sadd.s32 %s155, 1
    %p159 = scmp.eq.s32.totalorder %s16, 1
    %p160 = scmp.ne.s32.totalorder %s155, %s157
    %p161 = scmp.eq.s32.totalorder %s16, 0
    %p162 = por %p160, %p161
    %p163 = scmp.ne.s32.totalorder %s155, %s157
    %p164 = scmp.eq.s32.totalorder %s21, 1
    %p165 = por %p163, %p164
    %p166 = scmp.ne.s32.totalorder %s157, %s158
    %p167 = scmp.eq.s32.totalorder %s21, 0
    %p168 = por %p166, %p167
    %p169 = scmp.ne.s32.totalorder %s157, %s158
    %p170 = scmp.eq.s32.totalorder %s22, 1
    %p171 = por %p169, %p170
    %p173 = scmp.ne.s32.totalorder %s158, %s172
    %p174 = scmp.eq.s32.totalorder %s22, 0
    %p175 = por %p173, %p174
    %s177 = sadd.s32 %s176, 1
    %p180 = scmp.eq.s32.totalorder %s16, 1
    %p181 = scmp.ne.s32.totalorder %s176, %s178
    %p182 = scmp.eq.s32.totalorder %s16, 0
    %p183 = por %p181, %p182
    %p184 = scmp.ne.s32.totalorder %s176, %s178
    %p185 = scmp.eq.s32.totalorder %s21, 1
    %p186 = por %p184, %p185
    %p187 = scmp.ne.s32.totalorder %s178, %s179
    %p188 = scmp.eq.s32.totalorder %s21, 0
    %p189 = por %p187, %p188
    %p190 = scmp.ne.s32.totalorder %s178, %s179
    %p191 = scmp.eq.s32.totalorder %s22, 1
    %p192 = por %p190, %p191
    %p194 = scmp.ne.s32.totalorder %s179, %s193
    %p195 = scmp.eq.s32.totalorder %s22, 0
    %p196 = por %p194, %p195
    %s198 = sadd.s32 %s197, 1
    %p201 = scmp.eq.s32.totalorder %s16, 1
    %p202 = scmp.ne.s32.totalorder %s197, %s199
    %p203 = scmp.eq.s32.totalorder %s16, 0
    %p204 = por %p202, %p203
    %p205 = scmp.ne.s32.totalorder %s197, %s199
    %p206 = scmp.eq.s32.totalorder %s21, 1
    %p207 = por %p205, %p206
    %p208 = scmp.ne.s32.totalorder %s199, %s200
    %p209 = scmp.eq.s32.totalorder %s21, 0
    %p210 = por %p208, %p209
    %p211 = scmp.ne.s32.totalorder %s199, %s200
    %p212 = scmp.eq.s32.totalorder %s22, 1
    %p213 = por %p211, %p212
    %p215 = scmp.ne.s32.totalorder %s200, %s214
    %p216 = scmp.eq.s32.totalorder %s22, 0
    %p217 = por %p215, %p216
    %s219 = sadd.s32 %s218, 1
    %p222 = scmp.eq.s32.totalorder %s16, 1
    %p223 = scmp.ne.s32.totalorder %s218, %s220
    %p224 = scmp.eq.s32.totalorder %s16, 0
    %p225 = por %p223, %p224
    %p226 = scmp.ne.s32.totalorder %s218, %s220
    %p227 = scmp.eq.s32.totalorder %s21, 1
    %p228 = por %p226, %p227
    %p229 = scmp.ne.s32.totalorder %s220, %s221
    %p230 = scmp.eq.s32.totalorder %s21, 0
    %p231 = por %p229, %p230
    %p232 = scmp.ne.s32.totalorder %s220, %s221
    %p233 = scmp.eq.s32.totalorder %s22, 1
    %p234 = por %p232, %p233
    %p236 = scmp.ne.s32.totalorder %s221, %s235
    %p237 = scmp.eq.s32.totalorder %s22, 0
    %p238 = por %p236, %p237
    %s239 = ssub.s32 %s16, %s23
    %p240 = scmp.eq.s32.totalorder %s239, 0
    %s242 = sadd.s32 %s241, 1
    %s243 = scalar_select %p240, %s241, %s242
    %p246 = pneg %p240
    %p247 = scmp.eq.s32.totalorder %s16, 1
    %p248 = por %p246, %p247
    %p249 = scmp.ne.s32.totalorder %s241, %s244
    %p250 = scmp.eq.s32.totalorder %s16, 0
    %p251 = por %p249, %p250
    %p252 = scmp.ne.s32.totalorder %s241, %s244
    %p253 = scmp.eq.s32.totalorder %s21, 1
    %p254 = por %p252, %p253
    %p255 = scmp.ne.s32.totalorder %s244, %s245
    %p256 = scmp.eq.s32.totalorder %s21, 0
    %p257 = por %p255, %p256
    %p258 = scmp.ne.s32.totalorder %s244, %s245
    %p259 = scmp.eq.s32.totalorder %s22, 1
    %p260 = por %p258, %p259
    %p262 = scmp.ne.s32.totalorder %s245, %s261
    %p263 = scmp.eq.s32.totalorder %s22, 0
    %p264 = por %p262, %p263
    %p265 = scmp.le.s32.totalorder 1, %s16
    %p266 = scmp.lt.s32.totalorder %s16, 3
    %p267 = pnand %p265, %p266
    %p268 = pneg %p267
    // Predicated region
    $region9: #{tpu_custom_call.1} parent=5 // pred_check
      _
    $region10: #{tpu_custom_call.1} parent=5 // pred_check_branch
      %270 = sbr.rel (%p267) target = $region12
    $region11: #{tpu_custom_call.1} parent=5 // pred_region
      %s271 = ssub.s32 %s16, 1
      // Predicated region
      $region13: #{tpu_custom_call.1} parent=11 // pred_check
        %p272 = pneg %p63
      $region14: #{tpu_custom_call.1} parent=11 // pred_check_branch
        %274 = sbr.rel (%p272) target = $region16
      $region15: #{tpu_custom_call.1} parent=11 // pred_region
        _
      $region16: #{tpu_custom_call.1} parent=11 // pred_fallthru
        _
      // Predicated region
      $region17: #{tpu_custom_call.1} parent=11 // pred_check
        %p275 = pneg %p84
      $region18: #{tpu_custom_call.1} parent=11 // pred_check_branch
        %277 = sbr.rel (%p275) target = $region20
      $region19: #{tpu_custom_call.1} parent=11 // pred_region
        _
      $region20: #{tpu_custom_call.1} parent=11 // pred_fallthru
        _
      // Predicated region
      $region21: #{tpu_custom_call.1} parent=11 // pred_check
        %p278 = pneg %p105
      $region22: #{tpu_custom_call.1} parent=11 // pred_check_branch
        %280 = sbr.rel (%p278) target = $region24
      $region23: #{tpu_custom_call.1} parent=11 // pred_region
        _
      $region24: #{tpu_custom_call.1} parent=11 // pred_fallthru
        _
      // Predicated region
      $region25: #{tpu_custom_call.1} parent=11 // pred_check
        %p281 = pneg %p126
      $region26: #{tpu_custom_call.1} parent=11 // pred_check_branch
        %283 = sbr.rel (%p281) target = $region28
      $region27: #{tpu_custom_call.1} parent=11 // pred_region
        _
      $region28: #{tpu_custom_call.1} parent=11 // pred_fallthru
        _
      // Predicated region
      $region29: #{tpu_custom_call.1} parent=11 // pred_check
        %p284 = pneg %p147
      $region30: #{tpu_custom_call.1} parent=11 // pred_check_branch
        %286 = sbr.rel (%p284) target = $region32
      $region31: #{tpu_custom_call.1} parent=11 // pred_region
        _
      $region32: #{tpu_custom_call.1} parent=11 // pred_fallthru
        _
      // Predicated region
      $region33: #{tpu_custom_call.1} parent=11 // pred_check
        %p287 = pneg %p168
      $region34: #{tpu_custom_call.1} parent=11 // pred_check_branch
        %289 = sbr.rel (%p287) target = $region36
      $region35: #{tpu_custom_call.1} parent=11 // pred_region
        _
      $region36: #{tpu_custom_call.1} parent=11 // pred_fallthru
        _
      // Predicated region
      $region37: #{tpu_custom_call.1} parent=11 // pred_check
        %p290 = pneg %p189
      $region38: #{tpu_custom_call.1} parent=11 // pred_check_branch
        %292 = sbr.rel (%p290) target = $region40
      $region39: #{tpu_custom_call.1} parent=11 // pred_region
        _
      $region40: #{tpu_custom_call.1} parent=11 // pred_fallthru
        _
      // Predicated region
      $region41: #{tpu_custom_call.1} parent=11 // pred_check
        %p293 = pneg %p210
      $region42: #{tpu_custom_call.1} parent=11 // pred_check_branch
        %295 = sbr.rel (%p293) target = $region44
      $region43: #{tpu_custom_call.1} parent=11 // pred_region
        _
      $region44: #{tpu_custom_call.1} parent=11 // pred_fallthru
        _
      // Predicated region
      $region45: #{tpu_custom_call.1} parent=11 // pred_check
        %p296 = pneg %p231
      $region46: #{tpu_custom_call.1} parent=11 // pred_check_branch
        %298 = sbr.rel (%p296) target = $region48
      $region47: #{tpu_custom_call.1} parent=11 // pred_region
        _
      $region48: #{tpu_custom_call.1} parent=11 // pred_fallthru
        _
    $region12: #{tpu_custom_call.1} parent=5 // pred_fallthru
      _
    %p299 = scmp.lt.s32.totalorder %s16, 2
    // Predicated region
    $region49: #{tpu_custom_call.1} parent=5 // pred_check
      %p300 = pneg %p299
    $region50: #{tpu_custom_call.1} parent=5 // pred_check_branch
      %302 = sbr.rel (%p300) target = $region52
    $region51: #{tpu_custom_call.1} parent=5 // pred_region
      // Predicated region
      $region53: #{tpu_custom_call.1} parent=51 // pred_check
        %p303 = pneg %p36
      $region54: #{tpu_custom_call.1} parent=51 // pred_check_branch
        %305 = sbr.rel (%p303) target = $region56
      $region55: #{tpu_custom_call.1} parent=51 // pred_region
        %s306 = smul.u32 4, %s16
        %p307 = scmp.lt.s32.totalorder %s306, 7
        %s308 = scalar_select %p307, %s306, 7
        %s309 = smul.addr %s308, 8
        %s310 = scalar_lea.vmem %s0, %s309
        %s311 = smul.u32 4, %s16
      $region56: #{tpu_custom_call.1} parent=51 // pred_fallthru
        _
    $region52: #{tpu_custom_call.1} parent=5 // pred_fallthru
      _
    %p312 = scmp.le.s32.totalorder 1, %s16
    %p313 = scmp.lt.s32.totalorder %s16, 3
    %p314 = pnand %p312, %p313
    %p315 = pneg %p314
    // Predicated region
    $region57: #{tpu_custom_call.1} parent=5 // pred_check
      _
    $region58: #{tpu_custom_call.1} parent=5 // pred_check_branch
      %317 = sbr.rel (%p314) target = $region60
    $region59: #{tpu_custom_call.1} parent=5 // pred_region
      %s318 = ssub.s32 %s16, 1
      %s319 = smul.u32 4, %s21
      %p320 = scmp.lt.s32.totalorder %s319, 7
      %s321 = scalar_select %p320, %s319, 7
      %s322 = smul.addr %s321, 8
      %s323 = scalar_lea.vmem %s0, %s322
      %p324 = pneg %p42
      %p325 = pneg %p39
      %p326 = pneg %p63
      %p327 = pneg %p60
      %p328 = pneg %p84
      %p329 = pneg %p81
      %p330 = pneg %p105
      %p331 = pneg %p102
      %p332 = pneg %p126
      %p333 = pneg %p123
      %p334 = pneg %p147
      %p335 = pneg %p144
      %p336 = pneg %p168
      %p337 = pneg %p165
      %p338 = pneg %p189
      %p339 = pneg %p186
      %p340 = pneg %p210
      %p341 = pneg %p207
      %p342 = pneg %p231
      %p343 = pneg %p228
      %p344 = pneg %p257
      %p345 = pneg %p254
      %s346 = smul.u32 4, %s21
      %p347 = scmp.lt.s32.totalorder %s346, 7
      %s348 = scalar_select %p347, %s346, 7
      %s349 = smul.addr %s348, 8
      %s350 = scalar_lea.vmem %s10, %s349
      %s351 = smul.u32 4, %s21
      %p352 = scmp.lt.s32.totalorder %s351, 7
      %s353 = scalar_select %p352, %s351, 7
      %s354 = smul.addr %s353, 8
      %s355 = scalar_lea.vmem %s0, %s354
      %s356 = smul.u32 4, %s21
      %s357 = smul.u32 4, %s21
      %p358 = scmp.lt.s32.totalorder %s357, 7
      %s359 = scalar_select %p358, %s357, 7
      %s360 = smul.addr %s359, 8
      %s361 = scalar_lea.vmem %s10, %s360
      %s362 = smul.u32 4, %s21
      %v364 = vld [vmem:[%s355] sm:$0xff]
      %v365 = vld [vmem:[%s355 + $0x8] sm:$0xff]
      %v366 = vld [vmem:[%s355 + $0x10] sm:$0xff]
      %v367 = vld [vmem:[%s355 + $0x18] sm:$0xff]
      %v368 = vld [vmem:[%s1] sm:$0x1]
      %v369 = vld [vmem:[%s2] sm:$0x1]
      %vm370 = vcmask 261120
      %v371 = vsel %vm370, %v364, 0.0
      %372 = vadd.xlane.f32.xlu0 %v371
      %v373 = vpop.xlane.xlu0 %372
      %v374 = vsel %vm370, %v365, 0.0
      %375 = vadd.xlane.f32.xlu0 %v374
      %v376 = vpop.xlane.xlu0 %375
      %v377 = vsel %vm370, %v366, 0.0
      %378 = vadd.xlane.f32.xlu0 %v377
      %v379 = vpop.xlane.xlu0 %378
      %v380 = vsel %vm370, %v367, 0.0
      %381 = vadd.xlane.f32.xlu0 %v380
      %v382 = vpop.xlane.xlu0 %381
      %v383 = vrcp.pop 32.0
      %v384 = vmul.f32 %v373, %v383
      %v385 = vmul.f32 %v376, %v383
      %v386 = vmul.f32 %v379, %v383
      %v387 = vmul.f32 %v382, %v383
      %v388 = vsub.f32 %v364, %v384
      %v389 = vsub.f32 %v365, %v385
      %v390 = vsub.f32 %v366, %v386
      %v391 = vsub.f32 %v367, %v387
      %v392 = vmul.f32 %v388, %v388
      %v393 = vmul.f32 %v389, %v389
      %v394 = vmul.f32 %v390, %v390
      %v395 = vmul.f32 %v391, %v391
      %v396 = vsel %vm370, %v392, 0.0
      %397 = vadd.xlane.f32.xlu0 %v396
      %v398 = vpop.xlane.xlu0 %397
      %v399 = vsel %vm370, %v393, 0.0
      %400 = vadd.xlane.f32.xlu0 %v399
      %v401 = vpop.xlane.xlu0 %400
      %v402 = vsel %vm370, %v394, 0.0
      %403 = vadd.xlane.f32.xlu0 %v402
      %v404 = vpop.xlane.xlu0 %403
      %v405 = vsel %vm370, %v395, 0.0
      %406 = vadd.xlane.f32.xlu0 %v405
      %v407 = vpop.xlane.xlu0 %406
      %v408 = vmul.f32 %v398, %v383
      %v409 = vmul.f32 %v401, %v383
      %v410 = vmul.f32 %v404, %v383
      %v411 = vmul.f32 %v407, %v383
      %v412 = vadd.f32 %v408, 1e-05
      %v413 = vadd.f32 %v409, 1e-05
      %v414 = vadd.f32 %v410, 1e-05
      %v415 = vadd.f32 %v411, 1e-05
      %v416 = vrsqrt.pop %v412
      %v417 = vrsqrt.pop %v413
      %v418 = vrsqrt.pop %v414
      %v419 = vrsqrt.pop %v415
      %v420 = vmul.f32 %v388, %v416
      %v421 = vmul.f32 %v389, %v417
      %v422 = vmul.f32 %v390, %v418
      %v423 = vmul.f32 %v391, %v419
      %v425 = vlaneseq
      %v426 = vshrl.u32 %v425, 7
      %v427 = vsub.s32 0, %v426
      %v428 = vrot.slane %v368, %v427
      %v430 = vmul.f32 %v420, %v428
      %v431 = vmul.f32 %v421, %v428
      %v432 = vmul.f32 %v422, %v428
      %v433 = vmul.f32 %v423, %v428
      %v435 = vlaneseq
      %v436 = vshrl.u32 %v435, 7
      %v437 = vsub.s32 0, %v436
      %v438 = vrot.slane %v369, %v437
      %v440 = vadd.f32 %v430, %v438
      %v441 = vadd.f32 %v431, %v438
      %v442 = vadd.f32 %v432, %v438
      %v443 = vadd.f32 %v433, %v438
      %v444 = vpack.c.bf16 %v441, %v440
      %v445 = vpack.c.bf16 %v443, %v442
      %v446 = vld [vmem:[%s3] sm:$0xff]
      %v447 = vld [vmem:[%s3 + $0x8] sm:$0xf]
      %v448 = vld [vmem:[%s3 + $0xc] sm:$0xff]
      %v449 = vld [vmem:[%s3 + $0x14] sm:$0xf]
      %v450 = vld [vmem:[%s3 + $0x18] sm:$0xff]
      %v451 = vld [vmem:[%s3 + $0x20] sm:$0xf]
      %v452 = vld [vmem:[%s3 + $0x24] sm:$0xff]
      %v453 = vld [vmem:[%s3 + $0x2c] sm:$0xf]
      %v462 = vunpack.c.l.b16 %v446
      %v463 = vunpack.c.h.b16 %v446
      %v464 = vunpack.c.l.b16 %v447
      %v465 = vunpack.c.l.b16 %v448
      %v466 = vunpack.c.h.b16 %v448
      %v467 = vunpack.c.l.b16 %v449
      %v468 = vunpack.c.l.b16 %v450
      %v469 = vunpack.c.h.b16 %v450
      %v470 = vunpack.c.l.b16 %v451
      %v471 = vunpack.c.l.b16 %v452
      %v472 = vunpack.c.h.b16 %v452
      %v473 = vunpack.c.l.b16 %v453
      %v474 = vpack.c.b16 %v465, %v462
      %v475 = vpack.c.b16 %v466, %v463
      %v476 = vpack.c.b16 %v467, %v464
      %v477 = vpack.c.b16 %v471, %v468
      %v478 = vpack.c.b16 %v472, %v469
      %v479 = vpack.c.b16 %v473, %v470
      %v487 = vsel %vm370, %v444, 0
      %v490 = vsel %vm370, %v445, 0
      %492 = vmatprep.subr.bf16.mxu0 0
      %493 = vmatpush1.bf16.msra.mxu0 0
      %494 = vmatprep.subr.bf16.mxu0 0
      %495 = vmatpush1.bf16.msra.mxu0 0
      %496 = vmatprep.subr.bf16.mxu0 0
      %497 = vmatpush1.bf16.msra.mxu0 0
      %498 = vmatprep.subr.bf16.mxu0 0
      %499 = vmatpush1.bf16.msra.mxu0 0
      %500 = vmatprep.subr.bf16.mxu0 0
      %501 = vmatpush1.bf16.msra.mxu0 0
      %502 = vmatprep.subr.bf16.mxu0 0
      %503 = vmatpush1.bf16.msra.mxu0 0
      %504 = vmatprep.subr.bf16.mxu0 %v478
      %505 = vmatpush1.bf16.msra.mxu0 %v477
      %506 = vmatprep.subr.bf16.mxu0 %v475
      %507 = vmatpush1.bf16.msra.mxu0 %v474
      %508 = vmatprep.subr.bf16.mxu0 0
      %509 = vmatpush2.bf16.msra.mxu0 0
      %510 = vmatprep.subr.bf16.mxu0 0
      %511 = vmatpush2.bf16.msra.mxu0 0
      %512 = vmatprep.subr.bf16.mxu0 0
      %513 = vmatpush2.bf16.msra.mxu0 0
      %514 = vmatprep.subr.bf16.mxu0 0
      %515 = vmatpush2.bf16.msra.mxu0 0
      %516 = vmatprep.subr.bf16.mxu0 0
      %517 = vmatpush2.bf16.msra.mxu0 0
      %518 = vmatprep.subr.bf16.mxu0 0
      %519 = vmatpush2.bf16.msra.mxu0 0
      %520 = vmatprep.subr.bf16.mxu0 0
      %521 = vmatpush2.bf16.msra.mxu0 0
      %522 = vmatprep.subr.bf16.mxu0 0
      %523 = vmatpush2.bf16.msra.mxu0 0
      %524 = vmatprep.mubr.bf16.mxu0 0
      %525 = vmatmul.mubr.bf16.gmra.mxu0 %v487
      %v526 = vpop.f32.mrf.mxu0
      %v527 = vadd.f32 0.0, %v526
      %v528 = vpop.f32.mrf.mxu0
      %v529 = vadd.f32 0.0, %v528
      %v530 = vpop.f32.mrf.mxu0
      %v531 = vadd.f32 0.0, %v530
      %v532 = vpop.f32.mrf.mxu0
      %v533 = vadd.f32 0.0, %v532
      %534 = vmatprep.mubr.bf16.mxu0 0
      %535 = vmatmul.mubr.bf16.gmra.mxu0 %v490
      %v536 = vpop.f32.mrf.mxu0
      %v537 = vadd.f32 0.0, %v536
      %v538 = vpop.f32.mrf.mxu0
      %v539 = vadd.f32 0.0, %v538
      %v540 = vpop.f32.mrf.mxu0
      %v541 = vadd.f32 0.0, %v540
      %v542 = vpop.f32.mrf.mxu0
      %v543 = vadd.f32 0.0, %v542
      %544 = vdwg.mxu0
      %545 = vmatprep.subr.bf16.mxu0 0
      %546 = vmatpush1.bf16.msra.mxu0 0
      %547 = vmatprep.subr.bf16.mxu0 0
      %548 = vmatpush1.bf16.msra.mxu0 0
      %549 = vmatprep.subr.bf16.mxu0 0
      %550 = vmatpush1.bf16.msra.mxu0 0
      %551 = vmatprep.subr.bf16.mxu0 0
      %552 = vmatpush1.bf16.msra.mxu0 0
      %553 = vmatprep.subr.bf16.mxu0 0
      %554 = vmatpush1.bf16.msra.mxu0 0
      %555 = vmatprep.subr.bf16.mxu0 0
      %556 = vmatpush1.bf16.msra.mxu0 0
      %557 = vmatprep.subr.bf16.mxu0 0
      %558 = vmatpush1.bf16.msra.mxu0 %v479
      %559 = vmatprep.subr.bf16.mxu0 0
      %560 = vmatpush1.bf16.msra.mxu0 %v476
      %561 = vmatprep.subr.bf16.mxu0 0
      %562 = vmatpush2.bf16.msra.mxu0 0
      %563 = vmatprep.subr.bf16.mxu0 0
      %564 = vmatpush2.bf16.msra.mxu0 0
      %565 = vmatprep.subr.bf16.mxu0 0
      %566 = vmatpush2.bf16.msra.mxu0 0
      %567 = vmatprep.subr.bf16.mxu0 0
      %568 = vmatpush2.bf16.msra.mxu0 0
      %569 = vmatprep.subr.bf16.mxu0 0
      %570 = vmatpush2.bf16.msra.mxu0 0
      %571 = vmatprep.subr.bf16.mxu0 0
      %572 = vmatpush2.bf16.msra.mxu0 0
      %573 = vmatprep.subr.bf16.mxu0 0
      %574 = vmatpush2.bf16.msra.mxu0 0
      %575 = vmatprep.subr.bf16.mxu0 0
      %576 = vmatpush2.bf16.msra.mxu0 0
      %577 = vmatprep.mubr.bf16.mxu0 0
      %578 = vmatmul.mubr.bf16.gmra.mxu0 %v487
      %v579 = vpop.f32.mrf.mxu0
      %v580 = vadd.f32 0.0, %v579
      %v581 = vpop.f32.mrf.mxu0
      %v582 = vpop.f32.mrf.mxu0
      %v583 = vadd.f32 0.0, %v582
      %v584 = vpop.f32.mrf.mxu0
      %585 = vmatprep.mubr.bf16.mxu0 0
      %586 = vmatmul.mubr.bf16.gmra.mxu0 %v490
      %v587 = vpop.f32.mrf.mxu0
      %v588 = vadd.f32 0.0, %v587
      %v589 = vpop.f32.mrf.mxu0
      %v590 = vpop.f32.mrf.mxu0
      %v591 = vadd.f32 0.0, %v590
      %v592 = vpop.f32.mrf.mxu0
      %593 = vdwg.mxu0
      %v594 = vpack.c.bf16 %v583, %v580
      %v595 = vpack.c.bf16 %v591, %v588
      %600 = vrot.lane.b32.xlu0 %v527, 120
      %v601 = vpop.permute.xlu0 %600
      %602 = vrot.lane.b32.xlu0 %v531, 120
      %v603 = vpop.permute.xlu0 %602
      %604 = vrot.lane.b32.xlu0 %v537, 120
      %v605 = vpop.permute.xlu0 %604
      %606 = vrot.lane.b32.xlu0 %v541, 120
      %v607 = vpop.permute.xlu0 %606
      %608 = vrot.lane.b32.xlu0 %v527, 112
      %v609 = vpop.permute.xlu0 %608
      %610 = vrot.lane.b32.xlu0 %v531, 112
      %v611 = vpop.permute.xlu0 %610
      %612 = vrot.lane.b32.xlu0 %v537, 112
      %v613 = vpop.permute.xlu0 %612
      %614 = vrot.lane.b32.xlu0 %v541, 112
      %v615 = vpop.permute.xlu0 %614
      %616 = vrot.lane.b32.xlu0 %v527, 104
      %v617 = vpop.permute.xlu0 %616
      %618 = vrot.lane.b32.xlu0 %v531, 104
      %v619 = vpop.permute.xlu0 %618
      %620 = vrot.lane.b32.xlu0 %v537, 104
      %v621 = vpop.permute.xlu0 %620
      %622 = vrot.lane.b32.xlu0 %v541, 104
      %v623 = vpop.permute.xlu0 %622
      %628 = vrot.lane.b32.xlu0 %v529, 120
      %v629 = vpop.permute.xlu0 %628
      %630 = vrot.lane.b32.xlu0 %v533, 120
      %v631 = vpop.permute.xlu0 %630
      %632 = vrot.lane.b32.xlu0 %v539, 120
      %v633 = vpop.permute.xlu0 %632
      %634 = vrot.lane.b32.xlu0 %v543, 120
      %v635 = vpop.permute.xlu0 %634
      %636 = vrot.lane.b32.xlu0 %v529, 112
      %v637 = vpop.permute.xlu0 %636
      %638 = vrot.lane.b32.xlu0 %v533, 112
      %v639 = vpop.permute.xlu0 %638
      %640 = vrot.lane.b32.xlu0 %v539, 112
      %v641 = vpop.permute.xlu0 %640
      %642 = vrot.lane.b32.xlu0 %v543, 112
      %v643 = vpop.permute.xlu0 %642
      %644 = vrot.lane.b32.xlu0 %v529, 104
      %v645 = vpop.permute.xlu0 %644
      %646 = vrot.lane.b32.xlu0 %v533, 104
      %v647 = vpop.permute.xlu0 %646
      %648 = vrot.lane.b32.xlu0 %v539, 104
      %v649 = vpop.permute.xlu0 %648
      %650 = vrot.lane.b32.xlu0 %v543, 104
      %v651 = vpop.permute.xlu0 %650
      %654 = vrot.lane.b32.xlu0 %v594, 96
      %v655 = vpop.permute.xlu0 %654
      %656 = vrot.lane.b32.xlu0 %v595, 96
      %v657 = vpop.permute.xlu0 %656
      %658 = vrot.lane.b32.xlu0 %v594, 64
      %v659 = vpop.permute.xlu0 %658
      %660 = vrot.lane.b32.xlu0 %v595, 64
      %v661 = vpop.permute.xlu0 %660
      %662 = vrot.lane.b32.xlu0 %v594, 32
      %v663 = vpop.permute.xlu0 %662
      %664 = vrot.lane.b32.xlu0 %v595, 32
      %v665 = vpop.permute.xlu0 %664
      %v666 = vlaneseq
      %v667 = vshrl.u32 %v666, 7
      %v668 = vlaneseq
      %v669 = vand.u32 %v668, 127
      %vm670 = vcmp.le.s32.totalorder %v669, %v667
      %vm671 = vcmask 64512
      %v672 = vsel %vm671, %v527, 0
      %v674 = vsel %vm671, %v529, 0
      %676 = vmatprep.subr.mxu0 0.0
      %677 = vmatpush1.xpose.msra.mxu0 0.0
      %678 = vmatprep.subr.mxu0 0.0
      %679 = vmatpush1.xpose.msra.mxu0 0.0
      %680 = vmatprep.subr.mxu0 0.0
      %681 = vmatpush1.xpose.msra.mxu0 0.0
      %682 = vmatprep.subr.mxu0 0.0
      %683 = vmatpush1.xpose.msra.mxu0 0.0
      %684 = vmatprep.subr.mxu0 0.0
      %685 = vmatpush1.xpose.msra.mxu0 0.0
      %686 = vmatprep.subr.mxu0 0.0
      %687 = vmatpush1.xpose.msra.mxu0 0.0
      %688 = vmatprep.subr.mxu0 0.0
      %689 = vmatpush1.xpose.msra.mxu0 0.0
      %690 = vmatprep.subr.mxu0 0.0
      %691 = vmatpush1.xpose.msra.mxu0 0.0
      %692 = vmatprep.subr.mxu0 0.0
      %693 = vmatpush1.xpose.msra.mxu0 0.0
      %694 = vmatprep.subr.mxu0 0.0
      %695 = vmatpush1.xpose.msra.mxu0 0.0
      %696 = vmatprep.subr.mxu0 0.0
      %697 = vmatpush1.xpose.msra.mxu0 0.0
      %698 = vmatprep.subr.mxu0 0.0
      %699 = vmatpush1.xpose.msra.mxu0 0.0
      %700 = vmatprep.subr.mxu0 0.0
      %701 = vmatpush1.xpose.msra.mxu0 0.0
      %702 = vmatprep.subr.mxu0 0.0
      %703 = vmatpush1.xpose.msra.mxu0 0.0
      %704 = vmatprep.subr.mxu0 0.0
      %705 = vmatpush1.xpose.msra.mxu0 0.0
      %706 = vmatprep.subr.mxu0 0.0
      %707 = vmatpush1.xpose.msra.mxu0 %v674
      %708 = vmatprep.subr.mxu0 0.0
      %709 = vmatpush2.xpose.msra.mxu0 0.0
      %710 = vmatprep.subr.mxu0 0.0
      %711 = vmatpush2.xpose.msra.mxu0 0.0
      %712 = vmatprep.subr.mxu0 0.0
      %713 = vmatpush2.xpose.msra.mxu0 0.0
      %714 = vmatprep.subr.mxu0 0.0
      %715 = vmatpush2.xpose.msra.mxu0 0.0
      %716 = vmatprep.subr.mxu0 0.0
      %717 = vmatpush2.xpose.msra.mxu0 0.0
      %718 = vmatprep.subr.mxu0 0.0
      %719 = vmatpush2.xpose.msra.mxu0 0.0
      %720 = vmatprep.subr.mxu0 0.0
      %721 = vmatpush2.xpose.msra.mxu0 0.0
      %722 = vmatprep.subr.mxu0 0.0
      %723 = vmatpush2.xpose.msra.mxu0 0.0
      %724 = vmatprep.subr.mxu0 0.0
      %725 = vmatpush2.xpose.msra.mxu0 0.0
      %726 = vmatprep.subr.mxu0 0.0
      %727 = vmatpush2.xpose.msra.mxu0 0.0
      %728 = vmatprep.subr.mxu0 0.0
      %729 = vmatpush2.xpose.msra.mxu0 0.0
      %730 = vmatprep.subr.mxu0 0.0
      %731 = vmatpush2.xpose.msra.mxu0 0.0
      %732 = vmatprep.subr.mxu0 0.0
      %733 = vmatpush2.xpose.msra.mxu0 0.0
      %734 = vmatprep.subr.mxu0 0.0
      %735 = vmatpush2.xpose.msra.mxu0 0.0
      %736 = vmatprep.subr.mxu0 0.0
      %737 = vmatpush2.xpose.msra.mxu0 0.0
      %738 = vmatprep.subr.mxu0 0.0
      %739 = vmatpush2.xpose.msra.mxu0 0.0
      %740 = vmatprep.mubr.f32.mxu0 0.0
      %741 = vmatmul.mubr.f32.gmra.mxu0 %v672
      %v742 = vpop.f32.mrf.mxu0
      %v743 = vadd.f32 0.0, %v742
      %v744 = vpop.f32.mrf.mxu0
      %745 = vdwg.mxu0
      %v746 = vsel %vm671, %v601, 0
      %v748 = vsel %vm671, %v629, 0
      %750 = vmatprep.subr.mxu0 0.0
      %751 = vmatpush1.xpose.msra.mxu0 0.0
      %752 = vmatprep.subr.mxu0 0.0
      %753 = vmatpush1.xpose.msra.mxu0 0.0
      %754 = vmatprep.subr.mxu0 0.0
      %755 = vmatpush1.xpose.msra.mxu0 0.0
      %756 = vmatprep.subr.mxu0 0.0
      %757 = vmatpush1.xpose.msra.mxu0 0.0
      %758 = vmatprep.subr.mxu0 0.0
      %759 = vmatpush1.xpose.msra.mxu0 0.0
      %760 = vmatprep.subr.mxu0 0.0
      %761 = vmatpush1.xpose.msra.mxu0 0.0
      %762 = vmatprep.subr.mxu0 0.0
      %763 = vmatpush1.xpose.msra.mxu0 0.0
      %764 = vmatprep.subr.mxu0 0.0
      %765 = vmatpush1.xpose.msra.mxu0 0.0
      %766 = vmatprep.subr.mxu0 0.0
      %767 = vmatpush1.xpose.msra.mxu0 0.0
      %768 = vmatprep.subr.mxu0 0.0
      %769 = vmatpush1.xpose.msra.mxu0 0.0
      %770 = vmatprep.subr.mxu0 0.0
      %771 = vmatpush1.xpose.msra.mxu0 0.0
      %772 = vmatprep.subr.mxu0 0.0
      %773 = vmatpush1.xpose.msra.mxu0 0.0
      %774 = vmatprep.subr.mxu0 0.0
      %775 = vmatpush1.xpose.msra.mxu0 0.0
      %776 = vmatprep.subr.mxu0 0.0
      %777 = vmatpush1.xpose.msra.mxu0 0.0
      %778 = vmatprep.subr.mxu0 0.0
      %779 = vmatpush1.xpose.msra.mxu0 0.0
      %780 = vmatprep.subr.mxu0 0.0
      %781 = vmatpush1.xpose.msra.mxu0 %v748
      %782 = vmatprep.subr.mxu0 0.0
      %783 = vmatpush2.xpose.msra.mxu0 0.0
      %784 = vmatprep.subr.mxu0 0.0
      %785 = vmatpush2.xpose.msra.mxu0 0.0
      %786 = vmatprep.subr.mxu0 0.0
      %787 = vmatpush2.xpose.msra.mxu0 0.0
      %788 = vmatprep.subr.mxu0 0.0
      %789 = vmatpush2.xpose.msra.mxu0 0.0
      %790 = vmatprep.subr.mxu0 0.0
      %791 = vmatpush2.xpose.msra.mxu0 0.0
      %792 = vmatprep.subr.mxu0 0.0
      %793 = vmatpush2.xpose.msra.mxu0 0.0
      %794 = vmatprep.subr.mxu0 0.0
      %795 = vmatpush2.xpose.msra.mxu0 0.0
      %796 = vmatprep.subr.mxu0 0.0
      %797 = vmatpush2.xpose.msra.mxu0 0.0
      %798 = vmatprep.subr.mxu0 0.0
      %799 = vmatpush2.xpose.msra.mxu0 0.0
      %800 = vmatprep.subr.mxu0 0.0
      %801 = vmatpush2.xpose.msra.mxu0 0.0
      %802 = vmatprep.subr.mxu0 0.0
      %803 = vmatpush2.xpose.msra.mxu0 0.0
      %804 = vmatprep.subr.mxu0 0.0
      %805 = vmatpush2.xpose.msra.mxu0 0.0
      %806 = vmatprep.subr.mxu0 0.0
      %807 = vmatpush2.xpose.msra.mxu0 0.0
      %808 = vmatprep.subr.mxu0 0.0
      %809 = vmatpush2.xpose.msra.mxu0 0.0
      %810 = vmatprep.subr.mxu0 0.0
      %811 = vmatpush2.xpose.msra.mxu0 0.0
      %812 = vmatprep.subr.mxu0 0.0
      %813 = vmatpush2.xpose.msra.mxu0 0.0
      %814 = vmatprep.mubr.f32.mxu0 0.0
      %815 = vmatmul.mubr.f32.gmra.mxu0 %v746
      %v816 = vpop.f32.mrf.mxu0
      %v817 = vadd.f32 0.0, %v816
      %v818 = vpop.f32.mrf.mxu0
      %819 = vdwg.mxu0
      %v820 = vsel %vm671, %v609, 0
      %v822 = vsel %vm671, %v637, 0
      %824 = vmatprep.subr.mxu0 0.0
      %825 = vmatpush1.xpose.msra.mxu0 0.0
      %826 = vmatprep.subr.mxu0 0.0
      %827 = vmatpush1.xpose.msra.mxu0 0.0
      %828 = vmatprep.subr.mxu0 0.0
      %829 = vmatpush1.xpose.msra.mxu0 0.0
      %830 = vmatprep.subr.mxu0 0.0
      %831 = vmatpush1.xpose.msra.mxu0 0.0
      %832 = vmatprep.subr.mxu0 0.0
      %833 = vmatpush1.xpose.msra.mxu0 0.0
      %834 = vmatprep.subr.mxu0 0.0
      %835 = vmatpush1.xpose.msra.mxu0 0.0
      %836 = vmatprep.subr.mxu0 0.0
      %837 = vmatpush1.xpose.msra.mxu0 0.0
      %838 = vmatprep.subr.mxu0 0.0
      %839 = vmatpush1.xpose.msra.mxu0 0.0
      %840 = vmatprep.subr.mxu0 0.0
      %841 = vmatpush1.xpose.msra.mxu0 0.0
      %842 = vmatprep.subr.mxu0 0.0
      %843 = vmatpush1.xpose.msra.mxu0 0.0
      %844 = vmatprep.subr.mxu0 0.0
      %845 = vmatpush1.xpose.msra.mxu0 0.0
      %846 = vmatprep.subr.mxu0 0.0
      %847 = vmatpush1.xpose.msra.mxu0 0.0
      %848 = vmatprep.subr.mxu0 0.0
      %849 = vmatpush1.xpose.msra.mxu0 0.0
      %850 = vmatprep.subr.mxu0 0.0
      %851 = vmatpush1.xpose.msra.mxu0 0.0
      %852 = vmatprep.subr.mxu0 0.0
      %853 = vmatpush1.xpose.msra.mxu0 0.0
      %854 = vmatprep.subr.mxu0 0.0
      %855 = vmatpush1.xpose.msra.mxu0 %v822
      %856 = vmatprep.subr.mxu0 0.0
      %857 = vmatpush2.xpose.msra.mxu0 0.0
      %858 = vmatprep.subr.mxu0 0.0
      %859 = vmatpush2.xpose.msra.mxu0 0.0
      %860 = vmatprep.subr.mxu0 0.0
      %861 = vmatpush2.xpose.msra.mxu0 0.0
      %862 = vmatprep.subr.mxu0 0.0
      %863 = vmatpush2.xpose.msra.mxu0 0.0
      %864 = vmatprep.subr.mxu0 0.0
      %865 = vmatpush2.xpose.msra.mxu0 0.0
      %866 = vmatprep.subr.mxu0 0.0
      %867 = vmatpush2.xpose.msra.mxu0 0.0
      %868 = vmatprep.subr.mxu0 0.0
      %869 = vmatpush2.xpose.msra.mxu0 0.0
      %870 = vmatprep.subr.mxu0 0.0
      %871 = vmatpush2.xpose.msra.mxu0 0.0
      %872 = vmatprep.subr.mxu0 0.0
      %873 = vmatpush2.xpose.msra.mxu0 0.0
      %874 = vmatprep.subr.mxu0 0.0
      %875 = vmatpush2.xpose.msra.mxu0 0.0
      %876 = vmatprep.subr.mxu0 0.0
      %877 = vmatpush2.xpose.msra.mxu0 0.0
      %878 = vmatprep.subr.mxu0 0.0
      %879 = vmatpush2.xpose.msra.mxu0 0.0
      %880 = vmatprep.subr.mxu0 0.0
      %881 = vmatpush2.xpose.msra.mxu0 0.0
      %882 = vmatprep.subr.mxu0 0.0
      %883 = vmatpush2.xpose.msra.mxu0 0.0
      %884 = vmatprep.subr.mxu0 0.0
      %885 = vmatpush2.xpose.msra.mxu0 0.0
      %886 = vmatprep.subr.mxu0 0.0
      %887 = vmatpush2.xpose.msra.mxu0 0.0
      %888 = vmatprep.mubr.f32.mxu0 0.0
      %889 = vmatmul.mubr.f32.gmra.mxu0 %v820
      %v890 = vpop.f32.mrf.mxu0
      %v891 = vadd.f32 0.0, %v890
      %v892 = vpop.f32.mrf.mxu0
      %893 = vdwg.mxu0
      %v894 = vsel %vm671, %v617, 0
      %v896 = vsel %vm671, %v645, 0
      %898 = vmatprep.subr.mxu0 0.0
      %899 = vmatpush1.xpose.msra.mxu0 0.0
      %900 = vmatprep.subr.mxu0 0.0
      %901 = vmatpush1.xpose.msra.mxu0 0.0
      %902 = vmatprep.subr.mxu0 0.0
      %903 = vmatpush1.xpose.msra.mxu0 0.0
      %904 = vmatprep.subr.mxu0 0.0
      %905 = vmatpush1.xpose.msra.mxu0 0.0
      %906 = vmatprep.subr.mxu0 0.0
      %907 = vmatpush1.xpose.msra.mxu0 0.0
      %908 = vmatprep.subr.mxu0 0.0
      %909 = vmatpush1.xpose.msra.mxu0 0.0
      %910 = vmatprep.subr.mxu0 0.0
      %911 = vmatpush1.xpose.msra.mxu0 0.0
      %912 = vmatprep.subr.mxu0 0.0
      %913 = vmatpush1.xpose.msra.mxu0 0.0
      %914 = vmatprep.subr.mxu0 0.0
      %915 = vmatpush1.xpose.msra.mxu0 0.0
      %916 = vmatprep.subr.mxu0 0.0
      %917 = vmatpush1.xpose.msra.mxu0 0.0
      %918 = vmatprep.subr.mxu0 0.0
      %919 = vmatpush1.xpose.msra.mxu0 0.0
      %920 = vmatprep.subr.mxu0 0.0
      %921 = vmatpush1.xpose.msra.mxu0 0.0
      %922 = vmatprep.subr.mxu0 0.0
      %923 = vmatpush1.xpose.msra.mxu0 0.0
      %924 = vmatprep.subr.mxu0 0.0
      %925 = vmatpush1.xpose.msra.mxu0 0.0
      %926 = vmatprep.subr.mxu0 0.0
      %927 = vmatpush1.xpose.msra.mxu0 0.0
      %928 = vmatprep.subr.mxu0 0.0
      %929 = vmatpush1.xpose.msra.mxu0 %v896
      %930 = vmatprep.subr.mxu0 0.0
      %931 = vmatpush2.xpose.msra.mxu0 0.0
      %932 = vmatprep.subr.mxu0 0.0
      %933 = vmatpush2.xpose.msra.mxu0 0.0
      %934 = vmatprep.subr.mxu0 0.0
      %935 = vmatpush2.xpose.msra.mxu0 0.0
      %936 = vmatprep.subr.mxu0 0.0
      %937 = vmatpush2.xpose.msra.mxu0 0.0
      %938 = vmatprep.subr.mxu0 0.0
      %939 = vmatpush2.xpose.msra.mxu0 0.0
      %940 = vmatprep.subr.mxu0 0.0
      %941 = vmatpush2.xpose.msra.mxu0 0.0
      %942 = vmatprep.subr.mxu0 0.0
      %943 = vmatpush2.xpose.msra.mxu0 0.0
      %944 = vmatprep.subr.mxu0 0.0
      %945 = vmatpush2.xpose.msra.mxu0 0.0
      %946 = vmatprep.subr.mxu0 0.0
      %947 = vmatpush2.xpose.msra.mxu0 0.0
      %948 = vmatprep.subr.mxu0 0.0
      %949 = vmatpush2.xpose.msra.mxu0 0.0
      %950 = vmatprep.subr.mxu0 0.0
      %951 = vmatpush2.xpose.msra.mxu0 0.0
      %952 = vmatprep.subr.mxu0 0.0
      %953 = vmatpush2.xpose.msra.mxu0 0.0
      %954 = vmatprep.subr.mxu0 0.0
      %955 = vmatpush2.xpose.msra.mxu0 0.0
      %956 = vmatprep.subr.mxu0 0.0
      %957 = vmatpush2.xpose.msra.mxu0 0.0
      %958 = vmatprep.subr.mxu0 0.0
      %959 = vmatpush2.xpose.msra.mxu0 0.0
      %960 = vmatprep.subr.mxu0 0.0
      %961 = vmatpush2.xpose.msra.mxu0 0.0
      %962 = vmatprep.mubr.f32.mxu0 0.0
      %963 = vmatmul.mubr.f32.gmra.mxu0 %v894
      %v964 = vpop.f32.mrf.mxu0
      %v965 = vadd.f32 0.0, %v964
      %v966 = vpop.f32.mrf.mxu0
      %967 = vdwg.mxu0
      %v968 = vmul.f32 %v743, 0.35355338
      %v969 = vmul.f32 %v817, 0.35355338
      %v970 = vmul.f32 %v891, 0.35355338
      %v971 = vmul.f32 %v965, 0.35355338
      %v972 = vsel %vm670, 1, 0
      %vm973 = vcmp.eq.s32.totalorder %v972, 1
      %v974 = vsel %vm973, %v968, -inf
      %v975 = vsel %vm973, %v969, -inf
      %v976 = vsel %vm973, %v970, -inf
      %v977 = vsel %vm973, %v971, -inf
      %v978 = vsel %vm671, %v974, -inf
      %979 = vmax.xlane.f32.xlu0 %v978
      %v980 = vpop.xlane.xlu0 %979
      %v981 = vsel %vm671, %v975, -inf
      %982 = vmax.xlane.f32.xlu0 %v981
      %v983 = vpop.xlane.xlu0 %982
      %v984 = vsel %vm671, %v976, -inf
      %985 = vmax.xlane.f32.xlu0 %v984
      %v986 = vpop.xlane.xlu0 %985
      %v987 = vsel %vm671, %v977, -inf
      %988 = vmax.xlane.f32.xlu0 %v987
      %v989 = vpop.xlane.xlu0 %988
      %v990 = vsub.f32 %v974, %v980
      %v991 = vsub.f32 %v975, %v983
      %v992 = vsub.f32 %v976, %v986
      %v993 = vsub.f32 %v977, %v989
      %v994 = vmul.f32 %v990, 1.442695
      %v995 = vpow.pop %v994
      %v996 = vmul.f32 %v991, 1.442695
      %v997 = vpow.pop %v996
      %v998 = vmul.f32 %v992, 1.442695
      %v999 = vpow.pop %v998
      %v1000 = vmul.f32 %v993, 1.442695
      %v1001 = vpow.pop %v1000
      %v1002 = vsel %vm671, %v995, 0.0
      %1003 = vadd.xlane.f32.xlu0 %v1002
      %v1004 = vpop.xlane.xlu0 %1003
      %v1005 = vsel %vm671, %v997, 0.0
      %1006 = vadd.xlane.f32.xlu0 %v1005
      %v1007 = vpop.xlane.xlu0 %1006
      %v1008 = vsel %vm671, %v999, 0.0
      %1009 = vadd.xlane.f32.xlu0 %v1008
      %v1010 = vpop.xlane.xlu0 %1009
      %v1011 = vsel %vm671, %v1001, 0.0
      %1012 = vadd.xlane.f32.xlu0 %v1011
      %v1013 = vpop.xlane.xlu0 %1012
      %v1014 = vrcp.pop %v1004
      %v1015 = vrcp.pop %v1007
      %v1016 = vrcp.pop %v1010
      %v1017 = vrcp.pop %v1013
      %v1018 = vmul.f32 %v995, %v1014
      %v1019 = vmul.f32 %v997, %v1015
      %v1020 = vmul.f32 %v999, %v1016
      %v1021 = vmul.f32 %v1001, %v1017
      %v1022 = vpack.c.bf16 %v1018, %v1018
      %v1023 = vpack.c.bf16 %v1019, %v1019
      %v1024 = vpack.c.bf16 %v1020, %v1020
      %v1025 = vpack.c.bf16 %v1021, %v1021
      %v1027 = vsel %vm671, %v1022, 0
      %vm1029 = vcmask 1043456
      %v1031 = vsel %vm1029, %v594, 0
      %1033 = vmatprep.subr.bf16.mxu0 0
      %1034 = vmatpush1.bf16.msra.mxu0 0
      %1035 = vmatprep.subr.bf16.mxu0 0
      %1036 = vmatpush1.bf16.msra.mxu0 0
      %1037 = vmatprep.subr.bf16.mxu0 0
      %1038 = vmatpush1.bf16.msra.mxu0 0
      %1039 = vmatprep.subr.bf16.mxu0 0
      %1040 = vmatpush1.bf16.msra.mxu0 0
      %1041 = vmatprep.subr.bf16.mxu0 0
      %1042 = vmatpush1.bf16.msra.mxu0 0
      %1043 = vmatprep.subr.bf16.mxu0 0
      %1044 = vmatpush1.bf16.msra.mxu0 0
      %1045 = vmatprep.subr.bf16.mxu0 0
      %1046 = vmatpush1.bf16.msra.mxu0 0
      %1047 = vmatprep.subr.bf16.mxu0 0
      %1048 = vmatpush1.bf16.msra.mxu0 %v1031
      %1049 = vmatprep.subr.bf16.mxu0 0
      %1050 = vmatpush2.bf16.msra.mxu0 0
      %1051 = vmatprep.subr.bf16.mxu0 0
      %1052 = vmatpush2.bf16.msra.mxu0 0
      %1053 = vmatprep.subr.bf16.mxu0 0
      %1054 = vmatpush2.bf16.msra.mxu0 0
      %1055 = vmatprep.subr.bf16.mxu0 0
      %1056 = vmatpush2.bf16.msra.mxu0 0
      %1057 = vmatprep.subr.bf16.mxu0 0
      %1058 = vmatpush2.bf16.msra.mxu0 0
      %1059 = vmatprep.subr.bf16.mxu0 0
      %1060 = vmatpush2.bf16.msra.mxu0 0
      %1061 = vmatprep.subr.bf16.mxu0 0
      %1062 = vmatpush2.bf16.msra.mxu0 0
      %1063 = vmatprep.subr.bf16.mxu0 0
      %1064 = vmatpush2.bf16.msra.mxu0 0
      %1065 = vmatprep.mubr.bf16.mxu0 0
      %1066 = vmatmul.mubr.bf16.gmra.mxu0 %v1027
      %v1067 = vpop.f32.mrf.mxu0
      %v1068 = vadd.f32 0.0, %v1067
      %v1069 = vpop.f32.mrf.mxu0
      %v1070 = vpop.f32.mrf.mxu0
      %v1071 = vpop.f32.mrf.mxu0
      %1072 = vdwg.mxu0
      %v1074 = vsel %vm671, %v1023, 0
      %v1077 = vsel %vm1029, %v655, 0
      %1079 = vmatprep.subr.bf16.mxu0 0
      %1080 = vmatpush1.bf16.msra.mxu0 0
      %1081 = vmatprep.subr.bf16.mxu0 0
      %1082 = vmatpush1.bf16.msra.mxu0 0
      %1083 = vmatprep.subr.bf16.mxu0 0
      %1084 = vmatpush1.bf16.msra.mxu0 0
      %1085 = vmatprep.subr.bf16.mxu0 0
      %1086 = vmatpush1.bf16.msra.mxu0 0
      %1087 = vmatprep.subr.bf16.mxu0 0
      %1088 = vmatpush1.bf16.msra.mxu0 0
      %1089 = vmatprep.subr.bf16.mxu0 0
      %1090 = vmatpush1.bf16.msra.mxu0 0
      %1091 = vmatprep.subr.bf16.mxu0 0
      %1092 = vmatpush1.bf16.msra.mxu0 0
      %1093 = vmatprep.subr.bf16.mxu0 0
      %1094 = vmatpush1.bf16.msra.mxu0 %v1077
      %1095 = vmatprep.subr.bf16.mxu0 0
      %1096 = vmatpush2.bf16.msra.mxu0 0
      %1097 = vmatprep.subr.bf16.mxu0 0
      %1098 = vmatpush2.bf16.msra.mxu0 0
      %1099 = vmatprep.subr.bf16.mxu0 0
      %1100 = vmatpush2.bf16.msra.mxu0 0
      %1101 = vmatprep.subr.bf16.mxu0 0
      %1102 = vmatpush2.bf16.msra.mxu0 0
      %1103 = vmatprep.subr.bf16.mxu0 0
      %1104 = vmatpush2.bf16.msra.mxu0 0
      %1105 = vmatprep.subr.bf16.mxu0 0
      %1106 = vmatpush2.bf16.msra.mxu0 0
      %1107 = vmatprep.subr.bf16.mxu0 0
      %1108 = vmatpush2.bf16.msra.mxu0 0
      %1109 = vmatprep.subr.bf16.mxu0 0
      %1110 = vmatpush2.bf16.msra.mxu0 0
      %1111 = vmatprep.mubr.bf16.mxu0 0
      %1112 = vmatmul.mubr.bf16.gmra.mxu0 %v1074
      %v1113 = vpop.f32.mrf.mxu0
      %v1114 = vadd.f32 0.0, %v1113
      %v1115 = vpop.f32.mrf.mxu0
      %v1116 = vpop.f32.mrf.mxu0
      %v1117 = vpop.f32.mrf.mxu0
      %1118 = vdwg.mxu0
      %v1120 = vsel %vm671, %v1024, 0
      %v1123 = vsel %vm1029, %v659, 0
      %1125 = vmatprep.subr.bf16.mxu0 0
      %1126 = vmatpush1.bf16.msra.mxu0 0
      %1127 = vmatprep.subr.bf16.mxu0 0
      %1128 = vmatpush1.bf16.msra.mxu0 0
      %1129 = vmatprep.subr.bf16.mxu0 0
      %1130 = vmatpush1.bf16.msra.mxu0 0
      %1131 = vmatprep.subr.bf16.mxu0 0
      %1132 = vmatpush1.bf16.msra.mxu0 0
      %1133 = vmatprep.subr.bf16.mxu0 0
      %1134 = vmatpush1.bf16.msra.mxu0 0
      %1135 = vmatprep.subr.bf16.mxu0 0
      %1136 = vmatpush1.bf16.msra.mxu0 0
      %1137 = vmatprep.subr.bf16.mxu0 0
      %1138 = vmatpush1.bf16.msra.mxu0 0
      %1139 = vmatprep.subr.bf16.mxu0 0
      %1140 = vmatpush1.bf16.msra.mxu0 %v1123
      %1141 = vmatprep.subr.bf16.mxu0 0
      %1142 = vmatpush2.bf16.msra.mxu0 0
      %1143 = vmatprep.subr.bf16.mxu0 0
      %1144 = vmatpush2.bf16.msra.mxu0 0
      %1145 = vmatprep.subr.bf16.mxu0 0
      %1146 = vmatpush2.bf16.msra.mxu0 0
      %1147 = vmatprep.subr.bf16.mxu0 0
      %1148 = vmatpush2.bf16.msra.mxu0 0
      %1149 = vmatprep.subr.bf16.mxu0 0
      %1150 = vmatpush2.bf16.msra.mxu0 0
      %1151 = vmatprep.subr.bf16.mxu0 0
      %1152 = vmatpush2.bf16.msra.mxu0 0
      %1153 = vmatprep.subr.bf16.mxu0 0
      %1154 = vmatpush2.bf16.msra.mxu0 0
      %1155 = vmatprep.subr.bf16.mxu0 0
      %1156 = vmatpush2.bf16.msra.mxu0 0
      %1157 = vmatprep.mubr.bf16.mxu0 0
      %1158 = vmatmul.mubr.bf16.gmra.mxu0 %v1120
      %v1159 = vpop.f32.mrf.mxu0
      %v1160 = vadd.f32 0.0, %v1159
      %v1161 = vpop.f32.mrf.mxu0
      %v1162 = vpop.f32.mrf.mxu0
      %v1163 = vpop.f32.mrf.mxu0
      %1164 = vdwg.mxu0
      %v1166 = vsel %vm671, %v1025, 0
      %v1169 = vsel %vm1029, %v663, 0
      %1171 = vmatprep.subr.bf16.mxu0 0
      %1172 = vmatpush1.bf16.msra.mxu0 0
      %1173 = vmatprep.subr.bf16.mxu0 0
      %1174 = vmatpush1.bf16.msra.mxu0 0
      %1175 = vmatprep.subr.bf16.mxu0 0
      %1176 = vmatpush1.bf16.msra.mxu0 0
      %1177 = vmatprep.subr.bf16.mxu0 0
      %1178 = vmatpush1.bf16.msra.mxu0 0
      %1179 = vmatprep.subr.bf16.mxu0 0
      %1180 = vmatpush1.bf16.msra.mxu0 0
      %1181 = vmatprep.subr.bf16.mxu0 0
      %1182 = vmatpush1.bf16.msra.mxu0 0
      %1183 = vmatprep.subr.bf16.mxu0 0
      %1184 = vmatpush1.bf16.msra.mxu0 0
      %1185 = vmatprep.subr.bf16.mxu0 0
      %1186 = vmatpush1.bf16.msra.mxu0 %v1169
      %1187 = vmatprep.subr.bf16.mxu0 0
      %1188 = vmatpush2.bf16.msra.mxu0 0
      %1189 = vmatprep.subr.bf16.mxu0 0
      %1190 = vmatpush2.bf16.msra.mxu0 0
      %1191 = vmatprep.subr.bf16.mxu0 0
      %1192 = vmatpush2.bf16.msra.mxu0 0
      %1193 = vmatprep.subr.bf16.mxu0 0
      %1194 = vmatpush2.bf16.msra.mxu0 0
      %1195 = vmatprep.subr.bf16.mxu0 0
      %1196 = vmatpush2.bf16.msra.mxu0 0
      %1197 = vmatprep.subr.bf16.mxu0 0
      %1198 = vmatpush2.bf16.msra.mxu0 0
      %1199 = vmatprep.subr.bf16.mxu0 0
      %1200 = vmatpush2.bf16.msra.mxu0 0
      %1201 = vmatprep.subr.bf16.mxu0 0
      %1202 = vmatpush2.bf16.msra.mxu0 0
      %1203 = vmatprep.mubr.bf16.mxu0 0
      %1204 = vmatmul.mubr.bf16.gmra.mxu0 %v1166
      %v1205 = vpop.f32.mrf.mxu0
      %v1206 = vadd.f32 0.0, %v1205
      %v1207 = vpop.f32.mrf.mxu0
      %v1208 = vpop.f32.mrf.mxu0
      %v1209 = vpop.f32.mrf.mxu0
      %1210 = vdwg.mxu0
      %v1211 = vsel %vm370, %v1068, 0.0
      %v1212 = vsel %vm370, %v1114, 0.0
      %v1213 = vadd.f32 %v1211, %v1212
      %v1214 = vsel %vm370, %v1160, 0.0
      %v1215 = vadd.f32 %v1213, %v1214
      %v1216 = vsel %vm370, %v1206, 0.0
      %v1217 = vadd.f32 %v1215, %v1216
      %v1218 = vsel %vm671, %v531, 0
      %v1220 = vsel %vm671, %v533, 0
      %1222 = vmatprep.subr.mxu0 0.0
      %1223 = vmatpush1.xpose.msra.mxu0 0.0
      %1224 = vmatprep.subr.mxu0 0.0
      %1225 = vmatpush1.xpose.msra.mxu0 0.0
      %1226 = vmatprep.subr.mxu0 0.0
      %1227 = vmatpush1.xpose.msra.mxu0 0.0
      %1228 = vmatprep.subr.mxu0 0.0
      %1229 = vmatpush1.xpose.msra.mxu0 0.0
      %1230 = vmatprep.subr.mxu0 0.0
      %1231 = vmatpush1.xpose.msra.mxu0 0.0
      %1232 = vmatprep.subr.mxu0 0.0
      %1233 = vmatpush1.xpose.msra.mxu0 0.0
      %1234 = vmatprep.subr.mxu0 0.0
      %1235 = vmatpush1.xpose.msra.mxu0 0.0
      %1236 = vmatprep.subr.mxu0 0.0
      %1237 = vmatpush1.xpose.msra.mxu0 0.0
      %1238 = vmatprep.subr.mxu0 0.0
      %1239 = vmatpush1.xpose.msra.mxu0 0.0
      %1240 = vmatprep.subr.mxu0 0.0
      %1241 = vmatpush1.xpose.msra.mxu0 0.0
      %1242 = vmatprep.subr.mxu0 0.0
      %1243 = vmatpush1.xpose.msra.mxu0 0.0
      %1244 = vmatprep.subr.mxu0 0.0
      %1245 = vmatpush1.xpose.msra.mxu0 0.0
      %1246 = vmatprep.subr.mxu0 0.0
      %1247 = vmatpush1.xpose.msra.mxu0 0.0
      %1248 = vmatprep.subr.mxu0 0.0
      %1249 = vmatpush1.xpose.msra.mxu0 0.0
      %1250 = vmatprep.subr.mxu0 0.0
      %1251 = vmatpush1.xpose.msra.mxu0 0.0
      %1252 = vmatprep.subr.mxu0 0.0
      %1253 = vmatpush1.xpose.msra.mxu0 %v1220
      %1254 = vmatprep.subr.mxu0 0.0
      %1255 = vmatpush2.xpose.msra.mxu0 0.0
      %1256 = vmatprep.subr.mxu0 0.0
      %1257 = vmatpush2.xpose.msra.mxu0 0.0
      %1258 = vmatprep.subr.mxu0 0.0
      %1259 = vmatpush2.xpose.msra.mxu0 0.0
      %1260 = vmatprep.subr.mxu0 0.0
      %1261 = vmatpush2.xpose.msra.mxu0 0.0
      %1262 = vmatprep.subr.mxu0 0.0
      %1263 = vmatpush2.xpose.msra.mxu0 0.0
      %1264 = vmatprep.subr.mxu0 0.0
      %1265 = vmatpush2.xpose.msra.mxu0 0.0
      %1266 = vmatprep.subr.mxu0 0.0
      %1267 = vmatpush2.xpose.msra.mxu0 0.0
      %1268 = vmatprep.subr.mxu0 0.0
      %1269 = vmatpush2.xpose.msra.mxu0 0.0
      %1270 = vmatprep.subr.mxu0 0.0
      %1271 = vmatpush2.xpose.msra.mxu0 0.0
      %1272 = vmatprep.subr.mxu0 0.0
      %1273 = vmatpush2.xpose.msra.mxu0 0.0
      %1274 = vmatprep.subr.mxu0 0.0
      %1275 = vmatpush2.xpose.msra.mxu0 0.0
      %1276 = vmatprep.subr.mxu0 0.0
      %1277 = vmatpush2.xpose.msra.mxu0 0.0
      %1278 = vmatprep.subr.mxu0 0.0
      %1279 = vmatpush2.xpose.msra.mxu0 0.0
      %1280 = vmatprep.subr.mxu0 0.0
      %1281 = vmatpush2.xpose.msra.mxu0 0.0
      %1282 = vmatprep.subr.mxu0 0.0
      %1283 = vmatpush2.xpose.msra.mxu0 0.0
      %1284 = vmatprep.subr.mxu0 0.0
      %1285 = vmatpush2.xpose.msra.mxu0 0.0
      %1286 = vmatprep.mubr.f32.mxu0 0.0
      %1287 = vmatmul.mubr.f32.gmra.mxu0 %v1218
      %v1288 = vpop.f32.mrf.mxu0
      %v1289 = vadd.f32 0.0, %v1288
      %v1290 = vpop.f32.mrf.mxu0
      %1291 = vdwg.mxu0
      %v1292 = vsel %vm671, %v603, 0
      %v1294 = vsel %vm671, %v631, 0
      %1296 = vmatprep.subr.mxu0 0.0
      %1297 = vmatpush1.xpose.msra.mxu0 0.0
      %1298 = vmatprep.subr.mxu0 0.0
      %1299 = vmatpush1.xpose.msra.mxu0 0.0
      %1300 = vmatprep.subr.mxu0 0.0
      %1301 = vmatpush1.xpose.msra.mxu0 0.0
      %1302 = vmatprep.subr.mxu0 0.0
      %1303 = vmatpush1.xpose.msra.mxu0 0.0
      %1304 = vmatprep.subr.mxu0 0.0
      %1305 = vmatpush1.xpose.msra.mxu0 0.0
      %1306 = vmatprep.subr.mxu0 0.0
      %1307 = vmatpush1.xpose.msra.mxu0 0.0
      %1308 = vmatprep.subr.mxu0 0.0
      %1309 = vmatpush1.xpose.msra.mxu0 0.0
      %1310 = vmatprep.subr.mxu0 0.0
      %1311 = vmatpush1.xpose.msra.mxu0 0.0
      %1312 = vmatprep.subr.mxu0 0.0
      %1313 = vmatpush1.xpose.msra.mxu0 0.0
      %1314 = vmatprep.subr.mxu0 0.0
      %1315 = vmatpush1.xpose.msra.mxu0 0.0
      %1316 = vmatprep.subr.mxu0 0.0
      %1317 = vmatpush1.xpose.msra.mxu0 0.0
      %1318 = vmatprep.subr.mxu0 0.0
      %1319 = vmatpush1.xpose.msra.mxu0 0.0
      %1320 = vmatprep.subr.mxu0 0.0
      %1321 = vmatpush1.xpose.msra.mxu0 0.0
      %1322 = vmatprep.subr.mxu0 0.0
      %1323 = vmatpush1.xpose.msra.mxu0 0.0
      %1324 = vmatprep.subr.mxu0 0.0
      %1325 = vmatpush1.xpose.msra.mxu0 0.0
      %1326 = vmatprep.subr.mxu0 0.0
      %1327 = vmatpush1.xpose.msra.mxu0 %v1294
      %1328 = vmatprep.subr.mxu0 0.0
      %1329 = vmatpush2.xpose.msra.mxu0 0.0
      %1330 = vmatprep.subr.mxu0 0.0
      %1331 = vmatpush2.xpose.msra.mxu0 0.0
      %1332 = vmatprep.subr.mxu0 0.0
      %1333 = vmatpush2.xpose.msra.mxu0 0.0
      %1334 = vmatprep.subr.mxu0 0.0
      %1335 = vmatpush2.xpose.msra.mxu0 0.0
      %1336 = vmatprep.subr.mxu0 0.0
      %1337 = vmatpush2.xpose.msra.mxu0 0.0
      %1338 = vmatprep.subr.mxu0 0.0
      %1339 = vmatpush2.xpose.msra.mxu0 0.0
      %1340 = vmatprep.subr.mxu0 0.0
      %1341 = vmatpush2.xpose.msra.mxu0 0.0
      %1342 = vmatprep.subr.mxu0 0.0
      %1343 = vmatpush2.xpose.msra.mxu0 0.0
      %1344 = vmatprep.subr.mxu0 0.0
      %1345 = vmatpush2.xpose.msra.mxu0 0.0
      %1346 = vmatprep.subr.mxu0 0.0
      %1347 = vmatpush2.xpose.msra.mxu0 0.0
      %1348 = vmatprep.subr.mxu0 0.0
      %1349 = vmatpush2.xpose.msra.mxu0 0.0
      %1350 = vmatprep.subr.mxu0 0.0
      %1351 = vmatpush2.xpose.msra.mxu0 0.0
      %1352 = vmatprep.subr.mxu0 0.0
      %1353 = vmatpush2.xpose.msra.mxu0 0.0
      %1354 = vmatprep.subr.mxu0 0.0
      %1355 = vmatpush2.xpose.msra.mxu0 0.0
      %1356 = vmatprep.subr.mxu0 0.0
      %1357 = vmatpush2.xpose.msra.mxu0 0.0
      %1358 = vmatprep.subr.mxu0 0.0
      %1359 = vmatpush2.xpose.msra.mxu0 0.0
      %1360 = vmatprep.mubr.f32.mxu0 0.0
      %1361 = vmatmul.mubr.f32.gmra.mxu0 %v1292
      %v1362 = vpop.f32.mrf.mxu0
      %v1363 = vadd.f32 0.0, %v1362
      %v1364 = vpop.f32.mrf.mxu0
      %1365 = vdwg.mxu0
      %v1366 = vsel %vm671, %v611, 0
      %v1368 = vsel %vm671, %v639, 0
      %1370 = vmatprep.subr.mxu0 0.0
      %1371 = vmatpush1.xpose.msra.mxu0 0.0
      %1372 = vmatprep.subr.mxu0 0.0
      %1373 = vmatpush1.xpose.msra.mxu0 0.0
      %1374 = vmatprep.subr.mxu0 0.0
      %1375 = vmatpush1.xpose.msra.mxu0 0.0
      %1376 = vmatprep.subr.mxu0 0.0
      %1377 = vmatpush1.xpose.msra.mxu0 0.0
      %1378 = vmatprep.subr.mxu0 0.0
      %1379 = vmatpush1.xpose.msra.mxu0 0.0
      %1380 = vmatprep.subr.mxu0 0.0
      %1381 = vmatpush1.xpose.msra.mxu0 0.0
      %1382 = vmatprep.subr.mxu0 0.0
      %1383 = vmatpush1.xpose.msra.mxu0 0.0
      %1384 = vmatprep.subr.mxu0 0.0
      %1385 = vmatpush1.xpose.msra.mxu0 0.0
      %1386 = vmatprep.subr.mxu0 0.0
      %1387 = vmatpush1.xpose.msra.mxu0 0.0
      %1388 = vmatprep.subr.mxu0 0.0
      %1389 = vmatpush1.xpose.msra.mxu0 0.0
      %1390 = vmatprep.subr.mxu0 0.0
      %1391 = vmatpush1.xpose.msra.mxu0 0.0
      %1392 = vmatprep.subr.mxu0 0.0
      %1393 = vmatpush1.xpose.msra.mxu0 0.0
      %1394 = vmatprep.subr.mxu0 0.0
      %1395 = vmatpush1.xpose.msra.mxu0 0.0
      %1396 = vmatprep.subr.mxu0 0.0
      %1397 = vmatpush1.xpose.msra.mxu0 0.0
      %1398 = vmatprep.subr.mxu0 0.0
      %1399 = vmatpush1.xpose.msra.mxu0 0.0
      %1400 = vmatprep.subr.mxu0 0.0
      %1401 = vmatpush1.xpose.msra.mxu0 %v1368
      %1402 = vmatprep.subr.mxu0 0.0
      %1403 = vmatpush2.xpose.msra.mxu0 0.0
      %1404 = vmatprep.subr.mxu0 0.0
      %1405 = vmatpush2.xpose.msra.mxu0 0.0
      %1406 = vmatprep.subr.mxu0 0.0
      %1407 = vmatpush2.xpose.msra.mxu0 0.0
      %1408 = vmatprep.subr.mxu0 0.0
      %1409 = vmatpush2.xpose.msra.mxu0 0.0
      %1410 = vmatprep.subr.mxu0 0.0
      %1411 = vmatpush2.xpose.msra.mxu0 0.0
      %1412 = vmatprep.subr.mxu0 0.0
      %1413 = vmatpush2.xpose.msra.mxu0 0.0
      %1414 = vmatprep.subr.mxu0 0.0
      %1415 = vmatpush2.xpose.msra.mxu0 0.0
      %1416 = vmatprep.subr.mxu0 0.0
      %1417 = vmatpush2.xpose.msra.mxu0 0.0
      %1418 = vmatprep.subr.mxu0 0.0
      %1419 = vmatpush2.xpose.msra.mxu0 0.0
      %1420 = vmatprep.subr.mxu0 0.0
      %1421 = vmatpush2.xpose.msra.mxu0 0.0
      %1422 = vmatprep.subr.mxu0 0.0
      %1423 = vmatpush2.xpose.msra.mxu0 0.0
      %1424 = vmatprep.subr.mxu0 0.0
      %1425 = vmatpush2.xpose.msra.mxu0 0.0
      %1426 = vmatprep.subr.mxu0 0.0
      %1427 = vmatpush2.xpose.msra.mxu0 0.0
      %1428 = vmatprep.subr.mxu0 0.0
      %1429 = vmatpush2.xpose.msra.mxu0 0.0
      %1430 = vmatprep.subr.mxu0 0.0
      %1431 = vmatpush2.xpose.msra.mxu0 0.0
      %1432 = vmatprep.subr.mxu0 0.0
      %1433 = vmatpush2.xpose.msra.mxu0 0.0
      %1434 = vmatprep.mubr.f32.mxu0 0.0
      %1435 = vmatmul.mubr.f32.gmra.mxu0 %v1366
      %v1436 = vpop.f32.mrf.mxu0
      %v1437 = vadd.f32 0.0, %v1436
      %v1438 = vpop.f32.mrf.mxu0
      %1439 = vdwg.mxu0
      %v1440 = vsel %vm671, %v619, 0
      %v1442 = vsel %vm671, %v647, 0
      %1444 = vmatprep.subr.mxu0 0.0
      %1445 = vmatpush1.xpose.msra.mxu0 0.0
      %1446 = vmatprep.subr.mxu0 0.0
      %1447 = vmatpush1.xpose.msra.mxu0 0.0
      %1448 = vmatprep.subr.mxu0 0.0
      %1449 = vmatpush1.xpose.msra.mxu0 0.0
      %1450 = vmatprep.subr.mxu0 0.0
      %1451 = vmatpush1.xpose.msra.mxu0 0.0
      %1452 = vmatprep.subr.mxu0 0.0
      %1453 = vmatpush1.xpose.msra.mxu0 0.0
      %1454 = vmatprep.subr.mxu0 0.0
      %1455 = vmatpush1.xpose.msra.mxu0 0.0
      %1456 = vmatprep.subr.mxu0 0.0
      %1457 = vmatpush1.xpose.msra.mxu0 0.0
      %1458 = vmatprep.subr.mxu0 0.0
      %1459 = vmatpush1.xpose.msra.mxu0 0.0
      %1460 = vmatprep.subr.mxu0 0.0
      %1461 = vmatpush1.xpose.msra.mxu0 0.0
      %1462 = vmatprep.subr.mxu0 0.0
      %1463 = vmatpush1.xpose.msra.mxu0 0.0
      %1464 = vmatprep.subr.mxu0 0.0
      %1465 = vmatpush1.xpose.msra.mxu0 0.0
      %1466 = vmatprep.subr.mxu0 0.0
      %1467 = vmatpush1.xpose.msra.mxu0 0.0
      %1468 = vmatprep.subr.mxu0 0.0
      %1469 = vmatpush1.xpose.msra.mxu0 0.0
      %1470 = vmatprep.subr.mxu0 0.0
      %1471 = vmatpush1.xpose.msra.mxu0 0.0
      %1472 = vmatprep.subr.mxu0 0.0
      %1473 = vmatpush1.xpose.msra.mxu0 0.0
      %1474 = vmatprep.subr.mxu0 0.0
      %1475 = vmatpush1.xpose.msra.mxu0 %v1442
      %1476 = vmatprep.subr.mxu0 0.0
      %1477 = vmatpush2.xpose.msra.mxu0 0.0
      %1478 = vmatprep.subr.mxu0 0.0
      %1479 = vmatpush2.xpose.msra.mxu0 0.0
      %1480 = vmatprep.subr.mxu0 0.0
      %1481 = vmatpush2.xpose.msra.mxu0 0.0
      %1482 = vmatprep.subr.mxu0 0.0
      %1483 = vmatpush2.xpose.msra.mxu0 0.0
      %1484 = vmatprep.subr.mxu0 0.0
      %1485 = vmatpush2.xpose.msra.mxu0 0.0
      %1486 = vmatprep.subr.mxu0 0.0
      %1487 = vmatpush2.xpose.msra.mxu0 0.0
      %1488 = vmatprep.subr.mxu0 0.0
      %1489 = vmatpush2.xpose.msra.mxu0 0.0
      %1490 = vmatprep.subr.mxu0 0.0
      %1491 = vmatpush2.xpose.msra.mxu0 0.0
      %1492 = vmatprep.subr.mxu0 0.0
      %1493 = vmatpush2.xpose.msra.mxu0 0.0
      %1494 = vmatprep.subr.mxu0 0.0
      %1495 = vmatpush2.xpose.msra.mxu0 0.0
      %1496 = vmatprep.subr.mxu0 0.0
      %1497 = vmatpush2.xpose.msra.mxu0 0.0
      %1498 = vmatprep.subr.mxu0 0.0
      %1499 = vmatpush2.xpose.msra.mxu0 0.0
      %1500 = vmatprep.subr.mxu0 0.0
      %1501 = vmatpush2.xpose.msra.mxu0 0.0
      %1502 = vmatprep.subr.mxu0 0.0
      %1503 = vmatpush2.xpose.msra.mxu0 0.0
      %1504 = vmatprep.subr.mxu0 0.0
      %1505 = vmatpush2.xpose.msra.mxu0 0.0
      %1506 = vmatprep.subr.mxu0 0.0
      %1507 = vmatpush2.xpose.msra.mxu0 0.0
      %1508 = vmatprep.mubr.f32.mxu0 0.0
      %1509 = vmatmul.mubr.f32.gmra.mxu0 %v1440
      %v1510 = vpop.f32.mrf.mxu0
      %v1511 = vadd.f32 0.0, %v1510
      %v1512 = vpop.f32.mrf.mxu0
      %1513 = vdwg.mxu0
      %v1514 = vmul.f32 %v1289, 0.35355338
      %v1515 = vmul.f32 %v1363, 0.35355338
      %v1516 = vmul.f32 %v1437, 0.35355338
      %v1517 = vmul.f32 %v1511, 0.35355338
      %v1518 = vsel %vm973, %v1514, -inf
      %v1519 = vsel %vm973, %v1515, -inf
      %v1520 = vsel %vm973, %v1516, -inf
      %v1521 = vsel %vm973, %v1517, -inf
      %v1522 = vsel %vm671, %v1518, -inf
      %1523 = vmax.xlane.f32.xlu0 %v1522
      %v1524 = vpop.xlane.xlu0 %1523
      %v1525 = vsel %vm671, %v1519, -inf
      %1526 = vmax.xlane.f32.xlu0 %v1525
      %v1527 = vpop.xlane.xlu0 %1526
      %v1528 = vsel %vm671, %v1520, -inf
      %1529 = vmax.xlane.f32.xlu0 %v1528
      %v1530 = vpop.xlane.xlu0 %1529
      %v1531 = vsel %vm671, %v1521, -inf
      %1532 = vmax.xlane.f32.xlu0 %v1531
      %v1533 = vpop.xlane.xlu0 %1532
      %v1534 = vsub.f32 %v1518, %v1524
      %v1535 = vsub.f32 %v1519, %v1527
      %v1536 = vsub.f32 %v1520, %v1530
      %v1537 = vsub.f32 %v1521, %v1533
      %v1538 = vmul.f32 %v1534, 1.442695
      %v1539 = vpow.pop %v1538
      %v1540 = vmul.f32 %v1535, 1.442695
      %v1541 = vpow.pop %v1540
      %v1542 = vmul.f32 %v1536, 1.442695
      %v1543 = vpow.pop %v1542
      %v1544 = vmul.f32 %v1537, 1.442695
      %v1545 = vpow.pop %v1544
      %v1546 = vsel %vm671, %v1539, 0.0
      %1547 = vadd.xlane.f32.xlu0 %v1546
      %v1548 = vpop.xlane.xlu0 %1547
      %v1549 = vsel %vm671, %v1541, 0.0
      %1550 = vadd.xlane.f32.xlu0 %v1549
      %v1551 = vpop.xlane.xlu0 %1550
      %v1552 = vsel %vm671, %v1543, 0.0
      %1553 = vadd.xlane.f32.xlu0 %v1552
      %v1554 = vpop.xlane.xlu0 %1553
      %v1555 = vsel %vm671, %v1545, 0.0
      %1556 = vadd.xlane.f32.xlu0 %v1555
      %v1557 = vpop.xlane.xlu0 %1556
      %v1558 = vrcp.pop %v1548
      %v1559 = vrcp.pop %v1551
      %v1560 = vrcp.pop %v1554
      %v1561 = vrcp.pop %v1557
      %v1562 = vmul.f32 %v1539, %v1558
      %v1563 = vmul.f32 %v1541, %v1559
      %v1564 = vmul.f32 %v1543, %v1560
      %v1565 = vmul.f32 %v1545, %v1561
      %v1566 = vpack.c.bf16 %v1562, %v1562
      %v1567 = vpack.c.bf16 %v1563, %v1563
      %v1568 = vpack.c.bf16 %v1564, %v1564
      %v1569 = vpack.c.bf16 %v1565, %v1565
      %v1570 = vrot.slane %v594, 4
      %v1572 = vsel %vm671, %v1566, 0
      %v1575 = vsel %vm1029, %v1570, 0
      %1577 = vmatprep.subr.bf16.mxu0 0
      %1578 = vmatpush1.bf16.msra.mxu0 0
      %1579 = vmatprep.subr.bf16.mxu0 0
      %1580 = vmatpush1.bf16.msra.mxu0 0
      %1581 = vmatprep.subr.bf16.mxu0 0
      %1582 = vmatpush1.bf16.msra.mxu0 0
      %1583 = vmatprep.subr.bf16.mxu0 0
      %1584 = vmatpush1.bf16.msra.mxu0 0
      %1585 = vmatprep.subr.bf16.mxu0 0
      %1586 = vmatpush1.bf16.msra.mxu0 0
      %1587 = vmatprep.subr.bf16.mxu0 0
      %1588 = vmatpush1.bf16.msra.mxu0 0
      %1589 = vmatprep.subr.bf16.mxu0 0
      %1590 = vmatpush1.bf16.msra.mxu0 0
      %1591 = vmatprep.subr.bf16.mxu0 0
      %1592 = vmatpush1.bf16.msra.mxu0 %v1575
      %1593 = vmatprep.subr.bf16.mxu0 0
      %1594 = vmatpush2.bf16.msra.mxu0 0
      %1595 = vmatprep.subr.bf16.mxu0 0
      %1596 = vmatpush2.bf16.msra.mxu0 0
      %1597 = vmatprep.subr.bf16.mxu0 0
      %1598 = vmatpush2.bf16.msra.mxu0 0
      %1599 = vmatprep.subr.bf16.mxu0 0
      %1600 = vmatpush2.bf16.msra.mxu0 0
      %1601 = vmatprep.subr.bf16.mxu0 0
      %1602 = vmatpush2.bf16.msra.mxu0 0
      %1603 = vmatprep.subr.bf16.mxu0 0
      %1604 = vmatpush2.bf16.msra.mxu0 0
      %1605 = vmatprep.subr.bf16.mxu0 0
      %1606 = vmatpush2.bf16.msra.mxu0 0
      %1607 = vmatprep.subr.bf16.mxu0 0
      %1608 = vmatpush2.bf16.msra.mxu0 0
      %1609 = vmatprep.mubr.bf16.mxu0 0
      %1610 = vmatmul.mubr.bf16.gmra.mxu0 %v1572
      %v1611 = vpop.f32.mrf.mxu0
      %v1612 = vadd.f32 0.0, %v1611
      %v1613 = vpop.f32.mrf.mxu0
      %v1614 = vpop.f32.mrf.mxu0
      %v1615 = vpop.f32.mrf.mxu0
      %1616 = vdwg.mxu0
      %v1617 = vrot.slane %v655, 4
      %v1619 = vsel %vm671, %v1567, 0
      %v1622 = vsel %vm1029, %v1617, 0
      %1624 = vmatprep.subr.bf16.mxu0 0
      %1625 = vmatpush1.bf16.msra.mxu0 0
      %1626 = vmatprep.subr.bf16.mxu0 0
      %1627 = vmatpush1.bf16.msra.mxu0 0
      %1628 = vmatprep.subr.bf16.mxu0 0
      %1629 = vmatpush1.bf16.msra.mxu0 0
      %1630 = vmatprep.subr.bf16.mxu0 0
      %1631 = vmatpush1.bf16.msra.mxu0 0
      %1632 = vmatprep.subr.bf16.mxu0 0
      %1633 = vmatpush1.bf16.msra.mxu0 0
      %1634 = vmatprep.subr.bf16.mxu0 0
      %1635 = vmatpush1.bf16.msra.mxu0 0
      %1636 = vmatprep.subr.bf16.mxu0 0
      %1637 = vmatpush1.bf16.msra.mxu0 0
      %1638 = vmatprep.subr.bf16.mxu0 0
      %1639 = vmatpush1.bf16.msra.mxu0 %v1622
      %1640 = vmatprep.subr.bf16.mxu0 0
      %1641 = vmatpush2.bf16.msra.mxu0 0
      %1642 = vmatprep.subr.bf16.mxu0 0
      %1643 = vmatpush2.bf16.msra.mxu0 0
      %1644 = vmatprep.subr.bf16.mxu0 0
      %1645 = vmatpush2.bf16.msra.mxu0 0
      %1646 = vmatprep.subr.bf16.mxu0 0
      %1647 = vmatpush2.bf16.msra.mxu0 0
      %1648 = vmatprep.subr.bf16.mxu0 0
      %1649 = vmatpush2.bf16.msra.mxu0 0
      %1650 = vmatprep.subr.bf16.mxu0 0
      %1651 = vmatpush2.bf16.msra.mxu0 0
      %1652 = vmatprep.subr.bf16.mxu0 0
      %1653 = vmatpush2.bf16.msra.mxu0 0
      %1654 = vmatprep.subr.bf16.mxu0 0
      %1655 = vmatpush2.bf16.msra.mxu0 0
      %1656 = vmatprep.mubr.bf16.mxu0 0
      %1657 = vmatmul.mubr.bf16.gmra.mxu0 %v1619
      %v1658 = vpop.f32.mrf.mxu0
      %v1659 = vadd.f32 0.0, %v1658
      %v1660 = vpop.f32.mrf.mxu0
      %v1661 = vpop.f32.mrf.mxu0
      %v1662 = vpop.f32.mrf.mxu0
      %1663 = vdwg.mxu0
      %v1664 = vrot.slane %v659, 4
      %v1666 = vsel %vm671, %v1568, 0
      %v1669 = vsel %vm1029, %v1664, 0
      %1671 = vmatprep.subr.bf16.mxu0 0
      %1672 = vmatpush1.bf16.msra.mxu0 0
      %1673 = vmatprep.subr.bf16.mxu0 0
      %1674 = vmatpush1.bf16.msra.mxu0 0
      %1675 = vmatprep.subr.bf16.mxu0 0
      %1676 = vmatpush1.bf16.msra.mxu0 0
      %1677 = vmatprep.subr.bf16.mxu0 0
      %1678 = vmatpush1.bf16.msra.mxu0 0
      %1679 = vmatprep.subr.bf16.mxu0 0
      %1680 = vmatpush1.bf16.msra.mxu0 0
      %1681 = vmatprep.subr.bf16.mxu0 0
      %1682 = vmatpush1.bf16.msra.mxu0 0
      %1683 = vmatprep.subr.bf16.mxu0 0
      %1684 = vmatpush1.bf16.msra.mxu0 0
      %1685 = vmatprep.subr.bf16.mxu0 0
      %1686 = vmatpush1.bf16.msra.mxu0 %v1669
      %1687 = vmatprep.subr.bf16.mxu0 0
      %1688 = vmatpush2.bf16.msra.mxu0 0
      %1689 = vmatprep.subr.bf16.mxu0 0
      %1690 = vmatpush2.bf16.msra.mxu0 0
      %1691 = vmatprep.subr.bf16.mxu0 0
      %1692 = vmatpush2.bf16.msra.mxu0 0
      %1693 = vmatprep.subr.bf16.mxu0 0
      %1694 = vmatpush2.bf16.msra.mxu0 0
      %1695 = vmatprep.subr.bf16.mxu0 0
      %1696 = vmatpush2.bf16.msra.mxu0 0
      %1697 = vmatprep.subr.bf16.mxu0 0
      %1698 = vmatpush2.bf16.msra.mxu0 0
      %1699 = vmatprep.subr.bf16.mxu0 0
      %1700 = vmatpush2.bf16.msra.mxu0 0
      %1701 = vmatprep.subr.bf16.mxu0 0
      %1702 = vmatpush2.bf16.msra.mxu0 0
      %1703 = vmatprep.mubr.bf16.mxu0 0
      %1704 = vmatmul.mubr.bf16.gmra.mxu0 %v1666
      %v1705 = vpop.f32.mrf.mxu0
      %v1706 = vadd.f32 0.0, %v1705
      %v1707 = vpop.f32.mrf.mxu0
      %v1708 = vpop.f32.mrf.mxu0
      %v1709 = vpop.f32.mrf.mxu0
      %1710 = vdwg.mxu0
      %v1711 = vrot.slane %v663, 4
      %v1713 = vsel %vm671, %v1569, 0
      %v1716 = vsel %vm1029, %v1711, 0
      %1718 = vmatprep.subr.bf16.mxu0 0
      %1719 = vmatpush1.bf16.msra.mxu0 0
      %1720 = vmatprep.subr.bf16.mxu0 0
      %1721 = vmatpush1.bf16.msra.mxu0 0
      %1722 = vmatprep.subr.bf16.mxu0 0
      %1723 = vmatpush1.bf16.msra.mxu0 0
      %1724 = vmatprep.subr.bf16.mxu0 0
      %1725 = vmatpush1.bf16.msra.mxu0 0
      %1726 = vmatprep.subr.bf16.mxu0 0
      %1727 = vmatpush1.bf16.msra.mxu0 0
      %1728 = vmatprep.subr.bf16.mxu0 0
      %1729 = vmatpush1.bf16.msra.mxu0 0
      %1730 = vmatprep.subr.bf16.mxu0 0
      %1731 = vmatpush1.bf16.msra.mxu0 0
      %1732 = vmatprep.subr.bf16.mxu0 0
      %1733 = vmatpush1.bf16.msra.mxu0 %v1716
      %1734 = vmatprep.subr.bf16.mxu0 0
      %1735 = vmatpush2.bf16.msra.mxu0 0
      %1736 = vmatprep.subr.bf16.mxu0 0
      %1737 = vmatpush2.bf16.msra.mxu0 0
      %1738 = vmatprep.subr.bf16.mxu0 0
      %1739 = vmatpush2.bf16.msra.mxu0 0
      %1740 = vmatprep.subr.bf16.mxu0 0
      %1741 = vmatpush2.bf16.msra.mxu0 0
      %1742 = vmatprep.subr.bf16.mxu0 0
      %1743 = vmatpush2.bf16.msra.mxu0 0
      %1744 = vmatprep.subr.bf16.mxu0 0
      %1745 = vmatpush2.bf16.msra.mxu0 0
      %1746 = vmatprep.subr.bf16.mxu0 0
      %1747 = vmatpush2.bf16.msra.mxu0 0
      %1748 = vmatprep.subr.bf16.mxu0 0
      %1749 = vmatpush2.bf16.msra.mxu0 0
      %1750 = vmatprep.mubr.bf16.mxu0 0
      %1751 = vmatmul.mubr.bf16.gmra.mxu0 %v1713
      %v1752 = vpop.f32.mrf.mxu0
      %v1753 = vadd.f32 0.0, %v1752
      %v1754 = vpop.f32.mrf.mxu0
      %v1755 = vpop.f32.mrf.mxu0
      %v1756 = vpop.f32.mrf.mxu0
      %1757 = vdwg.mxu0
      %v1758 = vsel %vm370, %v1612, 0.0
      %v1759 = vsel %vm370, %v1659, 0.0
      %v1760 = vadd.f32 %v1758, %v1759
      %v1761 = vsel %vm370, %v1706, 0.0
      %v1762 = vadd.f32 %v1760, %v1761
      %v1763 = vsel %vm370, %v1753, 0.0
      %v1764 = vadd.f32 %v1762, %v1763
      %v1765 = vsel %vm671, %v537, 0
      %v1767 = vsel %vm671, %v539, 0
      %1769 = vmatprep.subr.mxu0 0.0
      %1770 = vmatpush1.xpose.msra.mxu0 0.0
      %1771 = vmatprep.subr.mxu0 0.0
      %1772 = vmatpush1.xpose.msra.mxu0 0.0
      %1773 = vmatprep.subr.mxu0 0.0
      %1774 = vmatpush1.xpose.msra.mxu0 0.0
      %1775 = vmatprep.subr.mxu0 0.0
      %1776 = vmatpush1.xpose.msra.mxu0 0.0
      %1777 = vmatprep.subr.mxu0 0.0
      %1778 = vmatpush1.xpose.msra.mxu0 0.0
      %1779 = vmatprep.subr.mxu0 0.0
      %1780 = vmatpush1.xpose.msra.mxu0 0.0
      %1781 = vmatprep.subr.mxu0 0.0
      %1782 = vmatpush1.xpose.msra.mxu0 0.0
      %1783 = vmatprep.subr.mxu0 0.0
      %1784 = vmatpush1.xpose.msra.mxu0 0.0
      %1785 = vmatprep.subr.mxu0 0.0
      %1786 = vmatpush1.xpose.msra.mxu0 0.0
      %1787 = vmatprep.subr.mxu0 0.0
      %1788 = vmatpush1.xpose.msra.mxu0 0.0
      %1789 = vmatprep.subr.mxu0 0.0
      %1790 = vmatpush1.xpose.msra.mxu0 0.0
      %1791 = vmatprep.subr.mxu0 0.0
      %1792 = vmatpush1.xpose.msra.mxu0 0.0
      %1793 = vmatprep.subr.mxu0 0.0
      %1794 = vmatpush1.xpose.msra.mxu0 0.0
      %1795 = vmatprep.subr.mxu0 0.0
      %1796 = vmatpush1.xpose.msra.mxu0 0.0
      %1797 = vmatprep.subr.mxu0 0.0
      %1798 = vmatpush1.xpose.msra.mxu0 0.0
      %1799 = vmatprep.subr.mxu0 0.0
      %1800 = vmatpush1.xpose.msra.mxu0 %v1767
      %1801 = vmatprep.subr.mxu0 0.0
      %1802 = vmatpush2.xpose.msra.mxu0 0.0
      %1803 = vmatprep.subr.mxu0 0.0
      %1804 = vmatpush2.xpose.msra.mxu0 0.0
      %1805 = vmatprep.subr.mxu0 0.0
      %1806 = vmatpush2.xpose.msra.mxu0 0.0
      %1807 = vmatprep.subr.mxu0 0.0
      %1808 = vmatpush2.xpose.msra.mxu0 0.0
      %1809 = vmatprep.subr.mxu0 0.0
      %1810 = vmatpush2.xpose.msra.mxu0 0.0
      %1811 = vmatprep.subr.mxu0 0.0
      %1812 = vmatpush2.xpose.msra.mxu0 0.0
      %1813 = vmatprep.subr.mxu0 0.0
      %1814 = vmatpush2.xpose.msra.mxu0 0.0
      %1815 = vmatprep.subr.mxu0 0.0
      %1816 = vmatpush2.xpose.msra.mxu0 0.0
      %1817 = vmatprep.subr.mxu0 0.0
      %1818 = vmatpush2.xpose.msra.mxu0 0.0
      %1819 = vmatprep.subr.mxu0 0.0
      %1820 = vmatpush2.xpose.msra.mxu0 0.0
      %1821 = vmatprep.subr.mxu0 0.0
      %1822 = vmatpush2.xpose.msra.mxu0 0.0
      %1823 = vmatprep.subr.mxu0 0.0
      %1824 = vmatpush2.xpose.msra.mxu0 0.0
      %1825 = vmatprep.subr.mxu0 0.0
      %1826 = vmatpush2.xpose.msra.mxu0 0.0
      %1827 = vmatprep.subr.mxu0 0.0
      %1828 = vmatpush2.xpose.msra.mxu0 0.0
      %1829 = vmatprep.subr.mxu0 0.0
      %1830 = vmatpush2.xpose.msra.mxu0 0.0
      %1831 = vmatprep.subr.mxu0 0.0
      %1832 = vmatpush2.xpose.msra.mxu0 0.0
      %1833 = vmatprep.mubr.f32.mxu0 0.0
      %1834 = vmatmul.mubr.f32.gmra.mxu0 %v1765
      %v1835 = vpop.f32.mrf.mxu0
      %v1836 = vadd.f32 0.0, %v1835
      %v1837 = vpop.f32.mrf.mxu0
      %1838 = vdwg.mxu0
      %v1839 = vsel %vm671, %v605, 0
      %v1841 = vsel %vm671, %v633, 0
      %1843 = vmatprep.subr.mxu0 0.0
      %1844 = vmatpush1.xpose.msra.mxu0 0.0
      %1845 = vmatprep.subr.mxu0 0.0
      %1846 = vmatpush1.xpose.msra.mxu0 0.0
      %1847 = vmatprep.subr.mxu0 0.0
      %1848 = vmatpush1.xpose.msra.mxu0 0.0
      %1849 = vmatprep.subr.mxu0 0.0
      %1850 = vmatpush1.xpose.msra.mxu0 0.0
      %1851 = vmatprep.subr.mxu0 0.0
      %1852 = vmatpush1.xpose.msra.mxu0 0.0
      %1853 = vmatprep.subr.mxu0 0.0
      %1854 = vmatpush1.xpose.msra.mxu0 0.0
      %1855 = vmatprep.subr.mxu0 0.0
      %1856 = vmatpush1.xpose.msra.mxu0 0.0
      %1857 = vmatprep.subr.mxu0 0.0
      %1858 = vmatpush1.xpose.msra.mxu0 0.0
      %1859 = vmatprep.subr.mxu0 0.0
      %1860 = vmatpush1.xpose.msra.mxu0 0.0
      %1861 = vmatprep.subr.mxu0 0.0
      %1862 = vmatpush1.xpose.msra.mxu0 0.0
      %1863 = vmatprep.subr.mxu0 0.0
      %1864 = vmatpush1.xpose.msra.mxu0 0.0
      %1865 = vmatprep.subr.mxu0 0.0
      %1866 = vmatpush1.xpose.msra.mxu0 0.0
      %1867 = vmatprep.subr.mxu0 0.0
      %1868 = vmatpush1.xpose.msra.mxu0 0.0
      %1869 = vmatprep.subr.mxu0 0.0
      %1870 = vmatpush1.xpose.msra.mxu0 0.0
      %1871 = vmatprep.subr.mxu0 0.0
      %1872 = vmatpush1.xpose.msra.mxu0 0.0
      %1873 = vmatprep.subr.mxu0 0.0
      %1874 = vmatpush1.xpose.msra.mxu0 %v1841
      %1875 = vmatprep.subr.mxu0 0.0
      %1876 = vmatpush2.xpose.msra.mxu0 0.0
      %1877 = vmatprep.subr.mxu0 0.0
      %1878 = vmatpush2.xpose.msra.mxu0 0.0
      %1879 = vmatprep.subr.mxu0 0.0
      %1880 = vmatpush2.xpose.msra.mxu0 0.0
      %1881 = vmatprep.subr.mxu0 0.0
      %1882 = vmatpush2.xpose.msra.mxu0 0.0
      %1883 = vmatprep.subr.mxu0 0.0
      %1884 = vmatpush2.xpose.msra.mxu0 0.0
      %1885 = vmatprep.subr.mxu0 0.0
      %1886 = vmatpush2.xpose.msra.mxu0 0.0
      %1887 = vmatprep.subr.mxu0 0.0
      %1888 = vmatpush2.xpose.msra.mxu0 0.0
      %1889 = vmatprep.subr.mxu0 0.0
      %1890 = vmatpush2.xpose.msra.mxu0 0.0
      %1891 = vmatprep.subr.mxu0 0.0
      %1892 = vmatpush2.xpose.msra.mxu0 0.0
      %1893 = vmatprep.subr.mxu0 0.0
      %1894 = vmatpush2.xpose.msra.mxu0 0.0
      %1895 = vmatprep.subr.mxu0 0.0
      %1896 = vmatpush2.xpose.msra.mxu0 0.0
      %1897 = vmatprep.subr.mxu0 0.0
      %1898 = vmatpush2.xpose.msra.mxu0 0.0
      %1899 = vmatprep.subr.mxu0 0.0
      %1900 = vmatpush2.xpose.msra.mxu0 0.0
      %1901 = vmatprep.subr.mxu0 0.0
      %1902 = vmatpush2.xpose.msra.mxu0 0.0
      %1903 = vmatprep.subr.mxu0 0.0
      %1904 = vmatpush2.xpose.msra.mxu0 0.0
      %1905 = vmatprep.subr.mxu0 0.0
      %1906 = vmatpush2.xpose.msra.mxu0 0.0
      %1907 = vmatprep.mubr.f32.mxu0 0.0
      %1908 = vmatmul.mubr.f32.gmra.mxu0 %v1839
      %v1909 = vpop.f32.mrf.mxu0
      %v1910 = vadd.f32 0.0, %v1909
      %v1911 = vpop.f32.mrf.mxu0
      %1912 = vdwg.mxu0
      %v1913 = vsel %vm671, %v613, 0
      %v1915 = vsel %vm671, %v641, 0
      %1917 = vmatprep.subr.mxu0 0.0
      %1918 = vmatpush1.xpose.msra.mxu0 0.0
      %1919 = vmatprep.subr.mxu0 0.0
      %1920 = vmatpush1.xpose.msra.mxu0 0.0
      %1921 = vmatprep.subr.mxu0 0.0
      %1922 = vmatpush1.xpose.msra.mxu0 0.0
      %1923 = vmatprep.subr.mxu0 0.0
      %1924 = vmatpush1.xpose.msra.mxu0 0.0
      %1925 = vmatprep.subr.mxu0 0.0
      %1926 = vmatpush1.xpose.msra.mxu0 0.0
      %1927 = vmatprep.subr.mxu0 0.0
      %1928 = vmatpush1.xpose.msra.mxu0 0.0
      %1929 = vmatprep.subr.mxu0 0.0
      %1930 = vmatpush1.xpose.msra.mxu0 0.0
      %1931 = vmatprep.subr.mxu0 0.0
      %1932 = vmatpush1.xpose.msra.mxu0 0.0
      %1933 = vmatprep.subr.mxu0 0.0
      %1934 = vmatpush1.xpose.msra.mxu0 0.0
      %1935 = vmatprep.subr.mxu0 0.0
      %1936 = vmatpush1.xpose.msra.mxu0 0.0
      %1937 = vmatprep.subr.mxu0 0.0
      %1938 = vmatpush1.xpose.msra.mxu0 0.0
      %1939 = vmatprep.subr.mxu0 0.0
      %1940 = vmatpush1.xpose.msra.mxu0 0.0
      %1941 = vmatprep.subr.mxu0 0.0
      %1942 = vmatpush1.xpose.msra.mxu0 0.0
      %1943 = vmatprep.subr.mxu0 0.0
      %1944 = vmatpush1.xpose.msra.mxu0 0.0
      %1945 = vmatprep.subr.mxu0 0.0
      %1946 = vmatpush1.xpose.msra.mxu0 0.0
      %1947 = vmatprep.subr.mxu0 0.0
      %1948 = vmatpush1.xpose.msra.mxu0 %v1915
      %1949 = vmatprep.subr.mxu0 0.0
      %1950 = vmatpush2.xpose.msra.mxu0 0.0
      %1951 = vmatprep.subr.mxu0 0.0
      %1952 = vmatpush2.xpose.msra.mxu0 0.0
      %1953 = vmatprep.subr.mxu0 0.0
      %1954 = vmatpush2.xpose.msra.mxu0 0.0
      %1955 = vmatprep.subr.mxu0 0.0
      %1956 = vmatpush2.xpose.msra.mxu0 0.0
      %1957 = vmatprep.subr.mxu0 0.0
      %1958 = vmatpush2.xpose.msra.mxu0 0.0
      %1959 = vmatprep.subr.mxu0 0.0
      %1960 = vmatpush2.xpose.msra.mxu0 0.0
      %1961 = vmatprep.subr.mxu0 0.0
      %1962 = vmatpush2.xpose.msra.mxu0 0.0
      %1963 = vmatprep.subr.mxu0 0.0
      %1964 = vmatpush2.xpose.msra.mxu0 0.0
      %1965 = vmatprep.subr.mxu0 0.0
      %1966 = vmatpush2.xpose.msra.mxu0 0.0
      %1967 = vmatprep.subr.mxu0 0.0
      %1968 = vmatpush2.xpose.msra.mxu0 0.0
      %1969 = vmatprep.subr.mxu0 0.0
      %1970 = vmatpush2.xpose.msra.mxu0 0.0
      %1971 = vmatprep.subr.mxu0 0.0
      %1972 = vmatpush2.xpose.msra.mxu0 0.0
      %1973 = vmatprep.subr.mxu0 0.0
      %1974 = vmatpush2.xpose.msra.mxu0 0.0
      %1975 = vmatprep.subr.mxu0 0.0
      %1976 = vmatpush2.xpose.msra.mxu0 0.0
      %1977 = vmatprep.subr.mxu0 0.0
      %1978 = vmatpush2.xpose.msra.mxu0 0.0
      %1979 = vmatprep.subr.mxu0 0.0
      %1980 = vmatpush2.xpose.msra.mxu0 0.0
      %1981 = vmatprep.mubr.f32.mxu0 0.0
      %1982 = vmatmul.mubr.f32.gmra.mxu0 %v1913
      %v1983 = vpop.f32.mrf.mxu0
      %v1984 = vadd.f32 0.0, %v1983
      %v1985 = vpop.f32.mrf.mxu0
      %1986 = vdwg.mxu0
      %v1987 = vsel %vm671, %v621, 0
      %v1989 = vsel %vm671, %v649, 0
      %1991 = vmatprep.subr.mxu0 0.0
      %1992 = vmatpush1.xpose.msra.mxu0 0.0
      %1993 = vmatprep.subr.mxu0 0.0
      %1994 = vmatpush1.xpose.msra.mxu0 0.0
      %1995 = vmatprep.subr.mxu0 0.0
      %1996 = vmatpush1.xpose.msra.mxu0 0.0
      %1997 = vmatprep.subr.mxu0 0.0
      %1998 = vmatpush1.xpose.msra.mxu0 0.0
      %1999 = vmatprep.subr.mxu0 0.0
      %2000 = vmatpush1.xpose.msra.mxu0 0.0
      %2001 = vmatprep.subr.mxu0 0.0
      %2002 = vmatpush1.xpose.msra.mxu0 0.0
      %2003 = vmatprep.subr.mxu0 0.0
      %2004 = vmatpush1.xpose.msra.mxu0 0.0
      %2005 = vmatprep.subr.mxu0 0.0
      %2006 = vmatpush1.xpose.msra.mxu0 0.0
      %2007 = vmatprep.subr.mxu0 0.0
      %2008 = vmatpush1.xpose.msra.mxu0 0.0
      %2009 = vmatprep.subr.mxu0 0.0
      %2010 = vmatpush1.xpose.msra.mxu0 0.0
      %2011 = vmatprep.subr.mxu0 0.0
      %2012 = vmatpush1.xpose.msra.mxu0 0.0
      %2013 = vmatprep.subr.mxu0 0.0
      %2014 = vmatpush1.xpose.msra.mxu0 0.0
      %2015 = vmatprep.subr.mxu0 0.0
      %2016 = vmatpush1.xpose.msra.mxu0 0.0
      %2017 = vmatprep.subr.mxu0 0.0
      %2018 = vmatpush1.xpose.msra.mxu0 0.0
      %2019 = vmatprep.subr.mxu0 0.0
      %2020 = vmatpush1.xpose.msra.mxu0 0.0
      %2021 = vmatprep.subr.mxu0 0.0
      %2022 = vmatpush1.xpose.msra.mxu0 %v1989
      %2023 = vmatprep.subr.mxu0 0.0
      %2024 = vmatpush2.xpose.msra.mxu0 0.0
      %2025 = vmatprep.subr.mxu0 0.0
      %2026 = vmatpush2.xpose.msra.mxu0 0.0
      %2027 = vmatprep.subr.mxu0 0.0
      %2028 = vmatpush2.xpose.msra.mxu0 0.0
      %2029 = vmatprep.subr.mxu0 0.0
      %2030 = vmatpush2.xpose.msra.mxu0 0.0
      %2031 = vmatprep.subr.mxu0 0.0
      %2032 = vmatpush2.xpose.msra.mxu0 0.0
      %2033 = vmatprep.subr.mxu0 0.0
      %2034 = vmatpush2.xpose.msra.mxu0 0.0
      %2035 = vmatprep.subr.mxu0 0.0
      %2036 = vmatpush2.xpose.msra.mxu0 0.0
      %2037 = vmatprep.subr.mxu0 0.0
      %2038 = vmatpush2.xpose.msra.mxu0 0.0
      %2039 = vmatprep.subr.mxu0 0.0
      %2040 = vmatpush2.xpose.msra.mxu0 0.0
      %2041 = vmatprep.subr.mxu0 0.0
      %2042 = vmatpush2.xpose.msra.mxu0 0.0
      %2043 = vmatprep.subr.mxu0 0.0
      %2044 = vmatpush2.xpose.msra.mxu0 0.0
      %2045 = vmatprep.subr.mxu0 0.0
      %2046 = vmatpush2.xpose.msra.mxu0 0.0
      %2047 = vmatprep.subr.mxu0 0.0
      %2048 = vmatpush2.xpose.msra.mxu0 0.0
      %2049 = vmatprep.subr.mxu0 0.0
      %2050 = vmatpush2.xpose.msra.mxu0 0.0
      %2051 = vmatprep.subr.mxu0 0.0
      %2052 = vmatpush2.xpose.msra.mxu0 0.0
      %2053 = vmatprep.subr.mxu0 0.0
      %2054 = vmatpush2.xpose.msra.mxu0 0.0
      %2055 = vmatprep.mubr.f32.mxu0 0.0
      %2056 = vmatmul.mubr.f32.gmra.mxu0 %v1987
      %v2057 = vpop.f32.mrf.mxu0
      %v2058 = vadd.f32 0.0, %v2057
      %v2059 = vpop.f32.mrf.mxu0
      %2060 = vdwg.mxu0
      %v2061 = vmul.f32 %v1836, 0.35355338
      %v2062 = vmul.f32 %v1910, 0.35355338
      %v2063 = vmul.f32 %v1984, 0.35355338
      %v2064 = vmul.f32 %v2058, 0.35355338
      %v2065 = vsel %vm973, %v2061, -inf
      %v2066 = vsel %vm973, %v2062, -inf
      %v2067 = vsel %vm973, %v2063, -inf
      %v2068 = vsel %vm973, %v2064, -inf
      %v2069 = vsel %vm671, %v2065, -inf
      %2070 = vmax.xlane.f32.xlu0 %v2069
      %v2071 = vpop.xlane.xlu0 %2070
      %v2072 = vsel %vm671, %v2066, -inf
      %2073 = vmax.xlane.f32.xlu0 %v2072
      %v2074 = vpop.xlane.xlu0 %2073
      %v2075 = vsel %vm671, %v2067, -inf
      %2076 = vmax.xlane.f32.xlu0 %v2075
      %v2077 = vpop.xlane.xlu0 %2076
      %v2078 = vsel %vm671, %v2068, -inf
      %2079 = vmax.xlane.f32.xlu0 %v2078
      %v2080 = vpop.xlane.xlu0 %2079
      %v2081 = vsub.f32 %v2065, %v2071
      %v2082 = vsub.f32 %v2066, %v2074
      %v2083 = vsub.f32 %v2067, %v2077
      %v2084 = vsub.f32 %v2068, %v2080
      %v2085 = vmul.f32 %v2081, 1.442695
      %v2086 = vpow.pop %v2085
      %v2087 = vmul.f32 %v2082, 1.442695
      %v2088 = vpow.pop %v2087
      %v2089 = vmul.f32 %v2083, 1.442695
      %v2090 = vpow.pop %v2089
      %v2091 = vmul.f32 %v2084, 1.442695
      %v2092 = vpow.pop %v2091
      %v2093 = vsel %vm671, %v2086, 0.0
      %2094 = vadd.xlane.f32.xlu0 %v2093
      %v2095 = vpop.xlane.xlu0 %2094
      %v2096 = vsel %vm671, %v2088, 0.0
      %2097 = vadd.xlane.f32.xlu0 %v2096
      %v2098 = vpop.xlane.xlu0 %2097
      %v2099 = vsel %vm671, %v2090, 0.0
      %2100 = vadd.xlane.f32.xlu0 %v2099
      %v2101 = vpop.xlane.xlu0 %2100
      %v2102 = vsel %vm671, %v2092, 0.0
      %2103 = vadd.xlane.f32.xlu0 %v2102
      %v2104 = vpop.xlane.xlu0 %2103
      %v2105 = vrcp.pop %v2095
      %v2106 = vrcp.pop %v2098
      %v2107 = vrcp.pop %v2101
      %v2108 = vrcp.pop %v2104
      %v2109 = vmul.f32 %v2086, %v2105
      %v2110 = vmul.f32 %v2088, %v2106
      %v2111 = vmul.f32 %v2090, %v2107
      %v2112 = vmul.f32 %v2092, %v2108
      %v2113 = vpack.c.bf16 %v2109, %v2109
      %v2114 = vpack.c.bf16 %v2110, %v2110
      %v2115 = vpack.c.bf16 %v2111, %v2111
      %v2116 = vpack.c.bf16 %v2112, %v2112
      %v2118 = vsel %vm671, %v2113, 0
      %v2121 = vsel %vm1029, %v595, 0
      %2123 = vmatprep.subr.bf16.mxu0 0
      %2124 = vmatpush1.bf16.msra.mxu0 0
      %2125 = vmatprep.subr.bf16.mxu0 0
      %2126 = vmatpush1.bf16.msra.mxu0 0
      %2127 = vmatprep.subr.bf16.mxu0 0
      %2128 = vmatpush1.bf16.msra.mxu0 0
      %2129 = vmatprep.subr.bf16.mxu0 0
      %2130 = vmatpush1.bf16.msra.mxu0 0
      %2131 = vmatprep.subr.bf16.mxu0 0
      %2132 = vmatpush1.bf16.msra.mxu0 0
      %2133 = vmatprep.subr.bf16.mxu0 0
      %2134 = vmatpush1.bf16.msra.mxu0 0
      %2135 = vmatprep.subr.bf16.mxu0 0
      %2136 = vmatpush1.bf16.msra.mxu0 0
      %2137 = vmatprep.subr.bf16.mxu0 0
      %2138 = vmatpush1.bf16.msra.mxu0 %v2121
      %2139 = vmatprep.subr.bf16.mxu0 0
      %2140 = vmatpush2.bf16.msra.mxu0 0
      %2141 = vmatprep.subr.bf16.mxu0 0
      %2142 = vmatpush2.bf16.msra.mxu0 0
      %2143 = vmatprep.subr.bf16.mxu0 0
      %2144 = vmatpush2.bf16.msra.mxu0 0
      %2145 = vmatprep.subr.bf16.mxu0 0
      %2146 = vmatpush2.bf16.msra.mxu0 0
      %2147 = vmatprep.subr.bf16.mxu0 0
      %2148 = vmatpush2.bf16.msra.mxu0 0
      %2149 = vmatprep.subr.bf16.mxu0 0
      %2150 = vmatpush2.bf16.msra.mxu0 0
      %2151 = vmatprep.subr.bf16.mxu0 0
      %2152 = vmatpush2.bf16.msra.mxu0 0
      %2153 = vmatprep.subr.bf16.mxu0 0
      %2154 = vmatpush2.bf16.msra.mxu0 0
      %2155 = vmatprep.mubr.bf16.mxu0 0
      %2156 = vmatmul.mubr.bf16.gmra.mxu0 %v2118
      %v2157 = vpop.f32.mrf.mxu0
      %v2158 = vadd.f32 0.0, %v2157
      %v2159 = vpop.f32.mrf.mxu0
      %v2160 = vpop.f32.mrf.mxu0
      %v2161 = vpop.f32.mrf.mxu0
      %2162 = vdwg.mxu0
      %v2164 = vsel %vm671, %v2114, 0
      %v2167 = vsel %vm1029, %v657, 0
      %2169 = vmatprep.subr.bf16.mxu0 0
      %2170 = vmatpush1.bf16.msra.mxu0 0
      %2171 = vmatprep.subr.bf16.mxu0 0
      %2172 = vmatpush1.bf16.msra.mxu0 0
      %2173 = vmatprep.subr.bf16.mxu0 0
      %2174 = vmatpush1.bf16.msra.mxu0 0
      %2175 = vmatprep.subr.bf16.mxu0 0
      %2176 = vmatpush1.bf16.msra.mxu0 0
      %2177 = vmatprep.subr.bf16.mxu0 0
      %2178 = vmatpush1.bf16.msra.mxu0 0
      %2179 = vmatprep.subr.bf16.mxu0 0
      %2180 = vmatpush1.bf16.msra.mxu0 0
      %2181 = vmatprep.subr.bf16.mxu0 0
      %2182 = vmatpush1.bf16.msra.mxu0 0
      %2183 = vmatprep.subr.bf16.mxu0 0
      %2184 = vmatpush1.bf16.msra.mxu0 %v2167
      %2185 = vmatprep.subr.bf16.mxu0 0
      %2186 = vmatpush2.bf16.msra.mxu0 0
      %2187 = vmatprep.subr.bf16.mxu0 0
      %2188 = vmatpush2.bf16.msra.mxu0 0
      %2189 = vmatprep.subr.bf16.mxu0 0
      %2190 = vmatpush2.bf16.msra.mxu0 0
      %2191 = vmatprep.subr.bf16.mxu0 0
      %2192 = vmatpush2.bf16.msra.mxu0 0
      %2193 = vmatprep.subr.bf16.mxu0 0
      %2194 = vmatpush2.bf16.msra.mxu0 0
      %2195 = vmatprep.subr.bf16.mxu0 0
      %2196 = vmatpush2.bf16.msra.mxu0 0
      %2197 = vmatprep.subr.bf16.mxu0 0
      %2198 = vmatpush2.bf16.msra.mxu0 0
      %2199 = vmatprep.subr.bf16.mxu0 0
      %2200 = vmatpush2.bf16.msra.mxu0 0
      %2201 = vmatprep.mubr.bf16.mxu0 0
      %2202 = vmatmul.mubr.bf16.gmra.mxu0 %v2164
      %v2203 = vpop.f32.mrf.mxu0
      %v2204 = vadd.f32 0.0, %v2203
      %v2205 = vpop.f32.mrf.mxu0
      %v2206 = vpop.f32.mrf.mxu0
      %v2207 = vpop.f32.mrf.mxu0
      %2208 = vdwg.mxu0
      %v2210 = vsel %vm671, %v2115, 0
      %v2213 = vsel %vm1029, %v661, 0
      %2215 = vmatprep.subr.bf16.mxu0 0
      %2216 = vmatpush1.bf16.msra.mxu0 0
      %2217 = vmatprep.subr.bf16.mxu0 0
      %2218 = vmatpush1.bf16.msra.mxu0 0
      %2219 = vmatprep.subr.bf16.mxu0 0
      %2220 = vmatpush1.bf16.msra.mxu0 0
      %2221 = vmatprep.subr.bf16.mxu0 0
      %2222 = vmatpush1.bf16.msra.mxu0 0
      %2223 = vmatprep.subr.bf16.mxu0 0
      %2224 = vmatpush1.bf16.msra.mxu0 0
      %2225 = vmatprep.subr.bf16.mxu0 0
      %2226 = vmatpush1.bf16.msra.mxu0 0
      %2227 = vmatprep.subr.bf16.mxu0 0
      %2228 = vmatpush1.bf16.msra.mxu0 0
      %2229 = vmatprep.subr.bf16.mxu0 0
      %2230 = vmatpush1.bf16.msra.mxu0 %v2213
      %2231 = vmatprep.subr.bf16.mxu0 0
      %2232 = vmatpush2.bf16.msra.mxu0 0
      %2233 = vmatprep.subr.bf16.mxu0 0
      %2234 = vmatpush2.bf16.msra.mxu0 0
      %2235 = vmatprep.subr.bf16.mxu0 0
      %2236 = vmatpush2.bf16.msra.mxu0 0
      %2237 = vmatprep.subr.bf16.mxu0 0
      %2238 = vmatpush2.bf16.msra.mxu0 0
      %2239 = vmatprep.subr.bf16.mxu0 0
      %2240 = vmatpush2.bf16.msra.mxu0 0
      %2241 = vmatprep.subr.bf16.mxu0 0
      %2242 = vmatpush2.bf16.msra.mxu0 0
      %2243 = vmatprep.subr.bf16.mxu0 0
      %2244 = vmatpush2.bf16.msra.mxu0 0
      %2245 = vmatprep.subr.bf16.mxu0 0
      %2246 = vmatpush2.bf16.msra.mxu0 0
      %2247 = vmatprep.mubr.bf16.mxu0 0
      %2248 = vmatmul.mubr.bf16.gmra.mxu0 %v2210
      %v2249 = vpop.f32.mrf.mxu0
      %v2250 = vadd.f32 0.0, %v2249
      %v2251 = vpop.f32.mrf.mxu0
      %v2252 = vpop.f32.mrf.mxu0
      %v2253 = vpop.f32.mrf.mxu0
      %2254 = vdwg.mxu0
      %v2256 = vsel %vm671, %v2116, 0
      %v2259 = vsel %vm1029, %v665, 0
      %2261 = vmatprep.subr.bf16.mxu0 0
      %2262 = vmatpush1.bf16.msra.mxu0 0
      %2263 = vmatprep.subr.bf16.mxu0 0
      %2264 = vmatpush1.bf16.msra.mxu0 0
      %2265 = vmatprep.subr.bf16.mxu0 0
      %2266 = vmatpush1.bf16.msra.mxu0 0
      %2267 = vmatprep.subr.bf16.mxu0 0
      %2268 = vmatpush1.bf16.msra.mxu0 0
      %2269 = vmatprep.subr.bf16.mxu0 0
      %2270 = vmatpush1.bf16.msra.mxu0 0
      %2271 = vmatprep.subr.bf16.mxu0 0
      %2272 = vmatpush1.bf16.msra.mxu0 0
      %2273 = vmatprep.subr.bf16.mxu0 0
      %2274 = vmatpush1.bf16.msra.mxu0 0
      %2275 = vmatprep.subr.bf16.mxu0 0
      %2276 = vmatpush1.bf16.msra.mxu0 %v2259
      %2277 = vmatprep.subr.bf16.mxu0 0
      %2278 = vmatpush2.bf16.msra.mxu0 0
      %2279 = vmatprep.subr.bf16.mxu0 0
      %2280 = vmatpush2.bf16.msra.mxu0 0
      %2281 = vmatprep.subr.bf16.mxu0 0
      %2282 = vmatpush2.bf16.msra.mxu0 0
      %2283 = vmatprep.subr.bf16.mxu0 0
      %2284 = vmatpush2.bf16.msra.mxu0 0
      %2285 = vmatprep.subr.bf16.mxu0 0
      %2286 = vmatpush2.bf16.msra.mxu0 0
      %2287 = vmatprep.subr.bf16.mxu0 0
      %2288 = vmatpush2.bf16.msra.mxu0 0
      %2289 = vmatprep.subr.bf16.mxu0 0
      %2290 = vmatpush2.bf16.msra.mxu0 0
      %2291 = vmatprep.subr.bf16.mxu0 0
      %2292 = vmatpush2.bf16.msra.mxu0 0
      %2293 = vmatprep.mubr.bf16.mxu0 0
      %2294 = vmatmul.mubr.bf16.gmra.mxu0 %v2256
      %v2295 = vpop.f32.mrf.mxu0
      %v2296 = vadd.f32 0.0, %v2295
      %v2297 = vpop.f32.mrf.mxu0
      %v2298 = vpop.f32.mrf.mxu0
      %v2299 = vpop.f32.mrf.mxu0
      %2300 = vdwg.mxu0
      %v2301 = vsel %vm370, %v2158, 0.0
      %v2302 = vsel %vm370, %v2204, 0.0
      %v2303 = vadd.f32 %v2301, %v2302
      %v2304 = vsel %vm370, %v2250, 0.0
      %v2305 = vadd.f32 %v2303, %v2304
      %v2306 = vsel %vm370, %v2296, 0.0
      %v2307 = vadd.f32 %v2305, %v2306
      %v2308 = vsel %vm671, %v541, 0
      %v2310 = vsel %vm671, %v543, 0
      %2312 = vmatprep.subr.mxu0 0.0
      %2313 = vmatpush1.xpose.msra.mxu0 0.0
      %2314 = vmatprep.subr.mxu0 0.0
      %2315 = vmatpush1.xpose.msra.mxu0 0.0
      %2316 = vmatprep.subr.mxu0 0.0
      %2317 = vmatpush1.xpose.msra.mxu0 0.0
      %2318 = vmatprep.subr.mxu0 0.0
      %2319 = vmatpush1.xpose.msra.mxu0 0.0
      %2320 = vmatprep.subr.mxu0 0.0
      %2321 = vmatpush1.xpose.msra.mxu0 0.0
      %2322 = vmatprep.subr.mxu0 0.0
      %2323 = vmatpush1.xpose.msra.mxu0 0.0
      %2324 = vmatprep.subr.mxu0 0.0
      %2325 = vmatpush1.xpose.msra.mxu0 0.0
      %2326 = vmatprep.subr.mxu0 0.0
      %2327 = vmatpush1.xpose.msra.mxu0 0.0
      %2328 = vmatprep.subr.mxu0 0.0
      %2329 = vmatpush1.xpose.msra.mxu0 0.0
      %2330 = vmatprep.subr.mxu0 0.0
      %2331 = vmatpush1.xpose.msra.mxu0 0.0
      %2332 = vmatprep.subr.mxu0 0.0
      %2333 = vmatpush1.xpose.msra.mxu0 0.0
      %2334 = vmatprep.subr.mxu0 0.0
      %2335 = vmatpush1.xpose.msra.mxu0 0.0
      %2336 = vmatprep.subr.mxu0 0.0
      %2337 = vmatpush1.xpose.msra.mxu0 0.0
      %2338 = vmatprep.subr.mxu0 0.0
      %2339 = vmatpush1.xpose.msra.mxu0 0.0
      %2340 = vmatprep.subr.mxu0 0.0
      %2341 = vmatpush1.xpose.msra.mxu0 0.0
      %2342 = vmatprep.subr.mxu0 0.0
      %2343 = vmatpush1.xpose.msra.mxu0 %v2310
      %2344 = vmatprep.subr.mxu0 0.0
      %2345 = vmatpush2.xpose.msra.mxu0 0.0
      %2346 = vmatprep.subr.mxu0 0.0
      %2347 = vmatpush2.xpose.msra.mxu0 0.0
      %2348 = vmatprep.subr.mxu0 0.0
      %2349 = vmatpush2.xpose.msra.mxu0 0.0
      %2350 = vmatprep.subr.mxu0 0.0
      %2351 = vmatpush2.xpose.msra.mxu0 0.0
      %2352 = vmatprep.subr.mxu0 0.0
      %2353 = vmatpush2.xpose.msra.mxu0 0.0
      %2354 = vmatprep.subr.mxu0 0.0
      %2355 = vmatpush2.xpose.msra.mxu0 0.0
      %2356 = vmatprep.subr.mxu0 0.0
      %2357 = vmatpush2.xpose.msra.mxu0 0.0
      %2358 = vmatprep.subr.mxu0 0.0
      %2359 = vmatpush2.xpose.msra.mxu0 0.0
      %2360 = vmatprep.subr.mxu0 0.0
      %2361 = vmatpush2.xpose.msra.mxu0 0.0
      %2362 = vmatprep.subr.mxu0 0.0
      %2363 = vmatpush2.xpose.msra.mxu0 0.0
      %2364 = vmatprep.subr.mxu0 0.0
      %2365 = vmatpush2.xpose.msra.mxu0 0.0
      %2366 = vmatprep.subr.mxu0 0.0
      %2367 = vmatpush2.xpose.msra.mxu0 0.0
      %2368 = vmatprep.subr.mxu0 0.0
      %2369 = vmatpush2.xpose.msra.mxu0 0.0
      %2370 = vmatprep.subr.mxu0 0.0
      %2371 = vmatpush2.xpose.msra.mxu0 0.0
      %2372 = vmatprep.subr.mxu0 0.0
      %2373 = vmatpush2.xpose.msra.mxu0 0.0
      %2374 = vmatprep.subr.mxu0 0.0
      %2375 = vmatpush2.xpose.msra.mxu0 0.0
      %2376 = vmatprep.mubr.f32.mxu0 0.0
      %2377 = vmatmul.mubr.f32.gmra.mxu0 %v2308
      %v2378 = vpop.f32.mrf.mxu0
      %v2379 = vadd.f32 0.0, %v2378
      %v2380 = vpop.f32.mrf.mxu0
      %2381 = vdwg.mxu0
      %v2382 = vsel %vm671, %v607, 0
      %v2384 = vsel %vm671, %v635, 0
      %2386 = vmatprep.subr.mxu0 0.0
      %2387 = vmatpush1.xpose.msra.mxu0 0.0
      %2388 = vmatprep.subr.mxu0 0.0
      %2389 = vmatpush1.xpose.msra.mxu0 0.0
      %2390 = vmatprep.subr.mxu0 0.0
      %2391 = vmatpush1.xpose.msra.mxu0 0.0
      %2392 = vmatprep.subr.mxu0 0.0
      %2393 = vmatpush1.xpose.msra.mxu0 0.0
      %2394 = vmatprep.subr.mxu0 0.0
      %2395 = vmatpush1.xpose.msra.mxu0 0.0
      %2396 = vmatprep.subr.mxu0 0.0
      %2397 = vmatpush1.xpose.msra.mxu0 0.0
      %2398 = vmatprep.subr.mxu0 0.0
      %2399 = vmatpush1.xpose.msra.mxu0 0.0
      %2400 = vmatprep.subr.mxu0 0.0
      %2401 = vmatpush1.xpose.msra.mxu0 0.0
      %2402 = vmatprep.subr.mxu0 0.0
      %2403 = vmatpush1.xpose.msra.mxu0 0.0
      %2404 = vmatprep.subr.mxu0 0.0
      %2405 = vmatpush1.xpose.msra.mxu0 0.0
      %2406 = vmatprep.subr.mxu0 0.0
      %2407 = vmatpush1.xpose.msra.mxu0 0.0
      %2408 = vmatprep.subr.mxu0 0.0
      %2409 = vmatpush1.xpose.msra.mxu0 0.0
      %2410 = vmatprep.subr.mxu0 0.0
      %2411 = vmatpush1.xpose.msra.mxu0 0.0
      %2412 = vmatprep.subr.mxu0 0.0
      %2413 = vmatpush1.xpose.msra.mxu0 0.0
      %2414 = vmatprep.subr.mxu0 0.0
      %2415 = vmatpush1.xpose.msra.mxu0 0.0
      %2416 = vmatprep.subr.mxu0 0.0
      %2417 = vmatpush1.xpose.msra.mxu0 %v2384
      %2418 = vmatprep.subr.mxu0 0.0
      %2419 = vmatpush2.xpose.msra.mxu0 0.0
      %2420 = vmatprep.subr.mxu0 0.0
      %2421 = vmatpush2.xpose.msra.mxu0 0.0
      %2422 = vmatprep.subr.mxu0 0.0
      %2423 = vmatpush2.xpose.msra.mxu0 0.0
      %2424 = vmatprep.subr.mxu0 0.0
      %2425 = vmatpush2.xpose.msra.mxu0 0.0
      %2426 = vmatprep.subr.mxu0 0.0
      %2427 = vmatpush2.xpose.msra.mxu0 0.0
      %2428 = vmatprep.subr.mxu0 0.0
      %2429 = vmatpush2.xpose.msra.mxu0 0.0
      %2430 = vmatprep.subr.mxu0 0.0
      %2431 = vmatpush2.xpose.msra.mxu0 0.0
      %2432 = vmatprep.subr.mxu0 0.0
      %2433 = vmatpush2.xpose.msra.mxu0 0.0
      %2434 = vmatprep.subr.mxu0 0.0
      %2435 = vmatpush2.xpose.msra.mxu0 0.0
      %2436 = vmatprep.subr.mxu0 0.0
      %2437 = vmatpush2.xpose.msra.mxu0 0.0
      %2438 = vmatprep.subr.mxu0 0.0
      %2439 = vmatpush2.xpose.msra.mxu0 0.0
      %2440 = vmatprep.subr.mxu0 0.0
      %2441 = vmatpush2.xpose.msra.mxu0 0.0
      %2442 = vmatprep.subr.mxu0 0.0
      %2443 = vmatpush2.xpose.msra.mxu0 0.0
      %2444 = vmatprep.subr.mxu0 0.0
      %2445 = vmatpush2.xpose.msra.mxu0 0.0
      %2446 = vmatprep.subr.mxu0 0.0
      %2447 = vmatpush2.xpose.msra.mxu0 0.0
      %2448 = vmatprep.subr.mxu0 0.0
      %2449 = vmatpush2.xpose.msra.mxu0 0.0
      %2450 = vmatprep.mubr.f32.mxu0 0.0
      %2451 = vmatmul.mubr.f32.gmra.mxu0 %v2382
      %v2452 = vpop.f32.mrf.mxu0
      %v2453 = vadd.f32 0.0, %v2452
      %v2454 = vpop.f32.mrf.mxu0
      %2455 = vdwg.mxu0
      %v2456 = vsel %vm671, %v615, 0
      %v2458 = vsel %vm671, %v643, 0
      %2460 = vmatprep.subr.mxu0 0.0
      %2461 = vmatpush1.xpose.msra.mxu0 0.0
      %2462 = vmatprep.subr.mxu0 0.0
      %2463 = vmatpush1.xpose.msra.mxu0 0.0
      %2464 = vmatprep.subr.mxu0 0.0
      %2465 = vmatpush1.xpose.msra.mxu0 0.0
      %2466 = vmatprep.subr.mxu0 0.0
      %2467 = vmatpush1.xpose.msra.mxu0 0.0
      %2468 = vmatprep.subr.mxu0 0.0
      %2469 = vmatpush1.xpose.msra.mxu0 0.0
      %2470 = vmatprep.subr.mxu0 0.0
      %2471 = vmatpush1.xpose.msra.mxu0 0.0
      %2472 = vmatprep.subr.mxu0 0.0
      %2473 = vmatpush1.xpose.msra.mxu0 0.0
      %2474 = vmatprep.subr.mxu0 0.0
      %2475 = vmatpush1.xpose.msra.mxu0 0.0
      %2476 = vmatprep.subr.mxu0 0.0
      %2477 = vmatpush1.xpose.msra.mxu0 0.0
      %2478 = vmatprep.subr.mxu0 0.0
      %2479 = vmatpush1.xpose.msra.mxu0 0.0
      %2480 = vmatprep.subr.mxu0 0.0
      %2481 = vmatpush1.xpose.msra.mxu0 0.0
      %2482 = vmatprep.subr.mxu0 0.0
      %2483 = vmatpush1.xpose.msra.mxu0 0.0
      %2484 = vmatprep.subr.mxu0 0.0
      %2485 = vmatpush1.xpose.msra.mxu0 0.0
      %2486 = vmatprep.subr.mxu0 0.0
      %2487 = vmatpush1.xpose.msra.mxu0 0.0
      %2488 = vmatprep.subr.mxu0 0.0
      %2489 = vmatpush1.xpose.msra.mxu0 0.0
      %2490 = vmatprep.subr.mxu0 0.0
      %2491 = vmatpush1.xpose.msra.mxu0 %v2458
      %2492 = vmatprep.subr.mxu0 0.0
      %2493 = vmatpush2.xpose.msra.mxu0 0.0
      %2494 = vmatprep.subr.mxu0 0.0
      %2495 = vmatpush2.xpose.msra.mxu0 0.0
      %2496 = vmatprep.subr.mxu0 0.0
      %2497 = vmatpush2.xpose.msra.mxu0 0.0
      %2498 = vmatprep.subr.mxu0 0.0
      %2499 = vmatpush2.xpose.msra.mxu0 0.0
      %2500 = vmatprep.subr.mxu0 0.0
      %2501 = vmatpush2.xpose.msra.mxu0 0.0
      %2502 = vmatprep.subr.mxu0 0.0
      %2503 = vmatpush2.xpose.msra.mxu0 0.0
      %2504 = vmatprep.subr.mxu0 0.0
      %2505 = vmatpush2.xpose.msra.mxu0 0.0
      %2506 = vmatprep.subr.mxu0 0.0
      %2507 = vmatpush2.xpose.msra.mxu0 0.0
      %2508 = vmatprep.subr.mxu0 0.0
      %2509 = vmatpush2.xpose.msra.mxu0 0.0
      %2510 = vmatprep.subr.mxu0 0.0
      %2511 = vmatpush2.xpose.msra.mxu0 0.0
      %2512 = vmatprep.subr.mxu0 0.0
      %2513 = vmatpush2.xpose.msra.mxu0 0.0
      %2514 = vmatprep.subr.mxu0 0.0
      %2515 = vmatpush2.xpose.msra.mxu0 0.0
      %2516 = vmatprep.subr.mxu0 0.0
      %2517 = vmatpush2.xpose.msra.mxu0 0.0
      %2518 = vmatprep.subr.mxu0 0.0
      %2519 = vmatpush2.xpose.msra.mxu0 0.0
      %2520 = vmatprep.subr.mxu0 0.0
      %2521 = vmatpush2.xpose.msra.mxu0 0.0
      %2522 = vmatprep.subr.mxu0 0.0
      %2523 = vmatpush2.xpose.msra.mxu0 0.0
      %2524 = vmatprep.mubr.f32.mxu0 0.0
      %2525 = vmatmul.mubr.f32.gmra.mxu0 %v2456
      %v2526 = vpop.f32.mrf.mxu0
      %v2527 = vadd.f32 0.0, %v2526
      %v2528 = vpop.f32.mrf.mxu0
      %2529 = vdwg.mxu0
      %v2530 = vsel %vm671, %v623, 0
      %v2532 = vsel %vm671, %v651, 0
      %2534 = vmatprep.subr.mxu0 0.0
      %2535 = vmatpush1.xpose.msra.mxu0 0.0
      %2536 = vmatprep.subr.mxu0 0.0
      %2537 = vmatpush1.xpose.msra.mxu0 0.0
      %2538 = vmatprep.subr.mxu0 0.0
      %2539 = vmatpush1.xpose.msra.mxu0 0.0
      %2540 = vmatprep.subr.mxu0 0.0
      %2541 = vmatpush1.xpose.msra.mxu0 0.0
      %2542 = vmatprep.subr.mxu0 0.0
      %2543 = vmatpush1.xpose.msra.mxu0 0.0
      %2544 = vmatprep.subr.mxu0 0.0
      %2545 = vmatpush1.xpose.msra.mxu0 0.0
      %2546 = vmatprep.subr.mxu0 0.0
      %2547 = vmatpush1.xpose.msra.mxu0 0.0
      %2548 = vmatprep.subr.mxu0 0.0
      %2549 = vmatpush1.xpose.msra.mxu0 0.0
      %2550 = vmatprep.subr.mxu0 0.0
      %2551 = vmatpush1.xpose.msra.mxu0 0.0
      %2552 = vmatprep.subr.mxu0 0.0
      %2553 = vmatpush1.xpose.msra.mxu0 0.0
      %2554 = vmatprep.subr.mxu0 0.0
      %2555 = vmatpush1.xpose.msra.mxu0 0.0
      %2556 = vmatprep.subr.mxu0 0.0
      %2557 = vmatpush1.xpose.msra.mxu0 0.0
      %2558 = vmatprep.subr.mxu0 0.0
      %2559 = vmatpush1.xpose.msra.mxu0 0.0
      %2560 = vmatprep.subr.mxu0 0.0
      %2561 = vmatpush1.xpose.msra.mxu0 0.0
      %2562 = vmatprep.subr.mxu0 0.0
      %2563 = vmatpush1.xpose.msra.mxu0 0.0
      %2564 = vmatprep.subr.mxu0 0.0
      %2565 = vmatpush1.xpose.msra.mxu0 %v2532
      %2566 = vmatprep.subr.mxu0 0.0
      %2567 = vmatpush2.xpose.msra.mxu0 0.0
      %2568 = vmatprep.subr.mxu0 0.0
      %2569 = vmatpush2.xpose.msra.mxu0 0.0
      %2570 = vmatprep.subr.mxu0 0.0
      %2571 = vmatpush2.xpose.msra.mxu0 0.0
      %2572 = vmatprep.subr.mxu0 0.0
      %2573 = vmatpush2.xpose.msra.mxu0 0.0
      %2574 = vmatprep.subr.mxu0 0.0
      %2575 = vmatpush2.xpose.msra.mxu0 0.0
      %2576 = vmatprep.subr.mxu0 0.0
      %2577 = vmatpush2.xpose.msra.mxu0 0.0
      %2578 = vmatprep.subr.mxu0 0.0
      %2579 = vmatpush2.xpose.msra.mxu0 0.0
      %2580 = vmatprep.subr.mxu0 0.0
      %2581 = vmatpush2.xpose.msra.mxu0 0.0
      %2582 = vmatprep.subr.mxu0 0.0
      %2583 = vmatpush2.xpose.msra.mxu0 0.0
      %2584 = vmatprep.subr.mxu0 0.0
      %2585 = vmatpush2.xpose.msra.mxu0 0.0
      %2586 = vmatprep.subr.mxu0 0.0
      %2587 = vmatpush2.xpose.msra.mxu0 0.0
      %2588 = vmatprep.subr.mxu0 0.0
      %2589 = vmatpush2.xpose.msra.mxu0 0.0
      %2590 = vmatprep.subr.mxu0 0.0
      %2591 = vmatpush2.xpose.msra.mxu0 0.0
      %2592 = vmatprep.subr.mxu0 0.0
      %2593 = vmatpush2.xpose.msra.mxu0 0.0
      %2594 = vmatprep.subr.mxu0 0.0
      %2595 = vmatpush2.xpose.msra.mxu0 0.0
      %2596 = vmatprep.subr.mxu0 0.0
      %2597 = vmatpush2.xpose.msra.mxu0 0.0
      %2598 = vmatprep.mubr.f32.mxu0 0.0
      %2599 = vmatmul.mubr.f32.gmra.mxu0 %v2530
      %v2600 = vpop.f32.mrf.mxu0
      %v2601 = vadd.f32 0.0, %v2600
      %v2602 = vpop.f32.mrf.mxu0
      %2603 = vdwg.mxu0
      %v2604 = vmul.f32 %v2379, 0.35355338
      %v2605 = vmul.f32 %v2453, 0.35355338
      %v2606 = vmul.f32 %v2527, 0.35355338
      %v2607 = vmul.f32 %v2601, 0.35355338
      %v2608 = vsel %vm973, %v2604, -inf
      %v2609 = vsel %vm973, %v2605, -inf
      %v2610 = vsel %vm973, %v2606, -inf
      %v2611 = vsel %vm973, %v2607, -inf
      %v2612 = vsel %vm671, %v2608, -inf
      %2613 = vmax.xlane.f32.xlu0 %v2612
      %v2614 = vpop.xlane.xlu0 %2613
      %v2615 = vsel %vm671, %v2609, -inf
      %2616 = vmax.xlane.f32.xlu0 %v2615
      %v2617 = vpop.xlane.xlu0 %2616
      %v2618 = vsel %vm671, %v2610, -inf
      %2619 = vmax.xlane.f32.xlu0 %v2618
      %v2620 = vpop.xlane.xlu0 %2619
      %v2621 = vsel %vm671, %v2611, -inf
      %2622 = vmax.xlane.f32.xlu0 %v2621
      %v2623 = vpop.xlane.xlu0 %2622
      %v2624 = vsub.f32 %v2608, %v2614
      %v2625 = vsub.f32 %v2609, %v2617
      %v2626 = vsub.f32 %v2610, %v2620
      %v2627 = vsub.f32 %v2611, %v2623
      %v2628 = vmul.f32 %v2624, 1.442695
      %v2629 = vpow.pop %v2628
      %v2630 = vmul.f32 %v2625, 1.442695
      %v2631 = vpow.pop %v2630
      %v2632 = vmul.f32 %v2626, 1.442695
      %v2633 = vpow.pop %v2632
      %v2634 = vmul.f32 %v2627, 1.442695
      %v2635 = vpow.pop %v2634
      %v2636 = vsel %vm671, %v2629, 0.0
      %2637 = vadd.xlane.f32.xlu0 %v2636
      %v2638 = vpop.xlane.xlu0 %2637
      %v2639 = vsel %vm671, %v2631, 0.0
      %2640 = vadd.xlane.f32.xlu0 %v2639
      %v2641 = vpop.xlane.xlu0 %2640
      %v2642 = vsel %vm671, %v2633, 0.0
      %2643 = vadd.xlane.f32.xlu0 %v2642
      %v2644 = vpop.xlane.xlu0 %2643
      %v2645 = vsel %vm671, %v2635, 0.0
      %2646 = vadd.xlane.f32.xlu0 %v2645
      %v2647 = vpop.xlane.xlu0 %2646
      %v2648 = vrcp.pop %v2638
      %v2649 = vrcp.pop %v2641
      %v2650 = vrcp.pop %v2644
      %v2651 = vrcp.pop %v2647
      %v2652 = vmul.f32 %v2629, %v2648
      %v2653 = vmul.f32 %v2631, %v2649
      %v2654 = vmul.f32 %v2633, %v2650
      %v2655 = vmul.f32 %v2635, %v2651
      %v2656 = vpack.c.bf16 %v2652, %v2652
      %v2657 = vpack.c.bf16 %v2653, %v2653
      %v2658 = vpack.c.bf16 %v2654, %v2654
      %v2659 = vpack.c.bf16 %v2655, %v2655
      %v2660 = vrot.slane %v595, 4
      %v2662 = vsel %vm671, %v2656, 0
      %v2665 = vsel %vm1029, %v2660, 0
      %2667 = vmatprep.subr.bf16.mxu0 0
      %2668 = vmatpush1.bf16.msra.mxu0 0
      %2669 = vmatprep.subr.bf16.mxu0 0
      %2670 = vmatpush1.bf16.msra.mxu0 0
      %2671 = vmatprep.subr.bf16.mxu0 0
      %2672 = vmatpush1.bf16.msra.mxu0 0
      %2673 = vmatprep.subr.bf16.mxu0 0
      %2674 = vmatpush1.bf16.msra.mxu0 0
      %2675 = vmatprep.subr.bf16.mxu0 0
      %2676 = vmatpush1.bf16.msra.mxu0 0
      %2677 = vmatprep.subr.bf16.mxu0 0
      %2678 = vmatpush1.bf16.msra.mxu0 0
      %2679 = vmatprep.subr.bf16.mxu0 0
      %2680 = vmatpush1.bf16.msra.mxu0 0
      %2681 = vmatprep.subr.bf16.mxu0 0
      %2682 = vmatpush1.bf16.msra.mxu0 %v2665
      %2683 = vmatprep.subr.bf16.mxu0 0
      %2684 = vmatpush2.bf16.msra.mxu0 0
      %2685 = vmatprep.subr.bf16.mxu0 0
      %2686 = vmatpush2.bf16.msra.mxu0 0
      %2687 = vmatprep.subr.bf16.mxu0 0
      %2688 = vmatpush2.bf16.msra.mxu0 0
      %2689 = vmatprep.subr.bf16.mxu0 0
      %2690 = vmatpush2.bf16.msra.mxu0 0
      %2691 = vmatprep.subr.bf16.mxu0 0
      %2692 = vmatpush2.bf16.msra.mxu0 0
      %2693 = vmatprep.subr.bf16.mxu0 0
      %2694 = vmatpush2.bf16.msra.mxu0 0
      %2695 = vmatprep.subr.bf16.mxu0 0
      %2696 = vmatpush2.bf16.msra.mxu0 0
      %2697 = vmatprep.subr.bf16.mxu0 0
      %2698 = vmatpush2.bf16.msra.mxu0 0
      %2699 = vmatprep.mubr.bf16.mxu0 0
      %2700 = vmatmul.mubr.bf16.gmra.mxu0 %v2662
      %v2701 = vpop.f32.mrf.mxu0
      %v2702 = vadd.f32 0.0, %v2701
      %v2703 = vpop.f32.mrf.mxu0
      %v2704 = vpop.f32.mrf.mxu0
      %v2705 = vpop.f32.mrf.mxu0
      %2706 = vdwg.mxu0
      %v2707 = vrot.slane %v657, 4
      %v2709 = vsel %vm671, %v2657, 0
      %v2712 = vsel %vm1029, %v2707, 0
      %2714 = vmatprep.subr.bf16.mxu0 0
      %2715 = vmatpush1.bf16.msra.mxu0 0
      %2716 = vmatprep.subr.bf16.mxu0 0
      %2717 = vmatpush1.bf16.msra.mxu0 0
      %2718 = vmatprep.subr.bf16.mxu0 0
      %2719 = vmatpush1.bf16.msra.mxu0 0
      %2720 = vmatprep.subr.bf16.mxu0 0
      %2721 = vmatpush1.bf16.msra.mxu0 0
      %2722 = vmatprep.subr.bf16.mxu0 0
      %2723 = vmatpush1.bf16.msra.mxu0 0
      %2724 = vmatprep.subr.bf16.mxu0 0
      %2725 = vmatpush1.bf16.msra.mxu0 0
      %2726 = vmatprep.subr.bf16.mxu0 0
      %2727 = vmatpush1.bf16.msra.mxu0 0
      %2728 = vmatprep.subr.bf16.mxu0 0
      %2729 = vmatpush1.bf16.msra.mxu0 %v2712
      %2730 = vmatprep.subr.bf16.mxu0 0
      %2731 = vmatpush2.bf16.msra.mxu0 0
      %2732 = vmatprep.subr.bf16.mxu0 0
      %2733 = vmatpush2.bf16.msra.mxu0 0
      %2734 = vmatprep.subr.bf16.mxu0 0
      %2735 = vmatpush2.bf16.msra.mxu0 0
      %2736 = vmatprep.subr.bf16.mxu0 0
      %2737 = vmatpush2.bf16.msra.mxu0 0
      %2738 = vmatprep.subr.bf16.mxu0 0
      %2739 = vmatpush2.bf16.msra.mxu0 0
      %2740 = vmatprep.subr.bf16.mxu0 0
      %2741 = vmatpush2.bf16.msra.mxu0 0
      %2742 = vmatprep.subr.bf16.mxu0 0
      %2743 = vmatpush2.bf16.msra.mxu0 0
      %2744 = vmatprep.subr.bf16.mxu0 0
      %2745 = vmatpush2.bf16.msra.mxu0 0
      %2746 = vmatprep.mubr.bf16.mxu0 0
      %2747 = vmatmul.mubr.bf16.gmra.mxu0 %v2709
      %v2748 = vpop.f32.mrf.mxu0
      %v2749 = vadd.f32 0.0, %v2748
      %v2750 = vpop.f32.mrf.mxu0
      %v2751 = vpop.f32.mrf.mxu0
      %v2752 = vpop.f32.mrf.mxu0
      %2753 = vdwg.mxu0
      %v2754 = vrot.slane %v661, 4
      %v2756 = vsel %vm671, %v2658, 0
      %v2759 = vsel %vm1029, %v2754, 0
      %2761 = vmatprep.subr.bf16.mxu0 0
      %2762 = vmatpush1.bf16.msra.mxu0 0
      %2763 = vmatprep.subr.bf16.mxu0 0
      %2764 = vmatpush1.bf16.msra.mxu0 0
      %2765 = vmatprep.subr.bf16.mxu0 0
      %2766 = vmatpush1.bf16.msra.mxu0 0
      %2767 = vmatprep.subr.bf16.mxu0 0
      %2768 = vmatpush1.bf16.msra.mxu0 0
      %2769 = vmatprep.subr.bf16.mxu0 0
      %2770 = vmatpush1.bf16.msra.mxu0 0
      %2771 = vmatprep.subr.bf16.mxu0 0
      %2772 = vmatpush1.bf16.msra.mxu0 0
      %2773 = vmatprep.subr.bf16.mxu0 0
      %2774 = vmatpush1.bf16.msra.mxu0 0
      %2775 = vmatprep.subr.bf16.mxu0 0
      %2776 = vmatpush1.bf16.msra.mxu0 %v2759
      %2777 = vmatprep.subr.bf16.mxu0 0
      %2778 = vmatpush2.bf16.msra.mxu0 0
      %2779 = vmatprep.subr.bf16.mxu0 0
      %2780 = vmatpush2.bf16.msra.mxu0 0
      %2781 = vmatprep.subr.bf16.mxu0 0
      %2782 = vmatpush2.bf16.msra.mxu0 0
      %2783 = vmatprep.subr.bf16.mxu0 0
      %2784 = vmatpush2.bf16.msra.mxu0 0
      %2785 = vmatprep.subr.bf16.mxu0 0
      %2786 = vmatpush2.bf16.msra.mxu0 0
      %2787 = vmatprep.subr.bf16.mxu0 0
      %2788 = vmatpush2.bf16.msra.mxu0 0
      %2789 = vmatprep.subr.bf16.mxu0 0
      %2790 = vmatpush2.bf16.msra.mxu0 0
      %2791 = vmatprep.subr.bf16.mxu0 0
      %2792 = vmatpush2.bf16.msra.mxu0 0
      %2793 = vmatprep.mubr.bf16.mxu0 0
      %2794 = vmatmul.mubr.bf16.gmra.mxu0 %v2756
      %v2795 = vpop.f32.mrf.mxu0
      %v2796 = vadd.f32 0.0, %v2795
      %v2797 = vpop.f32.mrf.mxu0
      %v2798 = vpop.f32.mrf.mxu0
      %v2799 = vpop.f32.mrf.mxu0
      %2800 = vdwg.mxu0
      %v2801 = vrot.slane %v665, 4
      %v2803 = vsel %vm671, %v2659, 0
      %v2806 = vsel %vm1029, %v2801, 0
      %2808 = vmatprep.subr.bf16.mxu0 0
      %2809 = vmatpush1.bf16.msra.mxu0 0
      %2810 = vmatprep.subr.bf16.mxu0 0
      %2811 = vmatpush1.bf16.msra.mxu0 0
      %2812 = vmatprep.subr.bf16.mxu0 0
      %2813 = vmatpush1.bf16.msra.mxu0 0
      %2814 = vmatprep.subr.bf16.mxu0 0
      %2815 = vmatpush1.bf16.msra.mxu0 0
      %2816 = vmatprep.subr.bf16.mxu0 0
      %2817 = vmatpush1.bf16.msra.mxu0 0
      %2818 = vmatprep.subr.bf16.mxu0 0
      %2819 = vmatpush1.bf16.msra.mxu0 0
      %2820 = vmatprep.subr.bf16.mxu0 0
      %2821 = vmatpush1.bf16.msra.mxu0 0
      %2822 = vmatprep.subr.bf16.mxu0 0
      %2823 = vmatpush1.bf16.msra.mxu0 %v2806
      %2824 = vmatprep.subr.bf16.mxu0 0
      %2825 = vmatpush2.bf16.msra.mxu0 0
      %2826 = vmatprep.subr.bf16.mxu0 0
      %2827 = vmatpush2.bf16.msra.mxu0 0
      %2828 = vmatprep.subr.bf16.mxu0 0
      %2829 = vmatpush2.bf16.msra.mxu0 0
      %2830 = vmatprep.subr.bf16.mxu0 0
      %2831 = vmatpush2.bf16.msra.mxu0 0
      %2832 = vmatprep.subr.bf16.mxu0 0
      %2833 = vmatpush2.bf16.msra.mxu0 0
      %2834 = vmatprep.subr.bf16.mxu0 0
      %2835 = vmatpush2.bf16.msra.mxu0 0
      %2836 = vmatprep.subr.bf16.mxu0 0
      %2837 = vmatpush2.bf16.msra.mxu0 0
      %2838 = vmatprep.subr.bf16.mxu0 0
      %2839 = vmatpush2.bf16.msra.mxu0 0
      %2840 = vmatprep.mubr.bf16.mxu0 0
      %2841 = vmatmul.mubr.bf16.gmra.mxu0 %v2803
      %v2842 = vpop.f32.mrf.mxu0
      %v2843 = vadd.f32 0.0, %v2842
      %v2844 = vpop.f32.mrf.mxu0
      %v2845 = vpop.f32.mrf.mxu0
      %v2846 = vpop.f32.mrf.mxu0
      %2847 = vdwg.mxu0
      %v2848 = vsel %vm370, %v2702, 0.0
      %v2849 = vsel %vm370, %v2749, 0.0
      %v2850 = vadd.f32 %v2848, %v2849
      %v2851 = vsel %vm370, %v2796, 0.0
      %v2852 = vadd.f32 %v2850, %v2851
      %v2853 = vsel %vm370, %v2843, 0.0
      %v2854 = vadd.f32 %v2852, %v2853
      %v2855 = vadd.f32 %v364, %v1217
      %v2856 = vadd.f32 %v365, %v1764
      %v2857 = vadd.f32 %v366, %v2307
      %v2858 = vadd.f32 %v367, %v2854
      %v2859 = vld [vmem:[%s4] sm:$0x1]
      %v2860 = vld [vmem:[%s5] sm:$0x1]
      %v2861 = vsel %vm370, %v2855, 0.0
      %2862 = vadd.xlane.f32.xlu0 %v2861
      %v2863 = vpop.xlane.xlu0 %2862
      %v2864 = vsel %vm370, %v2856, 0.0
      %2865 = vadd.xlane.f32.xlu0 %v2864
      %v2866 = vpop.xlane.xlu0 %2865
      %v2867 = vsel %vm370, %v2857, 0.0
      %2868 = vadd.xlane.f32.xlu0 %v2867
      %v2869 = vpop.xlane.xlu0 %2868
      %v2870 = vsel %vm370, %v2858, 0.0
      %2871 = vadd.xlane.f32.xlu0 %v2870
      %v2872 = vpop.xlane.xlu0 %2871
      %v2873 = vmul.f32 %v2863, %v383
      %v2874 = vmul.f32 %v2866, %v383
      %v2875 = vmul.f32 %v2869, %v383
      %v2876 = vmul.f32 %v2872, %v383
      %v2877 = vsub.f32 %v2855, %v2873
      %v2878 = vsub.f32 %v2856, %v2874
      %v2879 = vsub.f32 %v2857, %v2875
      %v2880 = vsub.f32 %v2858, %v2876
      %v2881 = vmul.f32 %v2877, %v2877
      %v2882 = vmul.f32 %v2878, %v2878
      %v2883 = vmul.f32 %v2879, %v2879
      %v2884 = vmul.f32 %v2880, %v2880
      %v2885 = vsel %vm370, %v2881, 0.0
      %2886 = vadd.xlane.f32.xlu0 %v2885
      %v2887 = vpop.xlane.xlu0 %2886
      %v2888 = vsel %vm370, %v2882, 0.0
      %2889 = vadd.xlane.f32.xlu0 %v2888
      %v2890 = vpop.xlane.xlu0 %2889
      %v2891 = vsel %vm370, %v2883, 0.0
      %2892 = vadd.xlane.f32.xlu0 %v2891
      %v2893 = vpop.xlane.xlu0 %2892
      %v2894 = vsel %vm370, %v2884, 0.0
      %2895 = vadd.xlane.f32.xlu0 %v2894
      %v2896 = vpop.xlane.xlu0 %2895
      %v2897 = vmul.f32 %v2887, %v383
      %v2898 = vmul.f32 %v2890, %v383
      %v2899 = vmul.f32 %v2893, %v383
      %v2900 = vmul.f32 %v2896, %v383
      %v2901 = vadd.f32 %v2897, 1e-05
      %v2902 = vadd.f32 %v2898, 1e-05
      %v2903 = vadd.f32 %v2899, 1e-05
      %v2904 = vadd.f32 %v2900, 1e-05
      %v2905 = vrsqrt.pop %v2901
      %v2906 = vrsqrt.pop %v2902
      %v2907 = vrsqrt.pop %v2903
      %v2908 = vrsqrt.pop %v2904
      %v2909 = vmul.f32 %v2877, %v2905
      %v2910 = vmul.f32 %v2878, %v2906
      %v2911 = vmul.f32 %v2879, %v2907
      %v2912 = vmul.f32 %v2880, %v2908
      %v2914 = vlaneseq
      %v2915 = vshrl.u32 %v2914, 7
      %v2916 = vsub.s32 0, %v2915
      %v2917 = vrot.slane %v2859, %v2916
      %v2919 = vmul.f32 %v2909, %v2917
      %v2920 = vmul.f32 %v2910, %v2917
      %v2921 = vmul.f32 %v2911, %v2917
      %v2922 = vmul.f32 %v2912, %v2917
      %v2924 = vlaneseq
      %v2925 = vshrl.u32 %v2924, 7
      %v2926 = vsub.s32 0, %v2925
      %v2927 = vrot.slane %v2860, %v2926
      %v2929 = vadd.f32 %v2919, %v2927
      %v2930 = vadd.f32 %v2920, %v2927
      %v2931 = vadd.f32 %v2921, %v2927
      %v2932 = vadd.f32 %v2922, %v2927
      %v2933 = vpack.c.bf16 %v2930, %v2929
      %v2934 = vpack.c.bf16 %v2932, %v2931
      %v2935 = vld [vmem:[%s6] sm:$0xf]
      %v2936 = vld [vmem:[%s6 + $0x4] sm:$0xf]
      %v2937 = vld [vmem:[%s6 + $0x8] sm:$0xf]
      %v2938 = vld [vmem:[%s6 + $0xc] sm:$0xf]
      %v2939 = vld [vmem:[%s7] sm:$0x1]
      %v2941 = vlaneseq
      %v2942 = vshrl.u32 %v2941, 7
      %v2943 = vsub.s32 0, %v2942
      %v2944 = vrot.slane %v2939, %v2943
      %v2950 = vunpack.c.l.b16 %v2935
      %v2951 = vunpack.c.l.b16 %v2936
      %v2952 = vunpack.c.l.b16 %v2937
      %v2953 = vunpack.c.l.b16 %v2938
      %v2954 = vpack.c.b16 %v2951, %v2950
      %v2955 = vpack.c.b16 %v2953, %v2952
      %v2959 = vsel %vm370, %v2933, 0
      %v2962 = vsel %vm370, %v2934, 0
      %2964 = vmatprep.subr.bf16.mxu0 0
      %2965 = vmatpush1.bf16.msra.mxu0 0
      %2966 = vmatprep.subr.bf16.mxu0 0
      %2967 = vmatpush1.bf16.msra.mxu0 0
      %2968 = vmatprep.subr.bf16.mxu0 0
      %2969 = vmatpush1.bf16.msra.mxu0 0
      %2970 = vmatprep.subr.bf16.mxu0 0
      %2971 = vmatpush1.bf16.msra.mxu0 0
      %2972 = vmatprep.subr.bf16.mxu0 0
      %2973 = vmatpush1.bf16.msra.mxu0 0
      %2974 = vmatprep.subr.bf16.mxu0 0
      %2975 = vmatpush1.bf16.msra.mxu0 0
      %2976 = vmatprep.subr.bf16.mxu0 0
      %2977 = vmatpush1.bf16.msra.mxu0 %v2955
      %2978 = vmatprep.subr.bf16.mxu0 0
      %2979 = vmatpush1.bf16.msra.mxu0 %v2954
      %2980 = vmatprep.subr.bf16.mxu0 0
      %2981 = vmatpush2.bf16.msra.mxu0 0
      %2982 = vmatprep.subr.bf16.mxu0 0
      %2983 = vmatpush2.bf16.msra.mxu0 0
      %2984 = vmatprep.subr.bf16.mxu0 0
      %2985 = vmatpush2.bf16.msra.mxu0 0
      %2986 = vmatprep.subr.bf16.mxu0 0
      %2987 = vmatpush2.bf16.msra.mxu0 0
      %2988 = vmatprep.subr.bf16.mxu0 0
      %2989 = vmatpush2.bf16.msra.mxu0 0
      %2990 = vmatprep.subr.bf16.mxu0 0
      %2991 = vmatpush2.bf16.msra.mxu0 0
      %2992 = vmatprep.subr.bf16.mxu0 0
      %2993 = vmatpush2.bf16.msra.mxu0 0
      %2994 = vmatprep.subr.bf16.mxu0 0
      %2995 = vmatpush2.bf16.msra.mxu0 0
      %2996 = vmatprep.mubr.bf16.mxu0 0
      %2997 = vmatmul.mubr.bf16.gmra.mxu0 %v2959
      %v2998 = vpop.f32.mrf.mxu0
      %v2999 = vadd.f32 %v2944, %v2998
      %v3000 = vpop.f32.mrf.mxu0
      %v3001 = vpop.f32.mrf.mxu0
      %v3002 = vadd.f32 %v2944, %v3001
      %v3003 = vpop.f32.mrf.mxu0
      %3004 = vmatprep.mubr.bf16.mxu0 0
      %3005 = vmatmul.mubr.bf16.gmra.mxu0 %v2962
      %v3006 = vpop.f32.mrf.mxu0
      %v3007 = vadd.f32 %v2944, %v3006
      %v3008 = vpop.f32.mrf.mxu0
      %v3009 = vpop.f32.mrf.mxu0
      %v3010 = vadd.f32 %v2944, %v3009
      %v3011 = vpop.f32.mrf.mxu0
      %3012 = vdwg.mxu0
      %v3013 = vmax.f32 %v2999, 0.0
      %v3014 = vmax.f32 %v3002, 0.0
      %v3015 = vmax.f32 %v3007, 0.0
      %v3016 = vmax.f32 %v3010, 0.0
      %v3017 = vpack.c.bf16 %v3014, %v3013
      %v3018 = vpack.c.bf16 %v3016, %v3015
      %v3019 = vld [vmem:[%s8] sm:$0xf]
      %v3020 = vld [vmem:[%s8 + $0x4] sm:$0xf]
      %v3021 = vld [vmem:[%s8 + $0x8] sm:$0xf]
      %v3022 = vld [vmem:[%s8 + $0xc] sm:$0xf]
      %v3023 = vld [vmem:[%s8 + $0x10] sm:$0xf]
      %v3024 = vld [vmem:[%s8 + $0x14] sm:$0xf]
      %v3025 = vld [vmem:[%s8 + $0x18] sm:$0xf]
      %v3026 = vld [vmem:[%s8 + $0x1c] sm:$0xf]
      %v3027 = vld [vmem:[%s8 + $0x20] sm:$0xf]
      %v3028 = vld [vmem:[%s8 + $0x24] sm:$0xf]
      %v3029 = vld [vmem:[%s8 + $0x28] sm:$0xf]
      %v3030 = vld [vmem:[%s8 + $0x2c] sm:$0xf]
      %v3031 = vld [vmem:[%s8 + $0x30] sm:$0xf]
      %v3032 = vld [vmem:[%s8 + $0x34] sm:$0xf]
      %v3033 = vld [vmem:[%s8 + $0x38] sm:$0xf]
      %v3034 = vld [vmem:[%s8 + $0x3c] sm:$0xf]
      %v3035 = vld [vmem:[%s9] sm:$0x1]
      %v3037 = vlaneseq
      %v3038 = vshrl.u32 %v3037, 7
      %v3039 = vsub.s32 0, %v3038
      %v3040 = vrot.slane %v3035, %v3039
      %v3058 = vunpack.c.l.b16 %v3019
      %v3059 = vunpack.c.l.b16 %v3020
      %v3060 = vunpack.c.l.b16 %v3021
      %v3061 = vunpack.c.l.b16 %v3022
      %v3062 = vunpack.c.l.b16 %v3023
      %v3063 = vunpack.c.l.b16 %v3024
      %v3064 = vunpack.c.l.b16 %v3025
      %v3065 = vunpack.c.l.b16 %v3026
      %v3066 = vunpack.c.l.b16 %v3027
      %v3067 = vunpack.c.l.b16 %v3028
      %v3068 = vunpack.c.l.b16 %v3029
      %v3069 = vunpack.c.l.b16 %v3030
      %v3070 = vunpack.c.l.b16 %v3031
      %v3071 = vunpack.c.l.b16 %v3032
      %v3072 = vunpack.c.l.b16 %v3033
      %v3073 = vunpack.c.l.b16 %v3034
      %v3074 = vpack.c.b16 %v3059, %v3058
      %v3075 = vpack.c.b16 %v3061, %v3060
      %v3076 = vpack.c.b16 %v3063, %v3062
      %v3077 = vpack.c.b16 %v3065, %v3064
      %v3078 = vpack.c.b16 %v3067, %v3066
      %v3079 = vpack.c.b16 %v3069, %v3068
      %v3080 = vpack.c.b16 %v3071, %v3070
      %v3081 = vpack.c.b16 %v3073, %v3072
      %3090 = vmatprep.subr.bf16.mxu0 0
      %3091 = vmatpush1.bf16.msra.mxu0 %v3081
      %3092 = vmatprep.subr.bf16.mxu0 0
      %3093 = vmatpush1.bf16.msra.mxu0 %v3080
      %3094 = vmatprep.subr.bf16.mxu0 0
      %3095 = vmatpush1.bf16.msra.mxu0 %v3079
      %3096 = vmatprep.subr.bf16.mxu0 0
      %3097 = vmatpush1.bf16.msra.mxu0 %v3078
      %3098 = vmatprep.subr.bf16.mxu0 0
      %3099 = vmatpush1.bf16.msra.mxu0 %v3077
      %3100 = vmatprep.subr.bf16.mxu0 0
      %3101 = vmatpush1.bf16.msra.mxu0 %v3076
      %3102 = vmatprep.subr.bf16.mxu0 0
      %3103 = vmatpush1.bf16.msra.mxu0 %v3075
      %3104 = vmatprep.subr.bf16.mxu0 0
      %3105 = vmatpush1.bf16.msra.mxu0 %v3074
      %3106 = vmatprep.subr.bf16.mxu0 0
      %3107 = vmatpush2.bf16.msra.mxu0 0
      %3108 = vmatprep.subr.bf16.mxu0 0
      %3109 = vmatpush2.bf16.msra.mxu0 0
      %3110 = vmatprep.subr.bf16.mxu0 0
      %3111 = vmatpush2.bf16.msra.mxu0 0
      %3112 = vmatprep.subr.bf16.mxu0 0
      %3113 = vmatpush2.bf16.msra.mxu0 0
      %3114 = vmatprep.subr.bf16.mxu0 0
      %3115 = vmatpush2.bf16.msra.mxu0 0
      %3116 = vmatprep.subr.bf16.mxu0 0
      %3117 = vmatpush2.bf16.msra.mxu0 0
      %3118 = vmatprep.subr.bf16.mxu0 0
      %3119 = vmatpush2.bf16.msra.mxu0 0
      %3120 = vmatprep.subr.bf16.mxu0 0
      %3121 = vmatpush2.bf16.msra.mxu0 0
      %3122 = vmatprep.mubr.bf16.mxu0 0
      %3123 = vmatmul.mubr.bf16.gmra.mxu0 %v3017
      %v3124 = vpop.f32.mrf.mxu0
      %v3125 = vadd.f32 %v3040, %v3124
      %v3126 = vpop.f32.mrf.mxu0
      %v3127 = vpop.f32.mrf.mxu0
      %v3128 = vadd.f32 %v3040, %v3127
      %v3129 = vpop.f32.mrf.mxu0
      %3130 = vmatprep.mubr.bf16.mxu0 0
      %3131 = vmatmul.mubr.bf16.gmra.mxu0 %v3018
      %v3132 = vpop.f32.mrf.mxu0
      %v3133 = vadd.f32 %v3040, %v3132
      %v3134 = vpop.f32.mrf.mxu0
      %v3135 = vpop.f32.mrf.mxu0
      %v3136 = vadd.f32 %v3040, %v3135
      %v3137 = vpop.f32.mrf.mxu0
      %3138 = vdwg.mxu0
      %v3139 = vadd.f32 %v2855, %v3125
      %v3140 = vadd.f32 %v2856, %v3128
      %v3141 = vadd.f32 %v2857, %v3133
      %v3142 = vadd.f32 %v2858, %v3136
      %3143 = vst.msk [vmem:[%s361] sm:$0xff] %vm370, %v3139
      %3144 = vst.msk [vmem:[%s361 + $0x8] sm:$0xff] %vm370, %v3140
      %3145 = vst.msk [vmem:[%s361 + $0x10] sm:$0xff] %vm370, %v3141
      %3146 = vst.msk [vmem:[%s361 + $0x18] sm:$0xff] %vm370, %v3142
      %s3147 = smul.u32 4, %s21
      %p3148 = scmp.lt.s32.totalorder %s3147, 7
      %s3149 = scalar_select %p3148, %s3147, 7
      %s3150 = smul.addr %s3149, 8
      %s3151 = scalar_lea.vmem %s10, %s3150
      // Predicated region
      $region61: #{tpu_custom_call.1} parent=59 // pred_check
        %p3152 = pneg %p254
      $region62: #{tpu_custom_call.1} parent=59 // pred_check_branch
        %3154 = sbr.rel (%p3152) target = $region64
      $region63: #{tpu_custom_call.1} parent=59 // pred_region
        %s3155 = smul.u32 4, %s21
      $region64: #{tpu_custom_call.1} parent=59 // pred_fallthru
        _
    $region60: #{tpu_custom_call.1} parent=5 // pred_fallthru
      _
    %p3156 = scmp.le.s32.totalorder 2, %s16
    // Predicated region
    $region65: #{tpu_custom_call.1} parent=5 // pred_check
      %p3157 = pneg %p3156
    $region66: #{tpu_custom_call.1} parent=5 // pred_check_branch
      %3159 = sbr.rel (%p3157) target = $region68
    $region67: #{tpu_custom_call.1} parent=5 // pred_region
      %s3160 = ssub.s32 %s16, 2
      // Predicated region
      $region69: #{tpu_custom_call.1} parent=67 // pred_check
        %p3161 = pneg %p260
      $region70: #{tpu_custom_call.1} parent=67 // pred_check_branch
        %3163 = sbr.rel (%p3161) target = $region72
      $region71: #{tpu_custom_call.1} parent=67 // pred_region
        %s3164 = smul.u32 4, %s22
        %p3165 = scmp.lt.s32.totalorder %s3164, 7
        %s3166 = scalar_select %p3165, %s3164, 7
        %s3167 = smul.addr %s3166, 8
        %s3168 = scalar_lea.vmem %s10, %s3167
      $region72: #{tpu_custom_call.1} parent=67 // pred_fallthru
        _
    $region68: #{tpu_custom_call.1} parent=5 // pred_fallthru
      _
  $region6: #{tpu_custom_call.1} parent=0 // loop_footer
    %s20 = sadd.s32 1, %s16
  $region7: #{tpu_custom_call.1} parent=0 // loop_footer_branch
    %15 = sbr.rel target = $region3
  $region8: #{tpu_custom_call.1} parent=0 // loop_exit
    _

</llo_original>
